<compile_context>
chip_gen: v7x
topology: tpu7x:2x2x1
jax: 0.10.0
libtpu: 0.0.40
codegen_flags: <defaults>
</compile_context>

<pallas_src>
import functools

import jax
import jax.numpy as jnp
import numpy as np
from jax import lax
from jax.experimental import pallas as pl
from jax.experimental.pallas import tpu as pltpu

_HIGHEST = lax.Precision.HIGHEST


# ----------------------------------------------------------------------------
# Fused encoder kernel (one batch tile per grid step)
# ----------------------------------------------------------------------------
def _encoder_kernel(x_ref, wt1_ref, bc1_ref, wt2_ref, bc2_ref, wt3_ref, bc3_ref,
                    wf1_ref, bf1_ref, wh_ref, bh_ref, o_ref, *, k, stride):
    """Whole EncoderNet forward for one batch tile.

    Layout conventions (chosen so nothing needs a strided or scattered ref
    access — only contiguous slices, concats and matmuls):
      * x_ref:            (H, bt, W*Cin)   spatial-row major, batch next
      * conv activations: 2-D (Hout*bt, Wout*Cout), row index = h*bt + b
      * conv weights:     host-packed W-direction block-Toeplitz
                          (k*Win*Cin, Wout*Cout) — one matmul per layer band
                          yields every output column of that row at once.
    """
    bt = x_ref.shape[1]

    def conv_relu(get_row, h_in, wt_ref, b_ref):
        # get_row(r) -> (bt, Win*Cin) value for input spatial row r.
        h_out = (h_in - k) // stride + 1
        rows = []
        for i in range(h_out):
            band = [get_row(stride * i + ki) for ki in range(k)]   # k x (bt, Win*Cin)
            rows.append(jnp.concatenate(band, axis=-1))            # (bt, k*Win*Cin)
        p = jnp.concatenate(rows, axis=0)                          # (h_out*bt, k*Win*Cin)
        y = jnp.dot(p, wt_ref[...], preferred_element_type=jnp.float32,
                    precision=_HIGHEST)
        return jnp.maximum(y + b_ref[...], 0.0), h_out             # (h_out*bt, Wout*Cout)

    x = x_ref[...]                                                 # (H, bt, W*Cin)
    a1, h1 = conv_relu(lambda r: x[r], x_ref.shape[0], wt1_ref, bc1_ref)
    a2, h2 = conv_relu(lambda r: a1[r * bt:(r + 1) * bt, :], h1, wt2_ref, bc2_ref)
    a3, h3 = conv_relu(lambda r: a2[r * bt:(r + 1) * bt, :], h2, wt3_ref, bc3_ref)

    # fc1 input: rows back to plain batch order, columns in (h, w, c) order
    # (the host-side fc1 row permutation matches torch's (c, h, w) flatten).
    e_in = jnp.concatenate([a3[h * bt:(h + 1) * bt, :] for h in range(h3)],
                           axis=-1)                                # (bt, H3*W3*C2)
    e = jnp.dot(e_in, wf1_ref[...], preferred_element_type=jnp.float32,
                precision=_HIGHEST)
    e = jnp.maximum(e + bf1_ref[...], 0.0)                         # (bt, F)

    # Fused, lane-dense head: [mu | logvar | zero pad to 128 lanes].
    out = jnp.dot(e, wh_ref[...], preferred_element_type=jnp.float32,
                  precision=_HIGHEST) + bh_ref[...]
    o_ref[...] = out.astype(o_ref.dtype)


# ----------------------------------------------------------------------------
# Wrapper
# ----------------------------------------------------------------------------
def _conv_out(n, k, s):
    return (n - k) // s + 1


@functools.partial(jax.jit, static_argnames=("kernel_size", "stride",
                                             "batch_tile", "latent_size"))
def encoder_forward(packed, x, *, kernel_size=3, stride=2, batch_tile=8,
                    latent_size=16):
    """x: (B, Cin, H, W) NCHW f32 -> (mu, logvar), each (B, latent_size)."""
    k, s = kernel_size, stride
    B, Cin, H, W = x.shape
    bt = batch_tile if (batch_tile <= B and B % batch_tile == 0) else B

    # Single tiny relayout of the raw input: (B,Cin,H,W) -> (H, B, W*Cin).
    x_rows = jnp.transpose(x, (2, 0, 3, 1)).reshape(H, B, W * Cin)

    args = (x_rows, packed["wt1"], packed["bc1"], packed["wt2"], packed["bc2"],
            packed["wt3"], packed["bc3"], packed["wf1"], packed["bf1"],
            packed["wh"], packed["bh"])
    head = packed["wh"].shape[1]                      # 128 (lane-dense head)

    def w_spec(a):
        return pl.BlockSpec(a.shape, lambda i: (0, 0))

    in_specs = [pl.BlockSpec((H, bt, W * Cin), lambda i: (0, i, 0))]
    in_specs += [w_spec(a) for a in args[1:]]
    out_spec = pl.BlockSpec((bt, head), lambda i: (i, 0))

    # Advisory cost estimate from the actual Toeplitz matmul shapes.
    H1, W1 = _conv_out(H, k, s), _conv_out(W, k, s)
    H2 = _conv_out(H1, k, s)
    H3 = _conv_out(H2, k, s)
    flops = 2 * B * (H1 * packed["wt1"].shape[0] * packed["wt1"].shape[1]
                     + H2 * packed["wt2"].shape[0] * packed["wt2"].shape[1]
                     + H3 * packed["wt3"].shape[0] * packed["wt3"].shape[1]
                     + packed["wf1"].shape[0] * packed["wf1"].shape[1]
                     + packed["wh"].shape[0] * packed["wh"].shape[1])
    bytes_accessed = 4 * (sum(int(a.size) for a in args) + B * head)

    out = pl.pallas_call(
        functools.partial(_encoder_kernel, k=k, stride=s),
        out_shape=jax.ShapeDtypeStruct((B, head), jnp.float32),
        grid=(B // bt,),
        in_specs=in_specs,
        out_specs=out_spec,
        compiler_params=pltpu.CompilerParams(
            dimension_semantics=("parallel",),      # v7x: shard batch tiles
            vmem_limit_bytes=32 * 1024 * 1024),     # safe on v5e/v6e/v7x
        cost_estimate=pl.CostEstimate(flops=flops, transcendentals=0,
                                      bytes_accessed=bytes_accessed),
    )(*args)

    return out[:, :latent_size], out[:, latent_size:2 * latent_size]


# ----------------------------------------------------------------------------
# Parameters (PyTorch layout) + one-time packing into the kernel layout
# ----------------------------------------------------------------------------
def init_encoder_params(key, *, width=16, height=16, input_channels=4,
                        conv_size1=32, conv_size2=64, kernel_size=3,
                        full_connected_size=256, latent_size=16):
    """Parameters in the PyTorch module's layout (conv: OIHW, fc: (in, out))."""
    red_w, red_h = width, height
    for _ in range(3):
        red_w = (red_w - 1) // 2
        red_h = (red_h - 1) // 2

    ks = jax.random.split(key, 12)
    scale = 0.05

    def w(k_, shape):
        return scale * jax.random.normal(k_, shape, dtype=jnp.float32)

    return {
        "conv1_w": w(ks[0], (conv_size1, input_channels, kernel_size, kernel_size)),
        "conv1_b": w(ks[1], (conv_size1,)),
        "conv2_w": w(ks[2], (conv_size2, conv_size1, kernel_size, kernel_size)),
        "conv2_b": w(ks[3], (conv_size2,)),
        "conv3_w": w(ks[4], (conv_size2, conv_size2, kernel_size, kernel_size)),
        "conv3_b": w(ks[5], (conv_size2,)),
        "fc1_w": w(ks[6], (conv_size2 * red_w * red_h, full_connected_size)),
        "fc1_b": w(ks[7], (full_connected_size,)),
        "fc21_w": w(ks[8], (full_connected_size, latent_size)),
        "fc21_b": w(ks[9], (latent_size,)),
        "fc22_w": w(ks[10], (full_connected_size, latent_size)),
        "fc22_b": w(ks[11], (latent_size,)),
    }


def _toeplitz_conv_weight(w_oihw, w_in, w_out, stride):
    """(Cout,Cin,k,k) OIHW -> W-direction block-Toeplitz (k*w_in*Cin, w_out*Cout).

    Entry [(ki*w_in + w)*Cin + ci, wo*Cout + co] = W[co, ci, ki, w - stride*wo]
    when 0 <= w - stride*wo < k, else 0 — so `patch_row @ Wt` evaluates every
    output column of a conv output row in one matmul (no strided gather).
    """
    w_np = np.asarray(w_oihw, dtype=np.float32)
    cout, cin, kh, kw = w_np.shape
    wt = np.zeros((kh * w_in * cin, w_out * cout), dtype=np.float32)
    for ki in range(kh):
        for wo in range(w_out):
            for kj in range(kw):
                col = stride * wo + kj
                r0 = (ki * w_in + col) * cin
                wt[r0:r0 + cin, wo * cout:(wo + 1) * cout] = w_np[:, :, ki, kj].T
    return jnp.asarray(wt)


def _tiled_bias(b, w_out):
    return jnp.asarray(np.tile(np.asarray(b, dtype=np.float32), w_out)[None, :])


def pack_encoder_params(params, *, height, width, kernel_size=3, stride=2,
                        head_lanes=128):
    """One-time (outside jit) repack of weights into the fused kernel's layout."""
    k, s = kernel_size, stride
    H1, W1 = _conv_out(height, k, s), _conv_out(width, k, s)
    H2, W2 = _conv_out(H1, k, s), _conv_out(W1, k, s)
    H3, W3 = _conv_out(H2, k, s), _conv_out(W2, k, s)

    c2 = params["conv3_w"].shape[0]
    fdim = params["fc1_w"].shape[1]

    # torch flattens conv3 output as (C,H,W); the kernel consumes (H,W,C)
    # (identity when the reduced spatial size is 1x1, as for 16x16 inputs).
    fc1_w = np.asarray(params["fc1_w"], dtype=np.float32)
    fc1_w = fc1_w.reshape(c2, H3, W3, fdim).transpose(1, 2, 0, 3)
    fc1_w = fc1_w.reshape(H3 * W3 * c2, fdim)

    # Fused head, zero-padded to 128 output lanes for a lane-dense store.
    wh = np.concatenate([np.asarray(params["fc21_w"], dtype=np.float32),
                         np.asarray(params["fc22_w"], dtype=np.float32)], axis=1)
    bh = np.concatenate([np.asarray(params["fc21_b"], dtype=np.float32),
                         np.asarray(params["fc22_b"], dtype=np.float32)])
    pad = max(0, head_lanes - wh.shape[1])
    wh = np.pad(wh, ((0, 0), (0, pad)))
    bh = np.pad(bh, (0, pad))

    return {
        "wt1": _toeplitz_conv_weight(params["conv1_w"], width, W1, s),
        "bc1": _tiled_bias(params["conv1_b"], W1),
        "wt2": _toeplitz_conv_weight(params["conv2_w"], W1, W2, s),
        "bc2": _tiled_bias(params["conv2_b"], W2),
        "wt3": _toeplitz_conv_weight(params["conv3_w"], W2, W3, s),
        "bc3": _tiled_bias(params["conv3_b"], W3),
        "wf1": jnp.asarray(fc1_w),
        "bf1": jnp.asarray(np.asarray(params["fc1_b"], dtype=np.float32)[None, :]),
        "wh": jnp.asarray(wh),
        "bh": jnp.asarray(bh[None, :]),
    }


# ----------------------------------------------------------------------------
# Pure-JAX reference (mirrors the PyTorch module) for the correctness check
# ----------------------------------------------------------------------------
def encoder_forward_reference(params, x, *, stride=2):
    def conv_relu(h, w, b):
        y = lax.conv_general_dilated(
            h, w, window_strides=(stride, stride), padding="VALID",
            dimension_numbers=("NCHW", "OIHW", "NCHW"), precision=_HIGHEST)
        return jax.nn.relu(y + b[None, :, None, None])

    cx = conv_relu(x, params["conv1_w"], params["conv1_b"])
    cx = conv_relu(cx, params["conv2_w"], params["conv2_b"])
    cx = conv_relu(cx, params["conv3_w"], params["conv3_b"])
    f_cx = cx.reshape(cx.shape[0], -1)            # torch: (C, H, W) flatten order
    e = jax.nn.relu(jnp.dot(f_cx, params["fc1_w"], precision=_HIGHEST)
                    + params["fc1_b"])
    mu = jnp.dot(e, params["fc21_w"], precision=_HIGHEST) + params["fc21_b"]
    logvar = jnp.dot(e, params["fc22_w"], precision=_HIGHEST) + params["fc22_b"]
    return mu, logvar


if __name__ == "__main__":
    # width = height = 16 -> reduced spatial size 1x1 (as in the module's loop)
    B, C, H, W = 2, 4, 16, 16
    key = jax.random.PRNGKey(0)
    k_x, k_p = jax.random.split(key)
    x = jax.random.normal(k_x, (B, C, H, W), dtype=jnp.float32)

    params = init_encoder_params(k_p, width=W, height=H)
    packed = pack_encoder_params(params, height=H, width=W)

    mu, logvar = encoder_forward(packed, x)
    jax.block_until_ready((mu, logvar))

    mu_ref, logvar_ref = encoder_forward_reference(params, x)
    np.testing.assert_allclose(np.asarray(mu), np.asarray(mu_ref),
                               rtol=1e-5, atol=1e-5)
    np.testing.assert_allclose(np.asarray(logvar), np.asarray(logvar_ref),
                               rtol=1e-5, atol=1e-5)
    assert mu.shape == (B, 16) and logvar.shape == (B, 16)
    print("KERNEL_OK")
</pallas_src>

<mosaic_0001>
module attributes {stable_mosaic.version = 11 : i64} {
  func.func @_encoder_kernel(%arg0: i32, %arg1: memref<16x2x64xf32, #tpu.memory_space<vmem>>, %arg2: memref<192x224xf32, #tpu.memory_space<vmem>>, %arg3: memref<1x224xf32, #tpu.memory_space<vmem>>, %arg4: memref<672x192xf32, #tpu.memory_space<vmem>>, %arg5: memref<1x192xf32, #tpu.memory_space<vmem>>, %arg6: memref<576x64xf32, #tpu.memory_space<vmem>>, %arg7: memref<1x64xf32, #tpu.memory_space<vmem>>, %arg8: memref<64x256xf32, #tpu.memory_space<vmem>>, %arg9: memref<1x256xf32, #tpu.memory_space<vmem>>, %arg10: memref<256x128xf32, #tpu.memory_space<vmem>>, %arg11: memref<1x128xf32, #tpu.memory_space<vmem>>, %arg12: memref<2x128xf32, #tpu.memory_space<vmem>>) attributes {dimension_semantics = [#tpu.dimension_semantics<parallel>], iteration_bounds = array<i64: 1>, scalar_prefetch = 0 : i64, scratch_operands = 0 : i64, tpu.core_type = #tpu.core_type<tc>, window_params = [{transform_indices = @transform_0, window_bounds = array<i64: 16, 2, 64>}, {pipeline_mode = #tpu.pipeline_mode<synchronous>, transform_indices = @transform_1, window_bounds = array<i64: 192, 224>}, {pipeline_mode = #tpu.pipeline_mode<synchronous>, transform_indices = @transform_2, window_bounds = array<i64: 1, 224>}, {pipeline_mode = #tpu.pipeline_mode<synchronous>, transform_indices = @transform_3, window_bounds = array<i64: 672, 192>}, {pipeline_mode = #tpu.pipeline_mode<synchronous>, transform_indices = @transform_4, window_bounds = array<i64: 1, 192>}, {pipeline_mode = #tpu.pipeline_mode<synchronous>, transform_indices = @transform_5, window_bounds = array<i64: 576, 64>}, {pipeline_mode = #tpu.pipeline_mode<synchronous>, transform_indices = @transform_6, window_bounds = array<i64: 1, 64>}, {pipeline_mode = #tpu.pipeline_mode<synchronous>, transform_indices = @transform_7, window_bounds = array<i64: 64, 256>}, {pipeline_mode = #tpu.pipeline_mode<synchronous>, transform_indices = @transform_8, window_bounds = array<i64: 1, 256>}, {pipeline_mode = #tpu.pipeline_mode<synchronous>, transform_indices = @transform_9, window_bounds = array<i64: 256, 128>}, {pipeline_mode = #tpu.pipeline_mode<synchronous>, transform_indices = @transform_10, window_bounds = array<i64: 1, 128>}, {transform_indices = @transform_11, window_bounds = array<i64: 2, 128>}]} {
    %c0 = arith.constant 0 : index
    %c0_0 = arith.constant 0 : index
    %c0_1 = arith.constant 0 : index
    %0 = vector.load %arg1[%c0, %c0_0, %c0_1] : memref<16x2x64xf32, #tpu.memory_space<vmem>>, vector<16x2x64xf32>
    %1 = vector.extract_strided_slice %0 {offsets = [0, 0, 0], sizes = [1, 2, 64], strides = [1, 1, 1]} : vector<16x2x64xf32> to vector<1x2x64xf32>
    %2 = vector.shape_cast %1 : vector<1x2x64xf32> to vector<2x64xf32>
    %3 = vector.extract_strided_slice %0 {offsets = [1, 0, 0], sizes = [1, 2, 64], strides = [1, 1, 1]} : vector<16x2x64xf32> to vector<1x2x64xf32>
    %4 = vector.shape_cast %3 : vector<1x2x64xf32> to vector<2x64xf32>
    %5 = vector.extract_strided_slice %0 {offsets = [2, 0, 0], sizes = [1, 2, 64], strides = [1, 1, 1]} : vector<16x2x64xf32> to vector<1x2x64xf32>
    %6 = vector.shape_cast %5 : vector<1x2x64xf32> to vector<2x64xf32>
    %7 = tpu.concatenate %2, %4, %6 in 1 : vector<2x64xf32>, vector<2x64xf32>, vector<2x64xf32> -> vector<2x192xf32>
    %8 = vector.extract_strided_slice %0 {offsets = [2, 0, 0], sizes = [1, 2, 64], strides = [1, 1, 1]} : vector<16x2x64xf32> to vector<1x2x64xf32>
    %9 = vector.shape_cast %8 : vector<1x2x64xf32> to vector<2x64xf32>
    %10 = vector.extract_strided_slice %0 {offsets = [3, 0, 0], sizes = [1, 2, 64], strides = [1, 1, 1]} : vector<16x2x64xf32> to vector<1x2x64xf32>
    %11 = vector.shape_cast %10 : vector<1x2x64xf32> to vector<2x64xf32>
    %12 = vector.extract_strided_slice %0 {offsets = [4, 0, 0], sizes = [1, 2, 64], strides = [1, 1, 1]} : vector<16x2x64xf32> to vector<1x2x64xf32>
    %13 = vector.shape_cast %12 : vector<1x2x64xf32> to vector<2x64xf32>
    %14 = tpu.concatenate %9, %11, %13 in 1 : vector<2x64xf32>, vector<2x64xf32>, vector<2x64xf32> -> vector<2x192xf32>
    %15 = vector.extract_strided_slice %0 {offsets = [4, 0, 0], sizes = [1, 2, 64], strides = [1, 1, 1]} : vector<16x2x64xf32> to vector<1x2x64xf32>
    %16 = vector.shape_cast %15 : vector<1x2x64xf32> to vector<2x64xf32>
    %17 = vector.extract_strided_slice %0 {offsets = [5, 0, 0], sizes = [1, 2, 64], strides = [1, 1, 1]} : vector<16x2x64xf32> to vector<1x2x64xf32>
    %18 = vector.shape_cast %17 : vector<1x2x64xf32> to vector<2x64xf32>
    %19 = vector.extract_strided_slice %0 {offsets = [6, 0, 0], sizes = [1, 2, 64], strides = [1, 1, 1]} : vector<16x2x64xf32> to vector<1x2x64xf32>
    %20 = vector.shape_cast %19 : vector<1x2x64xf32> to vector<2x64xf32>
    %21 = tpu.concatenate %16, %18, %20 in 1 : vector<2x64xf32>, vector<2x64xf32>, vector<2x64xf32> -> vector<2x192xf32>
    %22 = vector.extract_strided_slice %0 {offsets = [6, 0, 0], sizes = [1, 2, 64], strides = [1, 1, 1]} : vector<16x2x64xf32> to vector<1x2x64xf32>
    %23 = vector.shape_cast %22 : vector<1x2x64xf32> to vector<2x64xf32>
    %24 = vector.extract_strided_slice %0 {offsets = [7, 0, 0], sizes = [1, 2, 64], strides = [1, 1, 1]} : vector<16x2x64xf32> to vector<1x2x64xf32>
    %25 = vector.shape_cast %24 : vector<1x2x64xf32> to vector<2x64xf32>
    %26 = vector.extract_strided_slice %0 {offsets = [8, 0, 0], sizes = [1, 2, 64], strides = [1, 1, 1]} : vector<16x2x64xf32> to vector<1x2x64xf32>
    %27 = vector.shape_cast %26 : vector<1x2x64xf32> to vector<2x64xf32>
    %28 = tpu.concatenate %23, %25, %27 in 1 : vector<2x64xf32>, vector<2x64xf32>, vector<2x64xf32> -> vector<2x192xf32>
    %29 = vector.extract_strided_slice %0 {offsets = [8, 0, 0], sizes = [1, 2, 64], strides = [1, 1, 1]} : vector<16x2x64xf32> to vector<1x2x64xf32>
    %30 = vector.shape_cast %29 : vector<1x2x64xf32> to vector<2x64xf32>
    %31 = vector.extract_strided_slice %0 {offsets = [9, 0, 0], sizes = [1, 2, 64], strides = [1, 1, 1]} : vector<16x2x64xf32> to vector<1x2x64xf32>
    %32 = vector.shape_cast %31 : vector<1x2x64xf32> to vector<2x64xf32>
    %33 = vector.extract_strided_slice %0 {offsets = [10, 0, 0], sizes = [1, 2, 64], strides = [1, 1, 1]} : vector<16x2x64xf32> to vector<1x2x64xf32>
    %34 = vector.shape_cast %33 : vector<1x2x64xf32> to vector<2x64xf32>
    %35 = tpu.concatenate %30, %32, %34 in 1 : vector<2x64xf32>, vector<2x64xf32>, vector<2x64xf32> -> vector<2x192xf32>
    %36 = vector.extract_strided_slice %0 {offsets = [10, 0, 0], sizes = [1, 2, 64], strides = [1, 1, 1]} : vector<16x2x64xf32> to vector<1x2x64xf32>
    %37 = vector.shape_cast %36 : vector<1x2x64xf32> to vector<2x64xf32>
    %38 = vector.extract_strided_slice %0 {offsets = [11, 0, 0], sizes = [1, 2, 64], strides = [1, 1, 1]} : vector<16x2x64xf32> to vector<1x2x64xf32>
    %39 = vector.shape_cast %38 : vector<1x2x64xf32> to vector<2x64xf32>
    %40 = vector.extract_strided_slice %0 {offsets = [12, 0, 0], sizes = [1, 2, 64], strides = [1, 1, 1]} : vector<16x2x64xf32> to vector<1x2x64xf32>
    %41 = vector.shape_cast %40 : vector<1x2x64xf32> to vector<2x64xf32>
    %42 = tpu.concatenate %37, %39, %41 in 1 : vector<2x64xf32>, vector<2x64xf32>, vector<2x64xf32> -> vector<2x192xf32>
    %43 = vector.extract_strided_slice %0 {offsets = [12, 0, 0], sizes = [1, 2, 64], strides = [1, 1, 1]} : vector<16x2x64xf32> to vector<1x2x64xf32>
    %44 = vector.shape_cast %43 : vector<1x2x64xf32> to vector<2x64xf32>
    %45 = vector.extract_strided_slice %0 {offsets = [13, 0, 0], sizes = [1, 2, 64], strides = [1, 1, 1]} : vector<16x2x64xf32> to vector<1x2x64xf32>
    %46 = vector.shape_cast %45 : vector<1x2x64xf32> to vector<2x64xf32>
    %47 = vector.extract_strided_slice %0 {offsets = [14, 0, 0], sizes = [1, 2, 64], strides = [1, 1, 1]} : vector<16x2x64xf32> to vector<1x2x64xf32>
    %48 = vector.shape_cast %47 : vector<1x2x64xf32> to vector<2x64xf32>
    %49 = tpu.concatenate %44, %46, %48 in 1 : vector<2x64xf32>, vector<2x64xf32>, vector<2x64xf32> -> vector<2x192xf32>
    %50 = tpu.concatenate %7, %14, %21, %28, %35, %42, %49 in 0 : vector<2x192xf32>, vector<2x192xf32>, vector<2x192xf32>, vector<2x192xf32>, vector<2x192xf32>, vector<2x192xf32>, vector<2x192xf32> -> vector<14x192xf32>
    %c0_2 = arith.constant 0 : index
    %c0_3 = arith.constant 0 : index
    %51 = vector.load %arg2[%c0_2, %c0_3] : memref<192x224xf32, #tpu.memory_space<vmem>>, vector<192x224xf32>
    %cst = arith.constant dense<0.000000e+00> : vector<14x224xf32>
    %52 = tpu.matmul %50, %51, %cst {dimension_numbers = #tpu.dot_dimension_numbers<[1], [0], [0], [1], [0, 0, 1, 1], [], []>, precision = #tpu.contract_precision<fp32>} : vector<14x192xf32>, vector<192x224xf32>, vector<14x224xf32> -> vector<14x224xf32>
    %c0_4 = arith.constant 0 : index
    %c0_5 = arith.constant 0 : index
    %53 = vector.load %arg3[%c0_4, %c0_5] : memref<1x224xf32, #tpu.memory_space<vmem>>, vector<1x224xf32>
    %54 = vector.broadcast %53 : vector<1x224xf32> to vector<14x224xf32>
    %55 = arith.addf %52, %54 : vector<14x224xf32>
    %cst_6 = arith.constant 0.000000e+00 : f32
    %56 = vector.broadcast %cst_6 : f32 to vector<14x224xf32>
    %57 = arith.maximumf %55, %56 : vector<14x224xf32>
    %58 = vector.extract_strided_slice %57 {offsets = [0, 0], sizes = [2, 224], strides = [1, 1]} : vector<14x224xf32> to vector<2x224xf32>
    %59 = vector.extract_strided_slice %57 {offsets = [2, 0], sizes = [2, 224], strides = [1, 1]} : vector<14x224xf32> to vector<2x224xf32>
    %60 = vector.extract_strided_slice %57 {offsets = [4, 0], sizes = [2, 224], strides = [1, 1]} : vector<14x224xf32> to vector<2x224xf32>
    %61 = tpu.concatenate %58, %59, %60 in 1 : vector<2x224xf32>, vector<2x224xf32>, vector<2x224xf32> -> vector<2x672xf32>
    %62 = vector.extract_strided_slice %57 {offsets = [4, 0], sizes = [2, 224], strides = [1, 1]} : vector<14x224xf32> to vector<2x224xf32>
    %63 = vector.extract_strided_slice %57 {offsets = [6, 0], sizes = [2, 224], strides = [1, 1]} : vector<14x224xf32> to vector<2x224xf32>
    %64 = vector.extract_strided_slice %57 {offsets = [8, 0], sizes = [2, 224], strides = [1, 1]} : vector<14x224xf32> to vector<2x224xf32>
    %65 = tpu.concatenate %62, %63, %64 in 1 : vector<2x224xf32>, vector<2x224xf32>, vector<2x224xf32> -> vector<2x672xf32>
    %66 = vector.extract_strided_slice %57 {offsets = [8, 0], sizes = [2, 224], strides = [1, 1]} : vector<14x224xf32> to vector<2x224xf32>
    %67 = vector.extract_strided_slice %57 {offsets = [10, 0], sizes = [2, 224], strides = [1, 1]} : vector<14x224xf32> to vector<2x224xf32>
    %68 = vector.extract_strided_slice %57 {offsets = [12, 0], sizes = [2, 224], strides = [1, 1]} : vector<14x224xf32> to vector<2x224xf32>
    %69 = tpu.concatenate %66, %67, %68 in 1 : vector<2x224xf32>, vector<2x224xf32>, vector<2x224xf32> -> vector<2x672xf32>
    %70 = tpu.concatenate %61, %65, %69 in 0 : vector<2x672xf32>, vector<2x672xf32>, vector<2x672xf32> -> vector<6x672xf32>
    %c0_7 = arith.constant 0 : index
    %c0_8 = arith.constant 0 : index
    %71 = vector.load %arg4[%c0_7, %c0_8] : memref<672x192xf32, #tpu.memory_space<vmem>>, vector<672x192xf32>
    %cst_9 = arith.constant dense<0.000000e+00> : vector<6x192xf32>
    %72 = tpu.matmul %70, %71, %cst_9 {dimension_numbers = #tpu.dot_dimension_numbers<[1], [0], [0], [1], [0, 0, 1, 1], [], []>, precision = #tpu.contract_precision<fp32>} : vector<6x672xf32>, vector<672x192xf32>, vector<6x192xf32> -> vector<6x192xf32>
    %c0_10 = arith.constant 0 : index
    %c0_11 = arith.constant 0 : index
    %73 = vector.load %arg5[%c0_10, %c0_11] : memref<1x192xf32, #tpu.memory_space<vmem>>, vector<1x192xf32>
    %74 = vector.broadcast %73 : vector<1x192xf32> to vector<6x192xf32>
    %75 = arith.addf %72, %74 : vector<6x192xf32>
    %cst_12 = arith.constant 0.000000e+00 : f32
    %76 = vector.broadcast %cst_12 : f32 to vector<6x192xf32>
    %77 = arith.maximumf %75, %76 : vector<6x192xf32>
    %78 = vector.extract_strided_slice %77 {offsets = [0, 0], sizes = [2, 192], strides = [1, 1]} : vector<6x192xf32> to vector<2x192xf32>
    %79 = vector.extract_strided_slice %77 {offsets = [2, 0], sizes = [2, 192], strides = [1, 1]} : vector<6x192xf32> to vector<2x192xf32>
    %80 = vector.extract_strided_slice %77 {offsets = [4, 0], sizes = [2, 192], strides = [1, 1]} : vector<6x192xf32> to vector<2x192xf32>
    %81 = tpu.concatenate %78, %79, %80 in 1 : vector<2x192xf32>, vector<2x192xf32>, vector<2x192xf32> -> vector<2x576xf32>
    %c0_13 = arith.constant 0 : index
    %c0_14 = arith.constant 0 : index
    %82 = vector.load %arg6[%c0_13, %c0_14] : memref<576x64xf32, #tpu.memory_space<vmem>>, vector<576x64xf32>
    %cst_15 = arith.constant dense<0.000000e+00> : vector<2x64xf32>
    %83 = tpu.matmul %81, %82, %cst_15 {dimension_numbers = #tpu.dot_dimension_numbers<[1], [0], [0], [1], [0, 0, 1, 1], [], []>, precision = #tpu.contract_precision<fp32>} : vector<2x576xf32>, vector<576x64xf32>, vector<2x64xf32> -> vector<2x64xf32>
    %c0_16 = arith.constant 0 : index
    %c0_17 = arith.constant 0 : index
    %84 = vector.load %arg7[%c0_16, %c0_17] : memref<1x64xf32, #tpu.memory_space<vmem>>, vector<1x64xf32>
    %85 = vector.broadcast %84 : vector<1x64xf32> to vector<2x64xf32>
    %86 = arith.addf %83, %85 : vector<2x64xf32>
    %cst_18 = arith.constant 0.000000e+00 : f32
    %87 = vector.broadcast %cst_18 : f32 to vector<2x64xf32>
    %88 = arith.maximumf %86, %87 : vector<2x64xf32>
    %c0_19 = arith.constant 0 : index
    %c0_20 = arith.constant 0 : index
    %89 = vector.load %arg8[%c0_19, %c0_20] : memref<64x256xf32, #tpu.memory_space<vmem>>, vector<64x256xf32>
    %cst_21 = arith.constant dense<0.000000e+00> : vector<2x256xf32>
    %90 = tpu.matmul %88, %89, %cst_21 {dimension_numbers = #tpu.dot_dimension_numbers<[1], [0], [0], [1], [0, 0, 1, 1], [], []>, precision = #tpu.contract_precision<fp32>} : vector<2x64xf32>, vector<64x256xf32>, vector<2x256xf32> -> vector<2x256xf32>
    %c0_22 = arith.constant 0 : index
    %c0_23 = arith.constant 0 : index
    %91 = vector.load %arg9[%c0_22, %c0_23] : memref<1x256xf32, #tpu.memory_space<vmem>>, vector<1x256xf32>
    %92 = vector.broadcast %91 : vector<1x256xf32> to vector<2x256xf32>
    %93 = arith.addf %90, %92 : vector<2x256xf32>
    %cst_24 = arith.constant 0.000000e+00 : f32
    %94 = vector.broadcast %cst_24 : f32 to vector<2x256xf32>
    %95 = arith.maximumf %93, %94 : vector<2x256xf32>
    %c0_25 = arith.constant 0 : index
    %c0_26 = arith.constant 0 : index
    %96 = vector.load %arg10[%c0_25, %c0_26] : memref<256x128xf32, #tpu.memory_space<vmem>>, vector<256x128xf32>
    %cst_27 = arith.constant dense<0.000000e+00> : vector<2x128xf32>
    %97 = tpu.matmul %95, %96, %cst_27 {dimension_numbers = #tpu.dot_dimension_numbers<[1], [0], [0], [1], [0, 0, 1, 1], [], []>, precision = #tpu.contract_precision<fp32>} : vector<2x256xf32>, vector<256x128xf32>, vector<2x128xf32> -> vector<2x128xf32>
    %c0_28 = arith.constant 0 : index
    %c0_29 = arith.constant 0 : index
    %98 = vector.load %arg11[%c0_28, %c0_29] : memref<1x128xf32, #tpu.memory_space<vmem>>, vector<1x128xf32>
    %99 = vector.broadcast %98 : vector<1x128xf32> to vector<2x128xf32>
    %100 = arith.addf %97, %99 : vector<2x128xf32>
    %c0_30 = arith.constant 0 : index
    %c0_31 = arith.constant 0 : index
    %101 = vector.load %arg12[%c0_30, %c0_31] : memref<2x128xf32, #tpu.memory_space<vmem>>, vector<2x128xf32>
    tpu.vector_store %arg12[%c0_30, %c0_31], %100 {strides = array<i32>} : memref<2x128xf32, #tpu.memory_space<vmem>>, vector<2x128xf32>,
    return
  }
  func.func @transform_0(%arg0: i32) -> (i32, i32, i32) {
    %c0_i32 = arith.constant 0 : i32
    %c0_i32_0 = arith.constant 0 : i32
    %c0_i32_1 = arith.constant 0 : i32
    return %c0_i32, %arg0, %c0_i32_0 : i32, i32, i32
  }
  func.func @transform_1(%arg0: i32) -> (i32, i32) {
    %c0_i32 = arith.constant 0 : i32
    %c0_i32_0 = arith.constant 0 : i32
    %c0_i32_1 = arith.constant 0 : i32
    return %c0_i32, %c0_i32_0 : i32, i32
  }
  func.func @transform_2(%arg0: i32) -> (i32, i32) {
    %c0_i32 = arith.constant 0 : i32
    %c0_i32_0 = arith.constant 0 : i32
    %c0_i32_1 = arith.constant 0 : i32
    return %c0_i32, %c0_i32_0 : i32, i32
  }
  func.func @transform_3(%arg0: i32) -> (i32, i32) {
    %c0_i32 = arith.constant 0 : i32
    %c0_i32_0 = arith.constant 0 : i32
    %c0_i32_1 = arith.constant 0 : i32
    return %c0_i32, %c0_i32_0 : i32, i32
  }
  func.func @transform_4(%arg0: i32) -> (i32, i32) {
    %c0_i32 = arith.constant 0 : i32
    %c0_i32_0 = arith.constant 0 : i32
    %c0_i32_1 = arith.constant 0 : i32
    return %c0_i32, %c0_i32_0 : i32, i32
  }
  func.func @transform_5(%arg0: i32) -> (i32, i32) {
    %c0_i32 = arith.constant 0 : i32
    %c0_i32_0 = arith.constant 0 : i32
    %c0_i32_1 = arith.constant 0 : i32
    return %c0_i32, %c0_i32_0 : i32, i32
  }
  func.func @transform_6(%arg0: i32) -> (i32, i32) {
    %c0_i32 = arith.constant 0 : i32
    %c0_i32_0 = arith.constant 0 : i32
    %c0_i32_1 = arith.constant 0 : i32
    return %c0_i32, %c0_i32_0 : i32, i32
  }
  func.func @transform_7(%arg0: i32) -> (i32, i32) {
    %c0_i32 = arith.constant 0 : i32
    %c0_i32_0 = arith.constant 0 : i32
    %c0_i32_1 = arith.constant 0 : i32
    return %c0_i32, %c0_i32_0 : i32, i32
  }
  func.func @transform_8(%arg0: i32) -> (i32, i32) {
    %c0_i32 = arith.constant 0 : i32
    %c0_i32_0 = arith.constant 0 : i32
    %c0_i32_1 = arith.constant 0 : i32
    return %c0_i32, %c0_i32_0 : i32, i32
  }
  func.func @transform_9(%arg0: i32) -> (i32, i32) {
    %c0_i32 = arith.constant 0 : i32
    %c0_i32_0 = arith.constant 0 : i32
    %c0_i32_1 = arith.constant 0 : i32
    return %c0_i32, %c0_i32_0 : i32, i32
  }
  func.func @transform_10(%arg0: i32) -> (i32, i32) {
    %c0_i32 = arith.constant 0 : i32
    %c0_i32_0 = arith.constant 0 : i32
    %c0_i32_1 = arith.constant 0 : i32
    return %c0_i32, %c0_i32_0 : i32, i32
  }
  func.func @transform_11(%arg0: i32) -> (i32, i32) {
    %c0_i32 = arith.constant 0 : i32
    %c0_i32_0 = arith.constant 0 : i32
    return %arg0, %c0_i32 : i32, i32
  }
}

</mosaic_0001>

<llo_original>
// kernel: encoder_forward.1
$region0: #{encoder_forward.1}
  #allocation0 [shape = 'u32[]', space=smem, size = 0x4, offset = 0x4, fixed_abs, tag = 'smem constant byte address 0x4 - core index']
  #allocation1 [shape = 'u32[144,128]{1,0:T(1,128)}', space=vmem, size = 0x12000, scoped, tag = 'internal scratch']
  %s0 = inlined_call_operand.vmem [shape: f32[16,2,64], index: 0, kind: input, shape index: {}]
  %s1 = inlined_call_operand.vmem [shape: f32[192,224], index: 1, kind: input, shape index: {}]
  %s2 = inlined_call_operand.vmem [shape: f32[1,224], index: 2, kind: input, shape index: {}]
  %s3 = inlined_call_operand.vmem [shape: f32[672,192], index: 3, kind: input, shape index: {}]
  %s4 = inlined_call_operand.vmem [shape: f32[1,192], index: 4, kind: input, shape index: {}]
  %s5 = inlined_call_operand.vmem [shape: f32[576,64], index: 5, kind: input, shape index: {}]
  %s6 = inlined_call_operand.vmem [shape: f32[1,64], index: 6, kind: input, shape index: {}]
  %s7 = inlined_call_operand.vmem [shape: f32[64,256], index: 7, kind: input, shape index: {}]
  %s8 = inlined_call_operand.vmem [shape: f32[1,256], index: 8, kind: input, shape index: {}]
  %s9 = inlined_call_operand.vmem [shape: f32[256,128], index: 9, kind: input, shape index: {}]
  %s10 = inlined_call_operand.vmem [shape: f32[1,128], index: 10, kind: input, shape index: {}]
  %s11 = inlined_call_operand.vmem [shape: f32[2,128], index: 11, kind: output, shape index: {}]
  %s12 = sld [smem:[#allocation0]]
  $region54: #{encoder_forward.1} parent=0
    _
  %s14 = ssub.s32 1, %s12
  %s15 = scalar_select 0, %s14, %s12
  // Predicated region
  $region2: #{encoder_forward.1} parent=0 // pred_check
    _
  $region3: #{encoder_forward.1} parent=0 // pred_check_branch
    %17 = sbr.rel (0) target = $region5
  $region4: #{encoder_forward.1} parent=0 // pred_region
    _
  $region5: #{encoder_forward.1} parent=0 // pred_fallthru
    _
  // Predicated region
  $region6: #{encoder_forward.1} parent=0 // pred_check
    _
  $region7: #{encoder_forward.1} parent=0 // pred_check_branch
    %19 = sbr.rel (0) target = $region9
  $region8: #{encoder_forward.1} parent=0 // pred_region
    _
  $region9: #{encoder_forward.1} parent=0 // pred_fallthru
    _
  // Predicated region
  $region10: #{encoder_forward.1} parent=0 // pred_check
    _
  $region11: #{encoder_forward.1} parent=0 // pred_check_branch
    %21 = sbr.rel (0) target = $region13
  $region12: #{encoder_forward.1} parent=0 // pred_region
    _
  $region13: #{encoder_forward.1} parent=0 // pred_fallthru
    _
  // Predicated region
  $region14: #{encoder_forward.1} parent=0 // pred_check
    _
  $region15: #{encoder_forward.1} parent=0 // pred_check_branch
    %23 = sbr.rel (0) target = $region17
  $region16: #{encoder_forward.1} parent=0 // pred_region
    _
  $region17: #{encoder_forward.1} parent=0 // pred_fallthru
    _
  // Predicated region
  $region18: #{encoder_forward.1} parent=0 // pred_check
    _
  $region19: #{encoder_forward.1} parent=0 // pred_check_branch
    %25 = sbr.rel (0) target = $region21
  $region20: #{encoder_forward.1} parent=0 // pred_region
    _
  $region21: #{encoder_forward.1} parent=0 // pred_fallthru
    _
  // Predicated region
  $region22: #{encoder_forward.1} parent=0 // pred_check
    _
  $region23: #{encoder_forward.1} parent=0 // pred_check_branch
    %27 = sbr.rel (0) target = $region25
  $region24: #{encoder_forward.1} parent=0 // pred_region
    _
  $region25: #{encoder_forward.1} parent=0 // pred_fallthru
    _
  // Predicated region
  $region26: #{encoder_forward.1} parent=0 // pred_check
    _
  $region27: #{encoder_forward.1} parent=0 // pred_check_branch
    %29 = sbr.rel (0) target = $region29
  $region28: #{encoder_forward.1} parent=0 // pred_region
    _
  $region29: #{encoder_forward.1} parent=0 // pred_fallthru
    _
  // Predicated region
  $region30: #{encoder_forward.1} parent=0 // pred_check
    _
  $region31: #{encoder_forward.1} parent=0 // pred_check_branch
    %31 = sbr.rel (0) target = $region33
  $region32: #{encoder_forward.1} parent=0 // pred_region
    _
  $region33: #{encoder_forward.1} parent=0 // pred_fallthru
    _
  // Predicated region
  $region34: #{encoder_forward.1} parent=0 // pred_check
    _
  $region35: #{encoder_forward.1} parent=0 // pred_check_branch
    %33 = sbr.rel (0) target = $region37
  $region36: #{encoder_forward.1} parent=0 // pred_region
    _
  $region37: #{encoder_forward.1} parent=0 // pred_fallthru
    _
  // Predicated region
  $region38: #{encoder_forward.1} parent=0 // pred_check
    _
  $region39: #{encoder_forward.1} parent=0 // pred_check_branch
    %35 = sbr.rel (0) target = $region41
  $region40: #{encoder_forward.1} parent=0 // pred_region
    _
  $region41: #{encoder_forward.1} parent=0 // pred_fallthru
    _
  // Predicated region
  $region42: #{encoder_forward.1} parent=0 // pred_check
    _
  $region43: #{encoder_forward.1} parent=0 // pred_check_branch
    %37 = sbr.rel (0) target = $region45
  $region44: #{encoder_forward.1} parent=0 // pred_region
    _
  $region45: #{encoder_forward.1} parent=0 // pred_fallthru
    _
  %v38 = vld [vmem:[%s0] sm:$0x3]
  %v39 = vld [vmem:[%s0 + $0x2] sm:$0x3]
  %v40 = vld [vmem:[%s0 + $0x4] sm:$0x3]
  %v41 = vld [vmem:[%s0 + $0x6] sm:$0x3]
  %v42 = vld [vmem:[%s0 + $0x8] sm:$0x3]
  %v43 = vld [vmem:[%s0 + $0xa] sm:$0x3]
  %v44 = vld [vmem:[%s0 + $0xc] sm:$0x3]
  %v45 = vld [vmem:[%s0 + $0xe] sm:$0x3]
  %v46 = vld [vmem:[%s0 + $0x10] sm:$0x3]
  %v47 = vld [vmem:[%s0 + $0x12] sm:$0x3]
  %v48 = vld [vmem:[%s0 + $0x14] sm:$0x3]
  %v49 = vld [vmem:[%s0 + $0x16] sm:$0x3]
  %v50 = vld [vmem:[%s0 + $0x18] sm:$0x3]
  %v51 = vld [vmem:[%s0 + $0x1a] sm:$0x3]
  %v52 = vld [vmem:[%s0 + $0x1c] sm:$0x3]
  %54 = vrot.lane.b32.xlu0 %v39, 64
  %v55 = vpop.permute.xlu0 %54
  %vm57 = vcmask 523264
  %v58 = vsel %vm57, %v38, %v55
  %60 = vrot.lane.b32.xlu0 %v41, 64
  %v61 = vpop.permute.xlu0 %60
  %v63 = vsel %vm57, %v40, %v61
  %65 = vrot.lane.b32.xlu0 %v43, 64
  %v66 = vpop.permute.xlu0 %65
  %v68 = vsel %vm57, %v42, %v66
  %70 = vrot.lane.b32.xlu0 %v45, 64
  %v71 = vpop.permute.xlu0 %70
  %v73 = vsel %vm57, %v44, %v71
  %75 = vrot.lane.b32.xlu0 %v47, 64
  %v76 = vpop.permute.xlu0 %75
  %v78 = vsel %vm57, %v46, %v76
  %80 = vrot.lane.b32.xlu0 %v49, 64
  %v81 = vpop.permute.xlu0 %80
  %v83 = vsel %vm57, %v48, %v81
  %85 = vrot.lane.b32.xlu0 %v51, 64
  %v86 = vpop.permute.xlu0 %85
  %v88 = vsel %vm57, %v50, %v86
  %v91 = vrot.slane %v63, 6
  %v92 = vrot.slane %v42, 6
  %v97 = vrot.slane %v68, 4
  %v98 = vrot.slane %v44, 4
  %v103 = vrot.slane %v73, 2
  %v104 = vrot.slane %v46, 2
  %v109 = vrot.slane %v83, 6
  %v110 = vrot.slane %v50, 6
  %v115 = vrot.slane %v88, 4
  %v116 = vrot.slane %v52, 4
  %vm119 = vcmask 1041408
  %v120 = vsel %vm119, %v58, %v91
  %v121 = vsel %vm119, %v40, %v92
  %vm122 = vcmask 1043456
  %v123 = vsel %vm122, %v120, %v97
  %v124 = vsel %vm122, %v121, %v98
  %vm125 = vcmask 1045504
  %v126 = vsel %vm125, %v123, %v103
  %v127 = vsel %vm125, %v124, %v104
  %v128 = vsel %vm119, %v78, %v109
  %v129 = vsel %vm119, %v48, %v110
  %v130 = vsel %vm122, %v128, %v115
  %v131 = vsel %vm122, %v129, %v116
  %v132 = vld [vmem:[%s1] sm:$0xff]
  %v133 = vld [vmem:[%s1 + $0x8] sm:$0xff]
  %v134 = vld [vmem:[%s1 + $0x10] sm:$0xff]
  %v135 = vld [vmem:[%s1 + $0x18] sm:$0xff]
  %v136 = vld [vmem:[%s1 + $0x20] sm:$0xff]
  %v137 = vld [vmem:[%s1 + $0x28] sm:$0xff]
  %v138 = vld [vmem:[%s1 + $0x30] sm:$0xff]
  %v139 = vld [vmem:[%s1 + $0x38] sm:$0xff]
  %v140 = vld [vmem:[%s1 + $0x40] sm:$0xff]
  %v141 = vld [vmem:[%s1 + $0x48] sm:$0xff]
  %v142 = vld [vmem:[%s1 + $0x50] sm:$0xff]
  %v143 = vld [vmem:[%s1 + $0x58] sm:$0xff]
  %v144 = vld [vmem:[%s1 + $0x60] sm:$0xff]
  %v145 = vld [vmem:[%s1 + $0x68] sm:$0xff]
  %v146 = vld [vmem:[%s1 + $0x70] sm:$0xff]
  %v147 = vld [vmem:[%s1 + $0x78] sm:$0xff]
  %v148 = vld [vmem:[%s1 + $0x80] sm:$0xff]
  %v149 = vld [vmem:[%s1 + $0x88] sm:$0xff]
  %v150 = vld [vmem:[%s1 + $0x90] sm:$0xff]
  %v151 = vld [vmem:[%s1 + $0x98] sm:$0xff]
  %v152 = vld [vmem:[%s1 + $0xa0] sm:$0xff]
  %v153 = vld [vmem:[%s1 + $0xa8] sm:$0xff]
  %v154 = vld [vmem:[%s1 + $0xb0] sm:$0xff]
  %v155 = vld [vmem:[%s1 + $0xb8] sm:$0xff]
  %v156 = vld [vmem:[%s1 + $0xc0] sm:$0xff]
  %v157 = vld [vmem:[%s1 + $0xc8] sm:$0xff]
  %v158 = vld [vmem:[%s1 + $0xd0] sm:$0xff]
  %v159 = vld [vmem:[%s1 + $0xd8] sm:$0xff]
  %v160 = vld [vmem:[%s1 + $0xe0] sm:$0xff]
  %v161 = vld [vmem:[%s1 + $0xe8] sm:$0xff]
  %v162 = vld [vmem:[%s1 + $0xf0] sm:$0xff]
  %v163 = vld [vmem:[%s1 + $0xf8] sm:$0xff]
  %v164 = vld [vmem:[%s1 + $0x100] sm:$0xff]
  %v165 = vld [vmem:[%s1 + $0x108] sm:$0xff]
  %v166 = vld [vmem:[%s1 + $0x110] sm:$0xff]
  %v167 = vld [vmem:[%s1 + $0x118] sm:$0xff]
  %v168 = vld [vmem:[%s1 + $0x120] sm:$0xff]
  %v169 = vld [vmem:[%s1 + $0x128] sm:$0xff]
  %v170 = vld [vmem:[%s1 + $0x130] sm:$0xff]
  %v171 = vld [vmem:[%s1 + $0x138] sm:$0xff]
  %v172 = vld [vmem:[%s1 + $0x140] sm:$0xff]
  %v173 = vld [vmem:[%s1 + $0x148] sm:$0xff]
  %v174 = vld [vmem:[%s1 + $0x150] sm:$0xff]
  %v175 = vld [vmem:[%s1 + $0x158] sm:$0xff]
  %v176 = vld [vmem:[%s1 + $0x160] sm:$0xff]
  %v177 = vld [vmem:[%s1 + $0x168] sm:$0xff]
  %v178 = vld [vmem:[%s1 + $0x170] sm:$0xff]
  %v179 = vld [vmem:[%s1 + $0x178] sm:$0xff]
  %v180 = vld [vmem:[%s2] sm:$0x3]
  %v182 = vlaneseq
  %v183 = vshrl.u32 %v182, 7
  %v184 = vsub.s32 0, %v183
  %v185 = vrot.slane %v180, %v184
  %v186 = vlaneseq
  %v187 = vshrl.u32 %v186, 7
  %v188 = vsub.s32 1, %v187
  %v189 = vrot.slane %v180, %v188
  %v193 = vsel %vm57, %v127, 0
  %v196 = vsel %vm57, %v131, 0
  %v198 = vand.u32 %v133, 4294901760
  %199 = vmatprep.subr.mxu0 %v198
  %v200 = vand.u32 %v132, 4294901760
  %201 = vmatpush1.msra.mxu0 %v200
  %v202 = vand.u32 %v135, 4294901760
  %203 = vmatprep.subr.mxu0 %v202
  %v204 = vand.u32 %v134, 4294901760
  %205 = vmatpush1.msra.mxu0 %v204
  %v206 = vand.u32 %v137, 4294901760
  %207 = vmatprep.subr.mxu0 %v206
  %v208 = vand.u32 %v136, 4294901760
  %209 = vmatpush1.msra.mxu0 %v208
  %v210 = vand.u32 %v139, 4294901760
  %211 = vmatprep.subr.mxu0 %v210
  %v212 = vand.u32 %v138, 4294901760
  %213 = vmatpush1.msra.mxu0 %v212
  %v214 = vand.u32 %v141, 4294901760
  %215 = vmatprep.subr.mxu0 %v214
  %v216 = vand.u32 %v140, 4294901760
  %217 = vmatpush1.msra.mxu0 %v216
  %v218 = vand.u32 %v143, 4294901760
  %219 = vmatprep.subr.mxu0 %v218
  %v220 = vand.u32 %v142, 4294901760
  %221 = vmatpush1.msra.mxu0 %v220
  %v222 = vand.u32 %v145, 4294901760
  %223 = vmatprep.subr.mxu0 %v222
  %v224 = vand.u32 %v144, 4294901760
  %225 = vmatpush1.msra.mxu0 %v224
  %v226 = vand.u32 %v147, 4294901760
  %227 = vmatprep.subr.mxu0 %v226
  %v228 = vand.u32 %v146, 4294901760
  %229 = vmatpush1.msra.mxu0 %v228
  %v230 = vand.u32 %v149, 4294901760
  %231 = vmatprep.subr.mxu0 %v230
  %v232 = vand.u32 %v148, 4294901760
  %233 = vmatpush1.msra.mxu0 %v232
  %v234 = vand.u32 %v151, 4294901760
  %235 = vmatprep.subr.mxu0 %v234
  %v236 = vand.u32 %v150, 4294901760
  %237 = vmatpush1.msra.mxu0 %v236
  %v238 = vand.u32 %v153, 4294901760
  %239 = vmatprep.subr.mxu0 %v238
  %v240 = vand.u32 %v152, 4294901760
  %241 = vmatpush1.msra.mxu0 %v240
  %v242 = vand.u32 %v155, 4294901760
  %243 = vmatprep.subr.mxu0 %v242
  %v244 = vand.u32 %v154, 4294901760
  %245 = vmatpush1.msra.mxu0 %v244
  %v246 = vand.u32 %v157, 4294901760
  %247 = vmatprep.subr.mxu0 %v246
  %v248 = vand.u32 %v156, 4294901760
  %249 = vmatpush1.msra.mxu0 %v248
  %v250 = vand.u32 %v159, 4294901760
  %251 = vmatprep.subr.mxu0 %v250
  %v252 = vand.u32 %v158, 4294901760
  %253 = vmatpush1.msra.mxu0 %v252
  %v254 = vand.u32 %v161, 4294901760
  %255 = vmatprep.subr.mxu0 %v254
  %v256 = vand.u32 %v160, 4294901760
  %257 = vmatpush1.msra.mxu0 %v256
  %v258 = vand.u32 %v163, 4294901760
  %259 = vmatprep.subr.mxu0 %v258
  %v260 = vand.u32 %v162, 4294901760
  %261 = vmatpush1.msra.mxu0 %v260
  %v262 = vand.u32 %v165, 4294901760
  %263 = vmatprep.subr.mxu0 %v262
  %v264 = vand.u32 %v164, 4294901760
  %265 = vmatpush1.msra.mxu0 %v264
  %v266 = vand.u32 %v167, 4294901760
  %267 = vmatprep.subr.mxu0 %v266
  %v268 = vand.u32 %v166, 4294901760
  %269 = vmatpush1.msra.mxu0 %v268
  %v270 = vand.u32 %v169, 4294901760
  %271 = vmatprep.subr.mxu0 %v270
  %v272 = vand.u32 %v168, 4294901760
  %273 = vmatpush1.msra.mxu0 %v272
  %v274 = vand.u32 %v171, 4294901760
  %275 = vmatprep.subr.mxu0 %v274
  %v276 = vand.u32 %v170, 4294901760
  %277 = vmatpush1.msra.mxu0 %v276
  %v278 = vand.u32 %v173, 4294901760
  %279 = vmatprep.subr.mxu0 %v278
  %v280 = vand.u32 %v172, 4294901760
  %281 = vmatpush1.msra.mxu0 %v280
  %v282 = vand.u32 %v175, 4294901760
  %283 = vmatprep.subr.mxu0 %v282
  %v284 = vand.u32 %v174, 4294901760
  %285 = vmatpush1.msra.mxu0 %v284
  %v286 = vand.u32 %v177, 4294901760
  %287 = vmatprep.subr.mxu0 %v286
  %v288 = vand.u32 %v176, 4294901760
  %289 = vmatpush1.msra.mxu0 %v288
  %v290 = vand.u32 %v179, 4294901760
  %291 = vmatprep.subr.mxu0 %v290
  %v292 = vand.u32 %v178, 4294901760
  %293 = vmatpush1.msra.mxu0 %v292
  %294 = vmatprep.subr.mxu0 0.0
  %295 = vmatpush1.msra.mxu0 0.0
  %296 = vmatprep.subr.mxu0 0.0
  %297 = vmatpush1.msra.mxu0 0.0
  %298 = vmatprep.subr.mxu0 0.0
  %299 = vmatpush1.msra.mxu0 0.0
  %300 = vmatprep.subr.mxu0 0.0
  %301 = vmatpush1.msra.mxu0 0.0
  %302 = vmatprep.subr.mxu0 0.0
  %303 = vmatpush1.msra.mxu0 0.0
  %304 = vmatprep.subr.mxu0 0.0
  %305 = vmatpush1.msra.mxu0 0.0
  %306 = vmatprep.subr.mxu0 0.0
  %307 = vmatpush1.msra.mxu0 0.0
  %308 = vmatprep.subr.mxu0 0.0
  %309 = vmatpush1.msra.mxu0 0.0
  %v310 = vand.u32 %v193, 4294901760
  %v311 = vsub.f32 %v193, %v310
  %v312 = vand.u32 %v311, 4294901760
  %v313 = vsub.f32 %v311, %v312
  %v314 = vand.u32 %v313, 4294901760
  %315 = vmatprep.mubr.f32.mxu0 %v314
  %v316 = vand.u32 %v126, 4294901760
  %v317 = vsub.f32 %v126, %v316
  %v318 = vand.u32 %v317, 4294901760
  %v319 = vsub.f32 %v317, %v318
  %v320 = vand.u32 %v319, 4294901760
  %321 = vmatmul.mubr.f32.gmra.mrb[0].mxu0 %v320
  %v322 = vpop.f32.mrb[0].mxu0
  %v323 = vadd.f32 %v185, %v322
  %v324 = vpop.f32.mrb[0].mxu0
  %v325 = vadd.f32 %v189, %v324
  %v326 = vand.u32 %v196, 4294901760
  %v327 = vsub.f32 %v196, %v326
  %v328 = vand.u32 %v327, 4294901760
  %v329 = vsub.f32 %v327, %v328
  %v330 = vand.u32 %v329, 4294901760
  %331 = vmatprep.mubr.f32.mxu0 %v330
  %v332 = vand.u32 %v130, 4294901760
  %v333 = vsub.f32 %v130, %v332
  %v334 = vand.u32 %v333, 4294901760
  %v335 = vsub.f32 %v333, %v334
  %v336 = vand.u32 %v335, 4294901760
  %337 = vmatmul.mubr.f32.gmra.mrb[0].mxu0 %v336
  %v338 = vpop.f32.mrb[0].mxu0
  %v339 = vadd.f32 %v185, %v338
  %v340 = vpop.f32.mrb[0].mxu0
  %v341 = vadd.f32 %v189, %v340
  %342 = vdwg.mxu0
  %v343 = vand.u32 %v133, 4294901760
  %v344 = vsub.f32 %v133, %v343
  %v345 = vand.u32 %v344, 4294901760
  %v346 = vsub.f32 %v344, %v345
  %v347 = vand.u32 %v346, 4294901760
  %348 = vmatprep.subr.mxu0 %v347
  %v349 = vand.u32 %v132, 4294901760
  %v350 = vsub.f32 %v132, %v349
  %v351 = vand.u32 %v350, 4294901760
  %v352 = vsub.f32 %v350, %v351
  %v353 = vand.u32 %v352, 4294901760
  %354 = vmatpush1.msra.mxu0 %v353
  %v355 = vand.u32 %v135, 4294901760
  %v356 = vsub.f32 %v135, %v355
  %v357 = vand.u32 %v356, 4294901760
  %v358 = vsub.f32 %v356, %v357
  %v359 = vand.u32 %v358, 4294901760
  %360 = vmatprep.subr.mxu0 %v359
  %v361 = vand.u32 %v134, 4294901760
  %v362 = vsub.f32 %v134, %v361
  %v363 = vand.u32 %v362, 4294901760
  %v364 = vsub.f32 %v362, %v363
  %v365 = vand.u32 %v364, 4294901760
  %366 = vmatpush1.msra.mxu0 %v365
  %v367 = vand.u32 %v137, 4294901760
  %v368 = vsub.f32 %v137, %v367
  %v369 = vand.u32 %v368, 4294901760
  %v370 = vsub.f32 %v368, %v369
  %v371 = vand.u32 %v370, 4294901760
  %372 = vmatprep.subr.mxu0 %v371
  %v373 = vand.u32 %v136, 4294901760
  %v374 = vsub.f32 %v136, %v373
  %v375 = vand.u32 %v374, 4294901760
  %v376 = vsub.f32 %v374, %v375
  %v377 = vand.u32 %v376, 4294901760
  %378 = vmatpush1.msra.mxu0 %v377
  %v379 = vand.u32 %v139, 4294901760
  %v380 = vsub.f32 %v139, %v379
  %v381 = vand.u32 %v380, 4294901760
  %v382 = vsub.f32 %v380, %v381
  %v383 = vand.u32 %v382, 4294901760
  %384 = vmatprep.subr.mxu0 %v383
  %v385 = vand.u32 %v138, 4294901760
  %v386 = vsub.f32 %v138, %v385
  %v387 = vand.u32 %v386, 4294901760
  %v388 = vsub.f32 %v386, %v387
  %v389 = vand.u32 %v388, 4294901760
  %390 = vmatpush1.msra.mxu0 %v389
  %v391 = vand.u32 %v141, 4294901760
  %v392 = vsub.f32 %v141, %v391
  %v393 = vand.u32 %v392, 4294901760
  %v394 = vsub.f32 %v392, %v393
  %v395 = vand.u32 %v394, 4294901760
  %396 = vmatprep.subr.mxu0 %v395
  %v397 = vand.u32 %v140, 4294901760
  %v398 = vsub.f32 %v140, %v397
  %v399 = vand.u32 %v398, 4294901760
  %v400 = vsub.f32 %v398, %v399
  %v401 = vand.u32 %v400, 4294901760
  %402 = vmatpush1.msra.mxu0 %v401
  %v403 = vand.u32 %v143, 4294901760
  %v404 = vsub.f32 %v143, %v403
  %v405 = vand.u32 %v404, 4294901760
  %v406 = vsub.f32 %v404, %v405
  %v407 = vand.u32 %v406, 4294901760
  %408 = vmatprep.subr.mxu0 %v407
  %v409 = vand.u32 %v142, 4294901760
  %v410 = vsub.f32 %v142, %v409
  %v411 = vand.u32 %v410, 4294901760
  %v412 = vsub.f32 %v410, %v411
  %v413 = vand.u32 %v412, 4294901760
  %414 = vmatpush1.msra.mxu0 %v413
  %v415 = vand.u32 %v145, 4294901760
  %v416 = vsub.f32 %v145, %v415
  %v417 = vand.u32 %v416, 4294901760
  %v418 = vsub.f32 %v416, %v417
  %v419 = vand.u32 %v418, 4294901760
  %420 = vmatprep.subr.mxu0 %v419
  %v421 = vand.u32 %v144, 4294901760
  %v422 = vsub.f32 %v144, %v421
  %v423 = vand.u32 %v422, 4294901760
  %v424 = vsub.f32 %v422, %v423
  %v425 = vand.u32 %v424, 4294901760
  %426 = vmatpush1.msra.mxu0 %v425
  %v427 = vand.u32 %v147, 4294901760
  %v428 = vsub.f32 %v147, %v427
  %v429 = vand.u32 %v428, 4294901760
  %v430 = vsub.f32 %v428, %v429
  %v431 = vand.u32 %v430, 4294901760
  %432 = vmatprep.subr.mxu0 %v431
  %v433 = vand.u32 %v146, 4294901760
  %v434 = vsub.f32 %v146, %v433
  %v435 = vand.u32 %v434, 4294901760
  %v436 = vsub.f32 %v434, %v435
  %v437 = vand.u32 %v436, 4294901760
  %438 = vmatpush1.msra.mxu0 %v437
  %v439 = vand.u32 %v149, 4294901760
  %v440 = vsub.f32 %v149, %v439
  %v441 = vand.u32 %v440, 4294901760
  %v442 = vsub.f32 %v440, %v441
  %v443 = vand.u32 %v442, 4294901760
  %444 = vmatprep.subr.mxu0 %v443
  %v445 = vand.u32 %v148, 4294901760
  %v446 = vsub.f32 %v148, %v445
  %v447 = vand.u32 %v446, 4294901760
  %v448 = vsub.f32 %v446, %v447
  %v449 = vand.u32 %v448, 4294901760
  %450 = vmatpush1.msra.mxu0 %v449
  %v451 = vand.u32 %v151, 4294901760
  %v452 = vsub.f32 %v151, %v451
  %v453 = vand.u32 %v452, 4294901760
  %v454 = vsub.f32 %v452, %v453
  %v455 = vand.u32 %v454, 4294901760
  %456 = vmatprep.subr.mxu0 %v455
  %v457 = vand.u32 %v150, 4294901760
  %v458 = vsub.f32 %v150, %v457
  %v459 = vand.u32 %v458, 4294901760
  %v460 = vsub.f32 %v458, %v459
  %v461 = vand.u32 %v460, 4294901760
  %462 = vmatpush1.msra.mxu0 %v461
  %v463 = vand.u32 %v153, 4294901760
  %v464 = vsub.f32 %v153, %v463
  %v465 = vand.u32 %v464, 4294901760
  %v466 = vsub.f32 %v464, %v465
  %v467 = vand.u32 %v466, 4294901760
  %468 = vmatprep.subr.mxu0 %v467
  %v469 = vand.u32 %v152, 4294901760
  %v470 = vsub.f32 %v152, %v469
  %v471 = vand.u32 %v470, 4294901760
  %v472 = vsub.f32 %v470, %v471
  %v473 = vand.u32 %v472, 4294901760
  %474 = vmatpush1.msra.mxu0 %v473
  %v475 = vand.u32 %v155, 4294901760
  %v476 = vsub.f32 %v155, %v475
  %v477 = vand.u32 %v476, 4294901760
  %v478 = vsub.f32 %v476, %v477
  %v479 = vand.u32 %v478, 4294901760
  %480 = vmatprep.subr.mxu0 %v479
  %v481 = vand.u32 %v154, 4294901760
  %v482 = vsub.f32 %v154, %v481
  %v483 = vand.u32 %v482, 4294901760
  %v484 = vsub.f32 %v482, %v483
  %v485 = vand.u32 %v484, 4294901760
  %486 = vmatpush1.msra.mxu0 %v485
  %v487 = vand.u32 %v157, 4294901760
  %v488 = vsub.f32 %v157, %v487
  %v489 = vand.u32 %v488, 4294901760
  %v490 = vsub.f32 %v488, %v489
  %v491 = vand.u32 %v490, 4294901760
  %492 = vmatprep.subr.mxu0 %v491
  %v493 = vand.u32 %v156, 4294901760
  %v494 = vsub.f32 %v156, %v493
  %v495 = vand.u32 %v494, 4294901760
  %v496 = vsub.f32 %v494, %v495
  %v497 = vand.u32 %v496, 4294901760
  %498 = vmatpush1.msra.mxu0 %v497
  %v499 = vand.u32 %v159, 4294901760
  %v500 = vsub.f32 %v159, %v499
  %v501 = vand.u32 %v500, 4294901760
  %v502 = vsub.f32 %v500, %v501
  %v503 = vand.u32 %v502, 4294901760
  %504 = vmatprep.subr.mxu0 %v503
  %v505 = vand.u32 %v158, 4294901760
  %v506 = vsub.f32 %v158, %v505
  %v507 = vand.u32 %v506, 4294901760
  %v508 = vsub.f32 %v506, %v507
  %v509 = vand.u32 %v508, 4294901760
  %510 = vmatpush1.msra.mxu0 %v509
  %v511 = vand.u32 %v161, 4294901760
  %v512 = vsub.f32 %v161, %v511
  %v513 = vand.u32 %v512, 4294901760
  %v514 = vsub.f32 %v512, %v513
  %v515 = vand.u32 %v514, 4294901760
  %516 = vmatprep.subr.mxu0 %v515
  %v517 = vand.u32 %v160, 4294901760
  %v518 = vsub.f32 %v160, %v517
  %v519 = vand.u32 %v518, 4294901760
  %v520 = vsub.f32 %v518, %v519
  %v521 = vand.u32 %v520, 4294901760
  %522 = vmatpush1.msra.mxu0 %v521
  %v523 = vand.u32 %v163, 4294901760
  %v524 = vsub.f32 %v163, %v523
  %v525 = vand.u32 %v524, 4294901760
  %v526 = vsub.f32 %v524, %v525
  %v527 = vand.u32 %v526, 4294901760
  %528 = vmatprep.subr.mxu0 %v527
  %v529 = vand.u32 %v162, 4294901760
  %v530 = vsub.f32 %v162, %v529
  %v531 = vand.u32 %v530, 4294901760
  %v532 = vsub.f32 %v530, %v531
  %v533 = vand.u32 %v532, 4294901760
  %534 = vmatpush1.msra.mxu0 %v533
  %v535 = vand.u32 %v165, 4294901760
  %v536 = vsub.f32 %v165, %v535
  %v537 = vand.u32 %v536, 4294901760
  %v538 = vsub.f32 %v536, %v537
  %v539 = vand.u32 %v538, 4294901760
  %540 = vmatprep.subr.mxu0 %v539
  %v541 = vand.u32 %v164, 4294901760
  %v542 = vsub.f32 %v164, %v541
  %v543 = vand.u32 %v542, 4294901760
  %v544 = vsub.f32 %v542, %v543
  %v545 = vand.u32 %v544, 4294901760
  %546 = vmatpush1.msra.mxu0 %v545
  %v547 = vand.u32 %v167, 4294901760
  %v548 = vsub.f32 %v167, %v547
  %v549 = vand.u32 %v548, 4294901760
  %v550 = vsub.f32 %v548, %v549
  %v551 = vand.u32 %v550, 4294901760
  %552 = vmatprep.subr.mxu0 %v551
  %v553 = vand.u32 %v166, 4294901760
  %v554 = vsub.f32 %v166, %v553
  %v555 = vand.u32 %v554, 4294901760
  %v556 = vsub.f32 %v554, %v555
  %v557 = vand.u32 %v556, 4294901760
  %558 = vmatpush1.msra.mxu0 %v557
  %v559 = vand.u32 %v169, 4294901760
  %v560 = vsub.f32 %v169, %v559
  %v561 = vand.u32 %v560, 4294901760
  %v562 = vsub.f32 %v560, %v561
  %v563 = vand.u32 %v562, 4294901760
  %564 = vmatprep.subr.mxu0 %v563
  %v565 = vand.u32 %v168, 4294901760
  %v566 = vsub.f32 %v168, %v565
  %v567 = vand.u32 %v566, 4294901760
  %v568 = vsub.f32 %v566, %v567
  %v569 = vand.u32 %v568, 4294901760
  %570 = vmatpush1.msra.mxu0 %v569
  %v571 = vand.u32 %v171, 4294901760
  %v572 = vsub.f32 %v171, %v571
  %v573 = vand.u32 %v572, 4294901760
  %v574 = vsub.f32 %v572, %v573
  %v575 = vand.u32 %v574, 4294901760
  %576 = vmatprep.subr.mxu0 %v575
  %v577 = vand.u32 %v170, 4294901760
  %v578 = vsub.f32 %v170, %v577
  %v579 = vand.u32 %v578, 4294901760
  %v580 = vsub.f32 %v578, %v579
  %v581 = vand.u32 %v580, 4294901760
  %582 = vmatpush1.msra.mxu0 %v581
  %v583 = vand.u32 %v173, 4294901760
  %v584 = vsub.f32 %v173, %v583
  %v585 = vand.u32 %v584, 4294901760
  %v586 = vsub.f32 %v584, %v585
  %v587 = vand.u32 %v586, 4294901760
  %588 = vmatprep.subr.mxu0 %v587
  %v589 = vand.u32 %v172, 4294901760
  %v590 = vsub.f32 %v172, %v589
  %v591 = vand.u32 %v590, 4294901760
  %v592 = vsub.f32 %v590, %v591
  %v593 = vand.u32 %v592, 4294901760
  %594 = vmatpush1.msra.mxu0 %v593
  %v595 = vand.u32 %v175, 4294901760
  %v596 = vsub.f32 %v175, %v595
  %v597 = vand.u32 %v596, 4294901760
  %v598 = vsub.f32 %v596, %v597
  %v599 = vand.u32 %v598, 4294901760
  %600 = vmatprep.subr.mxu0 %v599
  %v601 = vand.u32 %v174, 4294901760
  %v602 = vsub.f32 %v174, %v601
  %v603 = vand.u32 %v602, 4294901760
  %v604 = vsub.f32 %v602, %v603
  %v605 = vand.u32 %v604, 4294901760
  %606 = vmatpush1.msra.mxu0 %v605
  %v607 = vand.u32 %v177, 4294901760
  %v608 = vsub.f32 %v177, %v607
  %v609 = vand.u32 %v608, 4294901760
  %v610 = vsub.f32 %v608, %v609
  %v611 = vand.u32 %v610, 4294901760
  %612 = vmatprep.subr.mxu0 %v611
  %v613 = vand.u32 %v176, 4294901760
  %v614 = vsub.f32 %v176, %v613
  %v615 = vand.u32 %v614, 4294901760
  %v616 = vsub.f32 %v614, %v615
  %v617 = vand.u32 %v616, 4294901760
  %618 = vmatpush1.msra.mxu0 %v617
  %v619 = vand.u32 %v179, 4294901760
  %v620 = vsub.f32 %v179, %v619
  %v621 = vand.u32 %v620, 4294901760
  %v622 = vsub.f32 %v620, %v621
  %v623 = vand.u32 %v622, 4294901760
  %624 = vmatprep.subr.mxu0 %v623
  %v625 = vand.u32 %v178, 4294901760
  %v626 = vsub.f32 %v178, %v625
  %v627 = vand.u32 %v626, 4294901760
  %v628 = vsub.f32 %v626, %v627
  %v629 = vand.u32 %v628, 4294901760
  %630 = vmatpush1.msra.mxu0 %v629
  %631 = vmatprep.subr.mxu0 0.0
  %632 = vmatpush1.msra.mxu0 0.0
  %633 = vmatprep.subr.mxu0 0.0
  %634 = vmatpush1.msra.mxu0 0.0
  %635 = vmatprep.subr.mxu0 0.0
  %636 = vmatpush1.msra.mxu0 0.0
  %637 = vmatprep.subr.mxu0 0.0
  %638 = vmatpush1.msra.mxu0 0.0
  %639 = vmatprep.subr.mxu0 0.0
  %640 = vmatpush1.msra.mxu0 0.0
  %641 = vmatprep.subr.mxu0 0.0
  %642 = vmatpush1.msra.mxu0 0.0
  %643 = vmatprep.subr.mxu0 0.0
  %644 = vmatpush1.msra.mxu0 0.0
  %645 = vmatprep.subr.mxu0 0.0
  %646 = vmatpush1.msra.mxu0 0.0
  %v647 = vand.u32 %v193, 4294901760
  %648 = vmatprep.mubr.f32.mxu0 %v647
  %v649 = vand.u32 %v126, 4294901760
  %650 = vmatmul.mubr.f32.gmra.mrb[0].mxu0 %v649
  %v651 = vpop.f32.mrb[0].mxu0
  %v652 = vadd.f32 %v323, %v651
  %v653 = vpop.f32.mrb[0].mxu0
  %v654 = vadd.f32 %v325, %v653
  %v655 = vand.u32 %v196, 4294901760
  %656 = vmatprep.mubr.f32.mxu0 %v655
  %v657 = vand.u32 %v130, 4294901760
  %658 = vmatmul.mubr.f32.gmra.mrb[0].mxu0 %v657
  %v659 = vpop.f32.mrb[0].mxu0
  %v660 = vadd.f32 %v339, %v659
  %v661 = vpop.f32.mrb[0].mxu0
  %v662 = vadd.f32 %v341, %v661
  %663 = vdwg.mxu0
  %v664 = vand.u32 %v133, 4294901760
  %v665 = vsub.f32 %v133, %v664
  %666 = vmatprep.subr.mxu0 %v665
  %v667 = vand.u32 %v132, 4294901760
  %v668 = vsub.f32 %v132, %v667
  %669 = vmatpush1.msra.mxu0 %v668
  %v670 = vand.u32 %v135, 4294901760
  %v671 = vsub.f32 %v135, %v670
  %672 = vmatprep.subr.mxu0 %v671
  %v673 = vand.u32 %v134, 4294901760
  %v674 = vsub.f32 %v134, %v673
  %675 = vmatpush1.msra.mxu0 %v674
  %v676 = vand.u32 %v137, 4294901760
  %v677 = vsub.f32 %v137, %v676
  %678 = vmatprep.subr.mxu0 %v677
  %v679 = vand.u32 %v136, 4294901760
  %v680 = vsub.f32 %v136, %v679
  %681 = vmatpush1.msra.mxu0 %v680
  %v682 = vand.u32 %v139, 4294901760
  %v683 = vsub.f32 %v139, %v682
  %684 = vmatprep.subr.mxu0 %v683
  %v685 = vand.u32 %v138, 4294901760
  %v686 = vsub.f32 %v138, %v685
  %687 = vmatpush1.msra.mxu0 %v686
  %v688 = vand.u32 %v141, 4294901760
  %v689 = vsub.f32 %v141, %v688
  %690 = vmatprep.subr.mxu0 %v689
  %v691 = vand.u32 %v140, 4294901760
  %v692 = vsub.f32 %v140, %v691
  %693 = vmatpush1.msra.mxu0 %v692
  %v694 = vand.u32 %v143, 4294901760
  %v695 = vsub.f32 %v143, %v694
  %696 = vmatprep.subr.mxu0 %v695
  %v697 = vand.u32 %v142, 4294901760
  %v698 = vsub.f32 %v142, %v697
  %699 = vmatpush1.msra.mxu0 %v698
  %v700 = vand.u32 %v145, 4294901760
  %v701 = vsub.f32 %v145, %v700
  %702 = vmatprep.subr.mxu0 %v701
  %v703 = vand.u32 %v144, 4294901760
  %v704 = vsub.f32 %v144, %v703
  %705 = vmatpush1.msra.mxu0 %v704
  %v706 = vand.u32 %v147, 4294901760
  %v707 = vsub.f32 %v147, %v706
  %708 = vmatprep.subr.mxu0 %v707
  %v709 = vand.u32 %v146, 4294901760
  %v710 = vsub.f32 %v146, %v709
  %711 = vmatpush1.msra.mxu0 %v710
  %v712 = vand.u32 %v149, 4294901760
  %v713 = vsub.f32 %v149, %v712
  %714 = vmatprep.subr.mxu0 %v713
  %v715 = vand.u32 %v148, 4294901760
  %v716 = vsub.f32 %v148, %v715
  %717 = vmatpush1.msra.mxu0 %v716
  %v718 = vand.u32 %v151, 4294901760
  %v719 = vsub.f32 %v151, %v718
  %720 = vmatprep.subr.mxu0 %v719
  %v721 = vand.u32 %v150, 4294901760
  %v722 = vsub.f32 %v150, %v721
  %723 = vmatpush1.msra.mxu0 %v722
  %v724 = vand.u32 %v153, 4294901760
  %v725 = vsub.f32 %v153, %v724
  %726 = vmatprep.subr.mxu0 %v725
  %v727 = vand.u32 %v152, 4294901760
  %v728 = vsub.f32 %v152, %v727
  %729 = vmatpush1.msra.mxu0 %v728
  %v730 = vand.u32 %v155, 4294901760
  %v731 = vsub.f32 %v155, %v730
  %732 = vmatprep.subr.mxu0 %v731
  %v733 = vand.u32 %v154, 4294901760
  %v734 = vsub.f32 %v154, %v733
  %735 = vmatpush1.msra.mxu0 %v734
  %v736 = vand.u32 %v157, 4294901760
  %v737 = vsub.f32 %v157, %v736
  %738 = vmatprep.subr.mxu0 %v737
  %v739 = vand.u32 %v156, 4294901760
  %v740 = vsub.f32 %v156, %v739
  %741 = vmatpush1.msra.mxu0 %v740
  %v742 = vand.u32 %v159, 4294901760
  %v743 = vsub.f32 %v159, %v742
  %744 = vmatprep.subr.mxu0 %v743
  %v745 = vand.u32 %v158, 4294901760
  %v746 = vsub.f32 %v158, %v745
  %747 = vmatpush1.msra.mxu0 %v746
  %v748 = vand.u32 %v161, 4294901760
  %v749 = vsub.f32 %v161, %v748
  %750 = vmatprep.subr.mxu0 %v749
  %v751 = vand.u32 %v160, 4294901760
  %v752 = vsub.f32 %v160, %v751
  %753 = vmatpush1.msra.mxu0 %v752
  %v754 = vand.u32 %v163, 4294901760
  %v755 = vsub.f32 %v163, %v754
  %756 = vmatprep.subr.mxu0 %v755
  %v757 = vand.u32 %v162, 4294901760
  %v758 = vsub.f32 %v162, %v757
  %759 = vmatpush1.msra.mxu0 %v758
  %v760 = vand.u32 %v165, 4294901760
  %v761 = vsub.f32 %v165, %v760
  %762 = vmatprep.subr.mxu0 %v761
  %v763 = vand.u32 %v164, 4294901760
  %v764 = vsub.f32 %v164, %v763
  %765 = vmatpush1.msra.mxu0 %v764
  %v766 = vand.u32 %v167, 4294901760
  %v767 = vsub.f32 %v167, %v766
  %768 = vmatprep.subr.mxu0 %v767
  %v769 = vand.u32 %v166, 4294901760
  %v770 = vsub.f32 %v166, %v769
  %771 = vmatpush1.msra.mxu0 %v770
  %v772 = vand.u32 %v169, 4294901760
  %v773 = vsub.f32 %v169, %v772
  %774 = vmatprep.subr.mxu0 %v773
  %v775 = vand.u32 %v168, 4294901760
  %v776 = vsub.f32 %v168, %v775
  %777 = vmatpush1.msra.mxu0 %v776
  %v778 = vand.u32 %v171, 4294901760
  %v779 = vsub.f32 %v171, %v778
  %780 = vmatprep.subr.mxu0 %v779
  %v781 = vand.u32 %v170, 4294901760
  %v782 = vsub.f32 %v170, %v781
  %783 = vmatpush1.msra.mxu0 %v782
  %v784 = vand.u32 %v173, 4294901760
  %v785 = vsub.f32 %v173, %v784
  %786 = vmatprep.subr.mxu0 %v785
  %v787 = vand.u32 %v172, 4294901760
  %v788 = vsub.f32 %v172, %v787
  %789 = vmatpush1.msra.mxu0 %v788
  %v790 = vand.u32 %v175, 4294901760
  %v791 = vsub.f32 %v175, %v790
  %792 = vmatprep.subr.mxu0 %v791
  %v793 = vand.u32 %v174, 4294901760
  %v794 = vsub.f32 %v174, %v793
  %795 = vmatpush1.msra.mxu0 %v794
  %v796 = vand.u32 %v177, 4294901760
  %v797 = vsub.f32 %v177, %v796
  %798 = vmatprep.subr.mxu0 %v797
  %v799 = vand.u32 %v176, 4294901760
  %v800 = vsub.f32 %v176, %v799
  %801 = vmatpush1.msra.mxu0 %v800
  %v802 = vand.u32 %v179, 4294901760
  %v803 = vsub.f32 %v179, %v802
  %804 = vmatprep.subr.mxu0 %v803
  %v805 = vand.u32 %v178, 4294901760
  %v806 = vsub.f32 %v178, %v805
  %807 = vmatpush1.msra.mxu0 %v806
  %808 = vmatprep.subr.mxu0 0.0
  %809 = vmatpush1.msra.mxu0 0.0
  %810 = vmatprep.subr.mxu0 0.0
  %811 = vmatpush1.msra.mxu0 0.0
  %812 = vmatprep.subr.mxu0 0.0
  %813 = vmatpush1.msra.mxu0 0.0
  %814 = vmatprep.subr.mxu0 0.0
  %815 = vmatpush1.msra.mxu0 0.0
  %816 = vmatprep.subr.mxu0 0.0
  %817 = vmatpush1.msra.mxu0 0.0
  %818 = vmatprep.subr.mxu0 0.0
  %819 = vmatpush1.msra.mxu0 0.0
  %820 = vmatprep.subr.mxu0 0.0
  %821 = vmatpush1.msra.mxu0 0.0
  %822 = vmatprep.subr.mxu0 0.0
  %823 = vmatpush1.msra.mxu0 0.0
  %v824 = vand.u32 %v193, 4294901760
  %v825 = vsub.f32 %v193, %v824
  %826 = vmatprep.mubr.f32.mxu0 %v825
  %v827 = vand.u32 %v126, 4294901760
  %v828 = vsub.f32 %v126, %v827
  %829 = vmatmul.mubr.f32.gmra.mrb[0].mxu0 %v828
  %v830 = vpop.f32.mrb[0].mxu0
  %v831 = vadd.f32 %v652, %v830
  %v832 = vpop.f32.mrb[0].mxu0
  %v833 = vadd.f32 %v654, %v832
  %v834 = vand.u32 %v196, 4294901760
  %v835 = vsub.f32 %v196, %v834
  %836 = vmatprep.mubr.f32.mxu0 %v835
  %v837 = vand.u32 %v130, 4294901760
  %v838 = vsub.f32 %v130, %v837
  %839 = vmatmul.mubr.f32.gmra.mrb[0].mxu0 %v838
  %v840 = vpop.f32.mrb[0].mxu0
  %v841 = vadd.f32 %v660, %v840
  %v842 = vpop.f32.mrb[0].mxu0
  %v843 = vadd.f32 %v662, %v842
  %844 = vdwg.mxu0
  %v845 = vand.u32 %v133, 4294901760
  %846 = vmatprep.subr.mxu0 %v845
  %v847 = vand.u32 %v132, 4294901760
  %848 = vmatpush1.msra.mxu0 %v847
  %v849 = vand.u32 %v135, 4294901760
  %850 = vmatprep.subr.mxu0 %v849
  %v851 = vand.u32 %v134, 4294901760
  %852 = vmatpush1.msra.mxu0 %v851
  %v853 = vand.u32 %v137, 4294901760
  %854 = vmatprep.subr.mxu0 %v853
  %v855 = vand.u32 %v136, 4294901760
  %856 = vmatpush1.msra.mxu0 %v855
  %v857 = vand.u32 %v139, 4294901760
  %858 = vmatprep.subr.mxu0 %v857
  %v859 = vand.u32 %v138, 4294901760
  %860 = vmatpush1.msra.mxu0 %v859
  %v861 = vand.u32 %v141, 4294901760
  %862 = vmatprep.subr.mxu0 %v861
  %v863 = vand.u32 %v140, 4294901760
  %864 = vmatpush1.msra.mxu0 %v863
  %v865 = vand.u32 %v143, 4294901760
  %866 = vmatprep.subr.mxu0 %v865
  %v867 = vand.u32 %v142, 4294901760
  %868 = vmatpush1.msra.mxu0 %v867
  %v869 = vand.u32 %v145, 4294901760
  %870 = vmatprep.subr.mxu0 %v869
  %v871 = vand.u32 %v144, 4294901760
  %872 = vmatpush1.msra.mxu0 %v871
  %v873 = vand.u32 %v147, 4294901760
  %874 = vmatprep.subr.mxu0 %v873
  %v875 = vand.u32 %v146, 4294901760
  %876 = vmatpush1.msra.mxu0 %v875
  %v877 = vand.u32 %v149, 4294901760
  %878 = vmatprep.subr.mxu0 %v877
  %v879 = vand.u32 %v148, 4294901760
  %880 = vmatpush1.msra.mxu0 %v879
  %v881 = vand.u32 %v151, 4294901760
  %882 = vmatprep.subr.mxu0 %v881
  %v883 = vand.u32 %v150, 4294901760
  %884 = vmatpush1.msra.mxu0 %v883
  %v885 = vand.u32 %v153, 4294901760
  %886 = vmatprep.subr.mxu0 %v885
  %v887 = vand.u32 %v152, 4294901760
  %888 = vmatpush1.msra.mxu0 %v887
  %v889 = vand.u32 %v155, 4294901760
  %890 = vmatprep.subr.mxu0 %v889
  %v891 = vand.u32 %v154, 4294901760
  %892 = vmatpush1.msra.mxu0 %v891
  %v893 = vand.u32 %v157, 4294901760
  %894 = vmatprep.subr.mxu0 %v893
  %v895 = vand.u32 %v156, 4294901760
  %896 = vmatpush1.msra.mxu0 %v895
  %v897 = vand.u32 %v159, 4294901760
  %898 = vmatprep.subr.mxu0 %v897
  %v899 = vand.u32 %v158, 4294901760
  %900 = vmatpush1.msra.mxu0 %v899
  %v901 = vand.u32 %v161, 4294901760
  %902 = vmatprep.subr.mxu0 %v901
  %v903 = vand.u32 %v160, 4294901760
  %904 = vmatpush1.msra.mxu0 %v903
  %v905 = vand.u32 %v163, 4294901760
  %906 = vmatprep.subr.mxu0 %v905
  %v907 = vand.u32 %v162, 4294901760
  %908 = vmatpush1.msra.mxu0 %v907
  %v909 = vand.u32 %v165, 4294901760
  %910 = vmatprep.subr.mxu0 %v909
  %v911 = vand.u32 %v164, 4294901760
  %912 = vmatpush1.msra.mxu0 %v911
  %v913 = vand.u32 %v167, 4294901760
  %914 = vmatprep.subr.mxu0 %v913
  %v915 = vand.u32 %v166, 4294901760
  %916 = vmatpush1.msra.mxu0 %v915
  %v917 = vand.u32 %v169, 4294901760
  %918 = vmatprep.subr.mxu0 %v917
  %v919 = vand.u32 %v168, 4294901760
  %920 = vmatpush1.msra.mxu0 %v919
  %v921 = vand.u32 %v171, 4294901760
  %922 = vmatprep.subr.mxu0 %v921
  %v923 = vand.u32 %v170, 4294901760
  %924 = vmatpush1.msra.mxu0 %v923
  %v925 = vand.u32 %v173, 4294901760
  %926 = vmatprep.subr.mxu0 %v925
  %v927 = vand.u32 %v172, 4294901760
  %928 = vmatpush1.msra.mxu0 %v927
  %v929 = vand.u32 %v175, 4294901760
  %930 = vmatprep.subr.mxu0 %v929
  %v931 = vand.u32 %v174, 4294901760
  %932 = vmatpush1.msra.mxu0 %v931
  %v933 = vand.u32 %v177, 4294901760
  %934 = vmatprep.subr.mxu0 %v933
  %v935 = vand.u32 %v176, 4294901760
  %936 = vmatpush1.msra.mxu0 %v935
  %v937 = vand.u32 %v179, 4294901760
  %938 = vmatprep.subr.mxu0 %v937
  %v939 = vand.u32 %v178, 4294901760
  %940 = vmatpush1.msra.mxu0 %v939
  %941 = vmatprep.subr.mxu0 0.0
  %942 = vmatpush1.msra.mxu0 0.0
  %943 = vmatprep.subr.mxu0 0.0
  %944 = vmatpush1.msra.mxu0 0.0
  %945 = vmatprep.subr.mxu0 0.0
  %946 = vmatpush1.msra.mxu0 0.0
  %947 = vmatprep.subr.mxu0 0.0
  %948 = vmatpush1.msra.mxu0 0.0
  %949 = vmatprep.subr.mxu0 0.0
  %950 = vmatpush1.msra.mxu0 0.0
  %951 = vmatprep.subr.mxu0 0.0
  %952 = vmatpush1.msra.mxu0 0.0
  %953 = vmatprep.subr.mxu0 0.0
  %954 = vmatpush1.msra.mxu0 0.0
  %955 = vmatprep.subr.mxu0 0.0
  %956 = vmatpush1.msra.mxu0 0.0
  %v957 = vand.u32 %v193, 4294901760
  %v958 = vsub.f32 %v193, %v957
  %v959 = vand.u32 %v958, 4294901760
  %960 = vmatprep.mubr.f32.mxu0 %v959
  %v961 = vand.u32 %v126, 4294901760
  %v962 = vsub.f32 %v126, %v961
  %v963 = vand.u32 %v962, 4294901760
  %964 = vmatmul.mubr.f32.gmra.mrb[0].mxu0 %v963
  %v965 = vpop.f32.mrb[0].mxu0
  %v966 = vadd.f32 %v831, %v965
  %v967 = vpop.f32.mrb[0].mxu0
  %v968 = vadd.f32 %v833, %v967
  %v969 = vand.u32 %v196, 4294901760
  %v970 = vsub.f32 %v196, %v969
  %v971 = vand.u32 %v970, 4294901760
  %972 = vmatprep.mubr.f32.mxu0 %v971
  %v973 = vand.u32 %v130, 4294901760
  %v974 = vsub.f32 %v130, %v973
  %v975 = vand.u32 %v974, 4294901760
  %976 = vmatmul.mubr.f32.gmra.mrb[0].mxu0 %v975
  %v977 = vpop.f32.mrb[0].mxu0
  %v978 = vadd.f32 %v841, %v977
  %v979 = vpop.f32.mrb[0].mxu0
  %v980 = vadd.f32 %v843, %v979
  %981 = vdwg.mxu0
  %v982 = vand.u32 %v133, 4294901760
  %v983 = vsub.f32 %v133, %v982
  %v984 = vand.u32 %v983, 4294901760
  %985 = vmatprep.subr.mxu0 %v984
  %v986 = vand.u32 %v132, 4294901760
  %v987 = vsub.f32 %v132, %v986
  %v988 = vand.u32 %v987, 4294901760
  %989 = vmatpush1.msra.mxu0 %v988
  %v990 = vand.u32 %v135, 4294901760
  %v991 = vsub.f32 %v135, %v990
  %v992 = vand.u32 %v991, 4294901760
  %993 = vmatprep.subr.mxu0 %v992
  %v994 = vand.u32 %v134, 4294901760
  %v995 = vsub.f32 %v134, %v994
  %v996 = vand.u32 %v995, 4294901760
  %997 = vmatpush1.msra.mxu0 %v996
  %v998 = vand.u32 %v137, 4294901760
  %v999 = vsub.f32 %v137, %v998
  %v1000 = vand.u32 %v999, 4294901760
  %1001 = vmatprep.subr.mxu0 %v1000
  %v1002 = vand.u32 %v136, 4294901760
  %v1003 = vsub.f32 %v136, %v1002
  %v1004 = vand.u32 %v1003, 4294901760
  %1005 = vmatpush1.msra.mxu0 %v1004
  %v1006 = vand.u32 %v139, 4294901760
  %v1007 = vsub.f32 %v139, %v1006
  %v1008 = vand.u32 %v1007, 4294901760
  %1009 = vmatprep.subr.mxu0 %v1008
  %v1010 = vand.u32 %v138, 4294901760
  %v1011 = vsub.f32 %v138, %v1010
  %v1012 = vand.u32 %v1011, 4294901760
  %1013 = vmatpush1.msra.mxu0 %v1012
  %v1014 = vand.u32 %v141, 4294901760
  %v1015 = vsub.f32 %v141, %v1014
  %v1016 = vand.u32 %v1015, 4294901760
  %1017 = vmatprep.subr.mxu0 %v1016
  %v1018 = vand.u32 %v140, 4294901760
  %v1019 = vsub.f32 %v140, %v1018
  %v1020 = vand.u32 %v1019, 4294901760
  %1021 = vmatpush1.msra.mxu0 %v1020
  %v1022 = vand.u32 %v143, 4294901760
  %v1023 = vsub.f32 %v143, %v1022
  %v1024 = vand.u32 %v1023, 4294901760
  %1025 = vmatprep.subr.mxu0 %v1024
  %v1026 = vand.u32 %v142, 4294901760
  %v1027 = vsub.f32 %v142, %v1026
  %v1028 = vand.u32 %v1027, 4294901760
  %1029 = vmatpush1.msra.mxu0 %v1028
  %v1030 = vand.u32 %v145, 4294901760
  %v1031 = vsub.f32 %v145, %v1030
  %v1032 = vand.u32 %v1031, 4294901760
  %1033 = vmatprep.subr.mxu0 %v1032
  %v1034 = vand.u32 %v144, 4294901760
  %v1035 = vsub.f32 %v144, %v1034
  %v1036 = vand.u32 %v1035, 4294901760
  %1037 = vmatpush1.msra.mxu0 %v1036
  %v1038 = vand.u32 %v147, 4294901760
  %v1039 = vsub.f32 %v147, %v1038
  %v1040 = vand.u32 %v1039, 4294901760
  %1041 = vmatprep.subr.mxu0 %v1040
  %v1042 = vand.u32 %v146, 4294901760
  %v1043 = vsub.f32 %v146, %v1042
  %v1044 = vand.u32 %v1043, 4294901760
  %1045 = vmatpush1.msra.mxu0 %v1044
  %v1046 = vand.u32 %v149, 4294901760
  %v1047 = vsub.f32 %v149, %v1046
  %v1048 = vand.u32 %v1047, 4294901760
  %1049 = vmatprep.subr.mxu0 %v1048
  %v1050 = vand.u32 %v148, 4294901760
  %v1051 = vsub.f32 %v148, %v1050
  %v1052 = vand.u32 %v1051, 4294901760
  %1053 = vmatpush1.msra.mxu0 %v1052
  %v1054 = vand.u32 %v151, 4294901760
  %v1055 = vsub.f32 %v151, %v1054
  %v1056 = vand.u32 %v1055, 4294901760
  %1057 = vmatprep.subr.mxu0 %v1056
  %v1058 = vand.u32 %v150, 4294901760
  %v1059 = vsub.f32 %v150, %v1058
  %v1060 = vand.u32 %v1059, 4294901760
  %1061 = vmatpush1.msra.mxu0 %v1060
  %v1062 = vand.u32 %v153, 4294901760
  %v1063 = vsub.f32 %v153, %v1062
  %v1064 = vand.u32 %v1063, 4294901760
  %1065 = vmatprep.subr.mxu0 %v1064
  %v1066 = vand.u32 %v152, 4294901760
  %v1067 = vsub.f32 %v152, %v1066
  %v1068 = vand.u32 %v1067, 4294901760
  %1069 = vmatpush1.msra.mxu0 %v1068
  %v1070 = vand.u32 %v155, 4294901760
  %v1071 = vsub.f32 %v155, %v1070
  %v1072 = vand.u32 %v1071, 4294901760
  %1073 = vmatprep.subr.mxu0 %v1072
  %v1074 = vand.u32 %v154, 4294901760
  %v1075 = vsub.f32 %v154, %v1074
  %v1076 = vand.u32 %v1075, 4294901760
  %1077 = vmatpush1.msra.mxu0 %v1076
  %v1078 = vand.u32 %v157, 4294901760
  %v1079 = vsub.f32 %v157, %v1078
  %v1080 = vand.u32 %v1079, 4294901760
  %1081 = vmatprep.subr.mxu0 %v1080
  %v1082 = vand.u32 %v156, 4294901760
  %v1083 = vsub.f32 %v156, %v1082
  %v1084 = vand.u32 %v1083, 4294901760
  %1085 = vmatpush1.msra.mxu0 %v1084
  %v1086 = vand.u32 %v159, 4294901760
  %v1087 = vsub.f32 %v159, %v1086
  %v1088 = vand.u32 %v1087, 4294901760
  %1089 = vmatprep.subr.mxu0 %v1088
  %v1090 = vand.u32 %v158, 4294901760
  %v1091 = vsub.f32 %v158, %v1090
  %v1092 = vand.u32 %v1091, 4294901760
  %1093 = vmatpush1.msra.mxu0 %v1092
  %v1094 = vand.u32 %v161, 4294901760
  %v1095 = vsub.f32 %v161, %v1094
  %v1096 = vand.u32 %v1095, 4294901760
  %1097 = vmatprep.subr.mxu0 %v1096
  %v1098 = vand.u32 %v160, 4294901760
  %v1099 = vsub.f32 %v160, %v1098
  %v1100 = vand.u32 %v1099, 4294901760
  %1101 = vmatpush1.msra.mxu0 %v1100
  %v1102 = vand.u32 %v163, 4294901760
  %v1103 = vsub.f32 %v163, %v1102
  %v1104 = vand.u32 %v1103, 4294901760
  %1105 = vmatprep.subr.mxu0 %v1104
  %v1106 = vand.u32 %v162, 4294901760
  %v1107 = vsub.f32 %v162, %v1106
  %v1108 = vand.u32 %v1107, 4294901760
  %1109 = vmatpush1.msra.mxu0 %v1108
  %v1110 = vand.u32 %v165, 4294901760
  %v1111 = vsub.f32 %v165, %v1110
  %v1112 = vand.u32 %v1111, 4294901760
  %1113 = vmatprep.subr.mxu0 %v1112
  %v1114 = vand.u32 %v164, 4294901760
  %v1115 = vsub.f32 %v164, %v1114
  %v1116 = vand.u32 %v1115, 4294901760
  %1117 = vmatpush1.msra.mxu0 %v1116
  %v1118 = vand.u32 %v167, 4294901760
  %v1119 = vsub.f32 %v167, %v1118
  %v1120 = vand.u32 %v1119, 4294901760
  %1121 = vmatprep.subr.mxu0 %v1120
  %v1122 = vand.u32 %v166, 4294901760
  %v1123 = vsub.f32 %v166, %v1122
  %v1124 = vand.u32 %v1123, 4294901760
  %1125 = vmatpush1.msra.mxu0 %v1124
  %v1126 = vand.u32 %v169, 4294901760
  %v1127 = vsub.f32 %v169, %v1126
  %v1128 = vand.u32 %v1127, 4294901760
  %1129 = vmatprep.subr.mxu0 %v1128
  %v1130 = vand.u32 %v168, 4294901760
  %v1131 = vsub.f32 %v168, %v1130
  %v1132 = vand.u32 %v1131, 4294901760
  %1133 = vmatpush1.msra.mxu0 %v1132
  %v1134 = vand.u32 %v171, 4294901760
  %v1135 = vsub.f32 %v171, %v1134
  %v1136 = vand.u32 %v1135, 4294901760
  %1137 = vmatprep.subr.mxu0 %v1136
  %v1138 = vand.u32 %v170, 4294901760
  %v1139 = vsub.f32 %v170, %v1138
  %v1140 = vand.u32 %v1139, 4294901760
  %1141 = vmatpush1.msra.mxu0 %v1140
  %v1142 = vand.u32 %v173, 4294901760
  %v1143 = vsub.f32 %v173, %v1142
  %v1144 = vand.u32 %v1143, 4294901760
  %1145 = vmatprep.subr.mxu0 %v1144
  %v1146 = vand.u32 %v172, 4294901760
  %v1147 = vsub.f32 %v172, %v1146
  %v1148 = vand.u32 %v1147, 4294901760
  %1149 = vmatpush1.msra.mxu0 %v1148
  %v1150 = vand.u32 %v175, 4294901760
  %v1151 = vsub.f32 %v175, %v1150
  %v1152 = vand.u32 %v1151, 4294901760
  %1153 = vmatprep.subr.mxu0 %v1152
  %v1154 = vand.u32 %v174, 4294901760
  %v1155 = vsub.f32 %v174, %v1154
  %v1156 = vand.u32 %v1155, 4294901760
  %1157 = vmatpush1.msra.mxu0 %v1156
  %v1158 = vand.u32 %v177, 4294901760
  %v1159 = vsub.f32 %v177, %v1158
  %v1160 = vand.u32 %v1159, 4294901760
  %1161 = vmatprep.subr.mxu0 %v1160
  %v1162 = vand.u32 %v176, 4294901760
  %v1163 = vsub.f32 %v176, %v1162
  %v1164 = vand.u32 %v1163, 4294901760
  %1165 = vmatpush1.msra.mxu0 %v1164
  %v1166 = vand.u32 %v179, 4294901760
  %v1167 = vsub.f32 %v179, %v1166
  %v1168 = vand.u32 %v1167, 4294901760
  %1169 = vmatprep.subr.mxu0 %v1168
  %v1170 = vand.u32 %v178, 4294901760
  %v1171 = vsub.f32 %v178, %v1170
  %v1172 = vand.u32 %v1171, 4294901760
  %1173 = vmatpush1.msra.mxu0 %v1172
  %1174 = vmatprep.subr.mxu0 0.0
  %1175 = vmatpush1.msra.mxu0 0.0
  %1176 = vmatprep.subr.mxu0 0.0
  %1177 = vmatpush1.msra.mxu0 0.0
  %1178 = vmatprep.subr.mxu0 0.0
  %1179 = vmatpush1.msra.mxu0 0.0
  %1180 = vmatprep.subr.mxu0 0.0
  %1181 = vmatpush1.msra.mxu0 0.0
  %1182 = vmatprep.subr.mxu0 0.0
  %1183 = vmatpush1.msra.mxu0 0.0
  %1184 = vmatprep.subr.mxu0 0.0
  %1185 = vmatpush1.msra.mxu0 0.0
  %1186 = vmatprep.subr.mxu0 0.0
  %1187 = vmatpush1.msra.mxu0 0.0
  %1188 = vmatprep.subr.mxu0 0.0
  %1189 = vmatpush1.msra.mxu0 0.0
  %v1190 = vand.u32 %v193, 4294901760
  %1191 = vmatprep.mubr.f32.mxu0 %v1190
  %v1192 = vand.u32 %v126, 4294901760
  %1193 = vmatmul.mubr.f32.gmra.mrb[0].mxu0 %v1192
  %v1194 = vpop.f32.mrb[0].mxu0
  %v1195 = vadd.f32 %v966, %v1194
  %v1196 = vpop.f32.mrb[0].mxu0
  %v1197 = vadd.f32 %v968, %v1196
  %v1198 = vand.u32 %v196, 4294901760
  %1199 = vmatprep.mubr.f32.mxu0 %v1198
  %v1200 = vand.u32 %v130, 4294901760
  %1201 = vmatmul.mubr.f32.gmra.mrb[0].mxu0 %v1200
  %v1202 = vpop.f32.mrb[0].mxu0
  %v1203 = vadd.f32 %v978, %v1202
  %v1204 = vpop.f32.mrb[0].mxu0
  %v1205 = vadd.f32 %v980, %v1204
  %1206 = vdwg.mxu0
  %v1207 = vand.u32 %v133, 4294901760
  %1208 = vmatprep.subr.mxu0 %v1207
  %v1209 = vand.u32 %v132, 4294901760
  %1210 = vmatpush1.msra.mxu0 %v1209
  %v1211 = vand.u32 %v135, 4294901760
  %1212 = vmatprep.subr.mxu0 %v1211
  %v1213 = vand.u32 %v134, 4294901760
  %1214 = vmatpush1.msra.mxu0 %v1213
  %v1215 = vand.u32 %v137, 4294901760
  %1216 = vmatprep.subr.mxu0 %v1215
  %v1217 = vand.u32 %v136, 4294901760
  %1218 = vmatpush1.msra.mxu0 %v1217
  %v1219 = vand.u32 %v139, 4294901760
  %1220 = vmatprep.subr.mxu0 %v1219
  %v1221 = vand.u32 %v138, 4294901760
  %1222 = vmatpush1.msra.mxu0 %v1221
  %v1223 = vand.u32 %v141, 4294901760
  %1224 = vmatprep.subr.mxu0 %v1223
  %v1225 = vand.u32 %v140, 4294901760
  %1226 = vmatpush1.msra.mxu0 %v1225
  %v1227 = vand.u32 %v143, 4294901760
  %1228 = vmatprep.subr.mxu0 %v1227
  %v1229 = vand.u32 %v142, 4294901760
  %1230 = vmatpush1.msra.mxu0 %v1229
  %v1231 = vand.u32 %v145, 4294901760
  %1232 = vmatprep.subr.mxu0 %v1231
  %v1233 = vand.u32 %v144, 4294901760
  %1234 = vmatpush1.msra.mxu0 %v1233
  %v1235 = vand.u32 %v147, 4294901760
  %1236 = vmatprep.subr.mxu0 %v1235
  %v1237 = vand.u32 %v146, 4294901760
  %1238 = vmatpush1.msra.mxu0 %v1237
  %v1239 = vand.u32 %v149, 4294901760
  %1240 = vmatprep.subr.mxu0 %v1239
  %v1241 = vand.u32 %v148, 4294901760
  %1242 = vmatpush1.msra.mxu0 %v1241
  %v1243 = vand.u32 %v151, 4294901760
  %1244 = vmatprep.subr.mxu0 %v1243
  %v1245 = vand.u32 %v150, 4294901760
  %1246 = vmatpush1.msra.mxu0 %v1245
  %v1247 = vand.u32 %v153, 4294901760
  %1248 = vmatprep.subr.mxu0 %v1247
  %v1249 = vand.u32 %v152, 4294901760
  %1250 = vmatpush1.msra.mxu0 %v1249
  %v1251 = vand.u32 %v155, 4294901760
  %1252 = vmatprep.subr.mxu0 %v1251
  %v1253 = vand.u32 %v154, 4294901760
  %1254 = vmatpush1.msra.mxu0 %v1253
  %v1255 = vand.u32 %v157, 4294901760
  %1256 = vmatprep.subr.mxu0 %v1255
  %v1257 = vand.u32 %v156, 4294901760
  %1258 = vmatpush1.msra.mxu0 %v1257
  %v1259 = vand.u32 %v159, 4294901760
  %1260 = vmatprep.subr.mxu0 %v1259
  %v1261 = vand.u32 %v158, 4294901760
  %1262 = vmatpush1.msra.mxu0 %v1261
  %v1263 = vand.u32 %v161, 4294901760
  %1264 = vmatprep.subr.mxu0 %v1263
  %v1265 = vand.u32 %v160, 4294901760
  %1266 = vmatpush1.msra.mxu0 %v1265
  %v1267 = vand.u32 %v163, 4294901760
  %1268 = vmatprep.subr.mxu0 %v1267
  %v1269 = vand.u32 %v162, 4294901760
  %1270 = vmatpush1.msra.mxu0 %v1269
  %v1271 = vand.u32 %v165, 4294901760
  %1272 = vmatprep.subr.mxu0 %v1271
  %v1273 = vand.u32 %v164, 4294901760
  %1274 = vmatpush1.msra.mxu0 %v1273
  %v1275 = vand.u32 %v167, 4294901760
  %1276 = vmatprep.subr.mxu0 %v1275
  %v1277 = vand.u32 %v166, 4294901760
  %1278 = vmatpush1.msra.mxu0 %v1277
  %v1279 = vand.u32 %v169, 4294901760
  %1280 = vmatprep.subr.mxu0 %v1279
  %v1281 = vand.u32 %v168, 4294901760
  %1282 = vmatpush1.msra.mxu0 %v1281
  %v1283 = vand.u32 %v171, 4294901760
  %1284 = vmatprep.subr.mxu0 %v1283
  %v1285 = vand.u32 %v170, 4294901760
  %1286 = vmatpush1.msra.mxu0 %v1285
  %v1287 = vand.u32 %v173, 4294901760
  %1288 = vmatprep.subr.mxu0 %v1287
  %v1289 = vand.u32 %v172, 4294901760
  %1290 = vmatpush1.msra.mxu0 %v1289
  %v1291 = vand.u32 %v175, 4294901760
  %1292 = vmatprep.subr.mxu0 %v1291
  %v1293 = vand.u32 %v174, 4294901760
  %1294 = vmatpush1.msra.mxu0 %v1293
  %v1295 = vand.u32 %v177, 4294901760
  %1296 = vmatprep.subr.mxu0 %v1295
  %v1297 = vand.u32 %v176, 4294901760
  %1298 = vmatpush1.msra.mxu0 %v1297
  %v1299 = vand.u32 %v179, 4294901760
  %1300 = vmatprep.subr.mxu0 %v1299
  %v1301 = vand.u32 %v178, 4294901760
  %1302 = vmatpush1.msra.mxu0 %v1301
  %1303 = vmatprep.subr.mxu0 0.0
  %1304 = vmatpush1.msra.mxu0 0.0
  %1305 = vmatprep.subr.mxu0 0.0
  %1306 = vmatpush1.msra.mxu0 0.0
  %1307 = vmatprep.subr.mxu0 0.0
  %1308 = vmatpush1.msra.mxu0 0.0
  %1309 = vmatprep.subr.mxu0 0.0
  %1310 = vmatpush1.msra.mxu0 0.0
  %1311 = vmatprep.subr.mxu0 0.0
  %1312 = vmatpush1.msra.mxu0 0.0
  %1313 = vmatprep.subr.mxu0 0.0
  %1314 = vmatpush1.msra.mxu0 0.0
  %1315 = vmatprep.subr.mxu0 0.0
  %1316 = vmatpush1.msra.mxu0 0.0
  %1317 = vmatprep.subr.mxu0 0.0
  %1318 = vmatpush1.msra.mxu0 0.0
  %v1319 = vand.u32 %v193, 4294901760
  %1320 = vmatprep.mubr.f32.mxu0 %v1319
  %v1321 = vand.u32 %v126, 4294901760
  %1322 = vmatmul.mubr.f32.gmra.mrb[0].mxu0 %v1321
  %v1323 = vpop.f32.mrb[0].mxu0
  %v1324 = vadd.f32 %v1195, %v1323
  %v1325 = vpop.f32.mrb[0].mxu0
  %v1326 = vadd.f32 %v1197, %v1325
  %v1327 = vand.u32 %v196, 4294901760
  %1328 = vmatprep.mubr.f32.mxu0 %v1327
  %v1329 = vand.u32 %v130, 4294901760
  %1330 = vmatmul.mubr.f32.gmra.mrb[0].mxu0 %v1329
  %v1331 = vpop.f32.mrb[0].mxu0
  %v1332 = vadd.f32 %v1203, %v1331
  %v1333 = vpop.f32.mrb[0].mxu0
  %v1334 = vadd.f32 %v1205, %v1333
  %1335 = vdwg.mxu0
  %v1336 = vmax.f32 %v1324, 0.0
  %v1337 = vmax.f32 %v1326, 0.0
  %v1338 = vmax.f32 %v1332, 0.0
  %v1339 = vmax.f32 %v1334, 0.0
  %v1342 = vrot.slane %v1336, 2
  %v1343 = vrot.slane %v1337, 2
  %1344 = vrot.lane.b32.xlu0 %v1342, 96
  %v1345 = vpop.permute.xlu0 %1344
  %1346 = vrot.lane.b32.xlu0 %v1343, 96
  %v1347 = vpop.permute.xlu0 %1346
  %vm1348 = vcmask 785408
  %v1349 = vsel %vm1348, %v1345, %v1347
  %v1353 = vrot.slane %v1336, 4
  %v1354 = vrot.slane %v1337, 4
  %1355 = vrot.lane.b32.xlu0 %v1353, 64
  %v1356 = vpop.permute.xlu0 %1355
  %1357 = vrot.lane.b32.xlu0 %v1354, 64
  %v1358 = vpop.permute.xlu0 %1357
  %v1359 = vsel %vm57, %v1356, %v1358
  %v1363 = vsel %vm1348, %v1337, %v1345
  %v1364 = vsel %vm57, %v1347, %v1356
  %v1367 = vrot.slane %v1338, 4
  %v1368 = vrot.slane %v1339, 4
  %1369 = vrot.lane.b32.xlu0 %v1367, 64
  %v1370 = vpop.permute.xlu0 %1369
  %1371 = vrot.lane.b32.xlu0 %v1368, 64
  %v1372 = vpop.permute.xlu0 %1371
  %v1373 = vsel %vm57, %v1370, %v1372
  %v1375 = vsel %vm57, %v1347, %v1370
  %v1376 = vrot.slane %v1338, 2
  %v1377 = vrot.slane %v1339, 2
  %1378 = vrot.lane.b32.xlu0 %v1376, 96
  %v1379 = vpop.permute.xlu0 %1378
  %1380 = vrot.lane.b32.xlu0 %v1377, 96
  %v1381 = vpop.permute.xlu0 %1380
  %v1382 = vsel %vm1348, %v1379, %v1381
  %v1385 = vsel %vm1348, %v1339, %v1379
  %v1386 = vsel %vm57, %v1381, %v1370
  %v1389 = vrot.slane %v1363, 2
  %v1390 = vrot.slane %v1349, 2
  %v1391 = vrot.slane %v1375, 2
  %v1392 = vrot.slane %v1373, 2
  %v1393 = vrot.slane %v1372, 2
  %v1402 = vrot.slane %v1385, 4
  %v1403 = vrot.slane %v1382, 4
  %v1404 = vrot.slane %v1386, 4
  %v1405 = vrot.slane %v1373, 4
  %v1406 = vrot.slane %v1372, 4
  %v1413 = vsel %vm119, %v1336, %v1342
  %v1414 = vsel %vm119, %v1363, %v1389
  %v1415 = vsel %vm119, %v1349, %v1390
  %v1416 = vsel %vm119, %v1364, %v1391
  %v1417 = vsel %vm119, %v1359, %v1392
  %v1418 = vsel %vm119, %v1358, %v1393
  %v1419 = vsel %vm122, %v1413, %v1367
  %v1420 = vsel %vm122, %v1414, %v1402
  %v1421 = vsel %vm122, %v1415, %v1403
  %v1422 = vsel %vm122, %v1416, %v1404
  %v1423 = vsel %vm122, %v1417, %v1405
  %v1424 = vsel %vm122, %v1418, %v1406
  %v1425 = vld [vmem:[%s3] sm:$0xff]
  %v1426 = vld [vmem:[%s3 + $0x8] sm:$0xff]
  %v1427 = vld [vmem:[%s3 + $0x10] sm:$0xff]
  %v1428 = vld [vmem:[%s3 + $0x18] sm:$0xff]
  %v1429 = vld [vmem:[%s3 + $0x20] sm:$0xff]
  %v1430 = vld [vmem:[%s3 + $0x28] sm:$0xff]
  %v1431 = vld [vmem:[%s3 + $0x30] sm:$0xff]
  %v1432 = vld [vmem:[%s3 + $0x38] sm:$0xff]
  %v1433 = vld [vmem:[%s3 + $0x40] sm:$0xff]
  %v1434 = vld [vmem:[%s3 + $0x48] sm:$0xff]
  %v1435 = vld [vmem:[%s3 + $0x50] sm:$0xff]
  %v1436 = vld [vmem:[%s3 + $0x58] sm:$0xff]
  %v1437 = vld [vmem:[%s3 + $0x60] sm:$0xff]
  %v1438 = vld [vmem:[%s3 + $0x68] sm:$0xff]
  %v1439 = vld [vmem:[%s3 + $0x70] sm:$0xff]
  %v1440 = vld [vmem:[%s3 + $0x78] sm:$0xff]
  %v1441 = vld [vmem:[%s3 + $0x80] sm:$0xff]
  %v1442 = vld [vmem:[%s3 + $0x88] sm:$0xff]
  %v1443 = vld [vmem:[%s3 + $0x90] sm:$0xff]
  %v1444 = vld [vmem:[%s3 + $0x98] sm:$0xff]
  %v1445 = vld [vmem:[%s3 + $0xa0] sm:$0xff]
  %v1446 = vld [vmem:[%s3 + $0xa8] sm:$0xff]
  %v1447 = vld [vmem:[%s3 + $0xb0] sm:$0xff]
  %v1448 = vld [vmem:[%s3 + $0xb8] sm:$0xff]
  %v1449 = vld [vmem:[%s3 + $0xc0] sm:$0xff]
  %v1450 = vld [vmem:[%s3 + $0xc8] sm:$0xff]
  %v1451 = vld [vmem:[%s3 + $0xd0] sm:$0xff]
  %v1452 = vld [vmem:[%s3 + $0xd8] sm:$0xff]
  %v1453 = vld [vmem:[%s3 + $0xe0] sm:$0xff]
  %v1454 = vld [vmem:[%s3 + $0xe8] sm:$0xff]
  %v1455 = vld [vmem:[%s3 + $0xf0] sm:$0xff]
  %v1456 = vld [vmem:[%s3 + $0xf8] sm:$0xff]
  %v1457 = vld [vmem:[%s3 + $0x100] sm:$0xff]
  %v1458 = vld [vmem:[%s3 + $0x108] sm:$0xff]
  %v1459 = vld [vmem:[%s3 + $0x110] sm:$0xff]
  %v1460 = vld [vmem:[%s3 + $0x118] sm:$0xff]
  %v1461 = vld [vmem:[%s3 + $0x120] sm:$0xff]
  %v1462 = vld [vmem:[%s3 + $0x128] sm:$0xff]
  %v1463 = vld [vmem:[%s3 + $0x130] sm:$0xff]
  %v1464 = vld [vmem:[%s3 + $0x138] sm:$0xff]
  %v1465 = vld [vmem:[%s3 + $0x140] sm:$0xff]
  %v1466 = vld [vmem:[%s3 + $0x148] sm:$0xff]
  %v1467 = vld [vmem:[%s3 + $0x150] sm:$0xff]
  %v1468 = vld [vmem:[%s3 + $0x158] sm:$0xff]
  %v1469 = vld [vmem:[%s3 + $0x160] sm:$0xff]
  %v1470 = vld [vmem:[%s3 + $0x168] sm:$0xff]
  %v1471 = vld [vmem:[%s3 + $0x170] sm:$0xff]
  %v1472 = vld [vmem:[%s3 + $0x178] sm:$0xff]
  %v1473 = vld [vmem:[%s3 + $0x180] sm:$0xff]
  %v1474 = vld [vmem:[%s3 + $0x188] sm:$0xff]
  %v1475 = vld [vmem:[%s3 + $0x190] sm:$0xff]
  %v1476 = vld [vmem:[%s3 + $0x198] sm:$0xff]
  %v1477 = vld [vmem:[%s3 + $0x1a0] sm:$0xff]
  %v1478 = vld [vmem:[%s3 + $0x1a8] sm:$0xff]
  %v1479 = vld [vmem:[%s3 + $0x1b0] sm:$0xff]
  %v1480 = vld [vmem:[%s3 + $0x1b8] sm:$0xff]
  %v1481 = vld [vmem:[%s3 + $0x1c0] sm:$0xff]
  %v1482 = vld [vmem:[%s3 + $0x1c8] sm:$0xff]
  %v1483 = vld [vmem:[%s3 + $0x1d0] sm:$0xff]
  %v1484 = vld [vmem:[%s3 + $0x1d8] sm:$0xff]
  %v1485 = vld [vmem:[%s3 + $0x1e0] sm:$0xff]
  %v1486 = vld [vmem:[%s3 + $0x1e8] sm:$0xff]
  %v1487 = vld [vmem:[%s3 + $0x1f0] sm:$0xff]
  %v1488 = vld [vmem:[%s3 + $0x1f8] sm:$0xff]
  %v1489 = vld [vmem:[%s3 + $0x200] sm:$0xff]
  %v1490 = vld [vmem:[%s3 + $0x208] sm:$0xff]
  %v1491 = vld [vmem:[%s3 + $0x210] sm:$0xff]
  %v1492 = vld [vmem:[%s3 + $0x218] sm:$0xff]
  %v1493 = vld [vmem:[%s3 + $0x220] sm:$0xff]
  %v1494 = vld [vmem:[%s3 + $0x228] sm:$0xff]
  %v1495 = vld [vmem:[%s3 + $0x230] sm:$0xff]
  %v1496 = vld [vmem:[%s3 + $0x238] sm:$0xff]
  %v1497 = vld [vmem:[%s3 + $0x240] sm:$0xff]
  %v1498 = vld [vmem:[%s3 + $0x248] sm:$0xff]
  %v1499 = vld [vmem:[%s3 + $0x250] sm:$0xff]
  %v1500 = vld [vmem:[%s3 + $0x258] sm:$0xff]
  %v1501 = vld [vmem:[%s3 + $0x260] sm:$0xff]
  %v1502 = vld [vmem:[%s3 + $0x268] sm:$0xff]
  %v1503 = vld [vmem:[%s3 + $0x270] sm:$0xff]
  %v1504 = vld [vmem:[%s3 + $0x278] sm:$0xff]
  %v1505 = vld [vmem:[%s3 + $0x280] sm:$0xff]
  %v1506 = vld [vmem:[%s3 + $0x288] sm:$0xff]
  %v1507 = vld [vmem:[%s3 + $0x290] sm:$0xff]
  %v1508 = vld [vmem:[%s3 + $0x298] sm:$0xff]
  %v1509 = vld [vmem:[%s3 + $0x2a0] sm:$0xff]
  %v1510 = vld [vmem:[%s3 + $0x2a8] sm:$0xff]
  %v1511 = vld [vmem:[%s3 + $0x2b0] sm:$0xff]
  %v1512 = vld [vmem:[%s3 + $0x2b8] sm:$0xff]
  %v1513 = vld [vmem:[%s3 + $0x2c0] sm:$0xff]
  %v1514 = vld [vmem:[%s3 + $0x2c8] sm:$0xff]
  %v1515 = vld [vmem:[%s3 + $0x2d0] sm:$0xff]
  %v1516 = vld [vmem:[%s3 + $0x2d8] sm:$0xff]
  %v1517 = vld [vmem:[%s3 + $0x2e0] sm:$0xff]
  %v1518 = vld [vmem:[%s3 + $0x2e8] sm:$0xff]
  %v1519 = vld [vmem:[%s3 + $0x2f0] sm:$0xff]
  %v1520 = vld [vmem:[%s3 + $0x2f8] sm:$0xff]
  %v1521 = vld [vmem:[%s3 + $0x300] sm:$0xff]
  %v1522 = vld [vmem:[%s3 + $0x308] sm:$0xff]
  %v1523 = vld [vmem:[%s3 + $0x310] sm:$0xff]
  %v1524 = vld [vmem:[%s3 + $0x318] sm:$0xff]
  %v1525 = vld [vmem:[%s3 + $0x320] sm:$0xff]
  %v1526 = vld [vmem:[%s3 + $0x328] sm:$0xff]
  %v1527 = vld [vmem:[%s3 + $0x330] sm:$0xff]
  %v1528 = vld [vmem:[%s3 + $0x338] sm:$0xff]
  %v1529 = vld [vmem:[%s3 + $0x340] sm:$0xff]
  %v1530 = vld [vmem:[%s3 + $0x348] sm:$0xff]
  %v1531 = vld [vmem:[%s3 + $0x350] sm:$0xff]
  %v1532 = vld [vmem:[%s3 + $0x358] sm:$0xff]
  %v1533 = vld [vmem:[%s3 + $0x360] sm:$0xff]
  %v1534 = vld [vmem:[%s3 + $0x368] sm:$0xff]
  %v1535 = vld [vmem:[%s3 + $0x370] sm:$0xff]
  %v1536 = vld [vmem:[%s3 + $0x378] sm:$0xff]
  %v1537 = vld [vmem:[%s3 + $0x380] sm:$0xff]
  %v1538 = vld [vmem:[%s3 + $0x388] sm:$0xff]
  %v1539 = vld [vmem:[%s3 + $0x390] sm:$0xff]
  %v1540 = vld [vmem:[%s3 + $0x398] sm:$0xff]
  %v1541 = vld [vmem:[%s3 + $0x3a0] sm:$0xff]
  %v1542 = vld [vmem:[%s3 + $0x3a8] sm:$0xff]
  %v1543 = vld [vmem:[%s3 + $0x3b0] sm:$0xff]
  %v1544 = vld [vmem:[%s3 + $0x3b8] sm:$0xff]
  %v1545 = vld [vmem:[%s3 + $0x3c0] sm:$0xff]
  %v1546 = vld [vmem:[%s3 + $0x3c8] sm:$0xff]
  %v1547 = vld [vmem:[%s3 + $0x3d0] sm:$0xff]
  %v1548 = vld [vmem:[%s3 + $0x3d8] sm:$0xff]
  %v1549 = vld [vmem:[%s3 + $0x3e0] sm:$0xff]
  %v1550 = vld [vmem:[%s3 + $0x3e8] sm:$0xff]
  %v1551 = vld [vmem:[%s3 + $0x3f0] sm:$0xff]
  %v1552 = vld [vmem:[%s3 + $0x3f8] sm:$0xff]
  %v1553 = vld [vmem:[%s3 + $0x400] sm:$0xff]
  %v1554 = vld [vmem:[%s3 + $0x408] sm:$0xff]
  %v1555 = vld [vmem:[%s3 + $0x410] sm:$0xff]
  %v1556 = vld [vmem:[%s3 + $0x418] sm:$0xff]
  %v1557 = vld [vmem:[%s3 + $0x420] sm:$0xff]
  %v1558 = vld [vmem:[%s3 + $0x428] sm:$0xff]
  %v1559 = vld [vmem:[%s3 + $0x430] sm:$0xff]
  %v1560 = vld [vmem:[%s3 + $0x438] sm:$0xff]
  %v1561 = vld [vmem:[%s3 + $0x440] sm:$0xff]
  %v1562 = vld [vmem:[%s3 + $0x448] sm:$0xff]
  %v1563 = vld [vmem:[%s3 + $0x450] sm:$0xff]
  %v1564 = vld [vmem:[%s3 + $0x458] sm:$0xff]
  %v1565 = vld [vmem:[%s3 + $0x460] sm:$0xff]
  %v1566 = vld [vmem:[%s3 + $0x468] sm:$0xff]
  %v1567 = vld [vmem:[%s3 + $0x470] sm:$0xff]
  %v1568 = vld [vmem:[%s3 + $0x478] sm:$0xff]
  %v1569 = vld [vmem:[%s3 + $0x480] sm:$0xff]
  %v1570 = vld [vmem:[%s3 + $0x488] sm:$0xff]
  %v1571 = vld [vmem:[%s3 + $0x490] sm:$0xff]
  %v1572 = vld [vmem:[%s3 + $0x498] sm:$0xff]
  %v1573 = vld [vmem:[%s3 + $0x4a0] sm:$0xff]
  %v1574 = vld [vmem:[%s3 + $0x4a8] sm:$0xff]
  %v1575 = vld [vmem:[%s3 + $0x4b0] sm:$0xff]
  %v1576 = vld [vmem:[%s3 + $0x4b8] sm:$0xff]
  %v1577 = vld [vmem:[%s3 + $0x4c0] sm:$0xff]
  %v1578 = vld [vmem:[%s3 + $0x4c8] sm:$0xff]
  %v1579 = vld [vmem:[%s3 + $0x4d0] sm:$0xff]
  %v1580 = vld [vmem:[%s3 + $0x4d8] sm:$0xff]
  %v1581 = vld [vmem:[%s3 + $0x4e0] sm:$0xff]
  %v1582 = vld [vmem:[%s3 + $0x4e8] sm:$0xff]
  %v1583 = vld [vmem:[%s3 + $0x4f0] sm:$0xff]
  %v1584 = vld [vmem:[%s3 + $0x4f8] sm:$0xff]
  %v1585 = vld [vmem:[%s3 + $0x500] sm:$0xff]
  %v1586 = vld [vmem:[%s3 + $0x508] sm:$0xff]
  %v1587 = vld [vmem:[%s3 + $0x510] sm:$0xff]
  %v1588 = vld [vmem:[%s3 + $0x518] sm:$0xff]
  %v1589 = vld [vmem:[%s3 + $0x520] sm:$0xff]
  %v1590 = vld [vmem:[%s3 + $0x528] sm:$0xff]
  %v1591 = vld [vmem:[%s3 + $0x530] sm:$0xff]
  %v1592 = vld [vmem:[%s3 + $0x538] sm:$0xff]
  %v1593 = vld [vmem:[%s4] sm:$0x3]
  %v1595 = vlaneseq
  %v1596 = vshrl.u32 %v1595, 7
  %v1597 = vsub.s32 0, %v1596
  %v1598 = vrot.slane %v1593, %v1597
  %v1599 = vlaneseq
  %v1600 = vshrl.u32 %v1599, 7
  %v1601 = vsub.s32 1, %v1600
  %v1602 = vrot.slane %v1593, %v1601
  %vm1605 = vcmask 261120
  %v1607 = vsel %vm1605, %v1424, 0
  %v1609 = vand.u32 %v1426, 4294901760
  %1610 = vmatprep.subr.mxu0 %v1609
  %v1611 = vand.u32 %v1425, 4294901760
  %1612 = vmatpush1.msra.mxu0 %v1611
  %v1613 = vand.u32 %v1428, 4294901760
  %1614 = vmatprep.subr.mxu0 %v1613
  %v1615 = vand.u32 %v1427, 4294901760
  %1616 = vmatpush1.msra.mxu0 %v1615
  %v1617 = vand.u32 %v1430, 4294901760
  %1618 = vmatprep.subr.mxu0 %v1617
  %v1619 = vand.u32 %v1429, 4294901760
  %1620 = vmatpush1.msra.mxu0 %v1619
  %v1621 = vand.u32 %v1432, 4294901760
  %1622 = vmatprep.subr.mxu0 %v1621
  %v1623 = vand.u32 %v1431, 4294901760
  %1624 = vmatpush1.msra.mxu0 %v1623
  %v1625 = vand.u32 %v1434, 4294901760
  %1626 = vmatprep.subr.mxu0 %v1625
  %v1627 = vand.u32 %v1433, 4294901760
  %1628 = vmatpush1.msra.mxu0 %v1627
  %v1629 = vand.u32 %v1436, 4294901760
  %1630 = vmatprep.subr.mxu0 %v1629
  %v1631 = vand.u32 %v1435, 4294901760
  %1632 = vmatpush1.msra.mxu0 %v1631
  %v1633 = vand.u32 %v1438, 4294901760
  %1634 = vmatprep.subr.mxu0 %v1633
  %v1635 = vand.u32 %v1437, 4294901760
  %1636 = vmatpush1.msra.mxu0 %v1635
  %v1637 = vand.u32 %v1440, 4294901760
  %1638 = vmatprep.subr.mxu0 %v1637
  %v1639 = vand.u32 %v1439, 4294901760
  %1640 = vmatpush1.msra.mxu0 %v1639
  %v1641 = vand.u32 %v1442, 4294901760
  %1642 = vmatprep.subr.mxu0 %v1641
  %v1643 = vand.u32 %v1441, 4294901760
  %1644 = vmatpush1.msra.mxu0 %v1643
  %v1645 = vand.u32 %v1444, 4294901760
  %1646 = vmatprep.subr.mxu0 %v1645
  %v1647 = vand.u32 %v1443, 4294901760
  %1648 = vmatpush1.msra.mxu0 %v1647
  %v1649 = vand.u32 %v1446, 4294901760
  %1650 = vmatprep.subr.mxu0 %v1649
  %v1651 = vand.u32 %v1445, 4294901760
  %1652 = vmatpush1.msra.mxu0 %v1651
  %v1653 = vand.u32 %v1448, 4294901760
  %1654 = vmatprep.subr.mxu0 %v1653
  %v1655 = vand.u32 %v1447, 4294901760
  %1656 = vmatpush1.msra.mxu0 %v1655
  %v1657 = vand.u32 %v1450, 4294901760
  %1658 = vmatprep.subr.mxu0 %v1657
  %v1659 = vand.u32 %v1449, 4294901760
  %1660 = vmatpush1.msra.mxu0 %v1659
  %v1661 = vand.u32 %v1452, 4294901760
  %1662 = vmatprep.subr.mxu0 %v1661
  %v1663 = vand.u32 %v1451, 4294901760
  %1664 = vmatpush1.msra.mxu0 %v1663
  %v1665 = vand.u32 %v1454, 4294901760
  %1666 = vmatprep.subr.mxu0 %v1665
  %v1667 = vand.u32 %v1453, 4294901760
  %1668 = vmatpush1.msra.mxu0 %v1667
  %v1669 = vand.u32 %v1456, 4294901760
  %1670 = vmatprep.subr.mxu0 %v1669
  %v1671 = vand.u32 %v1455, 4294901760
  %1672 = vmatpush1.msra.mxu0 %v1671
  %v1673 = vand.u32 %v1458, 4294901760
  %1674 = vmatprep.subr.mxu0 %v1673
  %v1675 = vand.u32 %v1457, 4294901760
  %1676 = vmatpush1.msra.mxu0 %v1675
  %v1677 = vand.u32 %v1460, 4294901760
  %1678 = vmatprep.subr.mxu0 %v1677
  %v1679 = vand.u32 %v1459, 4294901760
  %1680 = vmatpush1.msra.mxu0 %v1679
  %v1681 = vand.u32 %v1462, 4294901760
  %1682 = vmatprep.subr.mxu0 %v1681
  %v1683 = vand.u32 %v1461, 4294901760
  %1684 = vmatpush1.msra.mxu0 %v1683
  %v1685 = vand.u32 %v1464, 4294901760
  %1686 = vmatprep.subr.mxu0 %v1685
  %v1687 = vand.u32 %v1463, 4294901760
  %1688 = vmatpush1.msra.mxu0 %v1687
  %v1689 = vand.u32 %v1466, 4294901760
  %1690 = vmatprep.subr.mxu0 %v1689
  %v1691 = vand.u32 %v1465, 4294901760
  %1692 = vmatpush1.msra.mxu0 %v1691
  %v1693 = vand.u32 %v1468, 4294901760
  %1694 = vmatprep.subr.mxu0 %v1693
  %v1695 = vand.u32 %v1467, 4294901760
  %1696 = vmatpush1.msra.mxu0 %v1695
  %v1697 = vand.u32 %v1470, 4294901760
  %1698 = vmatprep.subr.mxu0 %v1697
  %v1699 = vand.u32 %v1469, 4294901760
  %1700 = vmatpush1.msra.mxu0 %v1699
  %v1701 = vand.u32 %v1472, 4294901760
  %1702 = vmatprep.subr.mxu0 %v1701
  %v1703 = vand.u32 %v1471, 4294901760
  %1704 = vmatpush1.msra.mxu0 %v1703
  %v1705 = vand.u32 %v1474, 4294901760
  %1706 = vmatprep.subr.mxu0 %v1705
  %v1707 = vand.u32 %v1473, 4294901760
  %1708 = vmatpush1.msra.mxu0 %v1707
  %v1709 = vand.u32 %v1476, 4294901760
  %1710 = vmatprep.subr.mxu0 %v1709
  %v1711 = vand.u32 %v1475, 4294901760
  %1712 = vmatpush1.msra.mxu0 %v1711
  %v1713 = vand.u32 %v1478, 4294901760
  %1714 = vmatprep.subr.mxu0 %v1713
  %v1715 = vand.u32 %v1477, 4294901760
  %1716 = vmatpush1.msra.mxu0 %v1715
  %v1717 = vand.u32 %v1480, 4294901760
  %1718 = vmatprep.subr.mxu0 %v1717
  %v1719 = vand.u32 %v1479, 4294901760
  %1720 = vmatpush1.msra.mxu0 %v1719
  %v1721 = vand.u32 %v1482, 4294901760
  %1722 = vmatprep.subr.mxu0 %v1721
  %v1723 = vand.u32 %v1481, 4294901760
  %1724 = vmatpush1.msra.mxu0 %v1723
  %v1725 = vand.u32 %v1484, 4294901760
  %1726 = vmatprep.subr.mxu0 %v1725
  %v1727 = vand.u32 %v1483, 4294901760
  %1728 = vmatpush1.msra.mxu0 %v1727
  %v1729 = vand.u32 %v1486, 4294901760
  %1730 = vmatprep.subr.mxu0 %v1729
  %v1731 = vand.u32 %v1485, 4294901760
  %1732 = vmatpush1.msra.mxu0 %v1731
  %v1733 = vand.u32 %v1488, 4294901760
  %1734 = vmatprep.subr.mxu0 %v1733
  %v1735 = vand.u32 %v1487, 4294901760
  %1736 = vmatpush1.msra.mxu0 %v1735
  %v1737 = vand.u32 %v1420, 4294901760
  %v1738 = vsub.f32 %v1420, %v1737
  %v1739 = vand.u32 %v1738, 4294901760
  %v1740 = vsub.f32 %v1738, %v1739
  %v1741 = vand.u32 %v1740, 4294901760
  %1742 = vmatprep.mubr.f32.mxu0 %v1741
  %v1743 = vand.u32 %v1419, 4294901760
  %v1744 = vsub.f32 %v1419, %v1743
  %v1745 = vand.u32 %v1744, 4294901760
  %v1746 = vsub.f32 %v1744, %v1745
  %v1747 = vand.u32 %v1746, 4294901760
  %1748 = vmatmul.mubr.f32.gmra.mrb[0].mxu0 %v1747
  %v1749 = vpop.f32.mrb[0].mxu0
  %v1750 = vadd.f32 %v1598, %v1749
  %v1751 = vpop.f32.mrb[0].mxu0
  %v1752 = vadd.f32 %v1602, %v1751
  %1753 = vdwg.mxu0
  %v1754 = vand.u32 %v1426, 4294901760
  %v1755 = vsub.f32 %v1426, %v1754
  %v1756 = vand.u32 %v1755, 4294901760
  %v1757 = vsub.f32 %v1755, %v1756
  %v1758 = vand.u32 %v1757, 4294901760
  %1759 = vmatprep.subr.mxu0 %v1758
  %v1760 = vand.u32 %v1425, 4294901760
  %v1761 = vsub.f32 %v1425, %v1760
  %v1762 = vand.u32 %v1761, 4294901760
  %v1763 = vsub.f32 %v1761, %v1762
  %v1764 = vand.u32 %v1763, 4294901760
  %1765 = vmatpush1.msra.mxu0 %v1764
  %v1766 = vand.u32 %v1428, 4294901760
  %v1767 = vsub.f32 %v1428, %v1766
  %v1768 = vand.u32 %v1767, 4294901760
  %v1769 = vsub.f32 %v1767, %v1768
  %v1770 = vand.u32 %v1769, 4294901760
  %1771 = vmatprep.subr.mxu0 %v1770
  %v1772 = vand.u32 %v1427, 4294901760
  %v1773 = vsub.f32 %v1427, %v1772
  %v1774 = vand.u32 %v1773, 4294901760
  %v1775 = vsub.f32 %v1773, %v1774
  %v1776 = vand.u32 %v1775, 4294901760
  %1777 = vmatpush1.msra.mxu0 %v1776
  %v1778 = vand.u32 %v1430, 4294901760
  %v1779 = vsub.f32 %v1430, %v1778
  %v1780 = vand.u32 %v1779, 4294901760
  %v1781 = vsub.f32 %v1779, %v1780
  %v1782 = vand.u32 %v1781, 4294901760
  %1783 = vmatprep.subr.mxu0 %v1782
  %v1784 = vand.u32 %v1429, 4294901760
  %v1785 = vsub.f32 %v1429, %v1784
  %v1786 = vand.u32 %v1785, 4294901760
  %v1787 = vsub.f32 %v1785, %v1786
  %v1788 = vand.u32 %v1787, 4294901760
  %1789 = vmatpush1.msra.mxu0 %v1788
  %v1790 = vand.u32 %v1432, 4294901760
  %v1791 = vsub.f32 %v1432, %v1790
  %v1792 = vand.u32 %v1791, 4294901760
  %v1793 = vsub.f32 %v1791, %v1792
  %v1794 = vand.u32 %v1793, 4294901760
  %1795 = vmatprep.subr.mxu0 %v1794
  %v1796 = vand.u32 %v1431, 4294901760
  %v1797 = vsub.f32 %v1431, %v1796
  %v1798 = vand.u32 %v1797, 4294901760
  %v1799 = vsub.f32 %v1797, %v1798
  %v1800 = vand.u32 %v1799, 4294901760
  %1801 = vmatpush1.msra.mxu0 %v1800
  %v1802 = vand.u32 %v1434, 4294901760
  %v1803 = vsub.f32 %v1434, %v1802
  %v1804 = vand.u32 %v1803, 4294901760
  %v1805 = vsub.f32 %v1803, %v1804
  %v1806 = vand.u32 %v1805, 4294901760
  %1807 = vmatprep.subr.mxu0 %v1806
  %v1808 = vand.u32 %v1433, 4294901760
  %v1809 = vsub.f32 %v1433, %v1808
  %v1810 = vand.u32 %v1809, 4294901760
  %v1811 = vsub.f32 %v1809, %v1810
  %v1812 = vand.u32 %v1811, 4294901760
  %1813 = vmatpush1.msra.mxu0 %v1812
  %v1814 = vand.u32 %v1436, 4294901760
  %v1815 = vsub.f32 %v1436, %v1814
  %v1816 = vand.u32 %v1815, 4294901760
  %v1817 = vsub.f32 %v1815, %v1816
  %v1818 = vand.u32 %v1817, 4294901760
  %1819 = vmatprep.subr.mxu0 %v1818
  %v1820 = vand.u32 %v1435, 4294901760
  %v1821 = vsub.f32 %v1435, %v1820
  %v1822 = vand.u32 %v1821, 4294901760
  %v1823 = vsub.f32 %v1821, %v1822
  %v1824 = vand.u32 %v1823, 4294901760
  %1825 = vmatpush1.msra.mxu0 %v1824
  %v1826 = vand.u32 %v1438, 4294901760
  %v1827 = vsub.f32 %v1438, %v1826
  %v1828 = vand.u32 %v1827, 4294901760
  %v1829 = vsub.f32 %v1827, %v1828
  %v1830 = vand.u32 %v1829, 4294901760
  %1831 = vmatprep.subr.mxu0 %v1830
  %v1832 = vand.u32 %v1437, 4294901760
  %v1833 = vsub.f32 %v1437, %v1832
  %v1834 = vand.u32 %v1833, 4294901760
  %v1835 = vsub.f32 %v1833, %v1834
  %v1836 = vand.u32 %v1835, 4294901760
  %1837 = vmatpush1.msra.mxu0 %v1836
  %v1838 = vand.u32 %v1440, 4294901760
  %v1839 = vsub.f32 %v1440, %v1838
  %v1840 = vand.u32 %v1839, 4294901760
  %v1841 = vsub.f32 %v1839, %v1840
  %v1842 = vand.u32 %v1841, 4294901760
  %1843 = vmatprep.subr.mxu0 %v1842
  %v1844 = vand.u32 %v1439, 4294901760
  %v1845 = vsub.f32 %v1439, %v1844
  %v1846 = vand.u32 %v1845, 4294901760
  %v1847 = vsub.f32 %v1845, %v1846
  %v1848 = vand.u32 %v1847, 4294901760
  %1849 = vmatpush1.msra.mxu0 %v1848
  %v1850 = vand.u32 %v1442, 4294901760
  %v1851 = vsub.f32 %v1442, %v1850
  %v1852 = vand.u32 %v1851, 4294901760
  %v1853 = vsub.f32 %v1851, %v1852
  %v1854 = vand.u32 %v1853, 4294901760
  %1855 = vmatprep.subr.mxu0 %v1854
  %v1856 = vand.u32 %v1441, 4294901760
  %v1857 = vsub.f32 %v1441, %v1856
  %v1858 = vand.u32 %v1857, 4294901760
  %v1859 = vsub.f32 %v1857, %v1858
  %v1860 = vand.u32 %v1859, 4294901760
  %1861 = vmatpush1.msra.mxu0 %v1860
  %v1862 = vand.u32 %v1444, 4294901760
  %v1863 = vsub.f32 %v1444, %v1862
  %v1864 = vand.u32 %v1863, 4294901760
  %v1865 = vsub.f32 %v1863, %v1864
  %v1866 = vand.u32 %v1865, 4294901760
  %1867 = vmatprep.subr.mxu0 %v1866
  %v1868 = vand.u32 %v1443, 4294901760
  %v1869 = vsub.f32 %v1443, %v1868
  %v1870 = vand.u32 %v1869, 4294901760
  %v1871 = vsub.f32 %v1869, %v1870
  %v1872 = vand.u32 %v1871, 4294901760
  %1873 = vmatpush1.msra.mxu0 %v1872
  %v1874 = vand.u32 %v1446, 4294901760
  %v1875 = vsub.f32 %v1446, %v1874
  %v1876 = vand.u32 %v1875, 4294901760
  %v1877 = vsub.f32 %v1875, %v1876
  %v1878 = vand.u32 %v1877, 4294901760
  %1879 = vmatprep.subr.mxu0 %v1878
  %v1880 = vand.u32 %v1445, 4294901760
  %v1881 = vsub.f32 %v1445, %v1880
  %v1882 = vand.u32 %v1881, 4294901760
  %v1883 = vsub.f32 %v1881, %v1882
  %v1884 = vand.u32 %v1883, 4294901760
  %1885 = vmatpush1.msra.mxu0 %v1884
  %v1886 = vand.u32 %v1448, 4294901760
  %v1887 = vsub.f32 %v1448, %v1886
  %v1888 = vand.u32 %v1887, 4294901760
  %v1889 = vsub.f32 %v1887, %v1888
  %v1890 = vand.u32 %v1889, 4294901760
  %1891 = vmatprep.subr.mxu0 %v1890
  %v1892 = vand.u32 %v1447, 4294901760
  %v1893 = vsub.f32 %v1447, %v1892
  %v1894 = vand.u32 %v1893, 4294901760
  %v1895 = vsub.f32 %v1893, %v1894
  %v1896 = vand.u32 %v1895, 4294901760
  %1897 = vmatpush1.msra.mxu0 %v1896
  %v1898 = vand.u32 %v1450, 4294901760
  %v1899 = vsub.f32 %v1450, %v1898
  %v1900 = vand.u32 %v1899, 4294901760
  %v1901 = vsub.f32 %v1899, %v1900
  %v1902 = vand.u32 %v1901, 4294901760
  %1903 = vmatprep.subr.mxu0 %v1902
  %v1904 = vand.u32 %v1449, 4294901760
  %v1905 = vsub.f32 %v1449, %v1904
  %v1906 = vand.u32 %v1905, 4294901760
  %v1907 = vsub.f32 %v1905, %v1906
  %v1908 = vand.u32 %v1907, 4294901760
  %1909 = vmatpush1.msra.mxu0 %v1908
  %v1910 = vand.u32 %v1452, 4294901760
  %v1911 = vsub.f32 %v1452, %v1910
  %v1912 = vand.u32 %v1911, 4294901760
  %v1913 = vsub.f32 %v1911, %v1912
  %v1914 = vand.u32 %v1913, 4294901760
  %1915 = vmatprep.subr.mxu0 %v1914
  %v1916 = vand.u32 %v1451, 4294901760
  %v1917 = vsub.f32 %v1451, %v1916
  %v1918 = vand.u32 %v1917, 4294901760
  %v1919 = vsub.f32 %v1917, %v1918
  %v1920 = vand.u32 %v1919, 4294901760
  %1921 = vmatpush1.msra.mxu0 %v1920
  %v1922 = vand.u32 %v1454, 4294901760
  %v1923 = vsub.f32 %v1454, %v1922
  %v1924 = vand.u32 %v1923, 4294901760
  %v1925 = vsub.f32 %v1923, %v1924
  %v1926 = vand.u32 %v1925, 4294901760
  %1927 = vmatprep.subr.mxu0 %v1926
  %v1928 = vand.u32 %v1453, 4294901760
  %v1929 = vsub.f32 %v1453, %v1928
  %v1930 = vand.u32 %v1929, 4294901760
  %v1931 = vsub.f32 %v1929, %v1930
  %v1932 = vand.u32 %v1931, 4294901760
  %1933 = vmatpush1.msra.mxu0 %v1932
  %v1934 = vand.u32 %v1456, 4294901760
  %v1935 = vsub.f32 %v1456, %v1934
  %v1936 = vand.u32 %v1935, 4294901760
  %v1937 = vsub.f32 %v1935, %v1936
  %v1938 = vand.u32 %v1937, 4294901760
  %1939 = vmatprep.subr.mxu0 %v1938
  %v1940 = vand.u32 %v1455, 4294901760
  %v1941 = vsub.f32 %v1455, %v1940
  %v1942 = vand.u32 %v1941, 4294901760
  %v1943 = vsub.f32 %v1941, %v1942
  %v1944 = vand.u32 %v1943, 4294901760
  %1945 = vmatpush1.msra.mxu0 %v1944
  %v1946 = vand.u32 %v1458, 4294901760
  %v1947 = vsub.f32 %v1458, %v1946
  %v1948 = vand.u32 %v1947, 4294901760
  %v1949 = vsub.f32 %v1947, %v1948
  %v1950 = vand.u32 %v1949, 4294901760
  %1951 = vmatprep.subr.mxu0 %v1950
  %v1952 = vand.u32 %v1457, 4294901760
  %v1953 = vsub.f32 %v1457, %v1952
  %v1954 = vand.u32 %v1953, 4294901760
  %v1955 = vsub.f32 %v1953, %v1954
  %v1956 = vand.u32 %v1955, 4294901760
  %1957 = vmatpush1.msra.mxu0 %v1956
  %v1958 = vand.u32 %v1460, 4294901760
  %v1959 = vsub.f32 %v1460, %v1958
  %v1960 = vand.u32 %v1959, 4294901760
  %v1961 = vsub.f32 %v1959, %v1960
  %v1962 = vand.u32 %v1961, 4294901760
  %1963 = vmatprep.subr.mxu0 %v1962
  %v1964 = vand.u32 %v1459, 4294901760
  %v1965 = vsub.f32 %v1459, %v1964
  %v1966 = vand.u32 %v1965, 4294901760
  %v1967 = vsub.f32 %v1965, %v1966
  %v1968 = vand.u32 %v1967, 4294901760
  %1969 = vmatpush1.msra.mxu0 %v1968
  %v1970 = vand.u32 %v1462, 4294901760
  %v1971 = vsub.f32 %v1462, %v1970
  %v1972 = vand.u32 %v1971, 4294901760
  %v1973 = vsub.f32 %v1971, %v1972
  %v1974 = vand.u32 %v1973, 4294901760
  %1975 = vmatprep.subr.mxu0 %v1974
  %v1976 = vand.u32 %v1461, 4294901760
  %v1977 = vsub.f32 %v1461, %v1976
  %v1978 = vand.u32 %v1977, 4294901760
  %v1979 = vsub.f32 %v1977, %v1978
  %v1980 = vand.u32 %v1979, 4294901760
  %1981 = vmatpush1.msra.mxu0 %v1980
  %v1982 = vand.u32 %v1464, 4294901760
  %v1983 = vsub.f32 %v1464, %v1982
  %v1984 = vand.u32 %v1983, 4294901760
  %v1985 = vsub.f32 %v1983, %v1984
  %v1986 = vand.u32 %v1985, 4294901760
  %1987 = vmatprep.subr.mxu0 %v1986
  %v1988 = vand.u32 %v1463, 4294901760
  %v1989 = vsub.f32 %v1463, %v1988
  %v1990 = vand.u32 %v1989, 4294901760
  %v1991 = vsub.f32 %v1989, %v1990
  %v1992 = vand.u32 %v1991, 4294901760
  %1993 = vmatpush1.msra.mxu0 %v1992
  %v1994 = vand.u32 %v1466, 4294901760
  %v1995 = vsub.f32 %v1466, %v1994
  %v1996 = vand.u32 %v1995, 4294901760
  %v1997 = vsub.f32 %v1995, %v1996
  %v1998 = vand.u32 %v1997, 4294901760
  %1999 = vmatprep.subr.mxu0 %v1998
  %v2000 = vand.u32 %v1465, 4294901760
  %v2001 = vsub.f32 %v1465, %v2000
  %v2002 = vand.u32 %v2001, 4294901760
  %v2003 = vsub.f32 %v2001, %v2002
  %v2004 = vand.u32 %v2003, 4294901760
  %2005 = vmatpush1.msra.mxu0 %v2004
  %v2006 = vand.u32 %v1468, 4294901760
  %v2007 = vsub.f32 %v1468, %v2006
  %v2008 = vand.u32 %v2007, 4294901760
  %v2009 = vsub.f32 %v2007, %v2008
  %v2010 = vand.u32 %v2009, 4294901760
  %2011 = vmatprep.subr.mxu0 %v2010
  %v2012 = vand.u32 %v1467, 4294901760
  %v2013 = vsub.f32 %v1467, %v2012
  %v2014 = vand.u32 %v2013, 4294901760
  %v2015 = vsub.f32 %v2013, %v2014
  %v2016 = vand.u32 %v2015, 4294901760
  %2017 = vmatpush1.msra.mxu0 %v2016
  %v2018 = vand.u32 %v1470, 4294901760
  %v2019 = vsub.f32 %v1470, %v2018
  %v2020 = vand.u32 %v2019, 4294901760
  %v2021 = vsub.f32 %v2019, %v2020
  %v2022 = vand.u32 %v2021, 4294901760
  %2023 = vmatprep.subr.mxu0 %v2022
  %v2024 = vand.u32 %v1469, 4294901760
  %v2025 = vsub.f32 %v1469, %v2024
  %v2026 = vand.u32 %v2025, 4294901760
  %v2027 = vsub.f32 %v2025, %v2026
  %v2028 = vand.u32 %v2027, 4294901760
  %2029 = vmatpush1.msra.mxu0 %v2028
  %v2030 = vand.u32 %v1472, 4294901760
  %v2031 = vsub.f32 %v1472, %v2030
  %v2032 = vand.u32 %v2031, 4294901760
  %v2033 = vsub.f32 %v2031, %v2032
  %v2034 = vand.u32 %v2033, 4294901760
  %2035 = vmatprep.subr.mxu0 %v2034
  %v2036 = vand.u32 %v1471, 4294901760
  %v2037 = vsub.f32 %v1471, %v2036
  %v2038 = vand.u32 %v2037, 4294901760
  %v2039 = vsub.f32 %v2037, %v2038
  %v2040 = vand.u32 %v2039, 4294901760
  %2041 = vmatpush1.msra.mxu0 %v2040
  %v2042 = vand.u32 %v1474, 4294901760
  %v2043 = vsub.f32 %v1474, %v2042
  %v2044 = vand.u32 %v2043, 4294901760
  %v2045 = vsub.f32 %v2043, %v2044
  %v2046 = vand.u32 %v2045, 4294901760
  %2047 = vmatprep.subr.mxu0 %v2046
  %v2048 = vand.u32 %v1473, 4294901760
  %v2049 = vsub.f32 %v1473, %v2048
  %v2050 = vand.u32 %v2049, 4294901760
  %v2051 = vsub.f32 %v2049, %v2050
  %v2052 = vand.u32 %v2051, 4294901760
  %2053 = vmatpush1.msra.mxu0 %v2052
  %v2054 = vand.u32 %v1476, 4294901760
  %v2055 = vsub.f32 %v1476, %v2054
  %v2056 = vand.u32 %v2055, 4294901760
  %v2057 = vsub.f32 %v2055, %v2056
  %v2058 = vand.u32 %v2057, 4294901760
  %2059 = vmatprep.subr.mxu0 %v2058
  %v2060 = vand.u32 %v1475, 4294901760
  %v2061 = vsub.f32 %v1475, %v2060
  %v2062 = vand.u32 %v2061, 4294901760
  %v2063 = vsub.f32 %v2061, %v2062
  %v2064 = vand.u32 %v2063, 4294901760
  %2065 = vmatpush1.msra.mxu0 %v2064
  %v2066 = vand.u32 %v1478, 4294901760
  %v2067 = vsub.f32 %v1478, %v2066
  %v2068 = vand.u32 %v2067, 4294901760
  %v2069 = vsub.f32 %v2067, %v2068
  %v2070 = vand.u32 %v2069, 4294901760
  %2071 = vmatprep.subr.mxu0 %v2070
  %v2072 = vand.u32 %v1477, 4294901760
  %v2073 = vsub.f32 %v1477, %v2072
  %v2074 = vand.u32 %v2073, 4294901760
  %v2075 = vsub.f32 %v2073, %v2074
  %v2076 = vand.u32 %v2075, 4294901760
  %2077 = vmatpush1.msra.mxu0 %v2076
  %v2078 = vand.u32 %v1480, 4294901760
  %v2079 = vsub.f32 %v1480, %v2078
  %v2080 = vand.u32 %v2079, 4294901760
  %v2081 = vsub.f32 %v2079, %v2080
  %v2082 = vand.u32 %v2081, 4294901760
  %2083 = vmatprep.subr.mxu0 %v2082
  %v2084 = vand.u32 %v1479, 4294901760
  %v2085 = vsub.f32 %v1479, %v2084
  %v2086 = vand.u32 %v2085, 4294901760
  %v2087 = vsub.f32 %v2085, %v2086
  %v2088 = vand.u32 %v2087, 4294901760
  %2089 = vmatpush1.msra.mxu0 %v2088
  %v2090 = vand.u32 %v1482, 4294901760
  %v2091 = vsub.f32 %v1482, %v2090
  %v2092 = vand.u32 %v2091, 4294901760
  %v2093 = vsub.f32 %v2091, %v2092
  %v2094 = vand.u32 %v2093, 4294901760
  %2095 = vmatprep.subr.mxu0 %v2094
  %v2096 = vand.u32 %v1481, 4294901760
  %v2097 = vsub.f32 %v1481, %v2096
  %v2098 = vand.u32 %v2097, 4294901760
  %v2099 = vsub.f32 %v2097, %v2098
  %v2100 = vand.u32 %v2099, 4294901760
  %2101 = vmatpush1.msra.mxu0 %v2100
  %v2102 = vand.u32 %v1484, 4294901760
  %v2103 = vsub.f32 %v1484, %v2102
  %v2104 = vand.u32 %v2103, 4294901760
  %v2105 = vsub.f32 %v2103, %v2104
  %v2106 = vand.u32 %v2105, 4294901760
  %2107 = vmatprep.subr.mxu0 %v2106
  %v2108 = vand.u32 %v1483, 4294901760
  %v2109 = vsub.f32 %v1483, %v2108
  %v2110 = vand.u32 %v2109, 4294901760
  %v2111 = vsub.f32 %v2109, %v2110
  %v2112 = vand.u32 %v2111, 4294901760
  %2113 = vmatpush1.msra.mxu0 %v2112
  %v2114 = vand.u32 %v1486, 4294901760
  %v2115 = vsub.f32 %v1486, %v2114
  %v2116 = vand.u32 %v2115, 4294901760
  %v2117 = vsub.f32 %v2115, %v2116
  %v2118 = vand.u32 %v2117, 4294901760
  %2119 = vmatprep.subr.mxu0 %v2118
  %v2120 = vand.u32 %v1485, 4294901760
  %v2121 = vsub.f32 %v1485, %v2120
  %v2122 = vand.u32 %v2121, 4294901760
  %v2123 = vsub.f32 %v2121, %v2122
  %v2124 = vand.u32 %v2123, 4294901760
  %2125 = vmatpush1.msra.mxu0 %v2124
  %v2126 = vand.u32 %v1488, 4294901760
  %v2127 = vsub.f32 %v1488, %v2126
  %v2128 = vand.u32 %v2127, 4294901760
  %v2129 = vsub.f32 %v2127, %v2128
  %v2130 = vand.u32 %v2129, 4294901760
  %2131 = vmatprep.subr.mxu0 %v2130
  %v2132 = vand.u32 %v1487, 4294901760
  %v2133 = vsub.f32 %v1487, %v2132
  %v2134 = vand.u32 %v2133, 4294901760
  %v2135 = vsub.f32 %v2133, %v2134
  %v2136 = vand.u32 %v2135, 4294901760
  %2137 = vmatpush1.msra.mxu0 %v2136
  %v2138 = vand.u32 %v1420, 4294901760
  %2139 = vmatprep.mubr.f32.mxu0 %v2138
  %v2140 = vand.u32 %v1419, 4294901760
  %2141 = vmatmul.mubr.f32.gmra.mrb[0].mxu0 %v2140
  %v2142 = vpop.f32.mrb[0].mxu0
  %v2143 = vadd.f32 %v1750, %v2142
  %v2144 = vpop.f32.mrb[0].mxu0
  %v2145 = vadd.f32 %v1752, %v2144
  %2146 = vdwg.mxu0
  %v2147 = vand.u32 %v1426, 4294901760
  %v2148 = vsub.f32 %v1426, %v2147
  %2149 = vmatprep.subr.mxu0 %v2148
  %v2150 = vand.u32 %v1425, 4294901760
  %v2151 = vsub.f32 %v1425, %v2150
  %2152 = vmatpush1.msra.mxu0 %v2151
  %v2153 = vand.u32 %v1428, 4294901760
  %v2154 = vsub.f32 %v1428, %v2153
  %2155 = vmatprep.subr.mxu0 %v2154
  %v2156 = vand.u32 %v1427, 4294901760
  %v2157 = vsub.f32 %v1427, %v2156
  %2158 = vmatpush1.msra.mxu0 %v2157
  %v2159 = vand.u32 %v1430, 4294901760
  %v2160 = vsub.f32 %v1430, %v2159
  %2161 = vmatprep.subr.mxu0 %v2160
  %v2162 = vand.u32 %v1429, 4294901760
  %v2163 = vsub.f32 %v1429, %v2162
  %2164 = vmatpush1.msra.mxu0 %v2163
  %v2165 = vand.u32 %v1432, 4294901760
  %v2166 = vsub.f32 %v1432, %v2165
  %2167 = vmatprep.subr.mxu0 %v2166
  %v2168 = vand.u32 %v1431, 4294901760
  %v2169 = vsub.f32 %v1431, %v2168
  %2170 = vmatpush1.msra.mxu0 %v2169
  %v2171 = vand.u32 %v1434, 4294901760
  %v2172 = vsub.f32 %v1434, %v2171
  %2173 = vmatprep.subr.mxu0 %v2172
  %v2174 = vand.u32 %v1433, 4294901760
  %v2175 = vsub.f32 %v1433, %v2174
  %2176 = vmatpush1.msra.mxu0 %v2175
  %v2177 = vand.u32 %v1436, 4294901760
  %v2178 = vsub.f32 %v1436, %v2177
  %2179 = vmatprep.subr.mxu0 %v2178
  %v2180 = vand.u32 %v1435, 4294901760
  %v2181 = vsub.f32 %v1435, %v2180
  %2182 = vmatpush1.msra.mxu0 %v2181
  %v2183 = vand.u32 %v1438, 4294901760
  %v2184 = vsub.f32 %v1438, %v2183
  %2185 = vmatprep.subr.mxu0 %v2184
  %v2186 = vand.u32 %v1437, 4294901760
  %v2187 = vsub.f32 %v1437, %v2186
  %2188 = vmatpush1.msra.mxu0 %v2187
  %v2189 = vand.u32 %v1440, 4294901760
  %v2190 = vsub.f32 %v1440, %v2189
  %2191 = vmatprep.subr.mxu0 %v2190
  %v2192 = vand.u32 %v1439, 4294901760
  %v2193 = vsub.f32 %v1439, %v2192
  %2194 = vmatpush1.msra.mxu0 %v2193
  %v2195 = vand.u32 %v1442, 4294901760
  %v2196 = vsub.f32 %v1442, %v2195
  %2197 = vmatprep.subr.mxu0 %v2196
  %v2198 = vand.u32 %v1441, 4294901760
  %v2199 = vsub.f32 %v1441, %v2198
  %2200 = vmatpush1.msra.mxu0 %v2199
  %v2201 = vand.u32 %v1444, 4294901760
  %v2202 = vsub.f32 %v1444, %v2201
  %2203 = vmatprep.subr.mxu0 %v2202
  %v2204 = vand.u32 %v1443, 4294901760
  %v2205 = vsub.f32 %v1443, %v2204
  %2206 = vmatpush1.msra.mxu0 %v2205
  %v2207 = vand.u32 %v1446, 4294901760
  %v2208 = vsub.f32 %v1446, %v2207
  %2209 = vmatprep.subr.mxu0 %v2208
  %v2210 = vand.u32 %v1445, 4294901760
  %v2211 = vsub.f32 %v1445, %v2210
  %2212 = vmatpush1.msra.mxu0 %v2211
  %v2213 = vand.u32 %v1448, 4294901760
  %v2214 = vsub.f32 %v1448, %v2213
  %2215 = vmatprep.subr.mxu0 %v2214
  %v2216 = vand.u32 %v1447, 4294901760
  %v2217 = vsub.f32 %v1447, %v2216
  %2218 = vmatpush1.msra.mxu0 %v2217
  %v2219 = vand.u32 %v1450, 4294901760
  %v2220 = vsub.f32 %v1450, %v2219
  %2221 = vmatprep.subr.mxu0 %v2220
  %v2222 = vand.u32 %v1449, 4294901760
  %v2223 = vsub.f32 %v1449, %v2222
  %2224 = vmatpush1.msra.mxu0 %v2223
  %v2225 = vand.u32 %v1452, 4294901760
  %v2226 = vsub.f32 %v1452, %v2225
  %2227 = vmatprep.subr.mxu0 %v2226
  %v2228 = vand.u32 %v1451, 4294901760
  %v2229 = vsub.f32 %v1451, %v2228
  %2230 = vmatpush1.msra.mxu0 %v2229
  %v2231 = vand.u32 %v1454, 4294901760
  %v2232 = vsub.f32 %v1454, %v2231
  %2233 = vmatprep.subr.mxu0 %v2232
  %v2234 = vand.u32 %v1453, 4294901760
  %v2235 = vsub.f32 %v1453, %v2234
  %2236 = vmatpush1.msra.mxu0 %v2235
  %v2237 = vand.u32 %v1456, 4294901760
  %v2238 = vsub.f32 %v1456, %v2237
  %2239 = vmatprep.subr.mxu0 %v2238
  %v2240 = vand.u32 %v1455, 4294901760
  %v2241 = vsub.f32 %v1455, %v2240
  %2242 = vmatpush1.msra.mxu0 %v2241
  %v2243 = vand.u32 %v1458, 4294901760
  %v2244 = vsub.f32 %v1458, %v2243
  %2245 = vmatprep.subr.mxu0 %v2244
  %v2246 = vand.u32 %v1457, 4294901760
  %v2247 = vsub.f32 %v1457, %v2246
  %2248 = vmatpush1.msra.mxu0 %v2247
  %v2249 = vand.u32 %v1460, 4294901760
  %v2250 = vsub.f32 %v1460, %v2249
  %2251 = vmatprep.subr.mxu0 %v2250
  %v2252 = vand.u32 %v1459, 4294901760
  %v2253 = vsub.f32 %v1459, %v2252
  %2254 = vmatpush1.msra.mxu0 %v2253
  %v2255 = vand.u32 %v1462, 4294901760
  %v2256 = vsub.f32 %v1462, %v2255
  %2257 = vmatprep.subr.mxu0 %v2256
  %v2258 = vand.u32 %v1461, 4294901760
  %v2259 = vsub.f32 %v1461, %v2258
  %2260 = vmatpush1.msra.mxu0 %v2259
  %v2261 = vand.u32 %v1464, 4294901760
  %v2262 = vsub.f32 %v1464, %v2261
  %2263 = vmatprep.subr.mxu0 %v2262
  %v2264 = vand.u32 %v1463, 4294901760
  %v2265 = vsub.f32 %v1463, %v2264
  %2266 = vmatpush1.msra.mxu0 %v2265
  %v2267 = vand.u32 %v1466, 4294901760
  %v2268 = vsub.f32 %v1466, %v2267
  %2269 = vmatprep.subr.mxu0 %v2268
  %v2270 = vand.u32 %v1465, 4294901760
  %v2271 = vsub.f32 %v1465, %v2270
  %2272 = vmatpush1.msra.mxu0 %v2271
  %v2273 = vand.u32 %v1468, 4294901760
  %v2274 = vsub.f32 %v1468, %v2273
  %2275 = vmatprep.subr.mxu0 %v2274
  %v2276 = vand.u32 %v1467, 4294901760
  %v2277 = vsub.f32 %v1467, %v2276
  %2278 = vmatpush1.msra.mxu0 %v2277
  %v2279 = vand.u32 %v1470, 4294901760
  %v2280 = vsub.f32 %v1470, %v2279
  %2281 = vmatprep.subr.mxu0 %v2280
  %v2282 = vand.u32 %v1469, 4294901760
  %v2283 = vsub.f32 %v1469, %v2282
  %2284 = vmatpush1.msra.mxu0 %v2283
  %v2285 = vand.u32 %v1472, 4294901760
  %v2286 = vsub.f32 %v1472, %v2285
  %2287 = vmatprep.subr.mxu0 %v2286
  %v2288 = vand.u32 %v1471, 4294901760
  %v2289 = vsub.f32 %v1471, %v2288
  %2290 = vmatpush1.msra.mxu0 %v2289
  %v2291 = vand.u32 %v1474, 4294901760
  %v2292 = vsub.f32 %v1474, %v2291
  %2293 = vmatprep.subr.mxu0 %v2292
  %v2294 = vand.u32 %v1473, 4294901760
  %v2295 = vsub.f32 %v1473, %v2294
  %2296 = vmatpush1.msra.mxu0 %v2295
  %v2297 = vand.u32 %v1476, 4294901760
  %v2298 = vsub.f32 %v1476, %v2297
  %2299 = vmatprep.subr.mxu0 %v2298
  %v2300 = vand.u32 %v1475, 4294901760
  %v2301 = vsub.f32 %v1475, %v2300
  %2302 = vmatpush1.msra.mxu0 %v2301
  %v2303 = vand.u32 %v1478, 4294901760
  %v2304 = vsub.f32 %v1478, %v2303
  %2305 = vmatprep.subr.mxu0 %v2304
  %v2306 = vand.u32 %v1477, 4294901760
  %v2307 = vsub.f32 %v1477, %v2306
  %2308 = vmatpush1.msra.mxu0 %v2307
  %v2309 = vand.u32 %v1480, 4294901760
  %v2310 = vsub.f32 %v1480, %v2309
  %2311 = vmatprep.subr.mxu0 %v2310
  %v2312 = vand.u32 %v1479, 4294901760
  %v2313 = vsub.f32 %v1479, %v2312
  %2314 = vmatpush1.msra.mxu0 %v2313
  %v2315 = vand.u32 %v1482, 4294901760
  %v2316 = vsub.f32 %v1482, %v2315
  %2317 = vmatprep.subr.mxu0 %v2316
  %v2318 = vand.u32 %v1481, 4294901760
  %v2319 = vsub.f32 %v1481, %v2318
  %2320 = vmatpush1.msra.mxu0 %v2319
  %v2321 = vand.u32 %v1484, 4294901760
  %v2322 = vsub.f32 %v1484, %v2321
  %2323 = vmatprep.subr.mxu0 %v2322
  %v2324 = vand.u32 %v1483, 4294901760
  %v2325 = vsub.f32 %v1483, %v2324
  %2326 = vmatpush1.msra.mxu0 %v2325
  %v2327 = vand.u32 %v1486, 4294901760
  %v2328 = vsub.f32 %v1486, %v2327
  %2329 = vmatprep.subr.mxu0 %v2328
  %v2330 = vand.u32 %v1485, 4294901760
  %v2331 = vsub.f32 %v1485, %v2330
  %2332 = vmatpush1.msra.mxu0 %v2331
  %v2333 = vand.u32 %v1488, 4294901760
  %v2334 = vsub.f32 %v1488, %v2333
  %2335 = vmatprep.subr.mxu0 %v2334
  %v2336 = vand.u32 %v1487, 4294901760
  %v2337 = vsub.f32 %v1487, %v2336
  %2338 = vmatpush1.msra.mxu0 %v2337
  %v2339 = vand.u32 %v1420, 4294901760
  %v2340 = vsub.f32 %v1420, %v2339
  %2341 = vmatprep.mubr.f32.mxu0 %v2340
  %v2342 = vand.u32 %v1419, 4294901760
  %v2343 = vsub.f32 %v1419, %v2342
  %2344 = vmatmul.mubr.f32.gmra.mrb[0].mxu0 %v2343
  %v2345 = vpop.f32.mrb[0].mxu0
  %v2346 = vadd.f32 %v2143, %v2345
  %v2347 = vpop.f32.mrb[0].mxu0
  %v2348 = vadd.f32 %v2145, %v2347
  %2349 = vdwg.mxu0
  %v2350 = vand.u32 %v1426, 4294901760
  %2351 = vmatprep.subr.mxu0 %v2350
  %v2352 = vand.u32 %v1425, 4294901760
  %2353 = vmatpush1.msra.mxu0 %v2352
  %v2354 = vand.u32 %v1428, 4294901760
  %2355 = vmatprep.subr.mxu0 %v2354
  %v2356 = vand.u32 %v1427, 4294901760
  %2357 = vmatpush1.msra.mxu0 %v2356
  %v2358 = vand.u32 %v1430, 4294901760
  %2359 = vmatprep.subr.mxu0 %v2358
  %v2360 = vand.u32 %v1429, 4294901760
  %2361 = vmatpush1.msra.mxu0 %v2360
  %v2362 = vand.u32 %v1432, 4294901760
  %2363 = vmatprep.subr.mxu0 %v2362
  %v2364 = vand.u32 %v1431, 4294901760
  %2365 = vmatpush1.msra.mxu0 %v2364
  %v2366 = vand.u32 %v1434, 4294901760
  %2367 = vmatprep.subr.mxu0 %v2366
  %v2368 = vand.u32 %v1433, 4294901760
  %2369 = vmatpush1.msra.mxu0 %v2368
  %v2370 = vand.u32 %v1436, 4294901760
  %2371 = vmatprep.subr.mxu0 %v2370
  %v2372 = vand.u32 %v1435, 4294901760
  %2373 = vmatpush1.msra.mxu0 %v2372
  %v2374 = vand.u32 %v1438, 4294901760
  %2375 = vmatprep.subr.mxu0 %v2374
  %v2376 = vand.u32 %v1437, 4294901760
  %2377 = vmatpush1.msra.mxu0 %v2376
  %v2378 = vand.u32 %v1440, 4294901760
  %2379 = vmatprep.subr.mxu0 %v2378
  %v2380 = vand.u32 %v1439, 4294901760
  %2381 = vmatpush1.msra.mxu0 %v2380
  %v2382 = vand.u32 %v1442, 4294901760
  %2383 = vmatprep.subr.mxu0 %v2382
  %v2384 = vand.u32 %v1441, 4294901760
  %2385 = vmatpush1.msra.mxu0 %v2384
  %v2386 = vand.u32 %v1444, 4294901760
  %2387 = vmatprep.subr.mxu0 %v2386
  %v2388 = vand.u32 %v1443, 4294901760
  %2389 = vmatpush1.msra.mxu0 %v2388
  %v2390 = vand.u32 %v1446, 4294901760
  %2391 = vmatprep.subr.mxu0 %v2390
  %v2392 = vand.u32 %v1445, 4294901760
  %2393 = vmatpush1.msra.mxu0 %v2392
  %v2394 = vand.u32 %v1448, 4294901760
  %2395 = vmatprep.subr.mxu0 %v2394
  %v2396 = vand.u32 %v1447, 4294901760
  %2397 = vmatpush1.msra.mxu0 %v2396
  %v2398 = vand.u32 %v1450, 4294901760
  %2399 = vmatprep.subr.mxu0 %v2398
  %v2400 = vand.u32 %v1449, 4294901760
  %2401 = vmatpush1.msra.mxu0 %v2400
  %v2402 = vand.u32 %v1452, 4294901760
  %2403 = vmatprep.subr.mxu0 %v2402
  %v2404 = vand.u32 %v1451, 4294901760
  %2405 = vmatpush1.msra.mxu0 %v2404
  %v2406 = vand.u32 %v1454, 4294901760
  %2407 = vmatprep.subr.mxu0 %v2406
  %v2408 = vand.u32 %v1453, 4294901760
  %2409 = vmatpush1.msra.mxu0 %v2408
  %v2410 = vand.u32 %v1456, 4294901760
  %2411 = vmatprep.subr.mxu0 %v2410
  %v2412 = vand.u32 %v1455, 4294901760
  %2413 = vmatpush1.msra.mxu0 %v2412
  %v2414 = vand.u32 %v1458, 4294901760
  %2415 = vmatprep.subr.mxu0 %v2414
  %v2416 = vand.u32 %v1457, 4294901760
  %2417 = vmatpush1.msra.mxu0 %v2416
  %v2418 = vand.u32 %v1460, 4294901760
  %2419 = vmatprep.subr.mxu0 %v2418
  %v2420 = vand.u32 %v1459, 4294901760
  %2421 = vmatpush1.msra.mxu0 %v2420
  %v2422 = vand.u32 %v1462, 4294901760
  %2423 = vmatprep.subr.mxu0 %v2422
  %v2424 = vand.u32 %v1461, 4294901760
  %2425 = vmatpush1.msra.mxu0 %v2424
  %v2426 = vand.u32 %v1464, 4294901760
  %2427 = vmatprep.subr.mxu0 %v2426
  %v2428 = vand.u32 %v1463, 4294901760
  %2429 = vmatpush1.msra.mxu0 %v2428
  %v2430 = vand.u32 %v1466, 4294901760
  %2431 = vmatprep.subr.mxu0 %v2430
  %v2432 = vand.u32 %v1465, 4294901760
  %2433 = vmatpush1.msra.mxu0 %v2432
  %v2434 = vand.u32 %v1468, 4294901760
  %2435 = vmatprep.subr.mxu0 %v2434
  %v2436 = vand.u32 %v1467, 4294901760
  %2437 = vmatpush1.msra.mxu0 %v2436
  %v2438 = vand.u32 %v1470, 4294901760
  %2439 = vmatprep.subr.mxu0 %v2438
  %v2440 = vand.u32 %v1469, 4294901760
  %2441 = vmatpush1.msra.mxu0 %v2440
  %v2442 = vand.u32 %v1472, 4294901760
  %2443 = vmatprep.subr.mxu0 %v2442
  %v2444 = vand.u32 %v1471, 4294901760
  %2445 = vmatpush1.msra.mxu0 %v2444
  %v2446 = vand.u32 %v1474, 4294901760
  %2447 = vmatprep.subr.mxu0 %v2446
  %v2448 = vand.u32 %v1473, 4294901760
  %2449 = vmatpush1.msra.mxu0 %v2448
  %v2450 = vand.u32 %v1476, 4294901760
  %2451 = vmatprep.subr.mxu0 %v2450
  %v2452 = vand.u32 %v1475, 4294901760
  %2453 = vmatpush1.msra.mxu0 %v2452
  %v2454 = vand.u32 %v1478, 4294901760
  %2455 = vmatprep.subr.mxu0 %v2454
  %v2456 = vand.u32 %v1477, 4294901760
  %2457 = vmatpush1.msra.mxu0 %v2456
  %v2458 = vand.u32 %v1480, 4294901760
  %2459 = vmatprep.subr.mxu0 %v2458
  %v2460 = vand.u32 %v1479, 4294901760
  %2461 = vmatpush1.msra.mxu0 %v2460
  %v2462 = vand.u32 %v1482, 4294901760
  %2463 = vmatprep.subr.mxu0 %v2462
  %v2464 = vand.u32 %v1481, 4294901760
  %2465 = vmatpush1.msra.mxu0 %v2464
  %v2466 = vand.u32 %v1484, 4294901760
  %2467 = vmatprep.subr.mxu0 %v2466
  %v2468 = vand.u32 %v1483, 4294901760
  %2469 = vmatpush1.msra.mxu0 %v2468
  %v2470 = vand.u32 %v1486, 4294901760
  %2471 = vmatprep.subr.mxu0 %v2470
  %v2472 = vand.u32 %v1485, 4294901760
  %2473 = vmatpush1.msra.mxu0 %v2472
  %v2474 = vand.u32 %v1488, 4294901760
  %2475 = vmatprep.subr.mxu0 %v2474
  %v2476 = vand.u32 %v1487, 4294901760
  %2477 = vmatpush1.msra.mxu0 %v2476
  %v2478 = vand.u32 %v1420, 4294901760
  %v2479 = vsub.f32 %v1420, %v2478
  %v2480 = vand.u32 %v2479, 4294901760
  %2481 = vmatprep.mubr.f32.mxu0 %v2480
  %v2482 = vand.u32 %v1419, 4294901760
  %v2483 = vsub.f32 %v1419, %v2482
  %v2484 = vand.u32 %v2483, 4294901760
  %2485 = vmatmul.mubr.f32.gmra.mrb[0].mxu0 %v2484
  %v2486 = vpop.f32.mrb[0].mxu0
  %v2487 = vadd.f32 %v2346, %v2486
  %v2488 = vpop.f32.mrb[0].mxu0
  %v2489 = vadd.f32 %v2348, %v2488
  %2490 = vdwg.mxu0
  %v2491 = vand.u32 %v1426, 4294901760
  %v2492 = vsub.f32 %v1426, %v2491
  %v2493 = vand.u32 %v2492, 4294901760
  %2494 = vmatprep.subr.mxu0 %v2493
  %v2495 = vand.u32 %v1425, 4294901760
  %v2496 = vsub.f32 %v1425, %v2495
  %v2497 = vand.u32 %v2496, 4294901760
  %2498 = vmatpush1.msra.mxu0 %v2497
  %v2499 = vand.u32 %v1428, 4294901760
  %v2500 = vsub.f32 %v1428, %v2499
  %v2501 = vand.u32 %v2500, 4294901760
  %2502 = vmatprep.subr.mxu0 %v2501
  %v2503 = vand.u32 %v1427, 4294901760
  %v2504 = vsub.f32 %v1427, %v2503
  %v2505 = vand.u32 %v2504, 4294901760
  %2506 = vmatpush1.msra.mxu0 %v2505
  %v2507 = vand.u32 %v1430, 4294901760
  %v2508 = vsub.f32 %v1430, %v2507
  %v2509 = vand.u32 %v2508, 4294901760
  %2510 = vmatprep.subr.mxu0 %v2509
  %v2511 = vand.u32 %v1429, 4294901760
  %v2512 = vsub.f32 %v1429, %v2511
  %v2513 = vand.u32 %v2512, 4294901760
  %2514 = vmatpush1.msra.mxu0 %v2513
  %v2515 = vand.u32 %v1432, 4294901760
  %v2516 = vsub.f32 %v1432, %v2515
  %v2517 = vand.u32 %v2516, 4294901760
  %2518 = vmatprep.subr.mxu0 %v2517
  %v2519 = vand.u32 %v1431, 4294901760
  %v2520 = vsub.f32 %v1431, %v2519
  %v2521 = vand.u32 %v2520, 4294901760
  %2522 = vmatpush1.msra.mxu0 %v2521
  %v2523 = vand.u32 %v1434, 4294901760
  %v2524 = vsub.f32 %v1434, %v2523
  %v2525 = vand.u32 %v2524, 4294901760
  %2526 = vmatprep.subr.mxu0 %v2525
  %v2527 = vand.u32 %v1433, 4294901760
  %v2528 = vsub.f32 %v1433, %v2527
  %v2529 = vand.u32 %v2528, 4294901760
  %2530 = vmatpush1.msra.mxu0 %v2529
  %v2531 = vand.u32 %v1436, 4294901760
  %v2532 = vsub.f32 %v1436, %v2531
  %v2533 = vand.u32 %v2532, 4294901760
  %2534 = vmatprep.subr.mxu0 %v2533
  %v2535 = vand.u32 %v1435, 4294901760
  %v2536 = vsub.f32 %v1435, %v2535
  %v2537 = vand.u32 %v2536, 4294901760
  %2538 = vmatpush1.msra.mxu0 %v2537
  %v2539 = vand.u32 %v1438, 4294901760
  %v2540 = vsub.f32 %v1438, %v2539
  %v2541 = vand.u32 %v2540, 4294901760
  %2542 = vmatprep.subr.mxu0 %v2541
  %v2543 = vand.u32 %v1437, 4294901760
  %v2544 = vsub.f32 %v1437, %v2543
  %v2545 = vand.u32 %v2544, 4294901760
  %2546 = vmatpush1.msra.mxu0 %v2545
  %v2547 = vand.u32 %v1440, 4294901760
  %v2548 = vsub.f32 %v1440, %v2547
  %v2549 = vand.u32 %v2548, 4294901760
  %2550 = vmatprep.subr.mxu0 %v2549
  %v2551 = vand.u32 %v1439, 4294901760
  %v2552 = vsub.f32 %v1439, %v2551
  %v2553 = vand.u32 %v2552, 4294901760
  %2554 = vmatpush1.msra.mxu0 %v2553
  %v2555 = vand.u32 %v1442, 4294901760
  %v2556 = vsub.f32 %v1442, %v2555
  %v2557 = vand.u32 %v2556, 4294901760
  %2558 = vmatprep.subr.mxu0 %v2557
  %v2559 = vand.u32 %v1441, 4294901760
  %v2560 = vsub.f32 %v1441, %v2559
  %v2561 = vand.u32 %v2560, 4294901760
  %2562 = vmatpush1.msra.mxu0 %v2561
  %v2563 = vand.u32 %v1444, 4294901760
  %v2564 = vsub.f32 %v1444, %v2563
  %v2565 = vand.u32 %v2564, 4294901760
  %2566 = vmatprep.subr.mxu0 %v2565
  %v2567 = vand.u32 %v1443, 4294901760
  %v2568 = vsub.f32 %v1443, %v2567
  %v2569 = vand.u32 %v2568, 4294901760
  %2570 = vmatpush1.msra.mxu0 %v2569
  %v2571 = vand.u32 %v1446, 4294901760
  %v2572 = vsub.f32 %v1446, %v2571
  %v2573 = vand.u32 %v2572, 4294901760
  %2574 = vmatprep.subr.mxu0 %v2573
  %v2575 = vand.u32 %v1445, 4294901760
  %v2576 = vsub.f32 %v1445, %v2575
  %v2577 = vand.u32 %v2576, 4294901760
  %2578 = vmatpush1.msra.mxu0 %v2577
  %v2579 = vand.u32 %v1448, 4294901760
  %v2580 = vsub.f32 %v1448, %v2579
  %v2581 = vand.u32 %v2580, 4294901760
  %2582 = vmatprep.subr.mxu0 %v2581
  %v2583 = vand.u32 %v1447, 4294901760
  %v2584 = vsub.f32 %v1447, %v2583
  %v2585 = vand.u32 %v2584, 4294901760
  %2586 = vmatpush1.msra.mxu0 %v2585
  %v2587 = vand.u32 %v1450, 4294901760
  %v2588 = vsub.f32 %v1450, %v2587
  %v2589 = vand.u32 %v2588, 4294901760
  %2590 = vmatprep.subr.mxu0 %v2589
  %v2591 = vand.u32 %v1449, 4294901760
  %v2592 = vsub.f32 %v1449, %v2591
  %v2593 = vand.u32 %v2592, 4294901760
  %2594 = vmatpush1.msra.mxu0 %v2593
  %v2595 = vand.u32 %v1452, 4294901760
  %v2596 = vsub.f32 %v1452, %v2595
  %v2597 = vand.u32 %v2596, 4294901760
  %2598 = vmatprep.subr.mxu0 %v2597
  %v2599 = vand.u32 %v1451, 4294901760
  %v2600 = vsub.f32 %v1451, %v2599
  %v2601 = vand.u32 %v2600, 4294901760
  %2602 = vmatpush1.msra.mxu0 %v2601
  %v2603 = vand.u32 %v1454, 4294901760
  %v2604 = vsub.f32 %v1454, %v2603
  %v2605 = vand.u32 %v2604, 4294901760
  %2606 = vmatprep.subr.mxu0 %v2605
  %v2607 = vand.u32 %v1453, 4294901760
  %v2608 = vsub.f32 %v1453, %v2607
  %v2609 = vand.u32 %v2608, 4294901760
  %2610 = vmatpush1.msra.mxu0 %v2609
  %v2611 = vand.u32 %v1456, 4294901760
  %v2612 = vsub.f32 %v1456, %v2611
  %v2613 = vand.u32 %v2612, 4294901760
  %2614 = vmatprep.subr.mxu0 %v2613
  %v2615 = vand.u32 %v1455, 4294901760
  %v2616 = vsub.f32 %v1455, %v2615
  %v2617 = vand.u32 %v2616, 4294901760
  %2618 = vmatpush1.msra.mxu0 %v2617
  %v2619 = vand.u32 %v1458, 4294901760
  %v2620 = vsub.f32 %v1458, %v2619
  %v2621 = vand.u32 %v2620, 4294901760
  %2622 = vmatprep.subr.mxu0 %v2621
  %v2623 = vand.u32 %v1457, 4294901760
  %v2624 = vsub.f32 %v1457, %v2623
  %v2625 = vand.u32 %v2624, 4294901760
  %2626 = vmatpush1.msra.mxu0 %v2625
  %v2627 = vand.u32 %v1460, 4294901760
  %v2628 = vsub.f32 %v1460, %v2627
  %v2629 = vand.u32 %v2628, 4294901760
  %2630 = vmatprep.subr.mxu0 %v2629
  %v2631 = vand.u32 %v1459, 4294901760
  %v2632 = vsub.f32 %v1459, %v2631
  %v2633 = vand.u32 %v2632, 4294901760
  %2634 = vmatpush1.msra.mxu0 %v2633
  %v2635 = vand.u32 %v1462, 4294901760
  %v2636 = vsub.f32 %v1462, %v2635
  %v2637 = vand.u32 %v2636, 4294901760
  %2638 = vmatprep.subr.mxu0 %v2637
  %v2639 = vand.u32 %v1461, 4294901760
  %v2640 = vsub.f32 %v1461, %v2639
  %v2641 = vand.u32 %v2640, 4294901760
  %2642 = vmatpush1.msra.mxu0 %v2641
  %v2643 = vand.u32 %v1464, 4294901760
  %v2644 = vsub.f32 %v1464, %v2643
  %v2645 = vand.u32 %v2644, 4294901760
  %2646 = vmatprep.subr.mxu0 %v2645
  %v2647 = vand.u32 %v1463, 4294901760
  %v2648 = vsub.f32 %v1463, %v2647
  %v2649 = vand.u32 %v2648, 4294901760
  %2650 = vmatpush1.msra.mxu0 %v2649
  %v2651 = vand.u32 %v1466, 4294901760
  %v2652 = vsub.f32 %v1466, %v2651
  %v2653 = vand.u32 %v2652, 4294901760
  %2654 = vmatprep.subr.mxu0 %v2653
  %v2655 = vand.u32 %v1465, 4294901760
  %v2656 = vsub.f32 %v1465, %v2655
  %v2657 = vand.u32 %v2656, 4294901760
  %2658 = vmatpush1.msra.mxu0 %v2657
  %v2659 = vand.u32 %v1468, 4294901760
  %v2660 = vsub.f32 %v1468, %v2659
  %v2661 = vand.u32 %v2660, 4294901760
  %2662 = vmatprep.subr.mxu0 %v2661
  %v2663 = vand.u32 %v1467, 4294901760
  %v2664 = vsub.f32 %v1467, %v2663
  %v2665 = vand.u32 %v2664, 4294901760
  %2666 = vmatpush1.msra.mxu0 %v2665
  %v2667 = vand.u32 %v1470, 4294901760
  %v2668 = vsub.f32 %v1470, %v2667
  %v2669 = vand.u32 %v2668, 4294901760
  %2670 = vmatprep.subr.mxu0 %v2669
  %v2671 = vand.u32 %v1469, 4294901760
  %v2672 = vsub.f32 %v1469, %v2671
  %v2673 = vand.u32 %v2672, 4294901760
  %2674 = vmatpush1.msra.mxu0 %v2673
  %v2675 = vand.u32 %v1472, 4294901760
  %v2676 = vsub.f32 %v1472, %v2675
  %v2677 = vand.u32 %v2676, 4294901760
  %2678 = vmatprep.subr.mxu0 %v2677
  %v2679 = vand.u32 %v1471, 4294901760
  %v2680 = vsub.f32 %v1471, %v2679
  %v2681 = vand.u32 %v2680, 4294901760
  %2682 = vmatpush1.msra.mxu0 %v2681
  %v2683 = vand.u32 %v1474, 4294901760
  %v2684 = vsub.f32 %v1474, %v2683
  %v2685 = vand.u32 %v2684, 4294901760
  %2686 = vmatprep.subr.mxu0 %v2685
  %v2687 = vand.u32 %v1473, 4294901760
  %v2688 = vsub.f32 %v1473, %v2687
  %v2689 = vand.u32 %v2688, 4294901760
  %2690 = vmatpush1.msra.mxu0 %v2689
  %v2691 = vand.u32 %v1476, 4294901760
  %v2692 = vsub.f32 %v1476, %v2691
  %v2693 = vand.u32 %v2692, 4294901760
  %2694 = vmatprep.subr.mxu0 %v2693
  %v2695 = vand.u32 %v1475, 4294901760
  %v2696 = vsub.f32 %v1475, %v2695
  %v2697 = vand.u32 %v2696, 4294901760
  %2698 = vmatpush1.msra.mxu0 %v2697
  %v2699 = vand.u32 %v1478, 4294901760
  %v2700 = vsub.f32 %v1478, %v2699
  %v2701 = vand.u32 %v2700, 4294901760
  %2702 = vmatprep.subr.mxu0 %v2701
  %v2703 = vand.u32 %v1477, 4294901760
  %v2704 = vsub.f32 %v1477, %v2703
  %v2705 = vand.u32 %v2704, 4294901760
  %2706 = vmatpush1.msra.mxu0 %v2705
  %v2707 = vand.u32 %v1480, 4294901760
  %v2708 = vsub.f32 %v1480, %v2707
  %v2709 = vand.u32 %v2708, 4294901760
  %2710 = vmatprep.subr.mxu0 %v2709
  %v2711 = vand.u32 %v1479, 4294901760
  %v2712 = vsub.f32 %v1479, %v2711
  %v2713 = vand.u32 %v2712, 4294901760
  %2714 = vmatpush1.msra.mxu0 %v2713
  %v2715 = vand.u32 %v1482, 4294901760
  %v2716 = vsub.f32 %v1482, %v2715
  %v2717 = vand.u32 %v2716, 4294901760
  %2718 = vmatprep.subr.mxu0 %v2717
  %v2719 = vand.u32 %v1481, 4294901760
  %v2720 = vsub.f32 %v1481, %v2719
  %v2721 = vand.u32 %v2720, 4294901760
  %2722 = vmatpush1.msra.mxu0 %v2721
  %v2723 = vand.u32 %v1484, 4294901760
  %v2724 = vsub.f32 %v1484, %v2723
  %v2725 = vand.u32 %v2724, 4294901760
  %2726 = vmatprep.subr.mxu0 %v2725
  %v2727 = vand.u32 %v1483, 4294901760
  %v2728 = vsub.f32 %v1483, %v2727
  %v2729 = vand.u32 %v2728, 4294901760
  %2730 = vmatpush1.msra.mxu0 %v2729
  %v2731 = vand.u32 %v1486, 4294901760
  %v2732 = vsub.f32 %v1486, %v2731
  %v2733 = vand.u32 %v2732, 4294901760
  %2734 = vmatprep.subr.mxu0 %v2733
  %v2735 = vand.u32 %v1485, 4294901760
  %v2736 = vsub.f32 %v1485, %v2735
  %v2737 = vand.u32 %v2736, 4294901760
  %2738 = vmatpush1.msra.mxu0 %v2737
  %v2739 = vand.u32 %v1488, 4294901760
  %v2740 = vsub.f32 %v1488, %v2739
  %v2741 = vand.u32 %v2740, 4294901760
  %2742 = vmatprep.subr.mxu0 %v2741
  %v2743 = vand.u32 %v1487, 4294901760
  %v2744 = vsub.f32 %v1487, %v2743
  %v2745 = vand.u32 %v2744, 4294901760
  %2746 = vmatpush1.msra.mxu0 %v2745
  %v2747 = vand.u32 %v1420, 4294901760
  %2748 = vmatprep.mubr.f32.mxu0 %v2747
  %v2749 = vand.u32 %v1419, 4294901760
  %2750 = vmatmul.mubr.f32.gmra.mrb[0].mxu0 %v2749
  %v2751 = vpop.f32.mrb[0].mxu0
  %v2752 = vadd.f32 %v2487, %v2751
  %v2753 = vpop.f32.mrb[0].mxu0
  %v2754 = vadd.f32 %v2489, %v2753
  %2755 = vdwg.mxu0
  %v2756 = vand.u32 %v1426, 4294901760
  %2757 = vmatprep.subr.mxu0 %v2756
  %v2758 = vand.u32 %v1425, 4294901760
  %2759 = vmatpush1.msra.mxu0 %v2758
  %v2760 = vand.u32 %v1428, 4294901760
  %2761 = vmatprep.subr.mxu0 %v2760
  %v2762 = vand.u32 %v1427, 4294901760
  %2763 = vmatpush1.msra.mxu0 %v2762
  %v2764 = vand.u32 %v1430, 4294901760
  %2765 = vmatprep.subr.mxu0 %v2764
  %v2766 = vand.u32 %v1429, 4294901760
  %2767 = vmatpush1.msra.mxu0 %v2766
  %v2768 = vand.u32 %v1432, 4294901760
  %2769 = vmatprep.subr.mxu0 %v2768
  %v2770 = vand.u32 %v1431, 4294901760
  %2771 = vmatpush1.msra.mxu0 %v2770
  %v2772 = vand.u32 %v1434, 4294901760
  %2773 = vmatprep.subr.mxu0 %v2772
  %v2774 = vand.u32 %v1433, 4294901760
  %2775 = vmatpush1.msra.mxu0 %v2774
  %v2776 = vand.u32 %v1436, 4294901760
  %2777 = vmatprep.subr.mxu0 %v2776
  %v2778 = vand.u32 %v1435, 4294901760
  %2779 = vmatpush1.msra.mxu0 %v2778
  %v2780 = vand.u32 %v1438, 4294901760
  %2781 = vmatprep.subr.mxu0 %v2780
  %v2782 = vand.u32 %v1437, 4294901760
  %2783 = vmatpush1.msra.mxu0 %v2782
  %v2784 = vand.u32 %v1440, 4294901760
  %2785 = vmatprep.subr.mxu0 %v2784
  %v2786 = vand.u32 %v1439, 4294901760
  %2787 = vmatpush1.msra.mxu0 %v2786
  %v2788 = vand.u32 %v1442, 4294901760
  %2789 = vmatprep.subr.mxu0 %v2788
  %v2790 = vand.u32 %v1441, 4294901760
  %2791 = vmatpush1.msra.mxu0 %v2790
  %v2792 = vand.u32 %v1444, 4294901760
  %2793 = vmatprep.subr.mxu0 %v2792
  %v2794 = vand.u32 %v1443, 4294901760
  %2795 = vmatpush1.msra.mxu0 %v2794
  %v2796 = vand.u32 %v1446, 4294901760
  %2797 = vmatprep.subr.mxu0 %v2796
  %v2798 = vand.u32 %v1445, 4294901760
  %2799 = vmatpush1.msra.mxu0 %v2798
  %v2800 = vand.u32 %v1448, 4294901760
  %2801 = vmatprep.subr.mxu0 %v2800
  %v2802 = vand.u32 %v1447, 4294901760
  %2803 = vmatpush1.msra.mxu0 %v2802
  %v2804 = vand.u32 %v1450, 4294901760
  %2805 = vmatprep.subr.mxu0 %v2804
  %v2806 = vand.u32 %v1449, 4294901760
  %2807 = vmatpush1.msra.mxu0 %v2806
  %v2808 = vand.u32 %v1452, 4294901760
  %2809 = vmatprep.subr.mxu0 %v2808
  %v2810 = vand.u32 %v1451, 4294901760
  %2811 = vmatpush1.msra.mxu0 %v2810
  %v2812 = vand.u32 %v1454, 4294901760
  %2813 = vmatprep.subr.mxu0 %v2812
  %v2814 = vand.u32 %v1453, 4294901760
  %2815 = vmatpush1.msra.mxu0 %v2814
  %v2816 = vand.u32 %v1456, 4294901760
  %2817 = vmatprep.subr.mxu0 %v2816
  %v2818 = vand.u32 %v1455, 4294901760
  %2819 = vmatpush1.msra.mxu0 %v2818
  %v2820 = vand.u32 %v1458, 4294901760
  %2821 = vmatprep.subr.mxu0 %v2820
  %v2822 = vand.u32 %v1457, 4294901760
  %2823 = vmatpush1.msra.mxu0 %v2822
  %v2824 = vand.u32 %v1460, 4294901760
  %2825 = vmatprep.subr.mxu0 %v2824
  %v2826 = vand.u32 %v1459, 4294901760
  %2827 = vmatpush1.msra.mxu0 %v2826
  %v2828 = vand.u32 %v1462, 4294901760
  %2829 = vmatprep.subr.mxu0 %v2828
  %v2830 = vand.u32 %v1461, 4294901760
  %2831 = vmatpush1.msra.mxu0 %v2830
  %v2832 = vand.u32 %v1464, 4294901760
  %2833 = vmatprep.subr.mxu0 %v2832
  %v2834 = vand.u32 %v1463, 4294901760
  %2835 = vmatpush1.msra.mxu0 %v2834
  %v2836 = vand.u32 %v1466, 4294901760
  %2837 = vmatprep.subr.mxu0 %v2836
  %v2838 = vand.u32 %v1465, 4294901760
  %2839 = vmatpush1.msra.mxu0 %v2838
  %v2840 = vand.u32 %v1468, 4294901760
  %2841 = vmatprep.subr.mxu0 %v2840
  %v2842 = vand.u32 %v1467, 4294901760
  %2843 = vmatpush1.msra.mxu0 %v2842
  %v2844 = vand.u32 %v1470, 4294901760
  %2845 = vmatprep.subr.mxu0 %v2844
  %v2846 = vand.u32 %v1469, 4294901760
  %2847 = vmatpush1.msra.mxu0 %v2846
  %v2848 = vand.u32 %v1472, 4294901760
  %2849 = vmatprep.subr.mxu0 %v2848
  %v2850 = vand.u32 %v1471, 4294901760
  %2851 = vmatpush1.msra.mxu0 %v2850
  %v2852 = vand.u32 %v1474, 4294901760
  %2853 = vmatprep.subr.mxu0 %v2852
  %v2854 = vand.u32 %v1473, 4294901760
  %2855 = vmatpush1.msra.mxu0 %v2854
  %v2856 = vand.u32 %v1476, 4294901760
  %2857 = vmatprep.subr.mxu0 %v2856
  %v2858 = vand.u32 %v1475, 4294901760
  %2859 = vmatpush1.msra.mxu0 %v2858
  %v2860 = vand.u32 %v1478, 4294901760
  %2861 = vmatprep.subr.mxu0 %v2860
  %v2862 = vand.u32 %v1477, 4294901760
  %2863 = vmatpush1.msra.mxu0 %v2862
  %v2864 = vand.u32 %v1480, 4294901760
  %2865 = vmatprep.subr.mxu0 %v2864
  %v2866 = vand.u32 %v1479, 4294901760
  %2867 = vmatpush1.msra.mxu0 %v2866
  %v2868 = vand.u32 %v1482, 4294901760
  %2869 = vmatprep.subr.mxu0 %v2868
  %v2870 = vand.u32 %v1481, 4294901760
  %2871 = vmatpush1.msra.mxu0 %v2870
  %v2872 = vand.u32 %v1484, 4294901760
  %2873 = vmatprep.subr.mxu0 %v2872
  %v2874 = vand.u32 %v1483, 4294901760
  %2875 = vmatpush1.msra.mxu0 %v2874
  %v2876 = vand.u32 %v1486, 4294901760
  %2877 = vmatprep.subr.mxu0 %v2876
  %v2878 = vand.u32 %v1485, 4294901760
  %2879 = vmatpush1.msra.mxu0 %v2878
  %v2880 = vand.u32 %v1488, 4294901760
  %2881 = vmatprep.subr.mxu0 %v2880
  %v2882 = vand.u32 %v1487, 4294901760
  %2883 = vmatpush1.msra.mxu0 %v2882
  %v2884 = vand.u32 %v1420, 4294901760
  %2885 = vmatprep.mubr.f32.mxu0 %v2884
  %v2886 = vand.u32 %v1419, 4294901760
  %2887 = vmatmul.mubr.f32.gmra.mrb[0].mxu0 %v2886
  %v2888 = vpop.f32.mrb[0].mxu0
  %v2889 = vadd.f32 %v2752, %v2888
  %v2890 = vpop.f32.mrb[0].mxu0
  %v2891 = vadd.f32 %v2754, %v2890
  %2892 = vdwg.mxu0
  %v2893 = vand.u32 %v1490, 4294901760
  %2894 = vmatprep.subr.mxu0 %v2893
  %v2895 = vand.u32 %v1489, 4294901760
  %2896 = vmatpush1.msra.mxu0 %v2895
  %v2897 = vand.u32 %v1492, 4294901760
  %2898 = vmatprep.subr.mxu0 %v2897
  %v2899 = vand.u32 %v1491, 4294901760
  %2900 = vmatpush1.msra.mxu0 %v2899
  %v2901 = vand.u32 %v1494, 4294901760
  %2902 = vmatprep.subr.mxu0 %v2901
  %v2903 = vand.u32 %v1493, 4294901760
  %2904 = vmatpush1.msra.mxu0 %v2903
  %v2905 = vand.u32 %v1496, 4294901760
  %2906 = vmatprep.subr.mxu0 %v2905
  %v2907 = vand.u32 %v1495, 4294901760
  %2908 = vmatpush1.msra.mxu0 %v2907
  %v2909 = vand.u32 %v1498, 4294901760
  %2910 = vmatprep.subr.mxu0 %v2909
  %v2911 = vand.u32 %v1497, 4294901760
  %2912 = vmatpush1.msra.mxu0 %v2911
  %v2913 = vand.u32 %v1500, 4294901760
  %2914 = vmatprep.subr.mxu0 %v2913
  %v2915 = vand.u32 %v1499, 4294901760
  %2916 = vmatpush1.msra.mxu0 %v2915
  %v2917 = vand.u32 %v1502, 4294901760
  %2918 = vmatprep.subr.mxu0 %v2917
  %v2919 = vand.u32 %v1501, 4294901760
  %2920 = vmatpush1.msra.mxu0 %v2919
  %v2921 = vand.u32 %v1504, 4294901760
  %2922 = vmatprep.subr.mxu0 %v2921
  %v2923 = vand.u32 %v1503, 4294901760
  %2924 = vmatpush1.msra.mxu0 %v2923
  %v2925 = vand.u32 %v1506, 4294901760
  %2926 = vmatprep.subr.mxu0 %v2925
  %v2927 = vand.u32 %v1505, 4294901760
  %2928 = vmatpush1.msra.mxu0 %v2927
  %v2929 = vand.u32 %v1508, 4294901760
  %2930 = vmatprep.subr.mxu0 %v2929
  %v2931 = vand.u32 %v1507, 4294901760
  %2932 = vmatpush1.msra.mxu0 %v2931
  %v2933 = vand.u32 %v1510, 4294901760
  %2934 = vmatprep.subr.mxu0 %v2933
  %v2935 = vand.u32 %v1509, 4294901760
  %2936 = vmatpush1.msra.mxu0 %v2935
  %v2937 = vand.u32 %v1512, 4294901760
  %2938 = vmatprep.subr.mxu0 %v2937
  %v2939 = vand.u32 %v1511, 4294901760
  %2940 = vmatpush1.msra.mxu0 %v2939
  %v2941 = vand.u32 %v1514, 4294901760
  %2942 = vmatprep.subr.mxu0 %v2941
  %v2943 = vand.u32 %v1513, 4294901760
  %2944 = vmatpush1.msra.mxu0 %v2943
  %v2945 = vand.u32 %v1516, 4294901760
  %2946 = vmatprep.subr.mxu0 %v2945
  %v2947 = vand.u32 %v1515, 4294901760
  %2948 = vmatpush1.msra.mxu0 %v2947
  %v2949 = vand.u32 %v1518, 4294901760
  %2950 = vmatprep.subr.mxu0 %v2949
  %v2951 = vand.u32 %v1517, 4294901760
  %2952 = vmatpush1.msra.mxu0 %v2951
  %v2953 = vand.u32 %v1520, 4294901760
  %2954 = vmatprep.subr.mxu0 %v2953
  %v2955 = vand.u32 %v1519, 4294901760
  %2956 = vmatpush1.msra.mxu0 %v2955
  %v2957 = vand.u32 %v1522, 4294901760
  %2958 = vmatprep.subr.mxu0 %v2957
  %v2959 = vand.u32 %v1521, 4294901760
  %2960 = vmatpush1.msra.mxu0 %v2959
  %v2961 = vand.u32 %v1524, 4294901760
  %2962 = vmatprep.subr.mxu0 %v2961
  %v2963 = vand.u32 %v1523, 4294901760
  %2964 = vmatpush1.msra.mxu0 %v2963
  %v2965 = vand.u32 %v1526, 4294901760
  %2966 = vmatprep.subr.mxu0 %v2965
  %v2967 = vand.u32 %v1525, 4294901760
  %2968 = vmatpush1.msra.mxu0 %v2967
  %v2969 = vand.u32 %v1528, 4294901760
  %2970 = vmatprep.subr.mxu0 %v2969
  %v2971 = vand.u32 %v1527, 4294901760
  %2972 = vmatpush1.msra.mxu0 %v2971
  %v2973 = vand.u32 %v1530, 4294901760
  %2974 = vmatprep.subr.mxu0 %v2973
  %v2975 = vand.u32 %v1529, 4294901760
  %2976 = vmatpush1.msra.mxu0 %v2975
  %v2977 = vand.u32 %v1532, 4294901760
  %2978 = vmatprep.subr.mxu0 %v2977
  %v2979 = vand.u32 %v1531, 4294901760
  %2980 = vmatpush1.msra.mxu0 %v2979
  %v2981 = vand.u32 %v1534, 4294901760
  %2982 = vmatprep.subr.mxu0 %v2981
  %v2983 = vand.u32 %v1533, 4294901760
  %2984 = vmatpush1.msra.mxu0 %v2983
  %v2985 = vand.u32 %v1536, 4294901760
  %2986 = vmatprep.subr.mxu0 %v2985
  %v2987 = vand.u32 %v1535, 4294901760
  %2988 = vmatpush1.msra.mxu0 %v2987
  %v2989 = vand.u32 %v1538, 4294901760
  %2990 = vmatprep.subr.mxu0 %v2989
  %v2991 = vand.u32 %v1537, 4294901760
  %2992 = vmatpush1.msra.mxu0 %v2991
  %v2993 = vand.u32 %v1540, 4294901760
  %2994 = vmatprep.subr.mxu0 %v2993
  %v2995 = vand.u32 %v1539, 4294901760
  %2996 = vmatpush1.msra.mxu0 %v2995
  %v2997 = vand.u32 %v1542, 4294901760
  %2998 = vmatprep.subr.mxu0 %v2997
  %v2999 = vand.u32 %v1541, 4294901760
  %3000 = vmatpush1.msra.mxu0 %v2999
  %v3001 = vand.u32 %v1544, 4294901760
  %3002 = vmatprep.subr.mxu0 %v3001
  %v3003 = vand.u32 %v1543, 4294901760
  %3004 = vmatpush1.msra.mxu0 %v3003
  %v3005 = vand.u32 %v1546, 4294901760
  %3006 = vmatprep.subr.mxu0 %v3005
  %v3007 = vand.u32 %v1545, 4294901760
  %3008 = vmatpush1.msra.mxu0 %v3007
  %v3009 = vand.u32 %v1548, 4294901760
  %3010 = vmatprep.subr.mxu0 %v3009
  %v3011 = vand.u32 %v1547, 4294901760
  %3012 = vmatpush1.msra.mxu0 %v3011
  %v3013 = vand.u32 %v1550, 4294901760
  %3014 = vmatprep.subr.mxu0 %v3013
  %v3015 = vand.u32 %v1549, 4294901760
  %3016 = vmatpush1.msra.mxu0 %v3015
  %v3017 = vand.u32 %v1552, 4294901760
  %3018 = vmatprep.subr.mxu0 %v3017
  %v3019 = vand.u32 %v1551, 4294901760
  %3020 = vmatpush1.msra.mxu0 %v3019
  %v3021 = vand.u32 %v1422, 4294901760
  %v3022 = vsub.f32 %v1422, %v3021
  %v3023 = vand.u32 %v3022, 4294901760
  %v3024 = vsub.f32 %v3022, %v3023
  %v3025 = vand.u32 %v3024, 4294901760
  %3026 = vmatprep.mubr.f32.mxu0 %v3025
  %v3027 = vand.u32 %v1421, 4294901760
  %v3028 = vsub.f32 %v1421, %v3027
  %v3029 = vand.u32 %v3028, 4294901760
  %v3030 = vsub.f32 %v3028, %v3029
  %v3031 = vand.u32 %v3030, 4294901760
  %3032 = vmatmul.mubr.f32.gmra.mrb[0].mxu0 %v3031
  %v3033 = vpop.f32.mrb[0].mxu0
  %v3034 = vadd.f32 %v2889, %v3033
  %v3035 = vpop.f32.mrb[0].mxu0
  %v3036 = vadd.f32 %v2891, %v3035
  %3037 = vdwg.mxu0
  %v3038 = vand.u32 %v1490, 4294901760
  %v3039 = vsub.f32 %v1490, %v3038
  %v3040 = vand.u32 %v3039, 4294901760
  %v3041 = vsub.f32 %v3039, %v3040
  %v3042 = vand.u32 %v3041, 4294901760
  %3043 = vmatprep.subr.mxu0 %v3042
  %v3044 = vand.u32 %v1489, 4294901760
  %v3045 = vsub.f32 %v1489, %v3044
  %v3046 = vand.u32 %v3045, 4294901760
  %v3047 = vsub.f32 %v3045, %v3046
  %v3048 = vand.u32 %v3047, 4294901760
  %3049 = vmatpush1.msra.mxu0 %v3048
  %v3050 = vand.u32 %v1492, 4294901760
  %v3051 = vsub.f32 %v1492, %v3050
  %v3052 = vand.u32 %v3051, 4294901760
  %v3053 = vsub.f32 %v3051, %v3052
  %v3054 = vand.u32 %v3053, 4294901760
  %3055 = vmatprep.subr.mxu0 %v3054
  %v3056 = vand.u32 %v1491, 4294901760
  %v3057 = vsub.f32 %v1491, %v3056
  %v3058 = vand.u32 %v3057, 4294901760
  %v3059 = vsub.f32 %v3057, %v3058
  %v3060 = vand.u32 %v3059, 4294901760
  %3061 = vmatpush1.msra.mxu0 %v3060
  %v3062 = vand.u32 %v1494, 4294901760
  %v3063 = vsub.f32 %v1494, %v3062
  %v3064 = vand.u32 %v3063, 4294901760
  %v3065 = vsub.f32 %v3063, %v3064
  %v3066 = vand.u32 %v3065, 4294901760
  %3067 = vmatprep.subr.mxu0 %v3066
  %v3068 = vand.u32 %v1493, 4294901760
  %v3069 = vsub.f32 %v1493, %v3068
  %v3070 = vand.u32 %v3069, 4294901760
  %v3071 = vsub.f32 %v3069, %v3070
  %v3072 = vand.u32 %v3071, 4294901760
  %3073 = vmatpush1.msra.mxu0 %v3072
  %v3074 = vand.u32 %v1496, 4294901760
  %v3075 = vsub.f32 %v1496, %v3074
  %v3076 = vand.u32 %v3075, 4294901760
  %v3077 = vsub.f32 %v3075, %v3076
  %v3078 = vand.u32 %v3077, 4294901760
  %3079 = vmatprep.subr.mxu0 %v3078
  %v3080 = vand.u32 %v1495, 4294901760
  %v3081 = vsub.f32 %v1495, %v3080
  %v3082 = vand.u32 %v3081, 4294901760
  %v3083 = vsub.f32 %v3081, %v3082
  %v3084 = vand.u32 %v3083, 4294901760
  %3085 = vmatpush1.msra.mxu0 %v3084
  %v3086 = vand.u32 %v1498, 4294901760
  %v3087 = vsub.f32 %v1498, %v3086
  %v3088 = vand.u32 %v3087, 4294901760
  %v3089 = vsub.f32 %v3087, %v3088
  %v3090 = vand.u32 %v3089, 4294901760
  %3091 = vmatprep.subr.mxu0 %v3090
  %v3092 = vand.u32 %v1497, 4294901760
  %v3093 = vsub.f32 %v1497, %v3092
  %v3094 = vand.u32 %v3093, 4294901760
  %v3095 = vsub.f32 %v3093, %v3094
  %v3096 = vand.u32 %v3095, 4294901760
  %3097 = vmatpush1.msra.mxu0 %v3096
  %v3098 = vand.u32 %v1500, 4294901760
  %v3099 = vsub.f32 %v1500, %v3098
  %v3100 = vand.u32 %v3099, 4294901760
  %v3101 = vsub.f32 %v3099, %v3100
  %v3102 = vand.u32 %v3101, 4294901760
  %3103 = vmatprep.subr.mxu0 %v3102
  %v3104 = vand.u32 %v1499, 4294901760
  %v3105 = vsub.f32 %v1499, %v3104
  %v3106 = vand.u32 %v3105, 4294901760
  %v3107 = vsub.f32 %v3105, %v3106
  %v3108 = vand.u32 %v3107, 4294901760
  %3109 = vmatpush1.msra.mxu0 %v3108
  %v3110 = vand.u32 %v1502, 4294901760
  %v3111 = vsub.f32 %v1502, %v3110
  %v3112 = vand.u32 %v3111, 4294901760
  %v3113 = vsub.f32 %v3111, %v3112
  %v3114 = vand.u32 %v3113, 4294901760
  %3115 = vmatprep.subr.mxu0 %v3114
  %v3116 = vand.u32 %v1501, 4294901760
  %v3117 = vsub.f32 %v1501, %v3116
  %v3118 = vand.u32 %v3117, 4294901760
  %v3119 = vsub.f32 %v3117, %v3118
  %v3120 = vand.u32 %v3119, 4294901760
  %3121 = vmatpush1.msra.mxu0 %v3120
  %v3122 = vand.u32 %v1504, 4294901760
  %v3123 = vsub.f32 %v1504, %v3122
  %v3124 = vand.u32 %v3123, 4294901760
  %v3125 = vsub.f32 %v3123, %v3124
  %v3126 = vand.u32 %v3125, 4294901760
  %3127 = vmatprep.subr.mxu0 %v3126
  %v3128 = vand.u32 %v1503, 4294901760
  %v3129 = vsub.f32 %v1503, %v3128
  %v3130 = vand.u32 %v3129, 4294901760
  %v3131 = vsub.f32 %v3129, %v3130
  %v3132 = vand.u32 %v3131, 4294901760
  %3133 = vmatpush1.msra.mxu0 %v3132
  %v3134 = vand.u32 %v1506, 4294901760
  %v3135 = vsub.f32 %v1506, %v3134
  %v3136 = vand.u32 %v3135, 4294901760
  %v3137 = vsub.f32 %v3135, %v3136
  %v3138 = vand.u32 %v3137, 4294901760
  %3139 = vmatprep.subr.mxu0 %v3138
  %v3140 = vand.u32 %v1505, 4294901760
  %v3141 = vsub.f32 %v1505, %v3140
  %v3142 = vand.u32 %v3141, 4294901760
  %v3143 = vsub.f32 %v3141, %v3142
  %v3144 = vand.u32 %v3143, 4294901760
  %3145 = vmatpush1.msra.mxu0 %v3144
  %v3146 = vand.u32 %v1508, 4294901760
  %v3147 = vsub.f32 %v1508, %v3146
  %v3148 = vand.u32 %v3147, 4294901760
  %v3149 = vsub.f32 %v3147, %v3148
  %v3150 = vand.u32 %v3149, 4294901760
  %3151 = vmatprep.subr.mxu0 %v3150
  %v3152 = vand.u32 %v1507, 4294901760
  %v3153 = vsub.f32 %v1507, %v3152
  %v3154 = vand.u32 %v3153, 4294901760
  %v3155 = vsub.f32 %v3153, %v3154
  %v3156 = vand.u32 %v3155, 4294901760
  %3157 = vmatpush1.msra.mxu0 %v3156
  %v3158 = vand.u32 %v1510, 4294901760
  %v3159 = vsub.f32 %v1510, %v3158
  %v3160 = vand.u32 %v3159, 4294901760
  %v3161 = vsub.f32 %v3159, %v3160
  %v3162 = vand.u32 %v3161, 4294901760
  %3163 = vmatprep.subr.mxu0 %v3162
  %v3164 = vand.u32 %v1509, 4294901760
  %v3165 = vsub.f32 %v1509, %v3164
  %v3166 = vand.u32 %v3165, 4294901760
  %v3167 = vsub.f32 %v3165, %v3166
  %v3168 = vand.u32 %v3167, 4294901760
  %3169 = vmatpush1.msra.mxu0 %v3168
  %v3170 = vand.u32 %v1512, 4294901760
  %v3171 = vsub.f32 %v1512, %v3170
  %v3172 = vand.u32 %v3171, 4294901760
  %v3173 = vsub.f32 %v3171, %v3172
  %v3174 = vand.u32 %v3173, 4294901760
  %3175 = vmatprep.subr.mxu0 %v3174
  %v3176 = vand.u32 %v1511, 4294901760
  %v3177 = vsub.f32 %v1511, %v3176
  %v3178 = vand.u32 %v3177, 4294901760
  %v3179 = vsub.f32 %v3177, %v3178
  %v3180 = vand.u32 %v3179, 4294901760
  %3181 = vmatpush1.msra.mxu0 %v3180
  %v3182 = vand.u32 %v1514, 4294901760
  %v3183 = vsub.f32 %v1514, %v3182
  %v3184 = vand.u32 %v3183, 4294901760
  %v3185 = vsub.f32 %v3183, %v3184
  %v3186 = vand.u32 %v3185, 4294901760
  %3187 = vmatprep.subr.mxu0 %v3186
  %v3188 = vand.u32 %v1513, 4294901760
  %v3189 = vsub.f32 %v1513, %v3188
  %v3190 = vand.u32 %v3189, 4294901760
  %v3191 = vsub.f32 %v3189, %v3190
  %v3192 = vand.u32 %v3191, 4294901760
  %3193 = vmatpush1.msra.mxu0 %v3192
  %v3194 = vand.u32 %v1516, 4294901760
  %v3195 = vsub.f32 %v1516, %v3194
  %v3196 = vand.u32 %v3195, 4294901760
  %v3197 = vsub.f32 %v3195, %v3196
  %v3198 = vand.u32 %v3197, 4294901760
  %3199 = vmatprep.subr.mxu0 %v3198
  %v3200 = vand.u32 %v1515, 4294901760
  %v3201 = vsub.f32 %v1515, %v3200
  %v3202 = vand.u32 %v3201, 4294901760
  %v3203 = vsub.f32 %v3201, %v3202
  %v3204 = vand.u32 %v3203, 4294901760
  %3205 = vmatpush1.msra.mxu0 %v3204
  %v3206 = vand.u32 %v1518, 4294901760
  %v3207 = vsub.f32 %v1518, %v3206
  %v3208 = vand.u32 %v3207, 4294901760
  %v3209 = vsub.f32 %v3207, %v3208
  %v3210 = vand.u32 %v3209, 4294901760
  %3211 = vmatprep.subr.mxu0 %v3210
  %v3212 = vand.u32 %v1517, 4294901760
  %v3213 = vsub.f32 %v1517, %v3212
  %v3214 = vand.u32 %v3213, 4294901760
  %v3215 = vsub.f32 %v3213, %v3214
  %v3216 = vand.u32 %v3215, 4294901760
  %3217 = vmatpush1.msra.mxu0 %v3216
  %v3218 = vand.u32 %v1520, 4294901760
  %v3219 = vsub.f32 %v1520, %v3218
  %v3220 = vand.u32 %v3219, 4294901760
  %v3221 = vsub.f32 %v3219, %v3220
  %v3222 = vand.u32 %v3221, 4294901760
  %3223 = vmatprep.subr.mxu0 %v3222
  %v3224 = vand.u32 %v1519, 4294901760
  %v3225 = vsub.f32 %v1519, %v3224
  %v3226 = vand.u32 %v3225, 4294901760
  %v3227 = vsub.f32 %v3225, %v3226
  %v3228 = vand.u32 %v3227, 4294901760
  %3229 = vmatpush1.msra.mxu0 %v3228
  %v3230 = vand.u32 %v1522, 4294901760
  %v3231 = vsub.f32 %v1522, %v3230
  %v3232 = vand.u32 %v3231, 4294901760
  %v3233 = vsub.f32 %v3231, %v3232
  %v3234 = vand.u32 %v3233, 4294901760
  %3235 = vmatprep.subr.mxu0 %v3234
  %v3236 = vand.u32 %v1521, 4294901760
  %v3237 = vsub.f32 %v1521, %v3236
  %v3238 = vand.u32 %v3237, 4294901760
  %v3239 = vsub.f32 %v3237, %v3238
  %v3240 = vand.u32 %v3239, 4294901760
  %3241 = vmatpush1.msra.mxu0 %v3240
  %v3242 = vand.u32 %v1524, 4294901760
  %v3243 = vsub.f32 %v1524, %v3242
  %v3244 = vand.u32 %v3243, 4294901760
  %v3245 = vsub.f32 %v3243, %v3244
  %v3246 = vand.u32 %v3245, 4294901760
  %3247 = vmatprep.subr.mxu0 %v3246
  %v3248 = vand.u32 %v1523, 4294901760
  %v3249 = vsub.f32 %v1523, %v3248
  %v3250 = vand.u32 %v3249, 4294901760
  %v3251 = vsub.f32 %v3249, %v3250
  %v3252 = vand.u32 %v3251, 4294901760
  %3253 = vmatpush1.msra.mxu0 %v3252
  %v3254 = vand.u32 %v1526, 4294901760
  %v3255 = vsub.f32 %v1526, %v3254
  %v3256 = vand.u32 %v3255, 4294901760
  %v3257 = vsub.f32 %v3255, %v3256
  %v3258 = vand.u32 %v3257, 4294901760
  %3259 = vmatprep.subr.mxu0 %v3258
  %v3260 = vand.u32 %v1525, 4294901760
  %v3261 = vsub.f32 %v1525, %v3260
  %v3262 = vand.u32 %v3261, 4294901760
  %v3263 = vsub.f32 %v3261, %v3262
  %v3264 = vand.u32 %v3263, 4294901760
  %3265 = vmatpush1.msra.mxu0 %v3264
  %v3266 = vand.u32 %v1528, 4294901760
  %v3267 = vsub.f32 %v1528, %v3266
  %v3268 = vand.u32 %v3267, 4294901760
  %v3269 = vsub.f32 %v3267, %v3268
  %v3270 = vand.u32 %v3269, 4294901760
  %3271 = vmatprep.subr.mxu0 %v3270
  %v3272 = vand.u32 %v1527, 4294901760
  %v3273 = vsub.f32 %v1527, %v3272
  %v3274 = vand.u32 %v3273, 4294901760
  %v3275 = vsub.f32 %v3273, %v3274
  %v3276 = vand.u32 %v3275, 4294901760
  %3277 = vmatpush1.msra.mxu0 %v3276
  %v3278 = vand.u32 %v1530, 4294901760
  %v3279 = vsub.f32 %v1530, %v3278
  %v3280 = vand.u32 %v3279, 4294901760
  %v3281 = vsub.f32 %v3279, %v3280
  %v3282 = vand.u32 %v3281, 4294901760
  %3283 = vmatprep.subr.mxu0 %v3282
  %v3284 = vand.u32 %v1529, 4294901760
  %v3285 = vsub.f32 %v1529, %v3284
  %v3286 = vand.u32 %v3285, 4294901760
  %v3287 = vsub.f32 %v3285, %v3286
  %v3288 = vand.u32 %v3287, 4294901760
  %3289 = vmatpush1.msra.mxu0 %v3288
  %v3290 = vand.u32 %v1532, 4294901760
  %v3291 = vsub.f32 %v1532, %v3290
  %v3292 = vand.u32 %v3291, 4294901760
  %v3293 = vsub.f32 %v3291, %v3292
  %v3294 = vand.u32 %v3293, 4294901760
  %3295 = vmatprep.subr.mxu0 %v3294
  %v3296 = vand.u32 %v1531, 4294901760
  %v3297 = vsub.f32 %v1531, %v3296
  %v3298 = vand.u32 %v3297, 4294901760
  %v3299 = vsub.f32 %v3297, %v3298
  %v3300 = vand.u32 %v3299, 4294901760
  %3301 = vmatpush1.msra.mxu0 %v3300
  %v3302 = vand.u32 %v1534, 4294901760
  %v3303 = vsub.f32 %v1534, %v3302
  %v3304 = vand.u32 %v3303, 4294901760
  %v3305 = vsub.f32 %v3303, %v3304
  %v3306 = vand.u32 %v3305, 4294901760
  %3307 = vmatprep.subr.mxu0 %v3306
  %v3308 = vand.u32 %v1533, 4294901760
  %v3309 = vsub.f32 %v1533, %v3308
  %v3310 = vand.u32 %v3309, 4294901760
  %v3311 = vsub.f32 %v3309, %v3310
  %v3312 = vand.u32 %v3311, 4294901760
  %3313 = vmatpush1.msra.mxu0 %v3312
  %v3314 = vand.u32 %v1536, 4294901760
  %v3315 = vsub.f32 %v1536, %v3314
  %v3316 = vand.u32 %v3315, 4294901760
  %v3317 = vsub.f32 %v3315, %v3316
  %v3318 = vand.u32 %v3317, 4294901760
  %3319 = vmatprep.subr.mxu0 %v3318
  %v3320 = vand.u32 %v1535, 4294901760
  %v3321 = vsub.f32 %v1535, %v3320
  %v3322 = vand.u32 %v3321, 4294901760
  %v3323 = vsub.f32 %v3321, %v3322
  %v3324 = vand.u32 %v3323, 4294901760
  %3325 = vmatpush1.msra.mxu0 %v3324
  %v3326 = vand.u32 %v1538, 4294901760
  %v3327 = vsub.f32 %v1538, %v3326
  %v3328 = vand.u32 %v3327, 4294901760
  %v3329 = vsub.f32 %v3327, %v3328
  %v3330 = vand.u32 %v3329, 4294901760
  %3331 = vmatprep.subr.mxu0 %v3330
  %v3332 = vand.u32 %v1537, 4294901760
  %v3333 = vsub.f32 %v1537, %v3332
  %v3334 = vand.u32 %v3333, 4294901760
  %v3335 = vsub.f32 %v3333, %v3334
  %v3336 = vand.u32 %v3335, 4294901760
  %3337 = vmatpush1.msra.mxu0 %v3336
  %v3338 = vand.u32 %v1540, 4294901760
  %v3339 = vsub.f32 %v1540, %v3338
  %v3340 = vand.u32 %v3339, 4294901760
  %v3341 = vsub.f32 %v3339, %v3340
  %v3342 = vand.u32 %v3341, 4294901760
  %3343 = vmatprep.subr.mxu0 %v3342
  %v3344 = vand.u32 %v1539, 4294901760
  %v3345 = vsub.f32 %v1539, %v3344
  %v3346 = vand.u32 %v3345, 4294901760
  %v3347 = vsub.f32 %v3345, %v3346
  %v3348 = vand.u32 %v3347, 4294901760
  %3349 = vmatpush1.msra.mxu0 %v3348
  %v3350 = vand.u32 %v1542, 4294901760
  %v3351 = vsub.f32 %v1542, %v3350
  %v3352 = vand.u32 %v3351, 4294901760
  %v3353 = vsub.f32 %v3351, %v3352
  %v3354 = vand.u32 %v3353, 4294901760
  %3355 = vmatprep.subr.mxu0 %v3354
  %v3356 = vand.u32 %v1541, 4294901760
  %v3357 = vsub.f32 %v1541, %v3356
  %v3358 = vand.u32 %v3357, 4294901760
  %v3359 = vsub.f32 %v3357, %v3358
  %v3360 = vand.u32 %v3359, 4294901760
  %3361 = vmatpush1.msra.mxu0 %v3360
  %v3362 = vand.u32 %v1544, 4294901760
  %v3363 = vsub.f32 %v1544, %v3362
  %v3364 = vand.u32 %v3363, 4294901760
  %v3365 = vsub.f32 %v3363, %v3364
  %v3366 = vand.u32 %v3365, 4294901760
  %3367 = vmatprep.subr.mxu0 %v3366
  %v3368 = vand.u32 %v1543, 4294901760
  %v3369 = vsub.f32 %v1543, %v3368
  %v3370 = vand.u32 %v3369, 4294901760
  %v3371 = vsub.f32 %v3369, %v3370
  %v3372 = vand.u32 %v3371, 4294901760
  %3373 = vmatpush1.msra.mxu0 %v3372
  %v3374 = vand.u32 %v1546, 4294901760
  %v3375 = vsub.f32 %v1546, %v3374
  %v3376 = vand.u32 %v3375, 4294901760
  %v3377 = vsub.f32 %v3375, %v3376
  %v3378 = vand.u32 %v3377, 4294901760
  %3379 = vmatprep.subr.mxu0 %v3378
  %v3380 = vand.u32 %v1545, 4294901760
  %v3381 = vsub.f32 %v1545, %v3380
  %v3382 = vand.u32 %v3381, 4294901760
  %v3383 = vsub.f32 %v3381, %v3382
  %v3384 = vand.u32 %v3383, 4294901760
  %3385 = vmatpush1.msra.mxu0 %v3384
  %v3386 = vand.u32 %v1548, 4294901760
  %v3387 = vsub.f32 %v1548, %v3386
  %v3388 = vand.u32 %v3387, 4294901760
  %v3389 = vsub.f32 %v3387, %v3388
  %v3390 = vand.u32 %v3389, 4294901760
  %3391 = vmatprep.subr.mxu0 %v3390
  %v3392 = vand.u32 %v1547, 4294901760
  %v3393 = vsub.f32 %v1547, %v3392
  %v3394 = vand.u32 %v3393, 4294901760
  %v3395 = vsub.f32 %v3393, %v3394
  %v3396 = vand.u32 %v3395, 4294901760
  %3397 = vmatpush1.msra.mxu0 %v3396
  %v3398 = vand.u32 %v1550, 4294901760
  %v3399 = vsub.f32 %v1550, %v3398
  %v3400 = vand.u32 %v3399, 4294901760
  %v3401 = vsub.f32 %v3399, %v3400
  %v3402 = vand.u32 %v3401, 4294901760
  %3403 = vmatprep.subr.mxu0 %v3402
  %v3404 = vand.u32 %v1549, 4294901760
  %v3405 = vsub.f32 %v1549, %v3404
  %v3406 = vand.u32 %v3405, 4294901760
  %v3407 = vsub.f32 %v3405, %v3406
  %v3408 = vand.u32 %v3407, 4294901760
  %3409 = vmatpush1.msra.mxu0 %v3408
  %v3410 = vand.u32 %v1552, 4294901760
  %v3411 = vsub.f32 %v1552, %v3410
  %v3412 = vand.u32 %v3411, 4294901760
  %v3413 = vsub.f32 %v3411, %v3412
  %v3414 = vand.u32 %v3413, 4294901760
  %3415 = vmatprep.subr.mxu0 %v3414
  %v3416 = vand.u32 %v1551, 4294901760
  %v3417 = vsub.f32 %v1551, %v3416
  %v3418 = vand.u32 %v3417, 4294901760
  %v3419 = vsub.f32 %v3417, %v3418
  %v3420 = vand.u32 %v3419, 4294901760
  %3421 = vmatpush1.msra.mxu0 %v3420
  %v3422 = vand.u32 %v1422, 4294901760
  %3423 = vmatprep.mubr.f32.mxu0 %v3422
  %v3424 = vand.u32 %v1421, 4294901760
  %3425 = vmatmul.mubr.f32.gmra.mrb[0].mxu0 %v3424
  %v3426 = vpop.f32.mrb[0].mxu0
  %v3427 = vadd.f32 %v3034, %v3426
  %v3428 = vpop.f32.mrb[0].mxu0
  %v3429 = vadd.f32 %v3036, %v3428
  %3430 = vdwg.mxu0
  %v3431 = vand.u32 %v1490, 4294901760
  %v3432 = vsub.f32 %v1490, %v3431
  %3433 = vmatprep.subr.mxu0 %v3432
  %v3434 = vand.u32 %v1489, 4294901760
  %v3435 = vsub.f32 %v1489, %v3434
  %3436 = vmatpush1.msra.mxu0 %v3435
  %v3437 = vand.u32 %v1492, 4294901760
  %v3438 = vsub.f32 %v1492, %v3437
  %3439 = vmatprep.subr.mxu0 %v3438
  %v3440 = vand.u32 %v1491, 4294901760
  %v3441 = vsub.f32 %v1491, %v3440
  %3442 = vmatpush1.msra.mxu0 %v3441
  %v3443 = vand.u32 %v1494, 4294901760
  %v3444 = vsub.f32 %v1494, %v3443
  %3445 = vmatprep.subr.mxu0 %v3444
  %v3446 = vand.u32 %v1493, 4294901760
  %v3447 = vsub.f32 %v1493, %v3446
  %3448 = vmatpush1.msra.mxu0 %v3447
  %v3449 = vand.u32 %v1496, 4294901760
  %v3450 = vsub.f32 %v1496, %v3449
  %3451 = vmatprep.subr.mxu0 %v3450
  %v3452 = vand.u32 %v1495, 4294901760
  %v3453 = vsub.f32 %v1495, %v3452
  %3454 = vmatpush1.msra.mxu0 %v3453
  %v3455 = vand.u32 %v1498, 4294901760
  %v3456 = vsub.f32 %v1498, %v3455
  %3457 = vmatprep.subr.mxu0 %v3456
  %v3458 = vand.u32 %v1497, 4294901760
  %v3459 = vsub.f32 %v1497, %v3458
  %3460 = vmatpush1.msra.mxu0 %v3459
  %v3461 = vand.u32 %v1500, 4294901760
  %v3462 = vsub.f32 %v1500, %v3461
  %3463 = vmatprep.subr.mxu0 %v3462
  %v3464 = vand.u32 %v1499, 4294901760
  %v3465 = vsub.f32 %v1499, %v3464
  %3466 = vmatpush1.msra.mxu0 %v3465
  %v3467 = vand.u32 %v1502, 4294901760
  %v3468 = vsub.f32 %v1502, %v3467
  %3469 = vmatprep.subr.mxu0 %v3468
  %v3470 = vand.u32 %v1501, 4294901760
  %v3471 = vsub.f32 %v1501, %v3470
  %3472 = vmatpush1.msra.mxu0 %v3471
  %v3473 = vand.u32 %v1504, 4294901760
  %v3474 = vsub.f32 %v1504, %v3473
  %3475 = vmatprep.subr.mxu0 %v3474
  %v3476 = vand.u32 %v1503, 4294901760
  %v3477 = vsub.f32 %v1503, %v3476
  %3478 = vmatpush1.msra.mxu0 %v3477
  %v3479 = vand.u32 %v1506, 4294901760
  %v3480 = vsub.f32 %v1506, %v3479
  %3481 = vmatprep.subr.mxu0 %v3480
  %v3482 = vand.u32 %v1505, 4294901760
  %v3483 = vsub.f32 %v1505, %v3482
  %3484 = vmatpush1.msra.mxu0 %v3483
  %v3485 = vand.u32 %v1508, 4294901760
  %v3486 = vsub.f32 %v1508, %v3485
  %3487 = vmatprep.subr.mxu0 %v3486
  %v3488 = vand.u32 %v1507, 4294901760
  %v3489 = vsub.f32 %v1507, %v3488
  %3490 = vmatpush1.msra.mxu0 %v3489
  %v3491 = vand.u32 %v1510, 4294901760
  %v3492 = vsub.f32 %v1510, %v3491
  %3493 = vmatprep.subr.mxu0 %v3492
  %v3494 = vand.u32 %v1509, 4294901760
  %v3495 = vsub.f32 %v1509, %v3494
  %3496 = vmatpush1.msra.mxu0 %v3495
  %v3497 = vand.u32 %v1512, 4294901760
  %v3498 = vsub.f32 %v1512, %v3497
  %3499 = vmatprep.subr.mxu0 %v3498
  %v3500 = vand.u32 %v1511, 4294901760
  %v3501 = vsub.f32 %v1511, %v3500
  %3502 = vmatpush1.msra.mxu0 %v3501
  %v3503 = vand.u32 %v1514, 4294901760
  %v3504 = vsub.f32 %v1514, %v3503
  %3505 = vmatprep.subr.mxu0 %v3504
  %v3506 = vand.u32 %v1513, 4294901760
  %v3507 = vsub.f32 %v1513, %v3506
  %3508 = vmatpush1.msra.mxu0 %v3507
  %v3509 = vand.u32 %v1516, 4294901760
  %v3510 = vsub.f32 %v1516, %v3509
  %3511 = vmatprep.subr.mxu0 %v3510
  %v3512 = vand.u32 %v1515, 4294901760
  %v3513 = vsub.f32 %v1515, %v3512
  %3514 = vmatpush1.msra.mxu0 %v3513
  %v3515 = vand.u32 %v1518, 4294901760
  %v3516 = vsub.f32 %v1518, %v3515
  %3517 = vmatprep.subr.mxu0 %v3516
  %v3518 = vand.u32 %v1517, 4294901760
  %v3519 = vsub.f32 %v1517, %v3518
  %3520 = vmatpush1.msra.mxu0 %v3519
  %v3521 = vand.u32 %v1520, 4294901760
  %v3522 = vsub.f32 %v1520, %v3521
  %3523 = vmatprep.subr.mxu0 %v3522
  %v3524 = vand.u32 %v1519, 4294901760
  %v3525 = vsub.f32 %v1519, %v3524
  %3526 = vmatpush1.msra.mxu0 %v3525
  %v3527 = vand.u32 %v1522, 4294901760
  %v3528 = vsub.f32 %v1522, %v3527
  %3529 = vmatprep.subr.mxu0 %v3528
  %v3530 = vand.u32 %v1521, 4294901760
  %v3531 = vsub.f32 %v1521, %v3530
  %3532 = vmatpush1.msra.mxu0 %v3531
  %v3533 = vand.u32 %v1524, 4294901760
  %v3534 = vsub.f32 %v1524, %v3533
  %3535 = vmatprep.subr.mxu0 %v3534
  %v3536 = vand.u32 %v1523, 4294901760
  %v3537 = vsub.f32 %v1523, %v3536
  %3538 = vmatpush1.msra.mxu0 %v3537
  %v3539 = vand.u32 %v1526, 4294901760
  %v3540 = vsub.f32 %v1526, %v3539
  %3541 = vmatprep.subr.mxu0 %v3540
  %v3542 = vand.u32 %v1525, 4294901760
  %v3543 = vsub.f32 %v1525, %v3542
  %3544 = vmatpush1.msra.mxu0 %v3543
  %v3545 = vand.u32 %v1528, 4294901760
  %v3546 = vsub.f32 %v1528, %v3545
  %3547 = vmatprep.subr.mxu0 %v3546
  %v3548 = vand.u32 %v1527, 4294901760
  %v3549 = vsub.f32 %v1527, %v3548
  %3550 = vmatpush1.msra.mxu0 %v3549
  %v3551 = vand.u32 %v1530, 4294901760
  %v3552 = vsub.f32 %v1530, %v3551
  %3553 = vmatprep.subr.mxu0 %v3552
  %v3554 = vand.u32 %v1529, 4294901760
  %v3555 = vsub.f32 %v1529, %v3554
  %3556 = vmatpush1.msra.mxu0 %v3555
  %v3557 = vand.u32 %v1532, 4294901760
  %v3558 = vsub.f32 %v1532, %v3557
  %3559 = vmatprep.subr.mxu0 %v3558
  %v3560 = vand.u32 %v1531, 4294901760
  %v3561 = vsub.f32 %v1531, %v3560
  %3562 = vmatpush1.msra.mxu0 %v3561
  %v3563 = vand.u32 %v1534, 4294901760
  %v3564 = vsub.f32 %v1534, %v3563
  %3565 = vmatprep.subr.mxu0 %v3564
  %v3566 = vand.u32 %v1533, 4294901760
  %v3567 = vsub.f32 %v1533, %v3566
  %3568 = vmatpush1.msra.mxu0 %v3567
  %v3569 = vand.u32 %v1536, 4294901760
  %v3570 = vsub.f32 %v1536, %v3569
  %3571 = vmatprep.subr.mxu0 %v3570
  %v3572 = vand.u32 %v1535, 4294901760
  %v3573 = vsub.f32 %v1535, %v3572
  %3574 = vmatpush1.msra.mxu0 %v3573
  %v3575 = vand.u32 %v1538, 4294901760
  %v3576 = vsub.f32 %v1538, %v3575
  %3577 = vmatprep.subr.mxu0 %v3576
  %v3578 = vand.u32 %v1537, 4294901760
  %v3579 = vsub.f32 %v1537, %v3578
  %3580 = vmatpush1.msra.mxu0 %v3579
  %v3581 = vand.u32 %v1540, 4294901760
  %v3582 = vsub.f32 %v1540, %v3581
  %3583 = vmatprep.subr.mxu0 %v3582
  %v3584 = vand.u32 %v1539, 4294901760
  %v3585 = vsub.f32 %v1539, %v3584
  %3586 = vmatpush1.msra.mxu0 %v3585
  %v3587 = vand.u32 %v1542, 4294901760
  %v3588 = vsub.f32 %v1542, %v3587
  %3589 = vmatprep.subr.mxu0 %v3588
  %v3590 = vand.u32 %v1541, 4294901760
  %v3591 = vsub.f32 %v1541, %v3590
  %3592 = vmatpush1.msra.mxu0 %v3591
  %v3593 = vand.u32 %v1544, 4294901760
  %v3594 = vsub.f32 %v1544, %v3593
  %3595 = vmatprep.subr.mxu0 %v3594
  %v3596 = vand.u32 %v1543, 4294901760
  %v3597 = vsub.f32 %v1543, %v3596
  %3598 = vmatpush1.msra.mxu0 %v3597
  %v3599 = vand.u32 %v1546, 4294901760
  %v3600 = vsub.f32 %v1546, %v3599
  %3601 = vmatprep.subr.mxu0 %v3600
  %v3602 = vand.u32 %v1545, 4294901760
  %v3603 = vsub.f32 %v1545, %v3602
  %3604 = vmatpush1.msra.mxu0 %v3603
  %v3605 = vand.u32 %v1548, 4294901760
  %v3606 = vsub.f32 %v1548, %v3605
  %3607 = vmatprep.subr.mxu0 %v3606
  %v3608 = vand.u32 %v1547, 4294901760
  %v3609 = vsub.f32 %v1547, %v3608
  %3610 = vmatpush1.msra.mxu0 %v3609
  %v3611 = vand.u32 %v1550, 4294901760
  %v3612 = vsub.f32 %v1550, %v3611
  %3613 = vmatprep.subr.mxu0 %v3612
  %v3614 = vand.u32 %v1549, 4294901760
  %v3615 = vsub.f32 %v1549, %v3614
  %3616 = vmatpush1.msra.mxu0 %v3615
  %v3617 = vand.u32 %v1552, 4294901760
  %v3618 = vsub.f32 %v1552, %v3617
  %3619 = vmatprep.subr.mxu0 %v3618
  %v3620 = vand.u32 %v1551, 4294901760
  %v3621 = vsub.f32 %v1551, %v3620
  %3622 = vmatpush1.msra.mxu0 %v3621
  %v3623 = vand.u32 %v1422, 4294901760
  %v3624 = vsub.f32 %v1422, %v3623
  %3625 = vmatprep.mubr.f32.mxu0 %v3624
  %v3626 = vand.u32 %v1421, 4294901760
  %v3627 = vsub.f32 %v1421, %v3626
  %3628 = vmatmul.mubr.f32.gmra.mrb[0].mxu0 %v3627
  %v3629 = vpop.f32.mrb[0].mxu0
  %v3630 = vadd.f32 %v3427, %v3629
  %v3631 = vpop.f32.mrb[0].mxu0
  %v3632 = vadd.f32 %v3429, %v3631
  %3633 = vdwg.mxu0
  %v3634 = vand.u32 %v1490, 4294901760
  %3635 = vmatprep.subr.mxu0 %v3634
  %v3636 = vand.u32 %v1489, 4294901760
  %3637 = vmatpush1.msra.mxu0 %v3636
  %v3638 = vand.u32 %v1492, 4294901760
  %3639 = vmatprep.subr.mxu0 %v3638
  %v3640 = vand.u32 %v1491, 4294901760
  %3641 = vmatpush1.msra.mxu0 %v3640
  %v3642 = vand.u32 %v1494, 4294901760
  %3643 = vmatprep.subr.mxu0 %v3642
  %v3644 = vand.u32 %v1493, 4294901760
  %3645 = vmatpush1.msra.mxu0 %v3644
  %v3646 = vand.u32 %v1496, 4294901760
  %3647 = vmatprep.subr.mxu0 %v3646
  %v3648 = vand.u32 %v1495, 4294901760
  %3649 = vmatpush1.msra.mxu0 %v3648
  %v3650 = vand.u32 %v1498, 4294901760
  %3651 = vmatprep.subr.mxu0 %v3650
  %v3652 = vand.u32 %v1497, 4294901760
  %3653 = vmatpush1.msra.mxu0 %v3652
  %v3654 = vand.u32 %v1500, 4294901760
  %3655 = vmatprep.subr.mxu0 %v3654
  %v3656 = vand.u32 %v1499, 4294901760
  %3657 = vmatpush1.msra.mxu0 %v3656
  %v3658 = vand.u32 %v1502, 4294901760
  %3659 = vmatprep.subr.mxu0 %v3658
  %v3660 = vand.u32 %v1501, 4294901760
  %3661 = vmatpush1.msra.mxu0 %v3660
  %v3662 = vand.u32 %v1504, 4294901760
  %3663 = vmatprep.subr.mxu0 %v3662
  %v3664 = vand.u32 %v1503, 4294901760
  %3665 = vmatpush1.msra.mxu0 %v3664
  %v3666 = vand.u32 %v1506, 4294901760
  %3667 = vmatprep.subr.mxu0 %v3666
  %v3668 = vand.u32 %v1505, 4294901760
  %3669 = vmatpush1.msra.mxu0 %v3668
  %v3670 = vand.u32 %v1508, 4294901760
  %3671 = vmatprep.subr.mxu0 %v3670
  %v3672 = vand.u32 %v1507, 4294901760
  %3673 = vmatpush1.msra.mxu0 %v3672
  %v3674 = vand.u32 %v1510, 4294901760
  %3675 = vmatprep.subr.mxu0 %v3674
  %v3676 = vand.u32 %v1509, 4294901760
  %3677 = vmatpush1.msra.mxu0 %v3676
  %v3678 = vand.u32 %v1512, 4294901760
  %3679 = vmatprep.subr.mxu0 %v3678
  %v3680 = vand.u32 %v1511, 4294901760
  %3681 = vmatpush1.msra.mxu0 %v3680
  %v3682 = vand.u32 %v1514, 4294901760
  %3683 = vmatprep.subr.mxu0 %v3682
  %v3684 = vand.u32 %v1513, 4294901760
  %3685 = vmatpush1.msra.mxu0 %v3684
  %v3686 = vand.u32 %v1516, 4294901760
  %3687 = vmatprep.subr.mxu0 %v3686
  %v3688 = vand.u32 %v1515, 4294901760
  %3689 = vmatpush1.msra.mxu0 %v3688
  %v3690 = vand.u32 %v1518, 4294901760
  %3691 = vmatprep.subr.mxu0 %v3690
  %v3692 = vand.u32 %v1517, 4294901760
  %3693 = vmatpush1.msra.mxu0 %v3692
  %v3694 = vand.u32 %v1520, 4294901760
  %3695 = vmatprep.subr.mxu0 %v3694
  %v3696 = vand.u32 %v1519, 4294901760
  %3697 = vmatpush1.msra.mxu0 %v3696
  %v3698 = vand.u32 %v1522, 4294901760
  %3699 = vmatprep.subr.mxu0 %v3698
  %v3700 = vand.u32 %v1521, 4294901760
  %3701 = vmatpush1.msra.mxu0 %v3700
  %v3702 = vand.u32 %v1524, 4294901760
  %3703 = vmatprep.subr.mxu0 %v3702
  %v3704 = vand.u32 %v1523, 4294901760
  %3705 = vmatpush1.msra.mxu0 %v3704
  %v3706 = vand.u32 %v1526, 4294901760
  %3707 = vmatprep.subr.mxu0 %v3706
  %v3708 = vand.u32 %v1525, 4294901760
  %3709 = vmatpush1.msra.mxu0 %v3708
  %v3710 = vand.u32 %v1528, 4294901760
  %3711 = vmatprep.subr.mxu0 %v3710
  %v3712 = vand.u32 %v1527, 4294901760
  %3713 = vmatpush1.msra.mxu0 %v3712
  %v3714 = vand.u32 %v1530, 4294901760
  %3715 = vmatprep.subr.mxu0 %v3714
  %v3716 = vand.u32 %v1529, 4294901760
  %3717 = vmatpush1.msra.mxu0 %v3716
  %v3718 = vand.u32 %v1532, 4294901760
  %3719 = vmatprep.subr.mxu0 %v3718
  %v3720 = vand.u32 %v1531, 4294901760
  %3721 = vmatpush1.msra.mxu0 %v3720
  %v3722 = vand.u32 %v1534, 4294901760
  %3723 = vmatprep.subr.mxu0 %v3722
  %v3724 = vand.u32 %v1533, 4294901760
  %3725 = vmatpush1.msra.mxu0 %v3724
  %v3726 = vand.u32 %v1536, 4294901760
  %3727 = vmatprep.subr.mxu0 %v3726
  %v3728 = vand.u32 %v1535, 4294901760
  %3729 = vmatpush1.msra.mxu0 %v3728
  %v3730 = vand.u32 %v1538, 4294901760
  %3731 = vmatprep.subr.mxu0 %v3730
  %v3732 = vand.u32 %v1537, 4294901760
  %3733 = vmatpush1.msra.mxu0 %v3732
  %v3734 = vand.u32 %v1540, 4294901760
  %3735 = vmatprep.subr.mxu0 %v3734
  %v3736 = vand.u32 %v1539, 4294901760
  %3737 = vmatpush1.msra.mxu0 %v3736
  %v3738 = vand.u32 %v1542, 4294901760
  %3739 = vmatprep.subr.mxu0 %v3738
  %v3740 = vand.u32 %v1541, 4294901760
  %3741 = vmatpush1.msra.mxu0 %v3740
  %v3742 = vand.u32 %v1544, 4294901760
  %3743 = vmatprep.subr.mxu0 %v3742
  %v3744 = vand.u32 %v1543, 4294901760
  %3745 = vmatpush1.msra.mxu0 %v3744
  %v3746 = vand.u32 %v1546, 4294901760
  %3747 = vmatprep.subr.mxu0 %v3746
  %v3748 = vand.u32 %v1545, 4294901760
  %3749 = vmatpush1.msra.mxu0 %v3748
  %v3750 = vand.u32 %v1548, 4294901760
  %3751 = vmatprep.subr.mxu0 %v3750
  %v3752 = vand.u32 %v1547, 4294901760
  %3753 = vmatpush1.msra.mxu0 %v3752
  %v3754 = vand.u32 %v1550, 4294901760
  %3755 = vmatprep.subr.mxu0 %v3754
  %v3756 = vand.u32 %v1549, 4294901760
  %3757 = vmatpush1.msra.mxu0 %v3756
  %v3758 = vand.u32 %v1552, 4294901760
  %3759 = vmatprep.subr.mxu0 %v3758
  %v3760 = vand.u32 %v1551, 4294901760
  %3761 = vmatpush1.msra.mxu0 %v3760
  %v3762 = vand.u32 %v1422, 4294901760
  %v3763 = vsub.f32 %v1422, %v3762
  %v3764 = vand.u32 %v3763, 4294901760
  %3765 = vmatprep.mubr.f32.mxu0 %v3764
  %v3766 = vand.u32 %v1421, 4294901760
  %v3767 = vsub.f32 %v1421, %v3766
  %v3768 = vand.u32 %v3767, 4294901760
  %3769 = vmatmul.mubr.f32.gmra.mrb[0].mxu0 %v3768
  %v3770 = vpop.f32.mrb[0].mxu0
  %v3771 = vadd.f32 %v3630, %v3770
  %v3772 = vpop.f32.mrb[0].mxu0
  %v3773 = vadd.f32 %v3632, %v3772
  %3774 = vdwg.mxu0
  %v3775 = vand.u32 %v1490, 4294901760
  %v3776 = vsub.f32 %v1490, %v3775
  %v3777 = vand.u32 %v3776, 4294901760
  %3778 = vmatprep.subr.mxu0 %v3777
  %v3779 = vand.u32 %v1489, 4294901760
  %v3780 = vsub.f32 %v1489, %v3779
  %v3781 = vand.u32 %v3780, 4294901760
  %3782 = vmatpush1.msra.mxu0 %v3781
  %v3783 = vand.u32 %v1492, 4294901760
  %v3784 = vsub.f32 %v1492, %v3783
  %v3785 = vand.u32 %v3784, 4294901760
  %3786 = vmatprep.subr.mxu0 %v3785
  %v3787 = vand.u32 %v1491, 4294901760
  %v3788 = vsub.f32 %v1491, %v3787
  %v3789 = vand.u32 %v3788, 4294901760
  %3790 = vmatpush1.msra.mxu0 %v3789
  %v3791 = vand.u32 %v1494, 4294901760
  %v3792 = vsub.f32 %v1494, %v3791
  %v3793 = vand.u32 %v3792, 4294901760
  %3794 = vmatprep.subr.mxu0 %v3793
  %v3795 = vand.u32 %v1493, 4294901760
  %v3796 = vsub.f32 %v1493, %v3795
  %v3797 = vand.u32 %v3796, 4294901760
  %3798 = vmatpush1.msra.mxu0 %v3797
  %v3799 = vand.u32 %v1496, 4294901760
  %v3800 = vsub.f32 %v1496, %v3799
  %v3801 = vand.u32 %v3800, 4294901760
  %3802 = vmatprep.subr.mxu0 %v3801
  %v3803 = vand.u32 %v1495, 4294901760
  %v3804 = vsub.f32 %v1495, %v3803
  %v3805 = vand.u32 %v3804, 4294901760
  %3806 = vmatpush1.msra.mxu0 %v3805
  %v3807 = vand.u32 %v1498, 4294901760
  %v3808 = vsub.f32 %v1498, %v3807
  %v3809 = vand.u32 %v3808, 4294901760
  %3810 = vmatprep.subr.mxu0 %v3809
  %v3811 = vand.u32 %v1497, 4294901760
  %v3812 = vsub.f32 %v1497, %v3811
  %v3813 = vand.u32 %v3812, 4294901760
  %3814 = vmatpush1.msra.mxu0 %v3813
  %v3815 = vand.u32 %v1500, 4294901760
  %v3816 = vsub.f32 %v1500, %v3815
  %v3817 = vand.u32 %v3816, 4294901760
  %3818 = vmatprep.subr.mxu0 %v3817
  %v3819 = vand.u32 %v1499, 4294901760
  %v3820 = vsub.f32 %v1499, %v3819
  %v3821 = vand.u32 %v3820, 4294901760
  %3822 = vmatpush1.msra.mxu0 %v3821
  %v3823 = vand.u32 %v1502, 4294901760
  %v3824 = vsub.f32 %v1502, %v3823
  %v3825 = vand.u32 %v3824, 4294901760
  %3826 = vmatprep.subr.mxu0 %v3825
  %v3827 = vand.u32 %v1501, 4294901760
  %v3828 = vsub.f32 %v1501, %v3827
  %v3829 = vand.u32 %v3828, 4294901760
  %3830 = vmatpush1.msra.mxu0 %v3829
  %v3831 = vand.u32 %v1504, 4294901760
  %v3832 = vsub.f32 %v1504, %v3831
  %v3833 = vand.u32 %v3832, 4294901760
  %3834 = vmatprep.subr.mxu0 %v3833
  %v3835 = vand.u32 %v1503, 4294901760
  %v3836 = vsub.f32 %v1503, %v3835
  %v3837 = vand.u32 %v3836, 4294901760
  %3838 = vmatpush1.msra.mxu0 %v3837
  %v3839 = vand.u32 %v1506, 4294901760
  %v3840 = vsub.f32 %v1506, %v3839
  %v3841 = vand.u32 %v3840, 4294901760
  %3842 = vmatprep.subr.mxu0 %v3841
  %v3843 = vand.u32 %v1505, 4294901760
  %v3844 = vsub.f32 %v1505, %v3843
  %v3845 = vand.u32 %v3844, 4294901760
  %3846 = vmatpush1.msra.mxu0 %v3845
  %v3847 = vand.u32 %v1508, 4294901760
  %v3848 = vsub.f32 %v1508, %v3847
  %v3849 = vand.u32 %v3848, 4294901760
  %3850 = vmatprep.subr.mxu0 %v3849
  %v3851 = vand.u32 %v1507, 4294901760
  %v3852 = vsub.f32 %v1507, %v3851
  %v3853 = vand.u32 %v3852, 4294901760
  %3854 = vmatpush1.msra.mxu0 %v3853
  %v3855 = vand.u32 %v1510, 4294901760
  %v3856 = vsub.f32 %v1510, %v3855
  %v3857 = vand.u32 %v3856, 4294901760
  %3858 = vmatprep.subr.mxu0 %v3857
  %v3859 = vand.u32 %v1509, 4294901760
  %v3860 = vsub.f32 %v1509, %v3859
  %v3861 = vand.u32 %v3860, 4294901760
  %3862 = vmatpush1.msra.mxu0 %v3861
  %v3863 = vand.u32 %v1512, 4294901760
  %v3864 = vsub.f32 %v1512, %v3863
  %v3865 = vand.u32 %v3864, 4294901760
  %3866 = vmatprep.subr.mxu0 %v3865
  %v3867 = vand.u32 %v1511, 4294901760
  %v3868 = vsub.f32 %v1511, %v3867
  %v3869 = vand.u32 %v3868, 4294901760
  %3870 = vmatpush1.msra.mxu0 %v3869
  %v3871 = vand.u32 %v1514, 4294901760
  %v3872 = vsub.f32 %v1514, %v3871
  %v3873 = vand.u32 %v3872, 4294901760
  %3874 = vmatprep.subr.mxu0 %v3873
  %v3875 = vand.u32 %v1513, 4294901760
  %v3876 = vsub.f32 %v1513, %v3875
  %v3877 = vand.u32 %v3876, 4294901760
  %3878 = vmatpush1.msra.mxu0 %v3877
  %v3879 = vand.u32 %v1516, 4294901760
  %v3880 = vsub.f32 %v1516, %v3879
  %v3881 = vand.u32 %v3880, 4294901760
  %3882 = vmatprep.subr.mxu0 %v3881
  %v3883 = vand.u32 %v1515, 4294901760
  %v3884 = vsub.f32 %v1515, %v3883
  %v3885 = vand.u32 %v3884, 4294901760
  %3886 = vmatpush1.msra.mxu0 %v3885
  %v3887 = vand.u32 %v1518, 4294901760
  %v3888 = vsub.f32 %v1518, %v3887
  %v3889 = vand.u32 %v3888, 4294901760
  %3890 = vmatprep.subr.mxu0 %v3889
  %v3891 = vand.u32 %v1517, 4294901760
  %v3892 = vsub.f32 %v1517, %v3891
  %v3893 = vand.u32 %v3892, 4294901760
  %3894 = vmatpush1.msra.mxu0 %v3893
  %v3895 = vand.u32 %v1520, 4294901760
  %v3896 = vsub.f32 %v1520, %v3895
  %v3897 = vand.u32 %v3896, 4294901760
  %3898 = vmatprep.subr.mxu0 %v3897
  %v3899 = vand.u32 %v1519, 4294901760
  %v3900 = vsub.f32 %v1519, %v3899
  %v3901 = vand.u32 %v3900, 4294901760
  %3902 = vmatpush1.msra.mxu0 %v3901
  %v3903 = vand.u32 %v1522, 4294901760
  %v3904 = vsub.f32 %v1522, %v3903
  %v3905 = vand.u32 %v3904, 4294901760
  %3906 = vmatprep.subr.mxu0 %v3905
  %v3907 = vand.u32 %v1521, 4294901760
  %v3908 = vsub.f32 %v1521, %v3907
  %v3909 = vand.u32 %v3908, 4294901760
  %3910 = vmatpush1.msra.mxu0 %v3909
  %v3911 = vand.u32 %v1524, 4294901760
  %v3912 = vsub.f32 %v1524, %v3911
  %v3913 = vand.u32 %v3912, 4294901760
  %3914 = vmatprep.subr.mxu0 %v3913
  %v3915 = vand.u32 %v1523, 4294901760
  %v3916 = vsub.f32 %v1523, %v3915
  %v3917 = vand.u32 %v3916, 4294901760
  %3918 = vmatpush1.msra.mxu0 %v3917
  %v3919 = vand.u32 %v1526, 4294901760
  %v3920 = vsub.f32 %v1526, %v3919
  %v3921 = vand.u32 %v3920, 4294901760
  %3922 = vmatprep.subr.mxu0 %v3921
  %v3923 = vand.u32 %v1525, 4294901760
  %v3924 = vsub.f32 %v1525, %v3923
  %v3925 = vand.u32 %v3924, 4294901760
  %3926 = vmatpush1.msra.mxu0 %v3925
  %v3927 = vand.u32 %v1528, 4294901760
  %v3928 = vsub.f32 %v1528, %v3927
  %v3929 = vand.u32 %v3928, 4294901760
  %3930 = vmatprep.subr.mxu0 %v3929
  %v3931 = vand.u32 %v1527, 4294901760
  %v3932 = vsub.f32 %v1527, %v3931
  %v3933 = vand.u32 %v3932, 4294901760
  %3934 = vmatpush1.msra.mxu0 %v3933
  %v3935 = vand.u32 %v1530, 4294901760
  %v3936 = vsub.f32 %v1530, %v3935
  %v3937 = vand.u32 %v3936, 4294901760
  %3938 = vmatprep.subr.mxu0 %v3937
  %v3939 = vand.u32 %v1529, 4294901760
  %v3940 = vsub.f32 %v1529, %v3939
  %v3941 = vand.u32 %v3940, 4294901760
  %3942 = vmatpush1.msra.mxu0 %v3941
  %v3943 = vand.u32 %v1532, 4294901760
  %v3944 = vsub.f32 %v1532, %v3943
  %v3945 = vand.u32 %v3944, 4294901760
  %3946 = vmatprep.subr.mxu0 %v3945
  %v3947 = vand.u32 %v1531, 4294901760
  %v3948 = vsub.f32 %v1531, %v3947
  %v3949 = vand.u32 %v3948, 4294901760
  %3950 = vmatpush1.msra.mxu0 %v3949
  %v3951 = vand.u32 %v1534, 4294901760
  %v3952 = vsub.f32 %v1534, %v3951
  %v3953 = vand.u32 %v3952, 4294901760
  %3954 = vmatprep.subr.mxu0 %v3953
  %v3955 = vand.u32 %v1533, 4294901760
  %v3956 = vsub.f32 %v1533, %v3955
  %v3957 = vand.u32 %v3956, 4294901760
  %3958 = vmatpush1.msra.mxu0 %v3957
  %v3959 = vand.u32 %v1536, 4294901760
  %v3960 = vsub.f32 %v1536, %v3959
  %v3961 = vand.u32 %v3960, 4294901760
  %3962 = vmatprep.subr.mxu0 %v3961
  %v3963 = vand.u32 %v1535, 4294901760
  %v3964 = vsub.f32 %v1535, %v3963
  %v3965 = vand.u32 %v3964, 4294901760
  %3966 = vmatpush1.msra.mxu0 %v3965
  %v3967 = vand.u32 %v1538, 4294901760
  %v3968 = vsub.f32 %v1538, %v3967
  %v3969 = vand.u32 %v3968, 4294901760
  %3970 = vmatprep.subr.mxu0 %v3969
  %v3971 = vand.u32 %v1537, 4294901760
  %v3972 = vsub.f32 %v1537, %v3971
  %v3973 = vand.u32 %v3972, 4294901760
  %3974 = vmatpush1.msra.mxu0 %v3973
  %v3975 = vand.u32 %v1540, 4294901760
  %v3976 = vsub.f32 %v1540, %v3975
  %v3977 = vand.u32 %v3976, 4294901760
  %3978 = vmatprep.subr.mxu0 %v3977
  %v3979 = vand.u32 %v1539, 4294901760
  %v3980 = vsub.f32 %v1539, %v3979
  %v3981 = vand.u32 %v3980, 4294901760
  %3982 = vmatpush1.msra.mxu0 %v3981
  %v3983 = vand.u32 %v1542, 4294901760
  %v3984 = vsub.f32 %v1542, %v3983
  %v3985 = vand.u32 %v3984, 4294901760
  %3986 = vmatprep.subr.mxu0 %v3985
  %v3987 = vand.u32 %v1541, 4294901760
  %v3988 = vsub.f32 %v1541, %v3987
  %v3989 = vand.u32 %v3988, 4294901760
  %3990 = vmatpush1.msra.mxu0 %v3989
  %v3991 = vand.u32 %v1544, 4294901760
  %v3992 = vsub.f32 %v1544, %v3991
  %v3993 = vand.u32 %v3992, 4294901760
  %3994 = vmatprep.subr.mxu0 %v3993
  %v3995 = vand.u32 %v1543, 4294901760
  %v3996 = vsub.f32 %v1543, %v3995
  %v3997 = vand.u32 %v3996, 4294901760
  %3998 = vmatpush1.msra.mxu0 %v3997
  %v3999 = vand.u32 %v1546, 4294901760
  %v4000 = vsub.f32 %v1546, %v3999
  %v4001 = vand.u32 %v4000, 4294901760
  %4002 = vmatprep.subr.mxu0 %v4001
  %v4003 = vand.u32 %v1545, 4294901760
  %v4004 = vsub.f32 %v1545, %v4003
  %v4005 = vand.u32 %v4004, 4294901760
  %4006 = vmatpush1.msra.mxu0 %v4005
  %v4007 = vand.u32 %v1548, 4294901760
  %v4008 = vsub.f32 %v1548, %v4007
  %v4009 = vand.u32 %v4008, 4294901760
  %4010 = vmatprep.subr.mxu0 %v4009
  %v4011 = vand.u32 %v1547, 4294901760
  %v4012 = vsub.f32 %v1547, %v4011
  %v4013 = vand.u32 %v4012, 4294901760
  %4014 = vmatpush1.msra.mxu0 %v4013
  %v4015 = vand.u32 %v1550, 4294901760
  %v4016 = vsub.f32 %v1550, %v4015
  %v4017 = vand.u32 %v4016, 4294901760
  %4018 = vmatprep.subr.mxu0 %v4017
  %v4019 = vand.u32 %v1549, 4294901760
  %v4020 = vsub.f32 %v1549, %v4019
  %v4021 = vand.u32 %v4020, 4294901760
  %4022 = vmatpush1.msra.mxu0 %v4021
  %v4023 = vand.u32 %v1552, 4294901760
  %v4024 = vsub.f32 %v1552, %v4023
  %v4025 = vand.u32 %v4024, 4294901760
  %4026 = vmatprep.subr.mxu0 %v4025
  %v4027 = vand.u32 %v1551, 4294901760
  %v4028 = vsub.f32 %v1551, %v4027
  %v4029 = vand.u32 %v4028, 4294901760
  %4030 = vmatpush1.msra.mxu0 %v4029
  %v4031 = vand.u32 %v1422, 4294901760
  %4032 = vmatprep.mubr.f32.mxu0 %v4031
  %v4033 = vand.u32 %v1421, 4294901760
  %4034 = vmatmul.mubr.f32.gmra.mrb[0].mxu0 %v4033
  %v4035 = vpop.f32.mrb[0].mxu0
  %v4036 = vadd.f32 %v3771, %v4035
  %v4037 = vpop.f32.mrb[0].mxu0
  %v4038 = vadd.f32 %v3773, %v4037
  %4039 = vdwg.mxu0
  %v4040 = vand.u32 %v1490, 4294901760
  %4041 = vmatprep.subr.mxu0 %v4040
  %v4042 = vand.u32 %v1489, 4294901760
  %4043 = vmatpush1.msra.mxu0 %v4042
  %v4044 = vand.u32 %v1492, 4294901760
  %4045 = vmatprep.subr.mxu0 %v4044
  %v4046 = vand.u32 %v1491, 4294901760
  %4047 = vmatpush1.msra.mxu0 %v4046
  %v4048 = vand.u32 %v1494, 4294901760
  %4049 = vmatprep.subr.mxu0 %v4048
  %v4050 = vand.u32 %v1493, 4294901760
  %4051 = vmatpush1.msra.mxu0 %v4050
  %v4052 = vand.u32 %v1496, 4294901760
  %4053 = vmatprep.subr.mxu0 %v4052
  %v4054 = vand.u32 %v1495, 4294901760
  %4055 = vmatpush1.msra.mxu0 %v4054
  %v4056 = vand.u32 %v1498, 4294901760
  %4057 = vmatprep.subr.mxu0 %v4056
  %v4058 = vand.u32 %v1497, 4294901760
  %4059 = vmatpush1.msra.mxu0 %v4058
  %v4060 = vand.u32 %v1500, 4294901760
  %4061 = vmatprep.subr.mxu0 %v4060
  %v4062 = vand.u32 %v1499, 4294901760
  %4063 = vmatpush1.msra.mxu0 %v4062
  %v4064 = vand.u32 %v1502, 4294901760
  %4065 = vmatprep.subr.mxu0 %v4064
  %v4066 = vand.u32 %v1501, 4294901760
  %4067 = vmatpush1.msra.mxu0 %v4066
  %v4068 = vand.u32 %v1504, 4294901760
  %4069 = vmatprep.subr.mxu0 %v4068
  %v4070 = vand.u32 %v1503, 4294901760
  %4071 = vmatpush1.msra.mxu0 %v4070
  %v4072 = vand.u32 %v1506, 4294901760
  %4073 = vmatprep.subr.mxu0 %v4072
  %v4074 = vand.u32 %v1505, 4294901760
  %4075 = vmatpush1.msra.mxu0 %v4074
  %v4076 = vand.u32 %v1508, 4294901760
  %4077 = vmatprep.subr.mxu0 %v4076
  %v4078 = vand.u32 %v1507, 4294901760
  %4079 = vmatpush1.msra.mxu0 %v4078
  %v4080 = vand.u32 %v1510, 4294901760
  %4081 = vmatprep.subr.mxu0 %v4080
  %v4082 = vand.u32 %v1509, 4294901760
  %4083 = vmatpush1.msra.mxu0 %v4082
  %v4084 = vand.u32 %v1512, 4294901760
  %4085 = vmatprep.subr.mxu0 %v4084
  %v4086 = vand.u32 %v1511, 4294901760
  %4087 = vmatpush1.msra.mxu0 %v4086
  %v4088 = vand.u32 %v1514, 4294901760
  %4089 = vmatprep.subr.mxu0 %v4088
  %v4090 = vand.u32 %v1513, 4294901760
  %4091 = vmatpush1.msra.mxu0 %v4090
  %v4092 = vand.u32 %v1516, 4294901760
  %4093 = vmatprep.subr.mxu0 %v4092
  %v4094 = vand.u32 %v1515, 4294901760
  %4095 = vmatpush1.msra.mxu0 %v4094
  %v4096 = vand.u32 %v1518, 4294901760
  %4097 = vmatprep.subr.mxu0 %v4096
  %v4098 = vand.u32 %v1517, 4294901760
  %4099 = vmatpush1.msra.mxu0 %v4098
  %v4100 = vand.u32 %v1520, 4294901760
  %4101 = vmatprep.subr.mxu0 %v4100
  %v4102 = vand.u32 %v1519, 4294901760
  %4103 = vmatpush1.msra.mxu0 %v4102
  %v4104 = vand.u32 %v1522, 4294901760
  %4105 = vmatprep.subr.mxu0 %v4104
  %v4106 = vand.u32 %v1521, 4294901760
  %4107 = vmatpush1.msra.mxu0 %v4106
  %v4108 = vand.u32 %v1524, 4294901760
  %4109 = vmatprep.subr.mxu0 %v4108
  %v4110 = vand.u32 %v1523, 4294901760
  %4111 = vmatpush1.msra.mxu0 %v4110
  %v4112 = vand.u32 %v1526, 4294901760
  %4113 = vmatprep.subr.mxu0 %v4112
  %v4114 = vand.u32 %v1525, 4294901760
  %4115 = vmatpush1.msra.mxu0 %v4114
  %v4116 = vand.u32 %v1528, 4294901760
  %4117 = vmatprep.subr.mxu0 %v4116
  %v4118 = vand.u32 %v1527, 4294901760
  %4119 = vmatpush1.msra.mxu0 %v4118
  %v4120 = vand.u32 %v1530, 4294901760
  %4121 = vmatprep.subr.mxu0 %v4120
  %v4122 = vand.u32 %v1529, 4294901760
  %4123 = vmatpush1.msra.mxu0 %v4122
  %v4124 = vand.u32 %v1532, 4294901760
  %4125 = vmatprep.subr.mxu0 %v4124
  %v4126 = vand.u32 %v1531, 4294901760
  %4127 = vmatpush1.msra.mxu0 %v4126
  %v4128 = vand.u32 %v1534, 4294901760
  %4129 = vmatprep.subr.mxu0 %v4128
  %v4130 = vand.u32 %v1533, 4294901760
  %4131 = vmatpush1.msra.mxu0 %v4130
  %v4132 = vand.u32 %v1536, 4294901760
  %4133 = vmatprep.subr.mxu0 %v4132
  %v4134 = vand.u32 %v1535, 4294901760
  %4135 = vmatpush1.msra.mxu0 %v4134
  %v4136 = vand.u32 %v1538, 4294901760
  %4137 = vmatprep.subr.mxu0 %v4136
  %v4138 = vand.u32 %v1537, 4294901760
  %4139 = vmatpush1.msra.mxu0 %v4138
  %v4140 = vand.u32 %v1540, 4294901760
  %4141 = vmatprep.subr.mxu0 %v4140
  %v4142 = vand.u32 %v1539, 4294901760
  %4143 = vmatpush1.msra.mxu0 %v4142
  %v4144 = vand.u32 %v1542, 4294901760
  %4145 = vmatprep.subr.mxu0 %v4144
  %v4146 = vand.u32 %v1541, 4294901760
  %4147 = vmatpush1.msra.mxu0 %v4146
  %v4148 = vand.u32 %v1544, 4294901760
  %4149 = vmatprep.subr.mxu0 %v4148
  %v4150 = vand.u32 %v1543, 4294901760
  %4151 = vmatpush1.msra.mxu0 %v4150
  %v4152 = vand.u32 %v1546, 4294901760
  %4153 = vmatprep.subr.mxu0 %v4152
  %v4154 = vand.u32 %v1545, 4294901760
  %4155 = vmatpush1.msra.mxu0 %v4154
  %v4156 = vand.u32 %v1548, 4294901760
  %4157 = vmatprep.subr.mxu0 %v4156
  %v4158 = vand.u32 %v1547, 4294901760
  %4159 = vmatpush1.msra.mxu0 %v4158
  %v4160 = vand.u32 %v1550, 4294901760
  %4161 = vmatprep.subr.mxu0 %v4160
  %v4162 = vand.u32 %v1549, 4294901760
  %4163 = vmatpush1.msra.mxu0 %v4162
  %v4164 = vand.u32 %v1552, 4294901760
  %4165 = vmatprep.subr.mxu0 %v4164
  %v4166 = vand.u32 %v1551, 4294901760
  %4167 = vmatpush1.msra.mxu0 %v4166
  %v4168 = vand.u32 %v1422, 4294901760
  %4169 = vmatprep.mubr.f32.mxu0 %v4168
  %v4170 = vand.u32 %v1421, 4294901760
  %4171 = vmatmul.mubr.f32.gmra.mrb[0].mxu0 %v4170
  %v4172 = vpop.f32.mrb[0].mxu0
  %v4173 = vadd.f32 %v4036, %v4172
  %v4174 = vpop.f32.mrb[0].mxu0
  %v4175 = vadd.f32 %v4038, %v4174
  %4176 = vdwg.mxu0
  %v4177 = vand.u32 %v1554, 4294901760
  %4178 = vmatprep.subr.mxu0 %v4177
  %v4179 = vand.u32 %v1553, 4294901760
  %4180 = vmatpush1.msra.mxu0 %v4179
  %v4181 = vand.u32 %v1556, 4294901760
  %4182 = vmatprep.subr.mxu0 %v4181
  %v4183 = vand.u32 %v1555, 4294901760
  %4184 = vmatpush1.msra.mxu0 %v4183
  %v4185 = vand.u32 %v1558, 4294901760
  %4186 = vmatprep.subr.mxu0 %v4185
  %v4187 = vand.u32 %v1557, 4294901760
  %4188 = vmatpush1.msra.mxu0 %v4187
  %v4189 = vand.u32 %v1560, 4294901760
  %4190 = vmatprep.subr.mxu0 %v4189
  %v4191 = vand.u32 %v1559, 4294901760
  %4192 = vmatpush1.msra.mxu0 %v4191
  %v4193 = vand.u32 %v1562, 4294901760
  %4194 = vmatprep.subr.mxu0 %v4193
  %v4195 = vand.u32 %v1561, 4294901760
  %4196 = vmatpush1.msra.mxu0 %v4195
  %v4197 = vand.u32 %v1564, 4294901760
  %4198 = vmatprep.subr.mxu0 %v4197
  %v4199 = vand.u32 %v1563, 4294901760
  %4200 = vmatpush1.msra.mxu0 %v4199
  %v4201 = vand.u32 %v1566, 4294901760
  %4202 = vmatprep.subr.mxu0 %v4201
  %v4203 = vand.u32 %v1565, 4294901760
  %4204 = vmatpush1.msra.mxu0 %v4203
  %v4205 = vand.u32 %v1568, 4294901760
  %4206 = vmatprep.subr.mxu0 %v4205
  %v4207 = vand.u32 %v1567, 4294901760
  %4208 = vmatpush1.msra.mxu0 %v4207
  %v4209 = vand.u32 %v1570, 4294901760
  %4210 = vmatprep.subr.mxu0 %v4209
  %v4211 = vand.u32 %v1569, 4294901760
  %4212 = vmatpush1.msra.mxu0 %v4211
  %v4213 = vand.u32 %v1572, 4294901760
  %4214 = vmatprep.subr.mxu0 %v4213
  %v4215 = vand.u32 %v1571, 4294901760
  %4216 = vmatpush1.msra.mxu0 %v4215
  %v4217 = vand.u32 %v1574, 4294901760
  %4218 = vmatprep.subr.mxu0 %v4217
  %v4219 = vand.u32 %v1573, 4294901760
  %4220 = vmatpush1.msra.mxu0 %v4219
  %v4221 = vand.u32 %v1576, 4294901760
  %4222 = vmatprep.subr.mxu0 %v4221
  %v4223 = vand.u32 %v1575, 4294901760
  %4224 = vmatpush1.msra.mxu0 %v4223
  %v4225 = vand.u32 %v1578, 4294901760
  %4226 = vmatprep.subr.mxu0 %v4225
  %v4227 = vand.u32 %v1577, 4294901760
  %4228 = vmatpush1.msra.mxu0 %v4227
  %v4229 = vand.u32 %v1580, 4294901760
  %4230 = vmatprep.subr.mxu0 %v4229
  %v4231 = vand.u32 %v1579, 4294901760
  %4232 = vmatpush1.msra.mxu0 %v4231
  %v4233 = vand.u32 %v1582, 4294901760
  %4234 = vmatprep.subr.mxu0 %v4233
  %v4235 = vand.u32 %v1581, 4294901760
  %4236 = vmatpush1.msra.mxu0 %v4235
  %v4237 = vand.u32 %v1584, 4294901760
  %4238 = vmatprep.subr.mxu0 %v4237
  %v4239 = vand.u32 %v1583, 4294901760
  %4240 = vmatpush1.msra.mxu0 %v4239
  %v4241 = vand.u32 %v1586, 4294901760
  %4242 = vmatprep.subr.mxu0 %v4241
  %v4243 = vand.u32 %v1585, 4294901760
  %4244 = vmatpush1.msra.mxu0 %v4243
  %v4245 = vand.u32 %v1588, 4294901760
  %4246 = vmatprep.subr.mxu0 %v4245
  %v4247 = vand.u32 %v1587, 4294901760
  %4248 = vmatpush1.msra.mxu0 %v4247
  %v4249 = vand.u32 %v1590, 4294901760
  %4250 = vmatprep.subr.mxu0 %v4249
  %v4251 = vand.u32 %v1589, 4294901760
  %4252 = vmatpush1.msra.mxu0 %v4251
  %v4253 = vand.u32 %v1592, 4294901760
  %4254 = vmatprep.subr.mxu0 %v4253
  %v4255 = vand.u32 %v1591, 4294901760
  %4256 = vmatpush1.msra.mxu0 %v4255
  %4257 = vmatprep.subr.mxu0 0.0
  %4258 = vmatpush1.msra.mxu0 0.0
  %4259 = vmatprep.subr.mxu0 0.0
  %4260 = vmatpush1.msra.mxu0 0.0
  %4261 = vmatprep.subr.mxu0 0.0
  %4262 = vmatpush1.msra.mxu0 0.0
  %4263 = vmatprep.subr.mxu0 0.0
  %4264 = vmatpush1.msra.mxu0 0.0
  %4265 = vmatprep.subr.mxu0 0.0
  %4266 = vmatpush1.msra.mxu0 0.0
  %4267 = vmatprep.subr.mxu0 0.0
  %4268 = vmatpush1.msra.mxu0 0.0
  %4269 = vmatprep.subr.mxu0 0.0
  %4270 = vmatpush1.msra.mxu0 0.0
  %4271 = vmatprep.subr.mxu0 0.0
  %4272 = vmatpush1.msra.mxu0 0.0
  %4273 = vmatprep.subr.mxu0 0.0
  %4274 = vmatpush1.msra.mxu0 0.0
  %4275 = vmatprep.subr.mxu0 0.0
  %4276 = vmatpush1.msra.mxu0 0.0
  %4277 = vmatprep.subr.mxu0 0.0
  %4278 = vmatpush1.msra.mxu0 0.0
  %4279 = vmatprep.subr.mxu0 0.0
  %4280 = vmatpush1.msra.mxu0 0.0
  %v4281 = vand.u32 %v1607, 4294901760
  %v4282 = vsub.f32 %v1607, %v4281
  %v4283 = vand.u32 %v4282, 4294901760
  %v4284 = vsub.f32 %v4282, %v4283
  %v4285 = vand.u32 %v4284, 4294901760
  %4286 = vmatprep.mubr.f32.mxu0 %v4285
  %v4287 = vand.u32 %v1423, 4294901760
  %v4288 = vsub.f32 %v1423, %v4287
  %v4289 = vand.u32 %v4288, 4294901760
  %v4290 = vsub.f32 %v4288, %v4289
  %v4291 = vand.u32 %v4290, 4294901760
  %4292 = vmatmul.mubr.f32.gmra.mrb[0].mxu0 %v4291
  %v4293 = vpop.f32.mrb[0].mxu0
  %v4294 = vadd.f32 %v4173, %v4293
  %v4295 = vpop.f32.mrb[0].mxu0
  %v4296 = vadd.f32 %v4175, %v4295
  %4297 = vdwg.mxu0
  %v4298 = vand.u32 %v1554, 4294901760
  %v4299 = vsub.f32 %v1554, %v4298
  %v4300 = vand.u32 %v4299, 4294901760
  %v4301 = vsub.f32 %v4299, %v4300
  %v4302 = vand.u32 %v4301, 4294901760
  %4303 = vmatprep.subr.mxu0 %v4302
  %v4304 = vand.u32 %v1553, 4294901760
  %v4305 = vsub.f32 %v1553, %v4304
  %v4306 = vand.u32 %v4305, 4294901760
  %v4307 = vsub.f32 %v4305, %v4306
  %v4308 = vand.u32 %v4307, 4294901760
  %4309 = vmatpush1.msra.mxu0 %v4308
  %v4310 = vand.u32 %v1556, 4294901760
  %v4311 = vsub.f32 %v1556, %v4310
  %v4312 = vand.u32 %v4311, 4294901760
  %v4313 = vsub.f32 %v4311, %v4312
  %v4314 = vand.u32 %v4313, 4294901760
  %4315 = vmatprep.subr.mxu0 %v4314
  %v4316 = vand.u32 %v1555, 4294901760
  %v4317 = vsub.f32 %v1555, %v4316
  %v4318 = vand.u32 %v4317, 4294901760
  %v4319 = vsub.f32 %v4317, %v4318
  %v4320 = vand.u32 %v4319, 4294901760
  %4321 = vmatpush1.msra.mxu0 %v4320
  %v4322 = vand.u32 %v1558, 4294901760
  %v4323 = vsub.f32 %v1558, %v4322
  %v4324 = vand.u32 %v4323, 4294901760
  %v4325 = vsub.f32 %v4323, %v4324
  %v4326 = vand.u32 %v4325, 4294901760
  %4327 = vmatprep.subr.mxu0 %v4326
  %v4328 = vand.u32 %v1557, 4294901760
  %v4329 = vsub.f32 %v1557, %v4328
  %v4330 = vand.u32 %v4329, 4294901760
  %v4331 = vsub.f32 %v4329, %v4330
  %v4332 = vand.u32 %v4331, 4294901760
  %4333 = vmatpush1.msra.mxu0 %v4332
  %v4334 = vand.u32 %v1560, 4294901760
  %v4335 = vsub.f32 %v1560, %v4334
  %v4336 = vand.u32 %v4335, 4294901760
  %v4337 = vsub.f32 %v4335, %v4336
  %v4338 = vand.u32 %v4337, 4294901760
  %4339 = vmatprep.subr.mxu0 %v4338
  %v4340 = vand.u32 %v1559, 4294901760
  %v4341 = vsub.f32 %v1559, %v4340
  %v4342 = vand.u32 %v4341, 4294901760
  %v4343 = vsub.f32 %v4341, %v4342
  %v4344 = vand.u32 %v4343, 4294901760
  %4345 = vmatpush1.msra.mxu0 %v4344
  %v4346 = vand.u32 %v1562, 4294901760
  %v4347 = vsub.f32 %v1562, %v4346
  %v4348 = vand.u32 %v4347, 4294901760
  %v4349 = vsub.f32 %v4347, %v4348
  %v4350 = vand.u32 %v4349, 4294901760
  %4351 = vmatprep.subr.mxu0 %v4350
  %v4352 = vand.u32 %v1561, 4294901760
  %v4353 = vsub.f32 %v1561, %v4352
  %v4354 = vand.u32 %v4353, 4294901760
  %v4355 = vsub.f32 %v4353, %v4354
  %v4356 = vand.u32 %v4355, 4294901760
  %4357 = vmatpush1.msra.mxu0 %v4356
  %v4358 = vand.u32 %v1564, 4294901760
  %v4359 = vsub.f32 %v1564, %v4358
  %v4360 = vand.u32 %v4359, 4294901760
  %v4361 = vsub.f32 %v4359, %v4360
  %v4362 = vand.u32 %v4361, 4294901760
  %4363 = vmatprep.subr.mxu0 %v4362
  %v4364 = vand.u32 %v1563, 4294901760
  %v4365 = vsub.f32 %v1563, %v4364
  %v4366 = vand.u32 %v4365, 4294901760
  %v4367 = vsub.f32 %v4365, %v4366
  %v4368 = vand.u32 %v4367, 4294901760
  %4369 = vmatpush1.msra.mxu0 %v4368
  %v4370 = vand.u32 %v1566, 4294901760
  %v4371 = vsub.f32 %v1566, %v4370
  %v4372 = vand.u32 %v4371, 4294901760
  %v4373 = vsub.f32 %v4371, %v4372
  %v4374 = vand.u32 %v4373, 4294901760
  %4375 = vmatprep.subr.mxu0 %v4374
  %v4376 = vand.u32 %v1565, 4294901760
  %v4377 = vsub.f32 %v1565, %v4376
  %v4378 = vand.u32 %v4377, 4294901760
  %v4379 = vsub.f32 %v4377, %v4378
  %v4380 = vand.u32 %v4379, 4294901760
  %4381 = vmatpush1.msra.mxu0 %v4380
  %v4382 = vand.u32 %v1568, 4294901760
  %v4383 = vsub.f32 %v1568, %v4382
  %v4384 = vand.u32 %v4383, 4294901760
  %v4385 = vsub.f32 %v4383, %v4384
  %v4386 = vand.u32 %v4385, 4294901760
  %4387 = vmatprep.subr.mxu0 %v4386
  %v4388 = vand.u32 %v1567, 4294901760
  %v4389 = vsub.f32 %v1567, %v4388
  %v4390 = vand.u32 %v4389, 4294901760
  %v4391 = vsub.f32 %v4389, %v4390
  %v4392 = vand.u32 %v4391, 4294901760
  %4393 = vmatpush1.msra.mxu0 %v4392
  %v4394 = vand.u32 %v1570, 4294901760
  %v4395 = vsub.f32 %v1570, %v4394
  %v4396 = vand.u32 %v4395, 4294901760
  %v4397 = vsub.f32 %v4395, %v4396
  %v4398 = vand.u32 %v4397, 4294901760
  %4399 = vmatprep.subr.mxu0 %v4398
  %v4400 = vand.u32 %v1569, 4294901760
  %v4401 = vsub.f32 %v1569, %v4400
  %v4402 = vand.u32 %v4401, 4294901760
  %v4403 = vsub.f32 %v4401, %v4402
  %v4404 = vand.u32 %v4403, 4294901760
  %4405 = vmatpush1.msra.mxu0 %v4404
  %v4406 = vand.u32 %v1572, 4294901760
  %v4407 = vsub.f32 %v1572, %v4406
  %v4408 = vand.u32 %v4407, 4294901760
  %v4409 = vsub.f32 %v4407, %v4408
  %v4410 = vand.u32 %v4409, 4294901760
  %4411 = vmatprep.subr.mxu0 %v4410
  %v4412 = vand.u32 %v1571, 4294901760
  %v4413 = vsub.f32 %v1571, %v4412
  %v4414 = vand.u32 %v4413, 4294901760
  %v4415 = vsub.f32 %v4413, %v4414
  %v4416 = vand.u32 %v4415, 4294901760
  %4417 = vmatpush1.msra.mxu0 %v4416
  %v4418 = vand.u32 %v1574, 4294901760
  %v4419 = vsub.f32 %v1574, %v4418
  %v4420 = vand.u32 %v4419, 4294901760
  %v4421 = vsub.f32 %v4419, %v4420
  %v4422 = vand.u32 %v4421, 4294901760
  %4423 = vmatprep.subr.mxu0 %v4422
  %v4424 = vand.u32 %v1573, 4294901760
  %v4425 = vsub.f32 %v1573, %v4424
  %v4426 = vand.u32 %v4425, 4294901760
  %v4427 = vsub.f32 %v4425, %v4426
  %v4428 = vand.u32 %v4427, 4294901760
  %4429 = vmatpush1.msra.mxu0 %v4428
  %v4430 = vand.u32 %v1576, 4294901760
  %v4431 = vsub.f32 %v1576, %v4430
  %v4432 = vand.u32 %v4431, 4294901760
  %v4433 = vsub.f32 %v4431, %v4432
  %v4434 = vand.u32 %v4433, 4294901760
  %4435 = vmatprep.subr.mxu0 %v4434
  %v4436 = vand.u32 %v1575, 4294901760
  %v4437 = vsub.f32 %v1575, %v4436
  %v4438 = vand.u32 %v4437, 4294901760
  %v4439 = vsub.f32 %v4437, %v4438
  %v4440 = vand.u32 %v4439, 4294901760
  %4441 = vmatpush1.msra.mxu0 %v4440
  %v4442 = vand.u32 %v1578, 4294901760
  %v4443 = vsub.f32 %v1578, %v4442
  %v4444 = vand.u32 %v4443, 4294901760
  %v4445 = vsub.f32 %v4443, %v4444
  %v4446 = vand.u32 %v4445, 4294901760
  %4447 = vmatprep.subr.mxu0 %v4446
  %v4448 = vand.u32 %v1577, 4294901760
  %v4449 = vsub.f32 %v1577, %v4448
  %v4450 = vand.u32 %v4449, 4294901760
  %v4451 = vsub.f32 %v4449, %v4450
  %v4452 = vand.u32 %v4451, 4294901760
  %4453 = vmatpush1.msra.mxu0 %v4452
  %v4454 = vand.u32 %v1580, 4294901760
  %v4455 = vsub.f32 %v1580, %v4454
  %v4456 = vand.u32 %v4455, 4294901760
  %v4457 = vsub.f32 %v4455, %v4456
  %v4458 = vand.u32 %v4457, 4294901760
  %4459 = vmatprep.subr.mxu0 %v4458
  %v4460 = vand.u32 %v1579, 4294901760
  %v4461 = vsub.f32 %v1579, %v4460
  %v4462 = vand.u32 %v4461, 4294901760
  %v4463 = vsub.f32 %v4461, %v4462
  %v4464 = vand.u32 %v4463, 4294901760
  %4465 = vmatpush1.msra.mxu0 %v4464
  %v4466 = vand.u32 %v1582, 4294901760
  %v4467 = vsub.f32 %v1582, %v4466
  %v4468 = vand.u32 %v4467, 4294901760
  %v4469 = vsub.f32 %v4467, %v4468
  %v4470 = vand.u32 %v4469, 4294901760
  %4471 = vmatprep.subr.mxu0 %v4470
  %v4472 = vand.u32 %v1581, 4294901760
  %v4473 = vsub.f32 %v1581, %v4472
  %v4474 = vand.u32 %v4473, 4294901760
  %v4475 = vsub.f32 %v4473, %v4474
  %v4476 = vand.u32 %v4475, 4294901760
  %4477 = vmatpush1.msra.mxu0 %v4476
  %v4478 = vand.u32 %v1584, 4294901760
  %v4479 = vsub.f32 %v1584, %v4478
  %v4480 = vand.u32 %v4479, 4294901760
  %v4481 = vsub.f32 %v4479, %v4480
  %v4482 = vand.u32 %v4481, 4294901760
  %4483 = vmatprep.subr.mxu0 %v4482
  %v4484 = vand.u32 %v1583, 4294901760
  %v4485 = vsub.f32 %v1583, %v4484
  %v4486 = vand.u32 %v4485, 4294901760
  %v4487 = vsub.f32 %v4485, %v4486
  %v4488 = vand.u32 %v4487, 4294901760
  %4489 = vmatpush1.msra.mxu0 %v4488
  %v4490 = vand.u32 %v1586, 4294901760
  %v4491 = vsub.f32 %v1586, %v4490
  %v4492 = vand.u32 %v4491, 4294901760
  %v4493 = vsub.f32 %v4491, %v4492
  %v4494 = vand.u32 %v4493, 4294901760
  %4495 = vmatprep.subr.mxu0 %v4494
  %v4496 = vand.u32 %v1585, 4294901760
  %v4497 = vsub.f32 %v1585, %v4496
  %v4498 = vand.u32 %v4497, 4294901760
  %v4499 = vsub.f32 %v4497, %v4498
  %v4500 = vand.u32 %v4499, 4294901760
  %4501 = vmatpush1.msra.mxu0 %v4500
  %v4502 = vand.u32 %v1588, 4294901760
  %v4503 = vsub.f32 %v1588, %v4502
  %v4504 = vand.u32 %v4503, 4294901760
  %v4505 = vsub.f32 %v4503, %v4504
  %v4506 = vand.u32 %v4505, 4294901760
  %4507 = vmatprep.subr.mxu0 %v4506
  %v4508 = vand.u32 %v1587, 4294901760
  %v4509 = vsub.f32 %v1587, %v4508
  %v4510 = vand.u32 %v4509, 4294901760
  %v4511 = vsub.f32 %v4509, %v4510
  %v4512 = vand.u32 %v4511, 4294901760
  %4513 = vmatpush1.msra.mxu0 %v4512
  %v4514 = vand.u32 %v1590, 4294901760
  %v4515 = vsub.f32 %v1590, %v4514
  %v4516 = vand.u32 %v4515, 4294901760
  %v4517 = vsub.f32 %v4515, %v4516
  %v4518 = vand.u32 %v4517, 4294901760
  %4519 = vmatprep.subr.mxu0 %v4518
  %v4520 = vand.u32 %v1589, 4294901760
  %v4521 = vsub.f32 %v1589, %v4520
  %v4522 = vand.u32 %v4521, 4294901760
  %v4523 = vsub.f32 %v4521, %v4522
  %v4524 = vand.u32 %v4523, 4294901760
  %4525 = vmatpush1.msra.mxu0 %v4524
  %v4526 = vand.u32 %v1592, 4294901760
  %v4527 = vsub.f32 %v1592, %v4526
  %v4528 = vand.u32 %v4527, 4294901760
  %v4529 = vsub.f32 %v4527, %v4528
  %v4530 = vand.u32 %v4529, 4294901760
  %4531 = vmatprep.subr.mxu0 %v4530
  %v4532 = vand.u32 %v1591, 4294901760
  %v4533 = vsub.f32 %v1591, %v4532
  %v4534 = vand.u32 %v4533, 4294901760
  %v4535 = vsub.f32 %v4533, %v4534
  %v4536 = vand.u32 %v4535, 4294901760
  %4537 = vmatpush1.msra.mxu0 %v4536
  %4538 = vmatprep.subr.mxu0 0.0
  %4539 = vmatpush1.msra.mxu0 0.0
  %4540 = vmatprep.subr.mxu0 0.0
  %4541 = vmatpush1.msra.mxu0 0.0
  %4542 = vmatprep.subr.mxu0 0.0
  %4543 = vmatpush1.msra.mxu0 0.0
  %4544 = vmatprep.subr.mxu0 0.0
  %4545 = vmatpush1.msra.mxu0 0.0
  %4546 = vmatprep.subr.mxu0 0.0
  %4547 = vmatpush1.msra.mxu0 0.0
  %4548 = vmatprep.subr.mxu0 0.0
  %4549 = vmatpush1.msra.mxu0 0.0
  %4550 = vmatprep.subr.mxu0 0.0
  %4551 = vmatpush1.msra.mxu0 0.0
  %4552 = vmatprep.subr.mxu0 0.0
  %4553 = vmatpush1.msra.mxu0 0.0
  %4554 = vmatprep.subr.mxu0 0.0
  %4555 = vmatpush1.msra.mxu0 0.0
  %4556 = vmatprep.subr.mxu0 0.0
  %4557 = vmatpush1.msra.mxu0 0.0
  %4558 = vmatprep.subr.mxu0 0.0
  %4559 = vmatpush1.msra.mxu0 0.0
  %4560 = vmatprep.subr.mxu0 0.0
  %4561 = vmatpush1.msra.mxu0 0.0
  %v4562 = vand.u32 %v1607, 4294901760
  %4563 = vmatprep.mubr.f32.mxu0 %v4562
  %v4564 = vand.u32 %v1423, 4294901760
  %4565 = vmatmul.mubr.f32.gmra.mrb[0].mxu0 %v4564
  %v4566 = vpop.f32.mrb[0].mxu0
  %v4567 = vadd.f32 %v4294, %v4566
  %v4568 = vpop.f32.mrb[0].mxu0
  %v4569 = vadd.f32 %v4296, %v4568
  %4570 = vdwg.mxu0
  %v4571 = vand.u32 %v1554, 4294901760
  %v4572 = vsub.f32 %v1554, %v4571
  %4573 = vmatprep.subr.mxu0 %v4572
  %v4574 = vand.u32 %v1553, 4294901760
  %v4575 = vsub.f32 %v1553, %v4574
  %4576 = vmatpush1.msra.mxu0 %v4575
  %v4577 = vand.u32 %v1556, 4294901760
  %v4578 = vsub.f32 %v1556, %v4577
  %4579 = vmatprep.subr.mxu0 %v4578
  %v4580 = vand.u32 %v1555, 4294901760
  %v4581 = vsub.f32 %v1555, %v4580
  %4582 = vmatpush1.msra.mxu0 %v4581
  %v4583 = vand.u32 %v1558, 4294901760
  %v4584 = vsub.f32 %v1558, %v4583
  %4585 = vmatprep.subr.mxu0 %v4584
  %v4586 = vand.u32 %v1557, 4294901760
  %v4587 = vsub.f32 %v1557, %v4586
  %4588 = vmatpush1.msra.mxu0 %v4587
  %v4589 = vand.u32 %v1560, 4294901760
  %v4590 = vsub.f32 %v1560, %v4589
  %4591 = vmatprep.subr.mxu0 %v4590
  %v4592 = vand.u32 %v1559, 4294901760
  %v4593 = vsub.f32 %v1559, %v4592
  %4594 = vmatpush1.msra.mxu0 %v4593
  %v4595 = vand.u32 %v1562, 4294901760
  %v4596 = vsub.f32 %v1562, %v4595
  %4597 = vmatprep.subr.mxu0 %v4596
  %v4598 = vand.u32 %v1561, 4294901760
  %v4599 = vsub.f32 %v1561, %v4598
  %4600 = vmatpush1.msra.mxu0 %v4599
  %v4601 = vand.u32 %v1564, 4294901760
  %v4602 = vsub.f32 %v1564, %v4601
  %4603 = vmatprep.subr.mxu0 %v4602
  %v4604 = vand.u32 %v1563, 4294901760
  %v4605 = vsub.f32 %v1563, %v4604
  %4606 = vmatpush1.msra.mxu0 %v4605
  %v4607 = vand.u32 %v1566, 4294901760
  %v4608 = vsub.f32 %v1566, %v4607
  %4609 = vmatprep.subr.mxu0 %v4608
  %v4610 = vand.u32 %v1565, 4294901760
  %v4611 = vsub.f32 %v1565, %v4610
  %4612 = vmatpush1.msra.mxu0 %v4611
  %v4613 = vand.u32 %v1568, 4294901760
  %v4614 = vsub.f32 %v1568, %v4613
  %4615 = vmatprep.subr.mxu0 %v4614
  %v4616 = vand.u32 %v1567, 4294901760
  %v4617 = vsub.f32 %v1567, %v4616
  %4618 = vmatpush1.msra.mxu0 %v4617
  %v4619 = vand.u32 %v1570, 4294901760
  %v4620 = vsub.f32 %v1570, %v4619
  %4621 = vmatprep.subr.mxu0 %v4620
  %v4622 = vand.u32 %v1569, 4294901760
  %v4623 = vsub.f32 %v1569, %v4622
  %4624 = vmatpush1.msra.mxu0 %v4623
  %v4625 = vand.u32 %v1572, 4294901760
  %v4626 = vsub.f32 %v1572, %v4625
  %4627 = vmatprep.subr.mxu0 %v4626
  %v4628 = vand.u32 %v1571, 4294901760
  %v4629 = vsub.f32 %v1571, %v4628
  %4630 = vmatpush1.msra.mxu0 %v4629
  %v4631 = vand.u32 %v1574, 4294901760
  %v4632 = vsub.f32 %v1574, %v4631
  %4633 = vmatprep.subr.mxu0 %v4632
  %v4634 = vand.u32 %v1573, 4294901760
  %v4635 = vsub.f32 %v1573, %v4634
  %4636 = vmatpush1.msra.mxu0 %v4635
  %v4637 = vand.u32 %v1576, 4294901760
  %v4638 = vsub.f32 %v1576, %v4637
  %4639 = vmatprep.subr.mxu0 %v4638
  %v4640 = vand.u32 %v1575, 4294901760
  %v4641 = vsub.f32 %v1575, %v4640
  %4642 = vmatpush1.msra.mxu0 %v4641
  %v4643 = vand.u32 %v1578, 4294901760
  %v4644 = vsub.f32 %v1578, %v4643
  %4645 = vmatprep.subr.mxu0 %v4644
  %v4646 = vand.u32 %v1577, 4294901760
  %v4647 = vsub.f32 %v1577, %v4646
  %4648 = vmatpush1.msra.mxu0 %v4647
  %v4649 = vand.u32 %v1580, 4294901760
  %v4650 = vsub.f32 %v1580, %v4649
  %4651 = vmatprep.subr.mxu0 %v4650
  %v4652 = vand.u32 %v1579, 4294901760
  %v4653 = vsub.f32 %v1579, %v4652
  %4654 = vmatpush1.msra.mxu0 %v4653
  %v4655 = vand.u32 %v1582, 4294901760
  %v4656 = vsub.f32 %v1582, %v4655
  %4657 = vmatprep.subr.mxu0 %v4656
  %v4658 = vand.u32 %v1581, 4294901760
  %v4659 = vsub.f32 %v1581, %v4658
  %4660 = vmatpush1.msra.mxu0 %v4659
  %v4661 = vand.u32 %v1584, 4294901760
  %v4662 = vsub.f32 %v1584, %v4661
  %4663 = vmatprep.subr.mxu0 %v4662
  %v4664 = vand.u32 %v1583, 4294901760
  %v4665 = vsub.f32 %v1583, %v4664
  %4666 = vmatpush1.msra.mxu0 %v4665
  %v4667 = vand.u32 %v1586, 4294901760
  %v4668 = vsub.f32 %v1586, %v4667
  %4669 = vmatprep.subr.mxu0 %v4668
  %v4670 = vand.u32 %v1585, 4294901760
  %v4671 = vsub.f32 %v1585, %v4670
  %4672 = vmatpush1.msra.mxu0 %v4671
  %v4673 = vand.u32 %v1588, 4294901760
  %v4674 = vsub.f32 %v1588, %v4673
  %4675 = vmatprep.subr.mxu0 %v4674
  %v4676 = vand.u32 %v1587, 4294901760
  %v4677 = vsub.f32 %v1587, %v4676
  %4678 = vmatpush1.msra.mxu0 %v4677
  %v4679 = vand.u32 %v1590, 4294901760
  %v4680 = vsub.f32 %v1590, %v4679
  %4681 = vmatprep.subr.mxu0 %v4680
  %v4682 = vand.u32 %v1589, 4294901760
  %v4683 = vsub.f32 %v1589, %v4682
  %4684 = vmatpush1.msra.mxu0 %v4683
  %v4685 = vand.u32 %v1592, 4294901760
  %v4686 = vsub.f32 %v1592, %v4685
  %4687 = vmatprep.subr.mxu0 %v4686
  %v4688 = vand.u32 %v1591, 4294901760
  %v4689 = vsub.f32 %v1591, %v4688
  %4690 = vmatpush1.msra.mxu0 %v4689
  %4691 = vmatprep.subr.mxu0 0.0
  %4692 = vmatpush1.msra.mxu0 0.0
  %4693 = vmatprep.subr.mxu0 0.0
  %4694 = vmatpush1.msra.mxu0 0.0
  %4695 = vmatprep.subr.mxu0 0.0
  %4696 = vmatpush1.msra.mxu0 0.0
  %4697 = vmatprep.subr.mxu0 0.0
  %4698 = vmatpush1.msra.mxu0 0.0
  %4699 = vmatprep.subr.mxu0 0.0
  %4700 = vmatpush1.msra.mxu0 0.0
  %4701 = vmatprep.subr.mxu0 0.0
  %4702 = vmatpush1.msra.mxu0 0.0
  %4703 = vmatprep.subr.mxu0 0.0
  %4704 = vmatpush1.msra.mxu0 0.0
  %4705 = vmatprep.subr.mxu0 0.0
  %4706 = vmatpush1.msra.mxu0 0.0
  %4707 = vmatprep.subr.mxu0 0.0
  %4708 = vmatpush1.msra.mxu0 0.0
  %4709 = vmatprep.subr.mxu0 0.0
  %4710 = vmatpush1.msra.mxu0 0.0
  %4711 = vmatprep.subr.mxu0 0.0
  %4712 = vmatpush1.msra.mxu0 0.0
  %4713 = vmatprep.subr.mxu0 0.0
  %4714 = vmatpush1.msra.mxu0 0.0
  %v4715 = vand.u32 %v1607, 4294901760
  %v4716 = vsub.f32 %v1607, %v4715
  %4717 = vmatprep.mubr.f32.mxu0 %v4716
  %v4718 = vand.u32 %v1423, 4294901760
  %v4719 = vsub.f32 %v1423, %v4718
  %4720 = vmatmul.mubr.f32.gmra.mrb[0].mxu0 %v4719
  %v4721 = vpop.f32.mrb[0].mxu0
  %v4722 = vadd.f32 %v4567, %v4721
  %v4723 = vpop.f32.mrb[0].mxu0
  %v4724 = vadd.f32 %v4569, %v4723
  %4725 = vdwg.mxu0
  %v4726 = vand.u32 %v1554, 4294901760
  %4727 = vmatprep.subr.mxu0 %v4726
  %v4728 = vand.u32 %v1553, 4294901760
  %4729 = vmatpush1.msra.mxu0 %v4728
  %v4730 = vand.u32 %v1556, 4294901760
  %4731 = vmatprep.subr.mxu0 %v4730
  %v4732 = vand.u32 %v1555, 4294901760
  %4733 = vmatpush1.msra.mxu0 %v4732
  %v4734 = vand.u32 %v1558, 4294901760
  %4735 = vmatprep.subr.mxu0 %v4734
  %v4736 = vand.u32 %v1557, 4294901760
  %4737 = vmatpush1.msra.mxu0 %v4736
  %v4738 = vand.u32 %v1560, 4294901760
  %4739 = vmatprep.subr.mxu0 %v4738
  %v4740 = vand.u32 %v1559, 4294901760
  %4741 = vmatpush1.msra.mxu0 %v4740
  %v4742 = vand.u32 %v1562, 4294901760
  %4743 = vmatprep.subr.mxu0 %v4742
  %v4744 = vand.u32 %v1561, 4294901760
  %4745 = vmatpush1.msra.mxu0 %v4744
  %v4746 = vand.u32 %v1564, 4294901760
  %4747 = vmatprep.subr.mxu0 %v4746
  %v4748 = vand.u32 %v1563, 4294901760
  %4749 = vmatpush1.msra.mxu0 %v4748
  %v4750 = vand.u32 %v1566, 4294901760
  %4751 = vmatprep.subr.mxu0 %v4750
  %v4752 = vand.u32 %v1565, 4294901760
  %4753 = vmatpush1.msra.mxu0 %v4752
  %v4754 = vand.u32 %v1568, 4294901760
  %4755 = vmatprep.subr.mxu0 %v4754
  %v4756 = vand.u32 %v1567, 4294901760
  %4757 = vmatpush1.msra.mxu0 %v4756
  %v4758 = vand.u32 %v1570, 4294901760
  %4759 = vmatprep.subr.mxu0 %v4758
  %v4760 = vand.u32 %v1569, 4294901760
  %4761 = vmatpush1.msra.mxu0 %v4760
  %v4762 = vand.u32 %v1572, 4294901760
  %4763 = vmatprep.subr.mxu0 %v4762
  %v4764 = vand.u32 %v1571, 4294901760
  %4765 = vmatpush1.msra.mxu0 %v4764
  %v4766 = vand.u32 %v1574, 4294901760
  %4767 = vmatprep.subr.mxu0 %v4766
  %v4768 = vand.u32 %v1573, 4294901760
  %4769 = vmatpush1.msra.mxu0 %v4768
  %v4770 = vand.u32 %v1576, 4294901760
  %4771 = vmatprep.subr.mxu0 %v4770
  %v4772 = vand.u32 %v1575, 4294901760
  %4773 = vmatpush1.msra.mxu0 %v4772
  %v4774 = vand.u32 %v1578, 4294901760
  %4775 = vmatprep.subr.mxu0 %v4774
  %v4776 = vand.u32 %v1577, 4294901760
  %4777 = vmatpush1.msra.mxu0 %v4776
  %v4778 = vand.u32 %v1580, 4294901760
  %4779 = vmatprep.subr.mxu0 %v4778
  %v4780 = vand.u32 %v1579, 4294901760
  %4781 = vmatpush1.msra.mxu0 %v4780
  %v4782 = vand.u32 %v1582, 4294901760
  %4783 = vmatprep.subr.mxu0 %v4782
  %v4784 = vand.u32 %v1581, 4294901760
  %4785 = vmatpush1.msra.mxu0 %v4784
  %v4786 = vand.u32 %v1584, 4294901760
  %4787 = vmatprep.subr.mxu0 %v4786
  %v4788 = vand.u32 %v1583, 4294901760
  %4789 = vmatpush1.msra.mxu0 %v4788
  %v4790 = vand.u32 %v1586, 4294901760
  %4791 = vmatprep.subr.mxu0 %v4790
  %v4792 = vand.u32 %v1585, 4294901760
  %4793 = vmatpush1.msra.mxu0 %v4792
  %v4794 = vand.u32 %v1588, 4294901760
  %4795 = vmatprep.subr.mxu0 %v4794
  %v4796 = vand.u32 %v1587, 4294901760
  %4797 = vmatpush1.msra.mxu0 %v4796
  %v4798 = vand.u32 %v1590, 4294901760
  %4799 = vmatprep.subr.mxu0 %v4798
  %v4800 = vand.u32 %v1589, 4294901760
  %4801 = vmatpush1.msra.mxu0 %v4800
  %v4802 = vand.u32 %v1592, 4294901760
  %4803 = vmatprep.subr.mxu0 %v4802
  %v4804 = vand.u32 %v1591, 4294901760
  %4805 = vmatpush1.msra.mxu0 %v4804
  %4806 = vmatprep.subr.mxu0 0.0
  %4807 = vmatpush1.msra.mxu0 0.0
  %4808 = vmatprep.subr.mxu0 0.0
  %4809 = vmatpush1.msra.mxu0 0.0
  %4810 = vmatprep.subr.mxu0 0.0
  %4811 = vmatpush1.msra.mxu0 0.0
  %4812 = vmatprep.subr.mxu0 0.0
  %4813 = vmatpush1.msra.mxu0 0.0
  %4814 = vmatprep.subr.mxu0 0.0
  %4815 = vmatpush1.msra.mxu0 0.0
  %4816 = vmatprep.subr.mxu0 0.0
  %4817 = vmatpush1.msra.mxu0 0.0
  %4818 = vmatprep.subr.mxu0 0.0
  %4819 = vmatpush1.msra.mxu0 0.0
  %4820 = vmatprep.subr.mxu0 0.0
  %4821 = vmatpush1.msra.mxu0 0.0
  %4822 = vmatprep.subr.mxu0 0.0
  %4823 = vmatpush1.msra.mxu0 0.0
  %4824 = vmatprep.subr.mxu0 0.0
  %4825 = vmatpush1.msra.mxu0 0.0
  %4826 = vmatprep.subr.mxu0 0.0
  %4827 = vmatpush1.msra.mxu0 0.0
  %4828 = vmatprep.subr.mxu0 0.0
  %4829 = vmatpush1.msra.mxu0 0.0
  %v4830 = vand.u32 %v1607, 4294901760
  %v4831 = vsub.f32 %v1607, %v4830
  %v4832 = vand.u32 %v4831, 4294901760
  %4833 = vmatprep.mubr.f32.mxu0 %v4832
  %v4834 = vand.u32 %v1423, 4294901760
  %v4835 = vsub.f32 %v1423, %v4834
  %v4836 = vand.u32 %v4835, 4294901760
  %4837 = vmatmul.mubr.f32.gmra.mrb[0].mxu0 %v4836
  %v4838 = vpop.f32.mrb[0].mxu0
  %v4839 = vadd.f32 %v4722, %v4838
  %v4840 = vpop.f32.mrb[0].mxu0
  %v4841 = vadd.f32 %v4724, %v4840
  %4842 = vdwg.mxu0
  %v4843 = vand.u32 %v1554, 4294901760
  %v4844 = vsub.f32 %v1554, %v4843
  %v4845 = vand.u32 %v4844, 4294901760
  %4846 = vmatprep.subr.mxu0 %v4845
  %v4847 = vand.u32 %v1553, 4294901760
  %v4848 = vsub.f32 %v1553, %v4847
  %v4849 = vand.u32 %v4848, 4294901760
  %4850 = vmatpush1.msra.mxu0 %v4849
  %v4851 = vand.u32 %v1556, 4294901760
  %v4852 = vsub.f32 %v1556, %v4851
  %v4853 = vand.u32 %v4852, 4294901760
  %4854 = vmatprep.subr.mxu0 %v4853
  %v4855 = vand.u32 %v1555, 4294901760
  %v4856 = vsub.f32 %v1555, %v4855
  %v4857 = vand.u32 %v4856, 4294901760
  %4858 = vmatpush1.msra.mxu0 %v4857
  %v4859 = vand.u32 %v1558, 4294901760
  %v4860 = vsub.f32 %v1558, %v4859
  %v4861 = vand.u32 %v4860, 4294901760
  %4862 = vmatprep.subr.mxu0 %v4861
  %v4863 = vand.u32 %v1557, 4294901760
  %v4864 = vsub.f32 %v1557, %v4863
  %v4865 = vand.u32 %v4864, 4294901760
  %4866 = vmatpush1.msra.mxu0 %v4865
  %v4867 = vand.u32 %v1560, 4294901760
  %v4868 = vsub.f32 %v1560, %v4867
  %v4869 = vand.u32 %v4868, 4294901760
  %4870 = vmatprep.subr.mxu0 %v4869
  %v4871 = vand.u32 %v1559, 4294901760
  %v4872 = vsub.f32 %v1559, %v4871
  %v4873 = vand.u32 %v4872, 4294901760
  %4874 = vmatpush1.msra.mxu0 %v4873
  %v4875 = vand.u32 %v1562, 4294901760
  %v4876 = vsub.f32 %v1562, %v4875
  %v4877 = vand.u32 %v4876, 4294901760
  %4878 = vmatprep.subr.mxu0 %v4877
  %v4879 = vand.u32 %v1561, 4294901760
  %v4880 = vsub.f32 %v1561, %v4879
  %v4881 = vand.u32 %v4880, 4294901760
  %4882 = vmatpush1.msra.mxu0 %v4881
  %v4883 = vand.u32 %v1564, 4294901760
  %v4884 = vsub.f32 %v1564, %v4883
  %v4885 = vand.u32 %v4884, 4294901760
  %4886 = vmatprep.subr.mxu0 %v4885
  %v4887 = vand.u32 %v1563, 4294901760
  %v4888 = vsub.f32 %v1563, %v4887
  %v4889 = vand.u32 %v4888, 4294901760
  %4890 = vmatpush1.msra.mxu0 %v4889
  %v4891 = vand.u32 %v1566, 4294901760
  %v4892 = vsub.f32 %v1566, %v4891
  %v4893 = vand.u32 %v4892, 4294901760
  %4894 = vmatprep.subr.mxu0 %v4893
  %v4895 = vand.u32 %v1565, 4294901760
  %v4896 = vsub.f32 %v1565, %v4895
  %v4897 = vand.u32 %v4896, 4294901760
  %4898 = vmatpush1.msra.mxu0 %v4897
  %v4899 = vand.u32 %v1568, 4294901760
  %v4900 = vsub.f32 %v1568, %v4899
  %v4901 = vand.u32 %v4900, 4294901760
  %4902 = vmatprep.subr.mxu0 %v4901
  %v4903 = vand.u32 %v1567, 4294901760
  %v4904 = vsub.f32 %v1567, %v4903
  %v4905 = vand.u32 %v4904, 4294901760
  %4906 = vmatpush1.msra.mxu0 %v4905
  %v4907 = vand.u32 %v1570, 4294901760
  %v4908 = vsub.f32 %v1570, %v4907
  %v4909 = vand.u32 %v4908, 4294901760
  %4910 = vmatprep.subr.mxu0 %v4909
  %v4911 = vand.u32 %v1569, 4294901760
  %v4912 = vsub.f32 %v1569, %v4911
  %v4913 = vand.u32 %v4912, 4294901760
  %4914 = vmatpush1.msra.mxu0 %v4913
  %v4915 = vand.u32 %v1572, 4294901760
  %v4916 = vsub.f32 %v1572, %v4915
  %v4917 = vand.u32 %v4916, 4294901760
  %4918 = vmatprep.subr.mxu0 %v4917
  %v4919 = vand.u32 %v1571, 4294901760
  %v4920 = vsub.f32 %v1571, %v4919
  %v4921 = vand.u32 %v4920, 4294901760
  %4922 = vmatpush1.msra.mxu0 %v4921
  %v4923 = vand.u32 %v1574, 4294901760
  %v4924 = vsub.f32 %v1574, %v4923
  %v4925 = vand.u32 %v4924, 4294901760
  %4926 = vmatprep.subr.mxu0 %v4925
  %v4927 = vand.u32 %v1573, 4294901760
  %v4928 = vsub.f32 %v1573, %v4927
  %v4929 = vand.u32 %v4928, 4294901760
  %4930 = vmatpush1.msra.mxu0 %v4929
  %v4931 = vand.u32 %v1576, 4294901760
  %v4932 = vsub.f32 %v1576, %v4931
  %v4933 = vand.u32 %v4932, 4294901760
  %4934 = vmatprep.subr.mxu0 %v4933
  %v4935 = vand.u32 %v1575, 4294901760
  %v4936 = vsub.f32 %v1575, %v4935
  %v4937 = vand.u32 %v4936, 4294901760
  %4938 = vmatpush1.msra.mxu0 %v4937
  %v4939 = vand.u32 %v1578, 4294901760
  %v4940 = vsub.f32 %v1578, %v4939
  %v4941 = vand.u32 %v4940, 4294901760
  %4942 = vmatprep.subr.mxu0 %v4941
  %v4943 = vand.u32 %v1577, 4294901760
  %v4944 = vsub.f32 %v1577, %v4943
  %v4945 = vand.u32 %v4944, 4294901760
  %4946 = vmatpush1.msra.mxu0 %v4945
  %v4947 = vand.u32 %v1580, 4294901760
  %v4948 = vsub.f32 %v1580, %v4947
  %v4949 = vand.u32 %v4948, 4294901760
  %4950 = vmatprep.subr.mxu0 %v4949
  %v4951 = vand.u32 %v1579, 4294901760
  %v4952 = vsub.f32 %v1579, %v4951
  %v4953 = vand.u32 %v4952, 4294901760
  %4954 = vmatpush1.msra.mxu0 %v4953
  %v4955 = vand.u32 %v1582, 4294901760
  %v4956 = vsub.f32 %v1582, %v4955
  %v4957 = vand.u32 %v4956, 4294901760
  %4958 = vmatprep.subr.mxu0 %v4957
  %v4959 = vand.u32 %v1581, 4294901760
  %v4960 = vsub.f32 %v1581, %v4959
  %v4961 = vand.u32 %v4960, 4294901760
  %4962 = vmatpush1.msra.mxu0 %v4961
  %v4963 = vand.u32 %v1584, 4294901760
  %v4964 = vsub.f32 %v1584, %v4963
  %v4965 = vand.u32 %v4964, 4294901760
  %4966 = vmatprep.subr.mxu0 %v4965
  %v4967 = vand.u32 %v1583, 4294901760
  %v4968 = vsub.f32 %v1583, %v4967
  %v4969 = vand.u32 %v4968, 4294901760
  %4970 = vmatpush1.msra.mxu0 %v4969
  %v4971 = vand.u32 %v1586, 4294901760
  %v4972 = vsub.f32 %v1586, %v4971
  %v4973 = vand.u32 %v4972, 4294901760
  %4974 = vmatprep.subr.mxu0 %v4973
  %v4975 = vand.u32 %v1585, 4294901760
  %v4976 = vsub.f32 %v1585, %v4975
  %v4977 = vand.u32 %v4976, 4294901760
  %4978 = vmatpush1.msra.mxu0 %v4977
  %v4979 = vand.u32 %v1588, 4294901760
  %v4980 = vsub.f32 %v1588, %v4979
  %v4981 = vand.u32 %v4980, 4294901760
  %4982 = vmatprep.subr.mxu0 %v4981
  %v4983 = vand.u32 %v1587, 4294901760
  %v4984 = vsub.f32 %v1587, %v4983
  %v4985 = vand.u32 %v4984, 4294901760
  %4986 = vmatpush1.msra.mxu0 %v4985
  %v4987 = vand.u32 %v1590, 4294901760
  %v4988 = vsub.f32 %v1590, %v4987
  %v4989 = vand.u32 %v4988, 4294901760
  %4990 = vmatprep.subr.mxu0 %v4989
  %v4991 = vand.u32 %v1589, 4294901760
  %v4992 = vsub.f32 %v1589, %v4991
  %v4993 = vand.u32 %v4992, 4294901760
  %4994 = vmatpush1.msra.mxu0 %v4993
  %v4995 = vand.u32 %v1592, 4294901760
  %v4996 = vsub.f32 %v1592, %v4995
  %v4997 = vand.u32 %v4996, 4294901760
  %4998 = vmatprep.subr.mxu0 %v4997
  %v4999 = vand.u32 %v1591, 4294901760
  %v5000 = vsub.f32 %v1591, %v4999
  %v5001 = vand.u32 %v5000, 4294901760
  %5002 = vmatpush1.msra.mxu0 %v5001
  %5003 = vmatprep.subr.mxu0 0.0
  %5004 = vmatpush1.msra.mxu0 0.0
  %5005 = vmatprep.subr.mxu0 0.0
  %5006 = vmatpush1.msra.mxu0 0.0
  %5007 = vmatprep.subr.mxu0 0.0
  %5008 = vmatpush1.msra.mxu0 0.0
  %5009 = vmatprep.subr.mxu0 0.0
  %5010 = vmatpush1.msra.mxu0 0.0
  %5011 = vmatprep.subr.mxu0 0.0
  %5012 = vmatpush1.msra.mxu0 0.0
  %5013 = vmatprep.subr.mxu0 0.0
  %5014 = vmatpush1.msra.mxu0 0.0
  %5015 = vmatprep.subr.mxu0 0.0
  %5016 = vmatpush1.msra.mxu0 0.0
  %5017 = vmatprep.subr.mxu0 0.0
  %5018 = vmatpush1.msra.mxu0 0.0
  %5019 = vmatprep.subr.mxu0 0.0
  %5020 = vmatpush1.msra.mxu0 0.0
  %5021 = vmatprep.subr.mxu0 0.0
  %5022 = vmatpush1.msra.mxu0 0.0
  %5023 = vmatprep.subr.mxu0 0.0
  %5024 = vmatpush1.msra.mxu0 0.0
  %5025 = vmatprep.subr.mxu0 0.0
  %5026 = vmatpush1.msra.mxu0 0.0
  %v5027 = vand.u32 %v1607, 4294901760
  %5028 = vmatprep.mubr.f32.mxu0 %v5027
  %v5029 = vand.u32 %v1423, 4294901760
  %5030 = vmatmul.mubr.f32.gmra.mrb[0].mxu0 %v5029
  %v5031 = vpop.f32.mrb[0].mxu0
  %v5032 = vadd.f32 %v4839, %v5031
  %v5033 = vpop.f32.mrb[0].mxu0
  %v5034 = vadd.f32 %v4841, %v5033
  %5035 = vdwg.mxu0
  %v5036 = vand.u32 %v1554, 4294901760
  %5037 = vmatprep.subr.mxu0 %v5036
  %v5038 = vand.u32 %v1553, 4294901760
  %5039 = vmatpush1.msra.mxu0 %v5038
  %v5040 = vand.u32 %v1556, 4294901760
  %5041 = vmatprep.subr.mxu0 %v5040
  %v5042 = vand.u32 %v1555, 4294901760
  %5043 = vmatpush1.msra.mxu0 %v5042
  %v5044 = vand.u32 %v1558, 4294901760
  %5045 = vmatprep.subr.mxu0 %v5044
  %v5046 = vand.u32 %v1557, 4294901760
  %5047 = vmatpush1.msra.mxu0 %v5046
  %v5048 = vand.u32 %v1560, 4294901760
  %5049 = vmatprep.subr.mxu0 %v5048
  %v5050 = vand.u32 %v1559, 4294901760
  %5051 = vmatpush1.msra.mxu0 %v5050
  %v5052 = vand.u32 %v1562, 4294901760
  %5053 = vmatprep.subr.mxu0 %v5052
  %v5054 = vand.u32 %v1561, 4294901760
  %5055 = vmatpush1.msra.mxu0 %v5054
  %v5056 = vand.u32 %v1564, 4294901760
  %5057 = vmatprep.subr.mxu0 %v5056
  %v5058 = vand.u32 %v1563, 4294901760
  %5059 = vmatpush1.msra.mxu0 %v5058
  %v5060 = vand.u32 %v1566, 4294901760
  %5061 = vmatprep.subr.mxu0 %v5060
  %v5062 = vand.u32 %v1565, 4294901760
  %5063 = vmatpush1.msra.mxu0 %v5062
  %v5064 = vand.u32 %v1568, 4294901760
  %5065 = vmatprep.subr.mxu0 %v5064
  %v5066 = vand.u32 %v1567, 4294901760
  %5067 = vmatpush1.msra.mxu0 %v5066
  %v5068 = vand.u32 %v1570, 4294901760
  %5069 = vmatprep.subr.mxu0 %v5068
  %v5070 = vand.u32 %v1569, 4294901760
  %5071 = vmatpush1.msra.mxu0 %v5070
  %v5072 = vand.u32 %v1572, 4294901760
  %5073 = vmatprep.subr.mxu0 %v5072
  %v5074 = vand.u32 %v1571, 4294901760
  %5075 = vmatpush1.msra.mxu0 %v5074
  %v5076 = vand.u32 %v1574, 4294901760
  %5077 = vmatprep.subr.mxu0 %v5076
  %v5078 = vand.u32 %v1573, 4294901760
  %5079 = vmatpush1.msra.mxu0 %v5078
  %v5080 = vand.u32 %v1576, 4294901760
  %5081 = vmatprep.subr.mxu0 %v5080
  %v5082 = vand.u32 %v1575, 4294901760
  %5083 = vmatpush1.msra.mxu0 %v5082
  %v5084 = vand.u32 %v1578, 4294901760
  %5085 = vmatprep.subr.mxu0 %v5084
  %v5086 = vand.u32 %v1577, 4294901760
  %5087 = vmatpush1.msra.mxu0 %v5086
  %v5088 = vand.u32 %v1580, 4294901760
  %5089 = vmatprep.subr.mxu0 %v5088
  %v5090 = vand.u32 %v1579, 4294901760
  %5091 = vmatpush1.msra.mxu0 %v5090
  %v5092 = vand.u32 %v1582, 4294901760
  %5093 = vmatprep.subr.mxu0 %v5092
  %v5094 = vand.u32 %v1581, 4294901760
  %5095 = vmatpush1.msra.mxu0 %v5094
  %v5096 = vand.u32 %v1584, 4294901760
  %5097 = vmatprep.subr.mxu0 %v5096
  %v5098 = vand.u32 %v1583, 4294901760
  %5099 = vmatpush1.msra.mxu0 %v5098
  %v5100 = vand.u32 %v1586, 4294901760
  %5101 = vmatprep.subr.mxu0 %v5100
  %v5102 = vand.u32 %v1585, 4294901760
  %5103 = vmatpush1.msra.mxu0 %v5102
  %v5104 = vand.u32 %v1588, 4294901760
  %5105 = vmatprep.subr.mxu0 %v5104
  %v5106 = vand.u32 %v1587, 4294901760
  %5107 = vmatpush1.msra.mxu0 %v5106
  %v5108 = vand.u32 %v1590, 4294901760
  %5109 = vmatprep.subr.mxu0 %v5108
  %v5110 = vand.u32 %v1589, 4294901760
  %5111 = vmatpush1.msra.mxu0 %v5110
  %v5112 = vand.u32 %v1592, 4294901760
  %5113 = vmatprep.subr.mxu0 %v5112
  %v5114 = vand.u32 %v1591, 4294901760
  %5115 = vmatpush1.msra.mxu0 %v5114
  %5116 = vmatprep.subr.mxu0 0.0
  %5117 = vmatpush1.msra.mxu0 0.0
  %5118 = vmatprep.subr.mxu0 0.0
  %5119 = vmatpush1.msra.mxu0 0.0
  %5120 = vmatprep.subr.mxu0 0.0
  %5121 = vmatpush1.msra.mxu0 0.0
  %5122 = vmatprep.subr.mxu0 0.0
  %5123 = vmatpush1.msra.mxu0 0.0
  %5124 = vmatprep.subr.mxu0 0.0
  %5125 = vmatpush1.msra.mxu0 0.0
  %5126 = vmatprep.subr.mxu0 0.0
  %5127 = vmatpush1.msra.mxu0 0.0
  %5128 = vmatprep.subr.mxu0 0.0
  %5129 = vmatpush1.msra.mxu0 0.0
  %5130 = vmatprep.subr.mxu0 0.0
  %5131 = vmatpush1.msra.mxu0 0.0
  %5132 = vmatprep.subr.mxu0 0.0
  %5133 = vmatpush1.msra.mxu0 0.0
  %5134 = vmatprep.subr.mxu0 0.0
  %5135 = vmatpush1.msra.mxu0 0.0
  %5136 = vmatprep.subr.mxu0 0.0
  %5137 = vmatpush1.msra.mxu0 0.0
  %5138 = vmatprep.subr.mxu0 0.0
  %5139 = vmatpush1.msra.mxu0 0.0
  %v5140 = vand.u32 %v1607, 4294901760
  %5141 = vmatprep.mubr.f32.mxu0 %v5140
  %v5142 = vand.u32 %v1423, 4294901760
  %5143 = vmatmul.mubr.f32.gmra.mrb[0].mxu0 %v5142
  %v5144 = vpop.f32.mrb[0].mxu0
  %v5145 = vadd.f32 %v5032, %v5144
  %v5146 = vpop.f32.mrb[0].mxu0
  %v5147 = vadd.f32 %v5034, %v5146
  %5148 = vdwg.mxu0
  %v5149 = vmax.f32 %v5145, 0.0
  %v5150 = vmax.f32 %v5147, 0.0
  %v5153 = vrot.slane %v5149, 2
  %v5154 = vrot.slane %v5150, 2
  %5155 = vrot.lane.b32.xlu0 %v5153, 64
  %v5156 = vpop.permute.xlu0 %5155
  %5157 = vrot.lane.b32.xlu0 %v5154, 64
  %v5158 = vpop.permute.xlu0 %5157
  %v5159 = vsel %vm57, %v5156, %v5158
  %v5162 = vrot.slane %v5149, 4
  %v5163 = vrot.slane %v5150, 4
  %v5165 = vsel %vm57, %v5150, %v5156
  %v5166 = vld [vmem:[%s5] sm:$0xff]
  %v5167 = vld [vmem:[%s5 + $0x8] sm:$0xff]
  %v5168 = vld [vmem:[%s5 + $0x10] sm:$0xff]
  %v5169 = vld [vmem:[%s5 + $0x18] sm:$0xff]
  %v5170 = vld [vmem:[%s5 + $0x20] sm:$0xff]
  %v5171 = vld [vmem:[%s5 + $0x28] sm:$0xff]
  %v5172 = vld [vmem:[%s5 + $0x30] sm:$0xff]
  %v5173 = vld [vmem:[%s5 + $0x38] sm:$0xff]
  %v5174 = vld [vmem:[%s5 + $0x40] sm:$0xff]
  %v5175 = vld [vmem:[%s5 + $0x48] sm:$0xff]
  %v5176 = vld [vmem:[%s5 + $0x50] sm:$0xff]
  %v5177 = vld [vmem:[%s5 + $0x58] sm:$0xff]
  %v5178 = vld [vmem:[%s5 + $0x60] sm:$0xff]
  %v5179 = vld [vmem:[%s5 + $0x68] sm:$0xff]
  %v5180 = vld [vmem:[%s5 + $0x70] sm:$0xff]
  %v5181 = vld [vmem:[%s5 + $0x78] sm:$0xff]
  %v5182 = vld [vmem:[%s5 + $0x80] sm:$0xff]
  %v5183 = vld [vmem:[%s5 + $0x88] sm:$0xff]
  %v5184 = vld [vmem:[%s5 + $0x90] sm:$0xff]
  %v5185 = vld [vmem:[%s5 + $0x98] sm:$0xff]
  %v5186 = vld [vmem:[%s5 + $0xa0] sm:$0xff]
  %v5187 = vld [vmem:[%s5 + $0xa8] sm:$0xff]
  %v5188 = vld [vmem:[%s5 + $0xb0] sm:$0xff]
  %v5189 = vld [vmem:[%s5 + $0xb8] sm:$0xff]
  %v5190 = vld [vmem:[%s5 + $0xc0] sm:$0xff]
  %v5191 = vld [vmem:[%s5 + $0xc8] sm:$0xff]
  %v5192 = vld [vmem:[%s5 + $0xd0] sm:$0xff]
  %v5193 = vld [vmem:[%s5 + $0xd8] sm:$0xff]
  %v5194 = vld [vmem:[%s5 + $0xe0] sm:$0xff]
  %v5195 = vld [vmem:[%s5 + $0xe8] sm:$0xff]
  %v5196 = vld [vmem:[%s5 + $0xf0] sm:$0xff]
  %v5197 = vld [vmem:[%s5 + $0xf8] sm:$0xff]
  %v5198 = vld [vmem:[%s5 + $0x100] sm:$0xff]
  %v5199 = vld [vmem:[%s5 + $0x108] sm:$0xff]
  %v5200 = vld [vmem:[%s5 + $0x110] sm:$0xff]
  %v5201 = vld [vmem:[%s5 + $0x118] sm:$0xff]
  %v5202 = vld [vmem:[%s5 + $0x120] sm:$0xff]
  %v5203 = vld [vmem:[%s5 + $0x128] sm:$0xff]
  %v5204 = vld [vmem:[%s5 + $0x130] sm:$0xff]
  %v5205 = vld [vmem:[%s5 + $0x138] sm:$0xff]
  %v5206 = vld [vmem:[%s5 + $0x140] sm:$0xff]
  %v5207 = vld [vmem:[%s5 + $0x148] sm:$0xff]
  %v5208 = vld [vmem:[%s5 + $0x150] sm:$0xff]
  %v5209 = vld [vmem:[%s5 + $0x158] sm:$0xff]
  %v5210 = vld [vmem:[%s5 + $0x160] sm:$0xff]
  %v5211 = vld [vmem:[%s5 + $0x168] sm:$0xff]
  %v5212 = vld [vmem:[%s5 + $0x170] sm:$0xff]
  %v5213 = vld [vmem:[%s5 + $0x178] sm:$0xff]
  %v5214 = vld [vmem:[%s5 + $0x180] sm:$0xff]
  %v5215 = vld [vmem:[%s5 + $0x188] sm:$0xff]
  %v5216 = vld [vmem:[%s5 + $0x190] sm:$0xff]
  %v5217 = vld [vmem:[%s5 + $0x198] sm:$0xff]
  %v5218 = vld [vmem:[%s5 + $0x1a0] sm:$0xff]
  %v5219 = vld [vmem:[%s5 + $0x1a8] sm:$0xff]
  %v5220 = vld [vmem:[%s5 + $0x1b0] sm:$0xff]
  %v5221 = vld [vmem:[%s5 + $0x1b8] sm:$0xff]
  %v5222 = vld [vmem:[%s5 + $0x1c0] sm:$0xff]
  %v5223 = vld [vmem:[%s5 + $0x1c8] sm:$0xff]
  %v5224 = vld [vmem:[%s5 + $0x1d0] sm:$0xff]
  %v5225 = vld [vmem:[%s5 + $0x1d8] sm:$0xff]
  %v5226 = vld [vmem:[%s5 + $0x1e0] sm:$0xff]
  %v5227 = vld [vmem:[%s5 + $0x1e8] sm:$0xff]
  %v5228 = vld [vmem:[%s5 + $0x1f0] sm:$0xff]
  %v5229 = vld [vmem:[%s5 + $0x1f8] sm:$0xff]
  %v5230 = vld [vmem:[%s5 + $0x200] sm:$0xff]
  %v5231 = vld [vmem:[%s5 + $0x208] sm:$0xff]
  %v5232 = vld [vmem:[%s5 + $0x210] sm:$0xff]
  %v5233 = vld [vmem:[%s5 + $0x218] sm:$0xff]
  %v5234 = vld [vmem:[%s5 + $0x220] sm:$0xff]
  %v5235 = vld [vmem:[%s5 + $0x228] sm:$0xff]
  %v5236 = vld [vmem:[%s5 + $0x230] sm:$0xff]
  %v5237 = vld [vmem:[%s5 + $0x238] sm:$0xff]
  %v5238 = vld [vmem:[%s6] sm:$0x1]
  %v5240 = vlaneseq
  %v5241 = vshrl.u32 %v5240, 7
  %v5242 = vsub.s32 0, %v5241
  %v5243 = vrot.slane %v5238, %v5242
  %v5245 = vsel %vm57, %v5163, 0
  %5247 = vmatprep.subr.mxu0 0.0
  %v5248 = vand.u32 %v5166, 4294901760
  %5249 = vmatpush1.msra.mxu0 %v5248
  %5250 = vmatprep.subr.mxu0 0.0
  %v5251 = vand.u32 %v5167, 4294901760
  %5252 = vmatpush1.msra.mxu0 %v5251
  %5253 = vmatprep.subr.mxu0 0.0
  %v5254 = vand.u32 %v5168, 4294901760
  %5255 = vmatpush1.msra.mxu0 %v5254
  %5256 = vmatprep.subr.mxu0 0.0
  %v5257 = vand.u32 %v5169, 4294901760
  %5258 = vmatpush1.msra.mxu0 %v5257
  %5259 = vmatprep.subr.mxu0 0.0
  %v5260 = vand.u32 %v5170, 4294901760
  %5261 = vmatpush1.msra.mxu0 %v5260
  %5262 = vmatprep.subr.mxu0 0.0
  %v5263 = vand.u32 %v5171, 4294901760
  %5264 = vmatpush1.msra.mxu0 %v5263
  %5265 = vmatprep.subr.mxu0 0.0
  %v5266 = vand.u32 %v5172, 4294901760
  %5267 = vmatpush1.msra.mxu0 %v5266
  %5268 = vmatprep.subr.mxu0 0.0
  %v5269 = vand.u32 %v5173, 4294901760
  %5270 = vmatpush1.msra.mxu0 %v5269
  %5271 = vmatprep.subr.mxu0 0.0
  %v5272 = vand.u32 %v5174, 4294901760
  %5273 = vmatpush1.msra.mxu0 %v5272
  %5274 = vmatprep.subr.mxu0 0.0
  %v5275 = vand.u32 %v5175, 4294901760
  %5276 = vmatpush1.msra.mxu0 %v5275
  %5277 = vmatprep.subr.mxu0 0.0
  %v5278 = vand.u32 %v5176, 4294901760
  %5279 = vmatpush1.msra.mxu0 %v5278
  %5280 = vmatprep.subr.mxu0 0.0
  %v5281 = vand.u32 %v5177, 4294901760
  %5282 = vmatpush1.msra.mxu0 %v5281
  %5283 = vmatprep.subr.mxu0 0.0
  %v5284 = vand.u32 %v5178, 4294901760
  %5285 = vmatpush1.msra.mxu0 %v5284
  %5286 = vmatprep.subr.mxu0 0.0
  %v5287 = vand.u32 %v5179, 4294901760
  %5288 = vmatpush1.msra.mxu0 %v5287
  %5289 = vmatprep.subr.mxu0 0.0
  %v5290 = vand.u32 %v5180, 4294901760
  %5291 = vmatpush1.msra.mxu0 %v5290
  %5292 = vmatprep.subr.mxu0 0.0
  %v5293 = vand.u32 %v5181, 4294901760
  %5294 = vmatpush1.msra.mxu0 %v5293
  %5295 = vmatprep.subr.mxu0 0.0
  %v5296 = vand.u32 %v5182, 4294901760
  %5297 = vmatpush1.msra.mxu0 %v5296
  %5298 = vmatprep.subr.mxu0 0.0
  %v5299 = vand.u32 %v5183, 4294901760
  %5300 = vmatpush1.msra.mxu0 %v5299
  %5301 = vmatprep.subr.mxu0 0.0
  %v5302 = vand.u32 %v5184, 4294901760
  %5303 = vmatpush1.msra.mxu0 %v5302
  %5304 = vmatprep.subr.mxu0 0.0
  %v5305 = vand.u32 %v5185, 4294901760
  %5306 = vmatpush1.msra.mxu0 %v5305
  %5307 = vmatprep.subr.mxu0 0.0
  %v5308 = vand.u32 %v5186, 4294901760
  %5309 = vmatpush1.msra.mxu0 %v5308
  %5310 = vmatprep.subr.mxu0 0.0
  %v5311 = vand.u32 %v5187, 4294901760
  %5312 = vmatpush1.msra.mxu0 %v5311
  %5313 = vmatprep.subr.mxu0 0.0
  %v5314 = vand.u32 %v5188, 4294901760
  %5315 = vmatpush1.msra.mxu0 %v5314
  %5316 = vmatprep.subr.mxu0 0.0
  %v5317 = vand.u32 %v5189, 4294901760
  %5318 = vmatpush1.msra.mxu0 %v5317
  %5319 = vmatprep.subr.mxu0 0.0
  %v5320 = vand.u32 %v5190, 4294901760
  %5321 = vmatpush1.msra.mxu0 %v5320
  %5322 = vmatprep.subr.mxu0 0.0
  %v5323 = vand.u32 %v5191, 4294901760
  %5324 = vmatpush1.msra.mxu0 %v5323
  %5325 = vmatprep.subr.mxu0 0.0
  %v5326 = vand.u32 %v5192, 4294901760
  %5327 = vmatpush1.msra.mxu0 %v5326
  %5328 = vmatprep.subr.mxu0 0.0
  %v5329 = vand.u32 %v5193, 4294901760
  %5330 = vmatpush1.msra.mxu0 %v5329
  %5331 = vmatprep.subr.mxu0 0.0
  %v5332 = vand.u32 %v5194, 4294901760
  %5333 = vmatpush1.msra.mxu0 %v5332
  %5334 = vmatprep.subr.mxu0 0.0
  %v5335 = vand.u32 %v5195, 4294901760
  %5336 = vmatpush1.msra.mxu0 %v5335
  %5337 = vmatprep.subr.mxu0 0.0
  %v5338 = vand.u32 %v5196, 4294901760
  %5339 = vmatpush1.msra.mxu0 %v5338
  %5340 = vmatprep.subr.mxu0 0.0
  %v5341 = vand.u32 %v5197, 4294901760
  %5342 = vmatpush1.msra.mxu0 %v5341
  %v5343 = vand.u32 %v5165, 4294901760
  %v5344 = vsub.f32 %v5165, %v5343
  %v5345 = vand.u32 %v5344, 4294901760
  %v5346 = vsub.f32 %v5344, %v5345
  %v5347 = vand.u32 %v5346, 4294901760
  %5348 = vmatprep.mubr.f32.mxu0 %v5347
  %v5349 = vand.u32 %v5149, 4294901760
  %v5350 = vsub.f32 %v5149, %v5349
  %v5351 = vand.u32 %v5350, 4294901760
  %v5352 = vsub.f32 %v5350, %v5351
  %v5353 = vand.u32 %v5352, 4294901760
  %5354 = vmatmul.mubr.f32.gmra.mrb[0].mxu0 %v5353
  %v5355 = vpop.f32.mrb[0].mxu0
  %v5356 = vadd.f32 %v5243, %v5355
  %v5357 = vpop.f32.mrb[0].mxu0
  %5358 = vdwg.mxu0
  %5359 = vmatprep.subr.mxu0 0.0
  %v5360 = vand.u32 %v5166, 4294901760
  %v5361 = vsub.f32 %v5166, %v5360
  %v5362 = vand.u32 %v5361, 4294901760
  %v5363 = vsub.f32 %v5361, %v5362
  %v5364 = vand.u32 %v5363, 4294901760
  %5365 = vmatpush1.msra.mxu0 %v5364
  %5366 = vmatprep.subr.mxu0 0.0
  %v5367 = vand.u32 %v5167, 4294901760
  %v5368 = vsub.f32 %v5167, %v5367
  %v5369 = vand.u32 %v5368, 4294901760
  %v5370 = vsub.f32 %v5368, %v5369
  %v5371 = vand.u32 %v5370, 4294901760
  %5372 = vmatpush1.msra.mxu0 %v5371
  %5373 = vmatprep.subr.mxu0 0.0
  %v5374 = vand.u32 %v5168, 4294901760
  %v5375 = vsub.f32 %v5168, %v5374
  %v5376 = vand.u32 %v5375, 4294901760
  %v5377 = vsub.f32 %v5375, %v5376
  %v5378 = vand.u32 %v5377, 4294901760
  %5379 = vmatpush1.msra.mxu0 %v5378
  %5380 = vmatprep.subr.mxu0 0.0
  %v5381 = vand.u32 %v5169, 4294901760
  %v5382 = vsub.f32 %v5169, %v5381
  %v5383 = vand.u32 %v5382, 4294901760
  %v5384 = vsub.f32 %v5382, %v5383
  %v5385 = vand.u32 %v5384, 4294901760
  %5386 = vmatpush1.msra.mxu0 %v5385
  %5387 = vmatprep.subr.mxu0 0.0
  %v5388 = vand.u32 %v5170, 4294901760
  %v5389 = vsub.f32 %v5170, %v5388
  %v5390 = vand.u32 %v5389, 4294901760
  %v5391 = vsub.f32 %v5389, %v5390
  %v5392 = vand.u32 %v5391, 4294901760
  %5393 = vmatpush1.msra.mxu0 %v5392
  %5394 = vmatprep.subr.mxu0 0.0
  %v5395 = vand.u32 %v5171, 4294901760
  %v5396 = vsub.f32 %v5171, %v5395
  %v5397 = vand.u32 %v5396, 4294901760
  %v5398 = vsub.f32 %v5396, %v5397
  %v5399 = vand.u32 %v5398, 4294901760
  %5400 = vmatpush1.msra.mxu0 %v5399
  %5401 = vmatprep.subr.mxu0 0.0
  %v5402 = vand.u32 %v5172, 4294901760
  %v5403 = vsub.f32 %v5172, %v5402
  %v5404 = vand.u32 %v5403, 4294901760
  %v5405 = vsub.f32 %v5403, %v5404
  %v5406 = vand.u32 %v5405, 4294901760
  %5407 = vmatpush1.msra.mxu0 %v5406
  %5408 = vmatprep.subr.mxu0 0.0
  %v5409 = vand.u32 %v5173, 4294901760
  %v5410 = vsub.f32 %v5173, %v5409
  %v5411 = vand.u32 %v5410, 4294901760
  %v5412 = vsub.f32 %v5410, %v5411
  %v5413 = vand.u32 %v5412, 4294901760
  %5414 = vmatpush1.msra.mxu0 %v5413
  %5415 = vmatprep.subr.mxu0 0.0
  %v5416 = vand.u32 %v5174, 4294901760
  %v5417 = vsub.f32 %v5174, %v5416
  %v5418 = vand.u32 %v5417, 4294901760
  %v5419 = vsub.f32 %v5417, %v5418
  %v5420 = vand.u32 %v5419, 4294901760
  %5421 = vmatpush1.msra.mxu0 %v5420
  %5422 = vmatprep.subr.mxu0 0.0
  %v5423 = vand.u32 %v5175, 4294901760
  %v5424 = vsub.f32 %v5175, %v5423
  %v5425 = vand.u32 %v5424, 4294901760
  %v5426 = vsub.f32 %v5424, %v5425
  %v5427 = vand.u32 %v5426, 4294901760
  %5428 = vmatpush1.msra.mxu0 %v5427
  %5429 = vmatprep.subr.mxu0 0.0
  %v5430 = vand.u32 %v5176, 4294901760
  %v5431 = vsub.f32 %v5176, %v5430
  %v5432 = vand.u32 %v5431, 4294901760
  %v5433 = vsub.f32 %v5431, %v5432
  %v5434 = vand.u32 %v5433, 4294901760
  %5435 = vmatpush1.msra.mxu0 %v5434
  %5436 = vmatprep.subr.mxu0 0.0
  %v5437 = vand.u32 %v5177, 4294901760
  %v5438 = vsub.f32 %v5177, %v5437
  %v5439 = vand.u32 %v5438, 4294901760
  %v5440 = vsub.f32 %v5438, %v5439
  %v5441 = vand.u32 %v5440, 4294901760
  %5442 = vmatpush1.msra.mxu0 %v5441
  %5443 = vmatprep.subr.mxu0 0.0
  %v5444 = vand.u32 %v5178, 4294901760
  %v5445 = vsub.f32 %v5178, %v5444
  %v5446 = vand.u32 %v5445, 4294901760
  %v5447 = vsub.f32 %v5445, %v5446
  %v5448 = vand.u32 %v5447, 4294901760
  %5449 = vmatpush1.msra.mxu0 %v5448
  %5450 = vmatprep.subr.mxu0 0.0
  %v5451 = vand.u32 %v5179, 4294901760
  %v5452 = vsub.f32 %v5179, %v5451
  %v5453 = vand.u32 %v5452, 4294901760
  %v5454 = vsub.f32 %v5452, %v5453
  %v5455 = vand.u32 %v5454, 4294901760
  %5456 = vmatpush1.msra.mxu0 %v5455
  %5457 = vmatprep.subr.mxu0 0.0
  %v5458 = vand.u32 %v5180, 4294901760
  %v5459 = vsub.f32 %v5180, %v5458
  %v5460 = vand.u32 %v5459, 4294901760
  %v5461 = vsub.f32 %v5459, %v5460
  %v5462 = vand.u32 %v5461, 4294901760
  %5463 = vmatpush1.msra.mxu0 %v5462
  %5464 = vmatprep.subr.mxu0 0.0
  %v5465 = vand.u32 %v5181, 4294901760
  %v5466 = vsub.f32 %v5181, %v5465
  %v5467 = vand.u32 %v5466, 4294901760
  %v5468 = vsub.f32 %v5466, %v5467
  %v5469 = vand.u32 %v5468, 4294901760
  %5470 = vmatpush1.msra.mxu0 %v5469
  %5471 = vmatprep.subr.mxu0 0.0
  %v5472 = vand.u32 %v5182, 4294901760
  %v5473 = vsub.f32 %v5182, %v5472
  %v5474 = vand.u32 %v5473, 4294901760
  %v5475 = vsub.f32 %v5473, %v5474
  %v5476 = vand.u32 %v5475, 4294901760
  %5477 = vmatpush1.msra.mxu0 %v5476
  %5478 = vmatprep.subr.mxu0 0.0
  %v5479 = vand.u32 %v5183, 4294901760
  %v5480 = vsub.f32 %v5183, %v5479
  %v5481 = vand.u32 %v5480, 4294901760
  %v5482 = vsub.f32 %v5480, %v5481
  %v5483 = vand.u32 %v5482, 4294901760
  %5484 = vmatpush1.msra.mxu0 %v5483
  %5485 = vmatprep.subr.mxu0 0.0
  %v5486 = vand.u32 %v5184, 4294901760
  %v5487 = vsub.f32 %v5184, %v5486
  %v5488 = vand.u32 %v5487, 4294901760
  %v5489 = vsub.f32 %v5487, %v5488
  %v5490 = vand.u32 %v5489, 4294901760
  %5491 = vmatpush1.msra.mxu0 %v5490
  %5492 = vmatprep.subr.mxu0 0.0
  %v5493 = vand.u32 %v5185, 4294901760
  %v5494 = vsub.f32 %v5185, %v5493
  %v5495 = vand.u32 %v5494, 4294901760
  %v5496 = vsub.f32 %v5494, %v5495
  %v5497 = vand.u32 %v5496, 4294901760
  %5498 = vmatpush1.msra.mxu0 %v5497
  %5499 = vmatprep.subr.mxu0 0.0
  %v5500 = vand.u32 %v5186, 4294901760
  %v5501 = vsub.f32 %v5186, %v5500
  %v5502 = vand.u32 %v5501, 4294901760
  %v5503 = vsub.f32 %v5501, %v5502
  %v5504 = vand.u32 %v5503, 4294901760
  %5505 = vmatpush1.msra.mxu0 %v5504
  %5506 = vmatprep.subr.mxu0 0.0
  %v5507 = vand.u32 %v5187, 4294901760
  %v5508 = vsub.f32 %v5187, %v5507
  %v5509 = vand.u32 %v5508, 4294901760
  %v5510 = vsub.f32 %v5508, %v5509
  %v5511 = vand.u32 %v5510, 4294901760
  %5512 = vmatpush1.msra.mxu0 %v5511
  %5513 = vmatprep.subr.mxu0 0.0
  %v5514 = vand.u32 %v5188, 4294901760
  %v5515 = vsub.f32 %v5188, %v5514
  %v5516 = vand.u32 %v5515, 4294901760
  %v5517 = vsub.f32 %v5515, %v5516
  %v5518 = vand.u32 %v5517, 4294901760
  %5519 = vmatpush1.msra.mxu0 %v5518
  %5520 = vmatprep.subr.mxu0 0.0
  %v5521 = vand.u32 %v5189, 4294901760
  %v5522 = vsub.f32 %v5189, %v5521
  %v5523 = vand.u32 %v5522, 4294901760
  %v5524 = vsub.f32 %v5522, %v5523
  %v5525 = vand.u32 %v5524, 4294901760
  %5526 = vmatpush1.msra.mxu0 %v5525
  %5527 = vmatprep.subr.mxu0 0.0
  %v5528 = vand.u32 %v5190, 4294901760
  %v5529 = vsub.f32 %v5190, %v5528
  %v5530 = vand.u32 %v5529, 4294901760
  %v5531 = vsub.f32 %v5529, %v5530
  %v5532 = vand.u32 %v5531, 4294901760
  %5533 = vmatpush1.msra.mxu0 %v5532
  %5534 = vmatprep.subr.mxu0 0.0
  %v5535 = vand.u32 %v5191, 4294901760
  %v5536 = vsub.f32 %v5191, %v5535
  %v5537 = vand.u32 %v5536, 4294901760
  %v5538 = vsub.f32 %v5536, %v5537
  %v5539 = vand.u32 %v5538, 4294901760
  %5540 = vmatpush1.msra.mxu0 %v5539
  %5541 = vmatprep.subr.mxu0 0.0
  %v5542 = vand.u32 %v5192, 4294901760
  %v5543 = vsub.f32 %v5192, %v5542
  %v5544 = vand.u32 %v5543, 4294901760
  %v5545 = vsub.f32 %v5543, %v5544
  %v5546 = vand.u32 %v5545, 4294901760
  %5547 = vmatpush1.msra.mxu0 %v5546
  %5548 = vmatprep.subr.mxu0 0.0
  %v5549 = vand.u32 %v5193, 4294901760
  %v5550 = vsub.f32 %v5193, %v5549
  %v5551 = vand.u32 %v5550, 4294901760
  %v5552 = vsub.f32 %v5550, %v5551
  %v5553 = vand.u32 %v5552, 4294901760
  %5554 = vmatpush1.msra.mxu0 %v5553
  %5555 = vmatprep.subr.mxu0 0.0
  %v5556 = vand.u32 %v5194, 4294901760
  %v5557 = vsub.f32 %v5194, %v5556
  %v5558 = vand.u32 %v5557, 4294901760
  %v5559 = vsub.f32 %v5557, %v5558
  %v5560 = vand.u32 %v5559, 4294901760
  %5561 = vmatpush1.msra.mxu0 %v5560
  %5562 = vmatprep.subr.mxu0 0.0
  %v5563 = vand.u32 %v5195, 4294901760
  %v5564 = vsub.f32 %v5195, %v5563
  %v5565 = vand.u32 %v5564, 4294901760
  %v5566 = vsub.f32 %v5564, %v5565
  %v5567 = vand.u32 %v5566, 4294901760
  %5568 = vmatpush1.msra.mxu0 %v5567
  %5569 = vmatprep.subr.mxu0 0.0
  %v5570 = vand.u32 %v5196, 4294901760
  %v5571 = vsub.f32 %v5196, %v5570
  %v5572 = vand.u32 %v5571, 4294901760
  %v5573 = vsub.f32 %v5571, %v5572
  %v5574 = vand.u32 %v5573, 4294901760
  %5575 = vmatpush1.msra.mxu0 %v5574
  %5576 = vmatprep.subr.mxu0 0.0
  %v5577 = vand.u32 %v5197, 4294901760
  %v5578 = vsub.f32 %v5197, %v5577
  %v5579 = vand.u32 %v5578, 4294901760
  %v5580 = vsub.f32 %v5578, %v5579
  %v5581 = vand.u32 %v5580, 4294901760
  %5582 = vmatpush1.msra.mxu0 %v5581
  %v5583 = vand.u32 %v5165, 4294901760
  %5584 = vmatprep.mubr.f32.mxu0 %v5583
  %v5585 = vand.u32 %v5149, 4294901760
  %5586 = vmatmul.mubr.f32.gmra.mrb[0].mxu0 %v5585
  %v5587 = vpop.f32.mrb[0].mxu0
  %v5588 = vadd.f32 %v5356, %v5587
  %v5589 = vpop.f32.mrb[0].mxu0
  %5590 = vdwg.mxu0
  %5591 = vmatprep.subr.mxu0 0.0
  %v5592 = vand.u32 %v5166, 4294901760
  %v5593 = vsub.f32 %v5166, %v5592
  %5594 = vmatpush1.msra.mxu0 %v5593
  %5595 = vmatprep.subr.mxu0 0.0
  %v5596 = vand.u32 %v5167, 4294901760
  %v5597 = vsub.f32 %v5167, %v5596
  %5598 = vmatpush1.msra.mxu0 %v5597
  %5599 = vmatprep.subr.mxu0 0.0
  %v5600 = vand.u32 %v5168, 4294901760
  %v5601 = vsub.f32 %v5168, %v5600
  %5602 = vmatpush1.msra.mxu0 %v5601
  %5603 = vmatprep.subr.mxu0 0.0
  %v5604 = vand.u32 %v5169, 4294901760
  %v5605 = vsub.f32 %v5169, %v5604
  %5606 = vmatpush1.msra.mxu0 %v5605
  %5607 = vmatprep.subr.mxu0 0.0
  %v5608 = vand.u32 %v5170, 4294901760
  %v5609 = vsub.f32 %v5170, %v5608
  %5610 = vmatpush1.msra.mxu0 %v5609
  %5611 = vmatprep.subr.mxu0 0.0
  %v5612 = vand.u32 %v5171, 4294901760
  %v5613 = vsub.f32 %v5171, %v5612
  %5614 = vmatpush1.msra.mxu0 %v5613
  %5615 = vmatprep.subr.mxu0 0.0
  %v5616 = vand.u32 %v5172, 4294901760
  %v5617 = vsub.f32 %v5172, %v5616
  %5618 = vmatpush1.msra.mxu0 %v5617
  %5619 = vmatprep.subr.mxu0 0.0
  %v5620 = vand.u32 %v5173, 4294901760
  %v5621 = vsub.f32 %v5173, %v5620
  %5622 = vmatpush1.msra.mxu0 %v5621
  %5623 = vmatprep.subr.mxu0 0.0
  %v5624 = vand.u32 %v5174, 4294901760
  %v5625 = vsub.f32 %v5174, %v5624
  %5626 = vmatpush1.msra.mxu0 %v5625
  %5627 = vmatprep.subr.mxu0 0.0
  %v5628 = vand.u32 %v5175, 4294901760
  %v5629 = vsub.f32 %v5175, %v5628
  %5630 = vmatpush1.msra.mxu0 %v5629
  %5631 = vmatprep.subr.mxu0 0.0
  %v5632 = vand.u32 %v5176, 4294901760
  %v5633 = vsub.f32 %v5176, %v5632
  %5634 = vmatpush1.msra.mxu0 %v5633
  %5635 = vmatprep.subr.mxu0 0.0
  %v5636 = vand.u32 %v5177, 4294901760
  %v5637 = vsub.f32 %v5177, %v5636
  %5638 = vmatpush1.msra.mxu0 %v5637
  %5639 = vmatprep.subr.mxu0 0.0
  %v5640 = vand.u32 %v5178, 4294901760
  %v5641 = vsub.f32 %v5178, %v5640
  %5642 = vmatpush1.msra.mxu0 %v5641
  %5643 = vmatprep.subr.mxu0 0.0
  %v5644 = vand.u32 %v5179, 4294901760
  %v5645 = vsub.f32 %v5179, %v5644
  %5646 = vmatpush1.msra.mxu0 %v5645
  %5647 = vmatprep.subr.mxu0 0.0
  %v5648 = vand.u32 %v5180, 4294901760
  %v5649 = vsub.f32 %v5180, %v5648
  %5650 = vmatpush1.msra.mxu0 %v5649
  %5651 = vmatprep.subr.mxu0 0.0
  %v5652 = vand.u32 %v5181, 4294901760
  %v5653 = vsub.f32 %v5181, %v5652
  %5654 = vmatpush1.msra.mxu0 %v5653
  %5655 = vmatprep.subr.mxu0 0.0
  %v5656 = vand.u32 %v5182, 4294901760
  %v5657 = vsub.f32 %v5182, %v5656
  %5658 = vmatpush1.msra.mxu0 %v5657
  %5659 = vmatprep.subr.mxu0 0.0
  %v5660 = vand.u32 %v5183, 4294901760
  %v5661 = vsub.f32 %v5183, %v5660
  %5662 = vmatpush1.msra.mxu0 %v5661
  %5663 = vmatprep.subr.mxu0 0.0
  %v5664 = vand.u32 %v5184, 4294901760
  %v5665 = vsub.f32 %v5184, %v5664
  %5666 = vmatpush1.msra.mxu0 %v5665
  %5667 = vmatprep.subr.mxu0 0.0
  %v5668 = vand.u32 %v5185, 4294901760
  %v5669 = vsub.f32 %v5185, %v5668
  %5670 = vmatpush1.msra.mxu0 %v5669
  %5671 = vmatprep.subr.mxu0 0.0
  %v5672 = vand.u32 %v5186, 4294901760
  %v5673 = vsub.f32 %v5186, %v5672
  %5674 = vmatpush1.msra.mxu0 %v5673
  %5675 = vmatprep.subr.mxu0 0.0
  %v5676 = vand.u32 %v5187, 4294901760
  %v5677 = vsub.f32 %v5187, %v5676
  %5678 = vmatpush1.msra.mxu0 %v5677
  %5679 = vmatprep.subr.mxu0 0.0
  %v5680 = vand.u32 %v5188, 4294901760
  %v5681 = vsub.f32 %v5188, %v5680
  %5682 = vmatpush1.msra.mxu0 %v5681
  %5683 = vmatprep.subr.mxu0 0.0
  %v5684 = vand.u32 %v5189, 4294901760
  %v5685 = vsub.f32 %v5189, %v5684
  %5686 = vmatpush1.msra.mxu0 %v5685
  %5687 = vmatprep.subr.mxu0 0.0
  %v5688 = vand.u32 %v5190, 4294901760
  %v5689 = vsub.f32 %v5190, %v5688
  %5690 = vmatpush1.msra.mxu0 %v5689
  %5691 = vmatprep.subr.mxu0 0.0
  %v5692 = vand.u32 %v5191, 4294901760
  %v5693 = vsub.f32 %v5191, %v5692
  %5694 = vmatpush1.msra.mxu0 %v5693
  %5695 = vmatprep.subr.mxu0 0.0
  %v5696 = vand.u32 %v5192, 4294901760
  %v5697 = vsub.f32 %v5192, %v5696
  %5698 = vmatpush1.msra.mxu0 %v5697
  %5699 = vmatprep.subr.mxu0 0.0
  %v5700 = vand.u32 %v5193, 4294901760
  %v5701 = vsub.f32 %v5193, %v5700
  %5702 = vmatpush1.msra.mxu0 %v5701
  %5703 = vmatprep.subr.mxu0 0.0
  %v5704 = vand.u32 %v5194, 4294901760
  %v5705 = vsub.f32 %v5194, %v5704
  %5706 = vmatpush1.msra.mxu0 %v5705
  %5707 = vmatprep.subr.mxu0 0.0
  %v5708 = vand.u32 %v5195, 4294901760
  %v5709 = vsub.f32 %v5195, %v5708
  %5710 = vmatpush1.msra.mxu0 %v5709
  %5711 = vmatprep.subr.mxu0 0.0
  %v5712 = vand.u32 %v5196, 4294901760
  %v5713 = vsub.f32 %v5196, %v5712
  %5714 = vmatpush1.msra.mxu0 %v5713
  %5715 = vmatprep.subr.mxu0 0.0
  %v5716 = vand.u32 %v5197, 4294901760
  %v5717 = vsub.f32 %v5197, %v5716
  %5718 = vmatpush1.msra.mxu0 %v5717
  %v5719 = vand.u32 %v5165, 4294901760
  %v5720 = vsub.f32 %v5165, %v5719
  %5721 = vmatprep.mubr.f32.mxu0 %v5720
  %v5722 = vand.u32 %v5149, 4294901760
  %v5723 = vsub.f32 %v5149, %v5722
  %5724 = vmatmul.mubr.f32.gmra.mrb[0].mxu0 %v5723
  %v5725 = vpop.f32.mrb[0].mxu0
  %v5726 = vadd.f32 %v5588, %v5725
  %v5727 = vpop.f32.mrb[0].mxu0
  %5728 = vdwg.mxu0
  %5729 = vmatprep.subr.mxu0 0.0
  %v5730 = vand.u32 %v5166, 4294901760
  %5731 = vmatpush1.msra.mxu0 %v5730
  %5732 = vmatprep.subr.mxu0 0.0
  %v5733 = vand.u32 %v5167, 4294901760
  %5734 = vmatpush1.msra.mxu0 %v5733
  %5735 = vmatprep.subr.mxu0 0.0
  %v5736 = vand.u32 %v5168, 4294901760
  %5737 = vmatpush1.msra.mxu0 %v5736
  %5738 = vmatprep.subr.mxu0 0.0
  %v5739 = vand.u32 %v5169, 4294901760
  %5740 = vmatpush1.msra.mxu0 %v5739
  %5741 = vmatprep.subr.mxu0 0.0
  %v5742 = vand.u32 %v5170, 4294901760
  %5743 = vmatpush1.msra.mxu0 %v5742
  %5744 = vmatprep.subr.mxu0 0.0
  %v5745 = vand.u32 %v5171, 4294901760
  %5746 = vmatpush1.msra.mxu0 %v5745
  %5747 = vmatprep.subr.mxu0 0.0
  %v5748 = vand.u32 %v5172, 4294901760
  %5749 = vmatpush1.msra.mxu0 %v5748
  %5750 = vmatprep.subr.mxu0 0.0
  %v5751 = vand.u32 %v5173, 4294901760
  %5752 = vmatpush1.msra.mxu0 %v5751
  %5753 = vmatprep.subr.mxu0 0.0
  %v5754 = vand.u32 %v5174, 4294901760
  %5755 = vmatpush1.msra.mxu0 %v5754
  %5756 = vmatprep.subr.mxu0 0.0
  %v5757 = vand.u32 %v5175, 4294901760
  %5758 = vmatpush1.msra.mxu0 %v5757
  %5759 = vmatprep.subr.mxu0 0.0
  %v5760 = vand.u32 %v5176, 4294901760
  %5761 = vmatpush1.msra.mxu0 %v5760
  %5762 = vmatprep.subr.mxu0 0.0
  %v5763 = vand.u32 %v5177, 4294901760
  %5764 = vmatpush1.msra.mxu0 %v5763
  %5765 = vmatprep.subr.mxu0 0.0
  %v5766 = vand.u32 %v5178, 4294901760
  %5767 = vmatpush1.msra.mxu0 %v5766
  %5768 = vmatprep.subr.mxu0 0.0
  %v5769 = vand.u32 %v5179, 4294901760
  %5770 = vmatpush1.msra.mxu0 %v5769
  %5771 = vmatprep.subr.mxu0 0.0
  %v5772 = vand.u32 %v5180, 4294901760
  %5773 = vmatpush1.msra.mxu0 %v5772
  %5774 = vmatprep.subr.mxu0 0.0
  %v5775 = vand.u32 %v5181, 4294901760
  %5776 = vmatpush1.msra.mxu0 %v5775
  %5777 = vmatprep.subr.mxu0 0.0
  %v5778 = vand.u32 %v5182, 4294901760
  %5779 = vmatpush1.msra.mxu0 %v5778
  %5780 = vmatprep.subr.mxu0 0.0
  %v5781 = vand.u32 %v5183, 4294901760
  %5782 = vmatpush1.msra.mxu0 %v5781
  %5783 = vmatprep.subr.mxu0 0.0
  %v5784 = vand.u32 %v5184, 4294901760
  %5785 = vmatpush1.msra.mxu0 %v5784
  %5786 = vmatprep.subr.mxu0 0.0
  %v5787 = vand.u32 %v5185, 4294901760
  %5788 = vmatpush1.msra.mxu0 %v5787
  %5789 = vmatprep.subr.mxu0 0.0
  %v5790 = vand.u32 %v5186, 4294901760
  %5791 = vmatpush1.msra.mxu0 %v5790
  %5792 = vmatprep.subr.mxu0 0.0
  %v5793 = vand.u32 %v5187, 4294901760
  %5794 = vmatpush1.msra.mxu0 %v5793
  %5795 = vmatprep.subr.mxu0 0.0
  %v5796 = vand.u32 %v5188, 4294901760
  %5797 = vmatpush1.msra.mxu0 %v5796
  %5798 = vmatprep.subr.mxu0 0.0
  %v5799 = vand.u32 %v5189, 4294901760
  %5800 = vmatpush1.msra.mxu0 %v5799
  %5801 = vmatprep.subr.mxu0 0.0
  %v5802 = vand.u32 %v5190, 4294901760
  %5803 = vmatpush1.msra.mxu0 %v5802
  %5804 = vmatprep.subr.mxu0 0.0
  %v5805 = vand.u32 %v5191, 4294901760
  %5806 = vmatpush1.msra.mxu0 %v5805
  %5807 = vmatprep.subr.mxu0 0.0
  %v5808 = vand.u32 %v5192, 4294901760
  %5809 = vmatpush1.msra.mxu0 %v5808
  %5810 = vmatprep.subr.mxu0 0.0
  %v5811 = vand.u32 %v5193, 4294901760
  %5812 = vmatpush1.msra.mxu0 %v5811
  %5813 = vmatprep.subr.mxu0 0.0
  %v5814 = vand.u32 %v5194, 4294901760
  %5815 = vmatpush1.msra.mxu0 %v5814
  %5816 = vmatprep.subr.mxu0 0.0
  %v5817 = vand.u32 %v5195, 4294901760
  %5818 = vmatpush1.msra.mxu0 %v5817
  %5819 = vmatprep.subr.mxu0 0.0
  %v5820 = vand.u32 %v5196, 4294901760
  %5821 = vmatpush1.msra.mxu0 %v5820
  %5822 = vmatprep.subr.mxu0 0.0
  %v5823 = vand.u32 %v5197, 4294901760
  %5824 = vmatpush1.msra.mxu0 %v5823
  %v5825 = vand.u32 %v5165, 4294901760
  %v5826 = vsub.f32 %v5165, %v5825
  %v5827 = vand.u32 %v5826, 4294901760
  %5828 = vmatprep.mubr.f32.mxu0 %v5827
  %v5829 = vand.u32 %v5149, 4294901760
  %v5830 = vsub.f32 %v5149, %v5829
  %v5831 = vand.u32 %v5830, 4294901760
  %5832 = vmatmul.mubr.f32.gmra.mrb[0].mxu0 %v5831
  %v5833 = vpop.f32.mrb[0].mxu0
  %v5834 = vadd.f32 %v5726, %v5833
  %v5835 = vpop.f32.mrb[0].mxu0
  %5836 = vdwg.mxu0
  %5837 = vmatprep.subr.mxu0 0.0
  %v5838 = vand.u32 %v5166, 4294901760
  %v5839 = vsub.f32 %v5166, %v5838
  %v5840 = vand.u32 %v5839, 4294901760
  %5841 = vmatpush1.msra.mxu0 %v5840
  %5842 = vmatprep.subr.mxu0 0.0
  %v5843 = vand.u32 %v5167, 4294901760
  %v5844 = vsub.f32 %v5167, %v5843
  %v5845 = vand.u32 %v5844, 4294901760
  %5846 = vmatpush1.msra.mxu0 %v5845
  %5847 = vmatprep.subr.mxu0 0.0
  %v5848 = vand.u32 %v5168, 4294901760
  %v5849 = vsub.f32 %v5168, %v5848
  %v5850 = vand.u32 %v5849, 4294901760
  %5851 = vmatpush1.msra.mxu0 %v5850
  %5852 = vmatprep.subr.mxu0 0.0
  %v5853 = vand.u32 %v5169, 4294901760
  %v5854 = vsub.f32 %v5169, %v5853
  %v5855 = vand.u32 %v5854, 4294901760
  %5856 = vmatpush1.msra.mxu0 %v5855
  %5857 = vmatprep.subr.mxu0 0.0
  %v5858 = vand.u32 %v5170, 4294901760
  %v5859 = vsub.f32 %v5170, %v5858
  %v5860 = vand.u32 %v5859, 4294901760
  %5861 = vmatpush1.msra.mxu0 %v5860
  %5862 = vmatprep.subr.mxu0 0.0
  %v5863 = vand.u32 %v5171, 4294901760
  %v5864 = vsub.f32 %v5171, %v5863
  %v5865 = vand.u32 %v5864, 4294901760
  %5866 = vmatpush1.msra.mxu0 %v5865
  %5867 = vmatprep.subr.mxu0 0.0
  %v5868 = vand.u32 %v5172, 4294901760
  %v5869 = vsub.f32 %v5172, %v5868
  %v5870 = vand.u32 %v5869, 4294901760
  %5871 = vmatpush1.msra.mxu0 %v5870
  %5872 = vmatprep.subr.mxu0 0.0
  %v5873 = vand.u32 %v5173, 4294901760
  %v5874 = vsub.f32 %v5173, %v5873
  %v5875 = vand.u32 %v5874, 4294901760
  %5876 = vmatpush1.msra.mxu0 %v5875
  %5877 = vmatprep.subr.mxu0 0.0
  %v5878 = vand.u32 %v5174, 4294901760
  %v5879 = vsub.f32 %v5174, %v5878
  %v5880 = vand.u32 %v5879, 4294901760
  %5881 = vmatpush1.msra.mxu0 %v5880
  %5882 = vmatprep.subr.mxu0 0.0
  %v5883 = vand.u32 %v5175, 4294901760
  %v5884 = vsub.f32 %v5175, %v5883
  %v5885 = vand.u32 %v5884, 4294901760
  %5886 = vmatpush1.msra.mxu0 %v5885
  %5887 = vmatprep.subr.mxu0 0.0
  %v5888 = vand.u32 %v5176, 4294901760
  %v5889 = vsub.f32 %v5176, %v5888
  %v5890 = vand.u32 %v5889, 4294901760
  %5891 = vmatpush1.msra.mxu0 %v5890
  %5892 = vmatprep.subr.mxu0 0.0
  %v5893 = vand.u32 %v5177, 4294901760
  %v5894 = vsub.f32 %v5177, %v5893
  %v5895 = vand.u32 %v5894, 4294901760
  %5896 = vmatpush1.msra.mxu0 %v5895
  %5897 = vmatprep.subr.mxu0 0.0
  %v5898 = vand.u32 %v5178, 4294901760
  %v5899 = vsub.f32 %v5178, %v5898
  %v5900 = vand.u32 %v5899, 4294901760
  %5901 = vmatpush1.msra.mxu0 %v5900
  %5902 = vmatprep.subr.mxu0 0.0
  %v5903 = vand.u32 %v5179, 4294901760
  %v5904 = vsub.f32 %v5179, %v5903
  %v5905 = vand.u32 %v5904, 4294901760
  %5906 = vmatpush1.msra.mxu0 %v5905
  %5907 = vmatprep.subr.mxu0 0.0
  %v5908 = vand.u32 %v5180, 4294901760
  %v5909 = vsub.f32 %v5180, %v5908
  %v5910 = vand.u32 %v5909, 4294901760
  %5911 = vmatpush1.msra.mxu0 %v5910
  %5912 = vmatprep.subr.mxu0 0.0
  %v5913 = vand.u32 %v5181, 4294901760
  %v5914 = vsub.f32 %v5181, %v5913
  %v5915 = vand.u32 %v5914, 4294901760
  %5916 = vmatpush1.msra.mxu0 %v5915
  %5917 = vmatprep.subr.mxu0 0.0
  %v5918 = vand.u32 %v5182, 4294901760
  %v5919 = vsub.f32 %v5182, %v5918
  %v5920 = vand.u32 %v5919, 4294901760
  %5921 = vmatpush1.msra.mxu0 %v5920
  %5922 = vmatprep.subr.mxu0 0.0
  %v5923 = vand.u32 %v5183, 4294901760
  %v5924 = vsub.f32 %v5183, %v5923
  %v5925 = vand.u32 %v5924, 4294901760
  %5926 = vmatpush1.msra.mxu0 %v5925
  %5927 = vmatprep.subr.mxu0 0.0
  %v5928 = vand.u32 %v5184, 4294901760
  %v5929 = vsub.f32 %v5184, %v5928
  %v5930 = vand.u32 %v5929, 4294901760
  %5931 = vmatpush1.msra.mxu0 %v5930
  %5932 = vmatprep.subr.mxu0 0.0
  %v5933 = vand.u32 %v5185, 4294901760
  %v5934 = vsub.f32 %v5185, %v5933
  %v5935 = vand.u32 %v5934, 4294901760
  %5936 = vmatpush1.msra.mxu0 %v5935
  %5937 = vmatprep.subr.mxu0 0.0
  %v5938 = vand.u32 %v5186, 4294901760
  %v5939 = vsub.f32 %v5186, %v5938
  %v5940 = vand.u32 %v5939, 4294901760
  %5941 = vmatpush1.msra.mxu0 %v5940
  %5942 = vmatprep.subr.mxu0 0.0
  %v5943 = vand.u32 %v5187, 4294901760
  %v5944 = vsub.f32 %v5187, %v5943
  %v5945 = vand.u32 %v5944, 4294901760
  %5946 = vmatpush1.msra.mxu0 %v5945
  %5947 = vmatprep.subr.mxu0 0.0
  %v5948 = vand.u32 %v5188, 4294901760
  %v5949 = vsub.f32 %v5188, %v5948
  %v5950 = vand.u32 %v5949, 4294901760
  %5951 = vmatpush1.msra.mxu0 %v5950
  %5952 = vmatprep.subr.mxu0 0.0
  %v5953 = vand.u32 %v5189, 4294901760
  %v5954 = vsub.f32 %v5189, %v5953
  %v5955 = vand.u32 %v5954, 4294901760
  %5956 = vmatpush1.msra.mxu0 %v5955
  %5957 = vmatprep.subr.mxu0 0.0
  %v5958 = vand.u32 %v5190, 4294901760
  %v5959 = vsub.f32 %v5190, %v5958
  %v5960 = vand.u32 %v5959, 4294901760
  %5961 = vmatpush1.msra.mxu0 %v5960
  %5962 = vmatprep.subr.mxu0 0.0
  %v5963 = vand.u32 %v5191, 4294901760
  %v5964 = vsub.f32 %v5191, %v5963
  %v5965 = vand.u32 %v5964, 4294901760
  %5966 = vmatpush1.msra.mxu0 %v5965
  %5967 = vmatprep.subr.mxu0 0.0
  %v5968 = vand.u32 %v5192, 4294901760
  %v5969 = vsub.f32 %v5192, %v5968
  %v5970 = vand.u32 %v5969, 4294901760
  %5971 = vmatpush1.msra.mxu0 %v5970
  %5972 = vmatprep.subr.mxu0 0.0
  %v5973 = vand.u32 %v5193, 4294901760
  %v5974 = vsub.f32 %v5193, %v5973
  %v5975 = vand.u32 %v5974, 4294901760
  %5976 = vmatpush1.msra.mxu0 %v5975
  %5977 = vmatprep.subr.mxu0 0.0
  %v5978 = vand.u32 %v5194, 4294901760
  %v5979 = vsub.f32 %v5194, %v5978
  %v5980 = vand.u32 %v5979, 4294901760
  %5981 = vmatpush1.msra.mxu0 %v5980
  %5982 = vmatprep.subr.mxu0 0.0
  %v5983 = vand.u32 %v5195, 4294901760
  %v5984 = vsub.f32 %v5195, %v5983
  %v5985 = vand.u32 %v5984, 4294901760
  %5986 = vmatpush1.msra.mxu0 %v5985
  %5987 = vmatprep.subr.mxu0 0.0
  %v5988 = vand.u32 %v5196, 4294901760
  %v5989 = vsub.f32 %v5196, %v5988
  %v5990 = vand.u32 %v5989, 4294901760
  %5991 = vmatpush1.msra.mxu0 %v5990
  %5992 = vmatprep.subr.mxu0 0.0
  %v5993 = vand.u32 %v5197, 4294901760
  %v5994 = vsub.f32 %v5197, %v5993
  %v5995 = vand.u32 %v5994, 4294901760
  %5996 = vmatpush1.msra.mxu0 %v5995
  %v5997 = vand.u32 %v5165, 4294901760
  %5998 = vmatprep.mubr.f32.mxu0 %v5997
  %v5999 = vand.u32 %v5149, 4294901760
  %6000 = vmatmul.mubr.f32.gmra.mrb[0].mxu0 %v5999
  %v6001 = vpop.f32.mrb[0].mxu0
  %v6002 = vadd.f32 %v5834, %v6001
  %v6003 = vpop.f32.mrb[0].mxu0
  %6004 = vdwg.mxu0
  %6005 = vmatprep.subr.mxu0 0.0
  %v6006 = vand.u32 %v5166, 4294901760
  %6007 = vmatpush1.msra.mxu0 %v6006
  %6008 = vmatprep.subr.mxu0 0.0
  %v6009 = vand.u32 %v5167, 4294901760
  %6010 = vmatpush1.msra.mxu0 %v6009
  %6011 = vmatprep.subr.mxu0 0.0
  %v6012 = vand.u32 %v5168, 4294901760
  %6013 = vmatpush1.msra.mxu0 %v6012
  %6014 = vmatprep.subr.mxu0 0.0
  %v6015 = vand.u32 %v5169, 4294901760
  %6016 = vmatpush1.msra.mxu0 %v6015
  %6017 = vmatprep.subr.mxu0 0.0
  %v6018 = vand.u32 %v5170, 4294901760
  %6019 = vmatpush1.msra.mxu0 %v6018
  %6020 = vmatprep.subr.mxu0 0.0
  %v6021 = vand.u32 %v5171, 4294901760
  %6022 = vmatpush1.msra.mxu0 %v6021
  %6023 = vmatprep.subr.mxu0 0.0
  %v6024 = vand.u32 %v5172, 4294901760
  %6025 = vmatpush1.msra.mxu0 %v6024
  %6026 = vmatprep.subr.mxu0 0.0
  %v6027 = vand.u32 %v5173, 4294901760
  %6028 = vmatpush1.msra.mxu0 %v6027
  %6029 = vmatprep.subr.mxu0 0.0
  %v6030 = vand.u32 %v5174, 4294901760
  %6031 = vmatpush1.msra.mxu0 %v6030
  %6032 = vmatprep.subr.mxu0 0.0
  %v6033 = vand.u32 %v5175, 4294901760
  %6034 = vmatpush1.msra.mxu0 %v6033
  %6035 = vmatprep.subr.mxu0 0.0
  %v6036 = vand.u32 %v5176, 4294901760
  %6037 = vmatpush1.msra.mxu0 %v6036
  %6038 = vmatprep.subr.mxu0 0.0
  %v6039 = vand.u32 %v5177, 4294901760
  %6040 = vmatpush1.msra.mxu0 %v6039
  %6041 = vmatprep.subr.mxu0 0.0
  %v6042 = vand.u32 %v5178, 4294901760
  %6043 = vmatpush1.msra.mxu0 %v6042
  %6044 = vmatprep.subr.mxu0 0.0
  %v6045 = vand.u32 %v5179, 4294901760
  %6046 = vmatpush1.msra.mxu0 %v6045
  %6047 = vmatprep.subr.mxu0 0.0
  %v6048 = vand.u32 %v5180, 4294901760
  %6049 = vmatpush1.msra.mxu0 %v6048
  %6050 = vmatprep.subr.mxu0 0.0
  %v6051 = vand.u32 %v5181, 4294901760
  %6052 = vmatpush1.msra.mxu0 %v6051
  %6053 = vmatprep.subr.mxu0 0.0
  %v6054 = vand.u32 %v5182, 4294901760
  %6055 = vmatpush1.msra.mxu0 %v6054
  %6056 = vmatprep.subr.mxu0 0.0
  %v6057 = vand.u32 %v5183, 4294901760
  %6058 = vmatpush1.msra.mxu0 %v6057
  %6059 = vmatprep.subr.mxu0 0.0
  %v6060 = vand.u32 %v5184, 4294901760
  %6061 = vmatpush1.msra.mxu0 %v6060
  %6062 = vmatprep.subr.mxu0 0.0
  %v6063 = vand.u32 %v5185, 4294901760
  %6064 = vmatpush1.msra.mxu0 %v6063
  %6065 = vmatprep.subr.mxu0 0.0
  %v6066 = vand.u32 %v5186, 4294901760
  %6067 = vmatpush1.msra.mxu0 %v6066
  %6068 = vmatprep.subr.mxu0 0.0
  %v6069 = vand.u32 %v5187, 4294901760
  %6070 = vmatpush1.msra.mxu0 %v6069
  %6071 = vmatprep.subr.mxu0 0.0
  %v6072 = vand.u32 %v5188, 4294901760
  %6073 = vmatpush1.msra.mxu0 %v6072
  %6074 = vmatprep.subr.mxu0 0.0
  %v6075 = vand.u32 %v5189, 4294901760
  %6076 = vmatpush1.msra.mxu0 %v6075
  %6077 = vmatprep.subr.mxu0 0.0
  %v6078 = vand.u32 %v5190, 4294901760
  %6079 = vmatpush1.msra.mxu0 %v6078
  %6080 = vmatprep.subr.mxu0 0.0
  %v6081 = vand.u32 %v5191, 4294901760
  %6082 = vmatpush1.msra.mxu0 %v6081
  %6083 = vmatprep.subr.mxu0 0.0
  %v6084 = vand.u32 %v5192, 4294901760
  %6085 = vmatpush1.msra.mxu0 %v6084
  %6086 = vmatprep.subr.mxu0 0.0
  %v6087 = vand.u32 %v5193, 4294901760
  %6088 = vmatpush1.msra.mxu0 %v6087
  %6089 = vmatprep.subr.mxu0 0.0
  %v6090 = vand.u32 %v5194, 4294901760
  %6091 = vmatpush1.msra.mxu0 %v6090
  %6092 = vmatprep.subr.mxu0 0.0
  %v6093 = vand.u32 %v5195, 4294901760
  %6094 = vmatpush1.msra.mxu0 %v6093
  %6095 = vmatprep.subr.mxu0 0.0
  %v6096 = vand.u32 %v5196, 4294901760
  %6097 = vmatpush1.msra.mxu0 %v6096
  %6098 = vmatprep.subr.mxu0 0.0
  %v6099 = vand.u32 %v5197, 4294901760
  %6100 = vmatpush1.msra.mxu0 %v6099
  %v6101 = vand.u32 %v5165, 4294901760
  %6102 = vmatprep.mubr.f32.mxu0 %v6101
  %v6103 = vand.u32 %v5149, 4294901760
  %6104 = vmatmul.mubr.f32.gmra.mrb[0].mxu0 %v6103
  %v6105 = vpop.f32.mrb[0].mxu0
  %v6106 = vadd.f32 %v6002, %v6105
  %v6107 = vpop.f32.mrb[0].mxu0
  %6108 = vdwg.mxu0
  %6109 = vmatprep.subr.mxu0 0.0
  %v6110 = vand.u32 %v5198, 4294901760
  %6111 = vmatpush1.msra.mxu0 %v6110
  %6112 = vmatprep.subr.mxu0 0.0
  %v6113 = vand.u32 %v5199, 4294901760
  %6114 = vmatpush1.msra.mxu0 %v6113
  %6115 = vmatprep.subr.mxu0 0.0
  %v6116 = vand.u32 %v5200, 4294901760
  %6117 = vmatpush1.msra.mxu0 %v6116
  %6118 = vmatprep.subr.mxu0 0.0
  %v6119 = vand.u32 %v5201, 4294901760
  %6120 = vmatpush1.msra.mxu0 %v6119
  %6121 = vmatprep.subr.mxu0 0.0
  %v6122 = vand.u32 %v5202, 4294901760
  %6123 = vmatpush1.msra.mxu0 %v6122
  %6124 = vmatprep.subr.mxu0 0.0
  %v6125 = vand.u32 %v5203, 4294901760
  %6126 = vmatpush1.msra.mxu0 %v6125
  %6127 = vmatprep.subr.mxu0 0.0
  %v6128 = vand.u32 %v5204, 4294901760
  %6129 = vmatpush1.msra.mxu0 %v6128
  %6130 = vmatprep.subr.mxu0 0.0
  %v6131 = vand.u32 %v5205, 4294901760
  %6132 = vmatpush1.msra.mxu0 %v6131
  %6133 = vmatprep.subr.mxu0 0.0
  %v6134 = vand.u32 %v5206, 4294901760
  %6135 = vmatpush1.msra.mxu0 %v6134
  %6136 = vmatprep.subr.mxu0 0.0
  %v6137 = vand.u32 %v5207, 4294901760
  %6138 = vmatpush1.msra.mxu0 %v6137
  %6139 = vmatprep.subr.mxu0 0.0
  %v6140 = vand.u32 %v5208, 4294901760
  %6141 = vmatpush1.msra.mxu0 %v6140
  %6142 = vmatprep.subr.mxu0 0.0
  %v6143 = vand.u32 %v5209, 4294901760
  %6144 = vmatpush1.msra.mxu0 %v6143
  %6145 = vmatprep.subr.mxu0 0.0
  %v6146 = vand.u32 %v5210, 4294901760
  %6147 = vmatpush1.msra.mxu0 %v6146
  %6148 = vmatprep.subr.mxu0 0.0
  %v6149 = vand.u32 %v5211, 4294901760
  %6150 = vmatpush1.msra.mxu0 %v6149
  %6151 = vmatprep.subr.mxu0 0.0
  %v6152 = vand.u32 %v5212, 4294901760
  %6153 = vmatpush1.msra.mxu0 %v6152
  %6154 = vmatprep.subr.mxu0 0.0
  %v6155 = vand.u32 %v5213, 4294901760
  %6156 = vmatpush1.msra.mxu0 %v6155
  %6157 = vmatprep.subr.mxu0 0.0
  %v6158 = vand.u32 %v5214, 4294901760
  %6159 = vmatpush1.msra.mxu0 %v6158
  %6160 = vmatprep.subr.mxu0 0.0
  %v6161 = vand.u32 %v5215, 4294901760
  %6162 = vmatpush1.msra.mxu0 %v6161
  %6163 = vmatprep.subr.mxu0 0.0
  %v6164 = vand.u32 %v5216, 4294901760
  %6165 = vmatpush1.msra.mxu0 %v6164
  %6166 = vmatprep.subr.mxu0 0.0
  %v6167 = vand.u32 %v5217, 4294901760
  %6168 = vmatpush1.msra.mxu0 %v6167
  %6169 = vmatprep.subr.mxu0 0.0
  %v6170 = vand.u32 %v5218, 4294901760
  %6171 = vmatpush1.msra.mxu0 %v6170
  %6172 = vmatprep.subr.mxu0 0.0
  %v6173 = vand.u32 %v5219, 4294901760
  %6174 = vmatpush1.msra.mxu0 %v6173
  %6175 = vmatprep.subr.mxu0 0.0
  %v6176 = vand.u32 %v5220, 4294901760
  %6177 = vmatpush1.msra.mxu0 %v6176
  %6178 = vmatprep.subr.mxu0 0.0
  %v6179 = vand.u32 %v5221, 4294901760
  %6180 = vmatpush1.msra.mxu0 %v6179
  %6181 = vmatprep.subr.mxu0 0.0
  %v6182 = vand.u32 %v5222, 4294901760
  %6183 = vmatpush1.msra.mxu0 %v6182
  %6184 = vmatprep.subr.mxu0 0.0
  %v6185 = vand.u32 %v5223, 4294901760
  %6186 = vmatpush1.msra.mxu0 %v6185
  %6187 = vmatprep.subr.mxu0 0.0
  %v6188 = vand.u32 %v5224, 4294901760
  %6189 = vmatpush1.msra.mxu0 %v6188
  %6190 = vmatprep.subr.mxu0 0.0
  %v6191 = vand.u32 %v5225, 4294901760
  %6192 = vmatpush1.msra.mxu0 %v6191
  %6193 = vmatprep.subr.mxu0 0.0
  %v6194 = vand.u32 %v5226, 4294901760
  %6195 = vmatpush1.msra.mxu0 %v6194
  %6196 = vmatprep.subr.mxu0 0.0
  %v6197 = vand.u32 %v5227, 4294901760
  %6198 = vmatpush1.msra.mxu0 %v6197
  %6199 = vmatprep.subr.mxu0 0.0
  %v6200 = vand.u32 %v5228, 4294901760
  %6201 = vmatpush1.msra.mxu0 %v6200
  %6202 = vmatprep.subr.mxu0 0.0
  %v6203 = vand.u32 %v5229, 4294901760
  %6204 = vmatpush1.msra.mxu0 %v6203
  %v6205 = vand.u32 %v5162, 4294901760
  %v6206 = vsub.f32 %v5162, %v6205
  %v6207 = vand.u32 %v6206, 4294901760
  %v6208 = vsub.f32 %v6206, %v6207
  %v6209 = vand.u32 %v6208, 4294901760
  %6210 = vmatprep.mubr.f32.mxu0 %v6209
  %v6211 = vand.u32 %v5159, 4294901760
  %v6212 = vsub.f32 %v5159, %v6211
  %v6213 = vand.u32 %v6212, 4294901760
  %v6214 = vsub.f32 %v6212, %v6213
  %v6215 = vand.u32 %v6214, 4294901760
  %6216 = vmatmul.mubr.f32.gmra.mrb[0].mxu0 %v6215
  %v6217 = vpop.f32.mrb[0].mxu0
  %v6218 = vadd.f32 %v6106, %v6217
  %v6219 = vpop.f32.mrb[0].mxu0
  %6220 = vdwg.mxu0
  %6221 = vmatprep.subr.mxu0 0.0
  %v6222 = vand.u32 %v5198, 4294901760
  %v6223 = vsub.f32 %v5198, %v6222
  %v6224 = vand.u32 %v6223, 4294901760
  %v6225 = vsub.f32 %v6223, %v6224
  %v6226 = vand.u32 %v6225, 4294901760
  %6227 = vmatpush1.msra.mxu0 %v6226
  %6228 = vmatprep.subr.mxu0 0.0
  %v6229 = vand.u32 %v5199, 4294901760
  %v6230 = vsub.f32 %v5199, %v6229
  %v6231 = vand.u32 %v6230, 4294901760
  %v6232 = vsub.f32 %v6230, %v6231
  %v6233 = vand.u32 %v6232, 4294901760
  %6234 = vmatpush1.msra.mxu0 %v6233
  %6235 = vmatprep.subr.mxu0 0.0
  %v6236 = vand.u32 %v5200, 4294901760
  %v6237 = vsub.f32 %v5200, %v6236
  %v6238 = vand.u32 %v6237, 4294901760
  %v6239 = vsub.f32 %v6237, %v6238
  %v6240 = vand.u32 %v6239, 4294901760
  %6241 = vmatpush1.msra.mxu0 %v6240
  %6242 = vmatprep.subr.mxu0 0.0
  %v6243 = vand.u32 %v5201, 4294901760
  %v6244 = vsub.f32 %v5201, %v6243
  %v6245 = vand.u32 %v6244, 4294901760
  %v6246 = vsub.f32 %v6244, %v6245
  %v6247 = vand.u32 %v6246, 4294901760
  %6248 = vmatpush1.msra.mxu0 %v6247
  %6249 = vmatprep.subr.mxu0 0.0
  %v6250 = vand.u32 %v5202, 4294901760
  %v6251 = vsub.f32 %v5202, %v6250
  %v6252 = vand.u32 %v6251, 4294901760
  %v6253 = vsub.f32 %v6251, %v6252
  %v6254 = vand.u32 %v6253, 4294901760
  %6255 = vmatpush1.msra.mxu0 %v6254
  %6256 = vmatprep.subr.mxu0 0.0
  %v6257 = vand.u32 %v5203, 4294901760
  %v6258 = vsub.f32 %v5203, %v6257
  %v6259 = vand.u32 %v6258, 4294901760
  %v6260 = vsub.f32 %v6258, %v6259
  %v6261 = vand.u32 %v6260, 4294901760
  %6262 = vmatpush1.msra.mxu0 %v6261
  %6263 = vmatprep.subr.mxu0 0.0
  %v6264 = vand.u32 %v5204, 4294901760
  %v6265 = vsub.f32 %v5204, %v6264
  %v6266 = vand.u32 %v6265, 4294901760
  %v6267 = vsub.f32 %v6265, %v6266
  %v6268 = vand.u32 %v6267, 4294901760
  %6269 = vmatpush1.msra.mxu0 %v6268
  %6270 = vmatprep.subr.mxu0 0.0
  %v6271 = vand.u32 %v5205, 4294901760
  %v6272 = vsub.f32 %v5205, %v6271
  %v6273 = vand.u32 %v6272, 4294901760
  %v6274 = vsub.f32 %v6272, %v6273
  %v6275 = vand.u32 %v6274, 4294901760
  %6276 = vmatpush1.msra.mxu0 %v6275
  %6277 = vmatprep.subr.mxu0 0.0
  %v6278 = vand.u32 %v5206, 4294901760
  %v6279 = vsub.f32 %v5206, %v6278
  %v6280 = vand.u32 %v6279, 4294901760
  %v6281 = vsub.f32 %v6279, %v6280
  %v6282 = vand.u32 %v6281, 4294901760
  %6283 = vmatpush1.msra.mxu0 %v6282
  %6284 = vmatprep.subr.mxu0 0.0
  %v6285 = vand.u32 %v5207, 4294901760
  %v6286 = vsub.f32 %v5207, %v6285
  %v6287 = vand.u32 %v6286, 4294901760
  %v6288 = vsub.f32 %v6286, %v6287
  %v6289 = vand.u32 %v6288, 4294901760
  %6290 = vmatpush1.msra.mxu0 %v6289
  %6291 = vmatprep.subr.mxu0 0.0
  %v6292 = vand.u32 %v5208, 4294901760
  %v6293 = vsub.f32 %v5208, %v6292
  %v6294 = vand.u32 %v6293, 4294901760
  %v6295 = vsub.f32 %v6293, %v6294
  %v6296 = vand.u32 %v6295, 4294901760
  %6297 = vmatpush1.msra.mxu0 %v6296
  %6298 = vmatprep.subr.mxu0 0.0
  %v6299 = vand.u32 %v5209, 4294901760
  %v6300 = vsub.f32 %v5209, %v6299
  %v6301 = vand.u32 %v6300, 4294901760
  %v6302 = vsub.f32 %v6300, %v6301
  %v6303 = vand.u32 %v6302, 4294901760
  %6304 = vmatpush1.msra.mxu0 %v6303
  %6305 = vmatprep.subr.mxu0 0.0
  %v6306 = vand.u32 %v5210, 4294901760
  %v6307 = vsub.f32 %v5210, %v6306
  %v6308 = vand.u32 %v6307, 4294901760
  %v6309 = vsub.f32 %v6307, %v6308
  %v6310 = vand.u32 %v6309, 4294901760
  %6311 = vmatpush1.msra.mxu0 %v6310
  %6312 = vmatprep.subr.mxu0 0.0
  %v6313 = vand.u32 %v5211, 4294901760
  %v6314 = vsub.f32 %v5211, %v6313
  %v6315 = vand.u32 %v6314, 4294901760
  %v6316 = vsub.f32 %v6314, %v6315
  %v6317 = vand.u32 %v6316, 4294901760
  %6318 = vmatpush1.msra.mxu0 %v6317
  %6319 = vmatprep.subr.mxu0 0.0
  %v6320 = vand.u32 %v5212, 4294901760
  %v6321 = vsub.f32 %v5212, %v6320
  %v6322 = vand.u32 %v6321, 4294901760
  %v6323 = vsub.f32 %v6321, %v6322
  %v6324 = vand.u32 %v6323, 4294901760
  %6325 = vmatpush1.msra.mxu0 %v6324
  %6326 = vmatprep.subr.mxu0 0.0
  %v6327 = vand.u32 %v5213, 4294901760
  %v6328 = vsub.f32 %v5213, %v6327
  %v6329 = vand.u32 %v6328, 4294901760
  %v6330 = vsub.f32 %v6328, %v6329
  %v6331 = vand.u32 %v6330, 4294901760
  %6332 = vmatpush1.msra.mxu0 %v6331
  %6333 = vmatprep.subr.mxu0 0.0
  %v6334 = vand.u32 %v5214, 4294901760
  %v6335 = vsub.f32 %v5214, %v6334
  %v6336 = vand.u32 %v6335, 4294901760
  %v6337 = vsub.f32 %v6335, %v6336
  %v6338 = vand.u32 %v6337, 4294901760
  %6339 = vmatpush1.msra.mxu0 %v6338
  %6340 = vmatprep.subr.mxu0 0.0
  %v6341 = vand.u32 %v5215, 4294901760
  %v6342 = vsub.f32 %v5215, %v6341
  %v6343 = vand.u32 %v6342, 4294901760
  %v6344 = vsub.f32 %v6342, %v6343
  %v6345 = vand.u32 %v6344, 4294901760
  %6346 = vmatpush1.msra.mxu0 %v6345
  %6347 = vmatprep.subr.mxu0 0.0
  %v6348 = vand.u32 %v5216, 4294901760
  %v6349 = vsub.f32 %v5216, %v6348
  %v6350 = vand.u32 %v6349, 4294901760
  %v6351 = vsub.f32 %v6349, %v6350
  %v6352 = vand.u32 %v6351, 4294901760
  %6353 = vmatpush1.msra.mxu0 %v6352
  %6354 = vmatprep.subr.mxu0 0.0
  %v6355 = vand.u32 %v5217, 4294901760
  %v6356 = vsub.f32 %v5217, %v6355
  %v6357 = vand.u32 %v6356, 4294901760
  %v6358 = vsub.f32 %v6356, %v6357
  %v6359 = vand.u32 %v6358, 4294901760
  %6360 = vmatpush1.msra.mxu0 %v6359
  %6361 = vmatprep.subr.mxu0 0.0
  %v6362 = vand.u32 %v5218, 4294901760
  %v6363 = vsub.f32 %v5218, %v6362
  %v6364 = vand.u32 %v6363, 4294901760
  %v6365 = vsub.f32 %v6363, %v6364
  %v6366 = vand.u32 %v6365, 4294901760
  %6367 = vmatpush1.msra.mxu0 %v6366
  %6368 = vmatprep.subr.mxu0 0.0
  %v6369 = vand.u32 %v5219, 4294901760
  %v6370 = vsub.f32 %v5219, %v6369
  %v6371 = vand.u32 %v6370, 4294901760
  %v6372 = vsub.f32 %v6370, %v6371
  %v6373 = vand.u32 %v6372, 4294901760
  %6374 = vmatpush1.msra.mxu0 %v6373
  %6375 = vmatprep.subr.mxu0 0.0
  %v6376 = vand.u32 %v5220, 4294901760
  %v6377 = vsub.f32 %v5220, %v6376
  %v6378 = vand.u32 %v6377, 4294901760
  %v6379 = vsub.f32 %v6377, %v6378
  %v6380 = vand.u32 %v6379, 4294901760
  %6381 = vmatpush1.msra.mxu0 %v6380
  %6382 = vmatprep.subr.mxu0 0.0
  %v6383 = vand.u32 %v5221, 4294901760
  %v6384 = vsub.f32 %v5221, %v6383
  %v6385 = vand.u32 %v6384, 4294901760
  %v6386 = vsub.f32 %v6384, %v6385
  %v6387 = vand.u32 %v6386, 4294901760
  %6388 = vmatpush1.msra.mxu0 %v6387
  %6389 = vmatprep.subr.mxu0 0.0
  %v6390 = vand.u32 %v5222, 4294901760
  %v6391 = vsub.f32 %v5222, %v6390
  %v6392 = vand.u32 %v6391, 4294901760
  %v6393 = vsub.f32 %v6391, %v6392
  %v6394 = vand.u32 %v6393, 4294901760
  %6395 = vmatpush1.msra.mxu0 %v6394
  %6396 = vmatprep.subr.mxu0 0.0
  %v6397 = vand.u32 %v5223, 4294901760
  %v6398 = vsub.f32 %v5223, %v6397
  %v6399 = vand.u32 %v6398, 4294901760
  %v6400 = vsub.f32 %v6398, %v6399
  %v6401 = vand.u32 %v6400, 4294901760
  %6402 = vmatpush1.msra.mxu0 %v6401
  %6403 = vmatprep.subr.mxu0 0.0
  %v6404 = vand.u32 %v5224, 4294901760
  %v6405 = vsub.f32 %v5224, %v6404
  %v6406 = vand.u32 %v6405, 4294901760
  %v6407 = vsub.f32 %v6405, %v6406
  %v6408 = vand.u32 %v6407, 4294901760
  %6409 = vmatpush1.msra.mxu0 %v6408
  %6410 = vmatprep.subr.mxu0 0.0
  %v6411 = vand.u32 %v5225, 4294901760
  %v6412 = vsub.f32 %v5225, %v6411
  %v6413 = vand.u32 %v6412, 4294901760
  %v6414 = vsub.f32 %v6412, %v6413
  %v6415 = vand.u32 %v6414, 4294901760
  %6416 = vmatpush1.msra.mxu0 %v6415
  %6417 = vmatprep.subr.mxu0 0.0
  %v6418 = vand.u32 %v5226, 4294901760
  %v6419 = vsub.f32 %v5226, %v6418
  %v6420 = vand.u32 %v6419, 4294901760
  %v6421 = vsub.f32 %v6419, %v6420
  %v6422 = vand.u32 %v6421, 4294901760
  %6423 = vmatpush1.msra.mxu0 %v6422
  %6424 = vmatprep.subr.mxu0 0.0
  %v6425 = vand.u32 %v5227, 4294901760
  %v6426 = vsub.f32 %v5227, %v6425
  %v6427 = vand.u32 %v6426, 4294901760
  %v6428 = vsub.f32 %v6426, %v6427
  %v6429 = vand.u32 %v6428, 4294901760
  %6430 = vmatpush1.msra.mxu0 %v6429
  %6431 = vmatprep.subr.mxu0 0.0
  %v6432 = vand.u32 %v5228, 4294901760
  %v6433 = vsub.f32 %v5228, %v6432
  %v6434 = vand.u32 %v6433, 4294901760
  %v6435 = vsub.f32 %v6433, %v6434
  %v6436 = vand.u32 %v6435, 4294901760
  %6437 = vmatpush1.msra.mxu0 %v6436
  %6438 = vmatprep.subr.mxu0 0.0
  %v6439 = vand.u32 %v5229, 4294901760
  %v6440 = vsub.f32 %v5229, %v6439
  %v6441 = vand.u32 %v6440, 4294901760
  %v6442 = vsub.f32 %v6440, %v6441
  %v6443 = vand.u32 %v6442, 4294901760
  %6444 = vmatpush1.msra.mxu0 %v6443
  %v6445 = vand.u32 %v5162, 4294901760
  %6446 = vmatprep.mubr.f32.mxu0 %v6445
  %v6447 = vand.u32 %v5159, 4294901760
  %6448 = vmatmul.mubr.f32.gmra.mrb[0].mxu0 %v6447
  %v6449 = vpop.f32.mrb[0].mxu0
  %v6450 = vadd.f32 %v6218, %v6449
  %v6451 = vpop.f32.mrb[0].mxu0
  %6452 = vdwg.mxu0
  %6453 = vmatprep.subr.mxu0 0.0
  %v6454 = vand.u32 %v5198, 4294901760
  %v6455 = vsub.f32 %v5198, %v6454
  %6456 = vmatpush1.msra.mxu0 %v6455
  %6457 = vmatprep.subr.mxu0 0.0
  %v6458 = vand.u32 %v5199, 4294901760
  %v6459 = vsub.f32 %v5199, %v6458
  %6460 = vmatpush1.msra.mxu0 %v6459
  %6461 = vmatprep.subr.mxu0 0.0
  %v6462 = vand.u32 %v5200, 4294901760
  %v6463 = vsub.f32 %v5200, %v6462
  %6464 = vmatpush1.msra.mxu0 %v6463
  %6465 = vmatprep.subr.mxu0 0.0
  %v6466 = vand.u32 %v5201, 4294901760
  %v6467 = vsub.f32 %v5201, %v6466
  %6468 = vmatpush1.msra.mxu0 %v6467
  %6469 = vmatprep.subr.mxu0 0.0
  %v6470 = vand.u32 %v5202, 4294901760
  %v6471 = vsub.f32 %v5202, %v6470
  %6472 = vmatpush1.msra.mxu0 %v6471
  %6473 = vmatprep.subr.mxu0 0.0
  %v6474 = vand.u32 %v5203, 4294901760
  %v6475 = vsub.f32 %v5203, %v6474
  %6476 = vmatpush1.msra.mxu0 %v6475
  %6477 = vmatprep.subr.mxu0 0.0
  %v6478 = vand.u32 %v5204, 4294901760
  %v6479 = vsub.f32 %v5204, %v6478
  %6480 = vmatpush1.msra.mxu0 %v6479
  %6481 = vmatprep.subr.mxu0 0.0
  %v6482 = vand.u32 %v5205, 4294901760
  %v6483 = vsub.f32 %v5205, %v6482
  %6484 = vmatpush1.msra.mxu0 %v6483
  %6485 = vmatprep.subr.mxu0 0.0
  %v6486 = vand.u32 %v5206, 4294901760
  %v6487 = vsub.f32 %v5206, %v6486
  %6488 = vmatpush1.msra.mxu0 %v6487
  %6489 = vmatprep.subr.mxu0 0.0
  %v6490 = vand.u32 %v5207, 4294901760
  %v6491 = vsub.f32 %v5207, %v6490
  %6492 = vmatpush1.msra.mxu0 %v6491
  %6493 = vmatprep.subr.mxu0 0.0
  %v6494 = vand.u32 %v5208, 4294901760
  %v6495 = vsub.f32 %v5208, %v6494
  %6496 = vmatpush1.msra.mxu0 %v6495
  %6497 = vmatprep.subr.mxu0 0.0
  %v6498 = vand.u32 %v5209, 4294901760
  %v6499 = vsub.f32 %v5209, %v6498
  %6500 = vmatpush1.msra.mxu0 %v6499
  %6501 = vmatprep.subr.mxu0 0.0
  %v6502 = vand.u32 %v5210, 4294901760
  %v6503 = vsub.f32 %v5210, %v6502
  %6504 = vmatpush1.msra.mxu0 %v6503
  %6505 = vmatprep.subr.mxu0 0.0
  %v6506 = vand.u32 %v5211, 4294901760
  %v6507 = vsub.f32 %v5211, %v6506
  %6508 = vmatpush1.msra.mxu0 %v6507
  %6509 = vmatprep.subr.mxu0 0.0
  %v6510 = vand.u32 %v5212, 4294901760
  %v6511 = vsub.f32 %v5212, %v6510
  %6512 = vmatpush1.msra.mxu0 %v6511
  %6513 = vmatprep.subr.mxu0 0.0
  %v6514 = vand.u32 %v5213, 4294901760
  %v6515 = vsub.f32 %v5213, %v6514
  %6516 = vmatpush1.msra.mxu0 %v6515
  %6517 = vmatprep.subr.mxu0 0.0
  %v6518 = vand.u32 %v5214, 4294901760
  %v6519 = vsub.f32 %v5214, %v6518
  %6520 = vmatpush1.msra.mxu0 %v6519
  %6521 = vmatprep.subr.mxu0 0.0
  %v6522 = vand.u32 %v5215, 4294901760
  %v6523 = vsub.f32 %v5215, %v6522
  %6524 = vmatpush1.msra.mxu0 %v6523
  %6525 = vmatprep.subr.mxu0 0.0
  %v6526 = vand.u32 %v5216, 4294901760
  %v6527 = vsub.f32 %v5216, %v6526
  %6528 = vmatpush1.msra.mxu0 %v6527
  %6529 = vmatprep.subr.mxu0 0.0
  %v6530 = vand.u32 %v5217, 4294901760
  %v6531 = vsub.f32 %v5217, %v6530
  %6532 = vmatpush1.msra.mxu0 %v6531
  %6533 = vmatprep.subr.mxu0 0.0
  %v6534 = vand.u32 %v5218, 4294901760
  %v6535 = vsub.f32 %v5218, %v6534
  %6536 = vmatpush1.msra.mxu0 %v6535
  %6537 = vmatprep.subr.mxu0 0.0
  %v6538 = vand.u32 %v5219, 4294901760
  %v6539 = vsub.f32 %v5219, %v6538
  %6540 = vmatpush1.msra.mxu0 %v6539
  %6541 = vmatprep.subr.mxu0 0.0
  %v6542 = vand.u32 %v5220, 4294901760
  %v6543 = vsub.f32 %v5220, %v6542
  %6544 = vmatpush1.msra.mxu0 %v6543
  %6545 = vmatprep.subr.mxu0 0.0
  %v6546 = vand.u32 %v5221, 4294901760
  %v6547 = vsub.f32 %v5221, %v6546
  %6548 = vmatpush1.msra.mxu0 %v6547
  %6549 = vmatprep.subr.mxu0 0.0
  %v6550 = vand.u32 %v5222, 4294901760
  %v6551 = vsub.f32 %v5222, %v6550
  %6552 = vmatpush1.msra.mxu0 %v6551
  %6553 = vmatprep.subr.mxu0 0.0
  %v6554 = vand.u32 %v5223, 4294901760
  %v6555 = vsub.f32 %v5223, %v6554
  %6556 = vmatpush1.msra.mxu0 %v6555
  %6557 = vmatprep.subr.mxu0 0.0
  %v6558 = vand.u32 %v5224, 4294901760
  %v6559 = vsub.f32 %v5224, %v6558
  %6560 = vmatpush1.msra.mxu0 %v6559
  %6561 = vmatprep.subr.mxu0 0.0
  %v6562 = vand.u32 %v5225, 4294901760
  %v6563 = vsub.f32 %v5225, %v6562
  %6564 = vmatpush1.msra.mxu0 %v6563
  %6565 = vmatprep.subr.mxu0 0.0
  %v6566 = vand.u32 %v5226, 4294901760
  %v6567 = vsub.f32 %v5226, %v6566
  %6568 = vmatpush1.msra.mxu0 %v6567
  %6569 = vmatprep.subr.mxu0 0.0
  %v6570 = vand.u32 %v5227, 4294901760
  %v6571 = vsub.f32 %v5227, %v6570
  %6572 = vmatpush1.msra.mxu0 %v6571
  %6573 = vmatprep.subr.mxu0 0.0
  %v6574 = vand.u32 %v5228, 4294901760
  %v6575 = vsub.f32 %v5228, %v6574
  %6576 = vmatpush1.msra.mxu0 %v6575
  %6577 = vmatprep.subr.mxu0 0.0
  %v6578 = vand.u32 %v5229, 4294901760
  %v6579 = vsub.f32 %v5229, %v6578
  %6580 = vmatpush1.msra.mxu0 %v6579
  %v6581 = vand.u32 %v5162, 4294901760
  %v6582 = vsub.f32 %v5162, %v6581
  %6583 = vmatprep.mubr.f32.mxu0 %v6582
  %v6584 = vand.u32 %v5159, 4294901760
  %v6585 = vsub.f32 %v5159, %v6584
  %6586 = vmatmul.mubr.f32.gmra.mrb[0].mxu0 %v6585
  %v6587 = vpop.f32.mrb[0].mxu0
  %v6588 = vadd.f32 %v6450, %v6587
  %v6589 = vpop.f32.mrb[0].mxu0
  %6590 = vdwg.mxu0
  %6591 = vmatprep.subr.mxu0 0.0
  %v6592 = vand.u32 %v5198, 4294901760
  %6593 = vmatpush1.msra.mxu0 %v6592
  %6594 = vmatprep.subr.mxu0 0.0
  %v6595 = vand.u32 %v5199, 4294901760
  %6596 = vmatpush1.msra.mxu0 %v6595
  %6597 = vmatprep.subr.mxu0 0.0
  %v6598 = vand.u32 %v5200, 4294901760
  %6599 = vmatpush1.msra.mxu0 %v6598
  %6600 = vmatprep.subr.mxu0 0.0
  %v6601 = vand.u32 %v5201, 4294901760
  %6602 = vmatpush1.msra.mxu0 %v6601
  %6603 = vmatprep.subr.mxu0 0.0
  %v6604 = vand.u32 %v5202, 4294901760
  %6605 = vmatpush1.msra.mxu0 %v6604
  %6606 = vmatprep.subr.mxu0 0.0
  %v6607 = vand.u32 %v5203, 4294901760
  %6608 = vmatpush1.msra.mxu0 %v6607
  %6609 = vmatprep.subr.mxu0 0.0
  %v6610 = vand.u32 %v5204, 4294901760
  %6611 = vmatpush1.msra.mxu0 %v6610
  %6612 = vmatprep.subr.mxu0 0.0
  %v6613 = vand.u32 %v5205, 4294901760
  %6614 = vmatpush1.msra.mxu0 %v6613
  %6615 = vmatprep.subr.mxu0 0.0
  %v6616 = vand.u32 %v5206, 4294901760
  %6617 = vmatpush1.msra.mxu0 %v6616
  %6618 = vmatprep.subr.mxu0 0.0
  %v6619 = vand.u32 %v5207, 4294901760
  %6620 = vmatpush1.msra.mxu0 %v6619
  %6621 = vmatprep.subr.mxu0 0.0
  %v6622 = vand.u32 %v5208, 4294901760
  %6623 = vmatpush1.msra.mxu0 %v6622
  %6624 = vmatprep.subr.mxu0 0.0
  %v6625 = vand.u32 %v5209, 4294901760
  %6626 = vmatpush1.msra.mxu0 %v6625
  %6627 = vmatprep.subr.mxu0 0.0
  %v6628 = vand.u32 %v5210, 4294901760
  %6629 = vmatpush1.msra.mxu0 %v6628
  %6630 = vmatprep.subr.mxu0 0.0
  %v6631 = vand.u32 %v5211, 4294901760
  %6632 = vmatpush1.msra.mxu0 %v6631
  %6633 = vmatprep.subr.mxu0 0.0
  %v6634 = vand.u32 %v5212, 4294901760
  %6635 = vmatpush1.msra.mxu0 %v6634
  %6636 = vmatprep.subr.mxu0 0.0
  %v6637 = vand.u32 %v5213, 4294901760
  %6638 = vmatpush1.msra.mxu0 %v6637
  %6639 = vmatprep.subr.mxu0 0.0
  %v6640 = vand.u32 %v5214, 4294901760
  %6641 = vmatpush1.msra.mxu0 %v6640
  %6642 = vmatprep.subr.mxu0 0.0
  %v6643 = vand.u32 %v5215, 4294901760
  %6644 = vmatpush1.msra.mxu0 %v6643
  %6645 = vmatprep.subr.mxu0 0.0
  %v6646 = vand.u32 %v5216, 4294901760
  %6647 = vmatpush1.msra.mxu0 %v6646
  %6648 = vmatprep.subr.mxu0 0.0
  %v6649 = vand.u32 %v5217, 4294901760
  %6650 = vmatpush1.msra.mxu0 %v6649
  %6651 = vmatprep.subr.mxu0 0.0
  %v6652 = vand.u32 %v5218, 4294901760
  %6653 = vmatpush1.msra.mxu0 %v6652
  %6654 = vmatprep.subr.mxu0 0.0
  %v6655 = vand.u32 %v5219, 4294901760
  %6656 = vmatpush1.msra.mxu0 %v6655
  %6657 = vmatprep.subr.mxu0 0.0
  %v6658 = vand.u32 %v5220, 4294901760
  %6659 = vmatpush1.msra.mxu0 %v6658
  %6660 = vmatprep.subr.mxu0 0.0
  %v6661 = vand.u32 %v5221, 4294901760
  %6662 = vmatpush1.msra.mxu0 %v6661
  %6663 = vmatprep.subr.mxu0 0.0
  %v6664 = vand.u32 %v5222, 4294901760
  %6665 = vmatpush1.msra.mxu0 %v6664
  %6666 = vmatprep.subr.mxu0 0.0
  %v6667 = vand.u32 %v5223, 4294901760
  %6668 = vmatpush1.msra.mxu0 %v6667
  %6669 = vmatprep.subr.mxu0 0.0
  %v6670 = vand.u32 %v5224, 4294901760
  %6671 = vmatpush1.msra.mxu0 %v6670
  %6672 = vmatprep.subr.mxu0 0.0
  %v6673 = vand.u32 %v5225, 4294901760
  %6674 = vmatpush1.msra.mxu0 %v6673
  %6675 = vmatprep.subr.mxu0 0.0
  %v6676 = vand.u32 %v5226, 4294901760
  %6677 = vmatpush1.msra.mxu0 %v6676
  %6678 = vmatprep.subr.mxu0 0.0
  %v6679 = vand.u32 %v5227, 4294901760
  %6680 = vmatpush1.msra.mxu0 %v6679
  %6681 = vmatprep.subr.mxu0 0.0
  %v6682 = vand.u32 %v5228, 4294901760
  %6683 = vmatpush1.msra.mxu0 %v6682
  %6684 = vmatprep.subr.mxu0 0.0
  %v6685 = vand.u32 %v5229, 4294901760
  %6686 = vmatpush1.msra.mxu0 %v6685
  %v6687 = vand.u32 %v5162, 4294901760
  %v6688 = vsub.f32 %v5162, %v6687
  %v6689 = vand.u32 %v6688, 4294901760
  %6690 = vmatprep.mubr.f32.mxu0 %v6689
  %v6691 = vand.u32 %v5159, 4294901760
  %v6692 = vsub.f32 %v5159, %v6691
  %v6693 = vand.u32 %v6692, 4294901760
  %6694 = vmatmul.mubr.f32.gmra.mrb[0].mxu0 %v6693
  %v6695 = vpop.f32.mrb[0].mxu0
  %v6696 = vadd.f32 %v6588, %v6695
  %v6697 = vpop.f32.mrb[0].mxu0
  %6698 = vdwg.mxu0
  %6699 = vmatprep.subr.mxu0 0.0
  %v6700 = vand.u32 %v5198, 4294901760
  %v6701 = vsub.f32 %v5198, %v6700
  %v6702 = vand.u32 %v6701, 4294901760
  %6703 = vmatpush1.msra.mxu0 %v6702
  %6704 = vmatprep.subr.mxu0 0.0
  %v6705 = vand.u32 %v5199, 4294901760
  %v6706 = vsub.f32 %v5199, %v6705
  %v6707 = vand.u32 %v6706, 4294901760
  %6708 = vmatpush1.msra.mxu0 %v6707
  %6709 = vmatprep.subr.mxu0 0.0
  %v6710 = vand.u32 %v5200, 4294901760
  %v6711 = vsub.f32 %v5200, %v6710
  %v6712 = vand.u32 %v6711, 4294901760
  %6713 = vmatpush1.msra.mxu0 %v6712
  %6714 = vmatprep.subr.mxu0 0.0
  %v6715 = vand.u32 %v5201, 4294901760
  %v6716 = vsub.f32 %v5201, %v6715
  %v6717 = vand.u32 %v6716, 4294901760
  %6718 = vmatpush1.msra.mxu0 %v6717
  %6719 = vmatprep.subr.mxu0 0.0
  %v6720 = vand.u32 %v5202, 4294901760
  %v6721 = vsub.f32 %v5202, %v6720
  %v6722 = vand.u32 %v6721, 4294901760
  %6723 = vmatpush1.msra.mxu0 %v6722
  %6724 = vmatprep.subr.mxu0 0.0
  %v6725 = vand.u32 %v5203, 4294901760
  %v6726 = vsub.f32 %v5203, %v6725
  %v6727 = vand.u32 %v6726, 4294901760
  %6728 = vmatpush1.msra.mxu0 %v6727
  %6729 = vmatprep.subr.mxu0 0.0
  %v6730 = vand.u32 %v5204, 4294901760
  %v6731 = vsub.f32 %v5204, %v6730
  %v6732 = vand.u32 %v6731, 4294901760
  %6733 = vmatpush1.msra.mxu0 %v6732
  %6734 = vmatprep.subr.mxu0 0.0
  %v6735 = vand.u32 %v5205, 4294901760
  %v6736 = vsub.f32 %v5205, %v6735
  %v6737 = vand.u32 %v6736, 4294901760
  %6738 = vmatpush1.msra.mxu0 %v6737
  %6739 = vmatprep.subr.mxu0 0.0
  %v6740 = vand.u32 %v5206, 4294901760
  %v6741 = vsub.f32 %v5206, %v6740
  %v6742 = vand.u32 %v6741, 4294901760
  %6743 = vmatpush1.msra.mxu0 %v6742
  %6744 = vmatprep.subr.mxu0 0.0
  %v6745 = vand.u32 %v5207, 4294901760
  %v6746 = vsub.f32 %v5207, %v6745
  %v6747 = vand.u32 %v6746, 4294901760
  %6748 = vmatpush1.msra.mxu0 %v6747
  %6749 = vmatprep.subr.mxu0 0.0
  %v6750 = vand.u32 %v5208, 4294901760
  %v6751 = vsub.f32 %v5208, %v6750
  %v6752 = vand.u32 %v6751, 4294901760
  %6753 = vmatpush1.msra.mxu0 %v6752
  %6754 = vmatprep.subr.mxu0 0.0
  %v6755 = vand.u32 %v5209, 4294901760
  %v6756 = vsub.f32 %v5209, %v6755
  %v6757 = vand.u32 %v6756, 4294901760
  %6758 = vmatpush1.msra.mxu0 %v6757
  %6759 = vmatprep.subr.mxu0 0.0
  %v6760 = vand.u32 %v5210, 4294901760
  %v6761 = vsub.f32 %v5210, %v6760
  %v6762 = vand.u32 %v6761, 4294901760
  %6763 = vmatpush1.msra.mxu0 %v6762
  %6764 = vmatprep.subr.mxu0 0.0
  %v6765 = vand.u32 %v5211, 4294901760
  %v6766 = vsub.f32 %v5211, %v6765
  %v6767 = vand.u32 %v6766, 4294901760
  %6768 = vmatpush1.msra.mxu0 %v6767
  %6769 = vmatprep.subr.mxu0 0.0
  %v6770 = vand.u32 %v5212, 4294901760
  %v6771 = vsub.f32 %v5212, %v6770
  %v6772 = vand.u32 %v6771, 4294901760
  %6773 = vmatpush1.msra.mxu0 %v6772
  %6774 = vmatprep.subr.mxu0 0.0
  %v6775 = vand.u32 %v5213, 4294901760
  %v6776 = vsub.f32 %v5213, %v6775
  %v6777 = vand.u32 %v6776, 4294901760
  %6778 = vmatpush1.msra.mxu0 %v6777
  %6779 = vmatprep.subr.mxu0 0.0
  %v6780 = vand.u32 %v5214, 4294901760
  %v6781 = vsub.f32 %v5214, %v6780
  %v6782 = vand.u32 %v6781, 4294901760
  %6783 = vmatpush1.msra.mxu0 %v6782
  %6784 = vmatprep.subr.mxu0 0.0
  %v6785 = vand.u32 %v5215, 4294901760
  %v6786 = vsub.f32 %v5215, %v6785
  %v6787 = vand.u32 %v6786, 4294901760
  %6788 = vmatpush1.msra.mxu0 %v6787
  %6789 = vmatprep.subr.mxu0 0.0
  %v6790 = vand.u32 %v5216, 4294901760
  %v6791 = vsub.f32 %v5216, %v6790
  %v6792 = vand.u32 %v6791, 4294901760
  %6793 = vmatpush1.msra.mxu0 %v6792
  %6794 = vmatprep.subr.mxu0 0.0
  %v6795 = vand.u32 %v5217, 4294901760
  %v6796 = vsub.f32 %v5217, %v6795
  %v6797 = vand.u32 %v6796, 4294901760
  %6798 = vmatpush1.msra.mxu0 %v6797
  %6799 = vmatprep.subr.mxu0 0.0
  %v6800 = vand.u32 %v5218, 4294901760
  %v6801 = vsub.f32 %v5218, %v6800
  %v6802 = vand.u32 %v6801, 4294901760
  %6803 = vmatpush1.msra.mxu0 %v6802
  %6804 = vmatprep.subr.mxu0 0.0
  %v6805 = vand.u32 %v5219, 4294901760
  %v6806 = vsub.f32 %v5219, %v6805
  %v6807 = vand.u32 %v6806, 4294901760
  %6808 = vmatpush1.msra.mxu0 %v6807
  %6809 = vmatprep.subr.mxu0 0.0
  %v6810 = vand.u32 %v5220, 4294901760
  %v6811 = vsub.f32 %v5220, %v6810
  %v6812 = vand.u32 %v6811, 4294901760
  %6813 = vmatpush1.msra.mxu0 %v6812
  %6814 = vmatprep.subr.mxu0 0.0
  %v6815 = vand.u32 %v5221, 4294901760
  %v6816 = vsub.f32 %v5221, %v6815
  %v6817 = vand.u32 %v6816, 4294901760
  %6818 = vmatpush1.msra.mxu0 %v6817
  %6819 = vmatprep.subr.mxu0 0.0
  %v6820 = vand.u32 %v5222, 4294901760
  %v6821 = vsub.f32 %v5222, %v6820
  %v6822 = vand.u32 %v6821, 4294901760
  %6823 = vmatpush1.msra.mxu0 %v6822
  %6824 = vmatprep.subr.mxu0 0.0
  %v6825 = vand.u32 %v5223, 4294901760
  %v6826 = vsub.f32 %v5223, %v6825
  %v6827 = vand.u32 %v6826, 4294901760
  %6828 = vmatpush1.msra.mxu0 %v6827
  %6829 = vmatprep.subr.mxu0 0.0
  %v6830 = vand.u32 %v5224, 4294901760
  %v6831 = vsub.f32 %v5224, %v6830
  %v6832 = vand.u32 %v6831, 4294901760
  %6833 = vmatpush1.msra.mxu0 %v6832
  %6834 = vmatprep.subr.mxu0 0.0
  %v6835 = vand.u32 %v5225, 4294901760
  %v6836 = vsub.f32 %v5225, %v6835
  %v6837 = vand.u32 %v6836, 4294901760
  %6838 = vmatpush1.msra.mxu0 %v6837
  %6839 = vmatprep.subr.mxu0 0.0
  %v6840 = vand.u32 %v5226, 4294901760
  %v6841 = vsub.f32 %v5226, %v6840
  %v6842 = vand.u32 %v6841, 4294901760
  %6843 = vmatpush1.msra.mxu0 %v6842
  %6844 = vmatprep.subr.mxu0 0.0
  %v6845 = vand.u32 %v5227, 4294901760
  %v6846 = vsub.f32 %v5227, %v6845
  %v6847 = vand.u32 %v6846, 4294901760
  %6848 = vmatpush1.msra.mxu0 %v6847
  %6849 = vmatprep.subr.mxu0 0.0
  %v6850 = vand.u32 %v5228, 4294901760
  %v6851 = vsub.f32 %v5228, %v6850
  %v6852 = vand.u32 %v6851, 4294901760
  %6853 = vmatpush1.msra.mxu0 %v6852
  %6854 = vmatprep.subr.mxu0 0.0
  %v6855 = vand.u32 %v5229, 4294901760
  %v6856 = vsub.f32 %v5229, %v6855
  %v6857 = vand.u32 %v6856, 4294901760
  %6858 = vmatpush1.msra.mxu0 %v6857
  %v6859 = vand.u32 %v5162, 4294901760
  %6860 = vmatprep.mubr.f32.mxu0 %v6859
  %v6861 = vand.u32 %v5159, 4294901760
  %6862 = vmatmul.mubr.f32.gmra.mrb[0].mxu0 %v6861
  %v6863 = vpop.f32.mrb[0].mxu0
  %v6864 = vadd.f32 %v6696, %v6863
  %v6865 = vpop.f32.mrb[0].mxu0
  %6866 = vdwg.mxu0
  %6867 = vmatprep.subr.mxu0 0.0
  %v6868 = vand.u32 %v5198, 4294901760
  %6869 = vmatpush1.msra.mxu0 %v6868
  %6870 = vmatprep.subr.mxu0 0.0
  %v6871 = vand.u32 %v5199, 4294901760
  %6872 = vmatpush1.msra.mxu0 %v6871
  %6873 = vmatprep.subr.mxu0 0.0
  %v6874 = vand.u32 %v5200, 4294901760
  %6875 = vmatpush1.msra.mxu0 %v6874
  %6876 = vmatprep.subr.mxu0 0.0
  %v6877 = vand.u32 %v5201, 4294901760
  %6878 = vmatpush1.msra.mxu0 %v6877
  %6879 = vmatprep.subr.mxu0 0.0
  %v6880 = vand.u32 %v5202, 4294901760
  %6881 = vmatpush1.msra.mxu0 %v6880
  %6882 = vmatprep.subr.mxu0 0.0
  %v6883 = vand.u32 %v5203, 4294901760
  %6884 = vmatpush1.msra.mxu0 %v6883
  %6885 = vmatprep.subr.mxu0 0.0
  %v6886 = vand.u32 %v5204, 4294901760
  %6887 = vmatpush1.msra.mxu0 %v6886
  %6888 = vmatprep.subr.mxu0 0.0
  %v6889 = vand.u32 %v5205, 4294901760
  %6890 = vmatpush1.msra.mxu0 %v6889
  %6891 = vmatprep.subr.mxu0 0.0
  %v6892 = vand.u32 %v5206, 4294901760
  %6893 = vmatpush1.msra.mxu0 %v6892
  %6894 = vmatprep.subr.mxu0 0.0
  %v6895 = vand.u32 %v5207, 4294901760
  %6896 = vmatpush1.msra.mxu0 %v6895
  %6897 = vmatprep.subr.mxu0 0.0
  %v6898 = vand.u32 %v5208, 4294901760
  %6899 = vmatpush1.msra.mxu0 %v6898
  %6900 = vmatprep.subr.mxu0 0.0
  %v6901 = vand.u32 %v5209, 4294901760
  %6902 = vmatpush1.msra.mxu0 %v6901
  %6903 = vmatprep.subr.mxu0 0.0
  %v6904 = vand.u32 %v5210, 4294901760
  %6905 = vmatpush1.msra.mxu0 %v6904
  %6906 = vmatprep.subr.mxu0 0.0
  %v6907 = vand.u32 %v5211, 4294901760
  %6908 = vmatpush1.msra.mxu0 %v6907
  %6909 = vmatprep.subr.mxu0 0.0
  %v6910 = vand.u32 %v5212, 4294901760
  %6911 = vmatpush1.msra.mxu0 %v6910
  %6912 = vmatprep.subr.mxu0 0.0
  %v6913 = vand.u32 %v5213, 4294901760
  %6914 = vmatpush1.msra.mxu0 %v6913
  %6915 = vmatprep.subr.mxu0 0.0
  %v6916 = vand.u32 %v5214, 4294901760
  %6917 = vmatpush1.msra.mxu0 %v6916
  %6918 = vmatprep.subr.mxu0 0.0
  %v6919 = vand.u32 %v5215, 4294901760
  %6920 = vmatpush1.msra.mxu0 %v6919
  %6921 = vmatprep.subr.mxu0 0.0
  %v6922 = vand.u32 %v5216, 4294901760
  %6923 = vmatpush1.msra.mxu0 %v6922
  %6924 = vmatprep.subr.mxu0 0.0
  %v6925 = vand.u32 %v5217, 4294901760
  %6926 = vmatpush1.msra.mxu0 %v6925
  %6927 = vmatprep.subr.mxu0 0.0
  %v6928 = vand.u32 %v5218, 4294901760
  %6929 = vmatpush1.msra.mxu0 %v6928
  %6930 = vmatprep.subr.mxu0 0.0
  %v6931 = vand.u32 %v5219, 4294901760
  %6932 = vmatpush1.msra.mxu0 %v6931
  %6933 = vmatprep.subr.mxu0 0.0
  %v6934 = vand.u32 %v5220, 4294901760
  %6935 = vmatpush1.msra.mxu0 %v6934
  %6936 = vmatprep.subr.mxu0 0.0
  %v6937 = vand.u32 %v5221, 4294901760
  %6938 = vmatpush1.msra.mxu0 %v6937
  %6939 = vmatprep.subr.mxu0 0.0
  %v6940 = vand.u32 %v5222, 4294901760
  %6941 = vmatpush1.msra.mxu0 %v6940
  %6942 = vmatprep.subr.mxu0 0.0
  %v6943 = vand.u32 %v5223, 4294901760
  %6944 = vmatpush1.msra.mxu0 %v6943
  %6945 = vmatprep.subr.mxu0 0.0
  %v6946 = vand.u32 %v5224, 4294901760
  %6947 = vmatpush1.msra.mxu0 %v6946
  %6948 = vmatprep.subr.mxu0 0.0
  %v6949 = vand.u32 %v5225, 4294901760
  %6950 = vmatpush1.msra.mxu0 %v6949
  %6951 = vmatprep.subr.mxu0 0.0
  %v6952 = vand.u32 %v5226, 4294901760
  %6953 = vmatpush1.msra.mxu0 %v6952
  %6954 = vmatprep.subr.mxu0 0.0
  %v6955 = vand.u32 %v5227, 4294901760
  %6956 = vmatpush1.msra.mxu0 %v6955
  %6957 = vmatprep.subr.mxu0 0.0
  %v6958 = vand.u32 %v5228, 4294901760
  %6959 = vmatpush1.msra.mxu0 %v6958
  %6960 = vmatprep.subr.mxu0 0.0
  %v6961 = vand.u32 %v5229, 4294901760
  %6962 = vmatpush1.msra.mxu0 %v6961
  %v6963 = vand.u32 %v5162, 4294901760
  %6964 = vmatprep.mubr.f32.mxu0 %v6963
  %v6965 = vand.u32 %v5159, 4294901760
  %6966 = vmatmul.mubr.f32.gmra.mrb[0].mxu0 %v6965
  %v6967 = vpop.f32.mrb[0].mxu0
  %v6968 = vadd.f32 %v6864, %v6967
  %v6969 = vpop.f32.mrb[0].mxu0
  %6970 = vdwg.mxu0
  %6971 = vmatprep.subr.mxu0 0.0
  %v6972 = vand.u32 %v5230, 4294901760
  %6973 = vmatpush1.msra.mxu0 %v6972
  %6974 = vmatprep.subr.mxu0 0.0
  %v6975 = vand.u32 %v5231, 4294901760
  %6976 = vmatpush1.msra.mxu0 %v6975
  %6977 = vmatprep.subr.mxu0 0.0
  %v6978 = vand.u32 %v5232, 4294901760
  %6979 = vmatpush1.msra.mxu0 %v6978
  %6980 = vmatprep.subr.mxu0 0.0
  %v6981 = vand.u32 %v5233, 4294901760
  %6982 = vmatpush1.msra.mxu0 %v6981
  %6983 = vmatprep.subr.mxu0 0.0
  %v6984 = vand.u32 %v5234, 4294901760
  %6985 = vmatpush1.msra.mxu0 %v6984
  %6986 = vmatprep.subr.mxu0 0.0
  %v6987 = vand.u32 %v5235, 4294901760
  %6988 = vmatpush1.msra.mxu0 %v6987
  %6989 = vmatprep.subr.mxu0 0.0
  %v6990 = vand.u32 %v5236, 4294901760
  %6991 = vmatpush1.msra.mxu0 %v6990
  %6992 = vmatprep.subr.mxu0 0.0
  %v6993 = vand.u32 %v5237, 4294901760
  %6994 = vmatpush1.msra.mxu0 %v6993
  %6995 = vmatprep.subr.mxu0 0.0
  %6996 = vmatpush1.msra.mxu0 0.0
  %6997 = vmatprep.subr.mxu0 0.0
  %6998 = vmatpush1.msra.mxu0 0.0
  %6999 = vmatprep.subr.mxu0 0.0
  %7000 = vmatpush1.msra.mxu0 0.0
  %7001 = vmatprep.subr.mxu0 0.0
  %7002 = vmatpush1.msra.mxu0 0.0
  %7003 = vmatprep.subr.mxu0 0.0
  %7004 = vmatpush1.msra.mxu0 0.0
  %7005 = vmatprep.subr.mxu0 0.0
  %7006 = vmatpush1.msra.mxu0 0.0
  %7007 = vmatprep.subr.mxu0 0.0
  %7008 = vmatpush1.msra.mxu0 0.0
  %7009 = vmatprep.subr.mxu0 0.0
  %7010 = vmatpush1.msra.mxu0 0.0
  %7011 = vmatprep.subr.mxu0 0.0
  %7012 = vmatpush1.msra.mxu0 0.0
  %7013 = vmatprep.subr.mxu0 0.0
  %7014 = vmatpush1.msra.mxu0 0.0
  %7015 = vmatprep.subr.mxu0 0.0
  %7016 = vmatpush1.msra.mxu0 0.0
  %7017 = vmatprep.subr.mxu0 0.0
  %7018 = vmatpush1.msra.mxu0 0.0
  %7019 = vmatprep.subr.mxu0 0.0
  %7020 = vmatpush1.msra.mxu0 0.0
  %7021 = vmatprep.subr.mxu0 0.0
  %7022 = vmatpush1.msra.mxu0 0.0
  %7023 = vmatprep.subr.mxu0 0.0
  %7024 = vmatpush1.msra.mxu0 0.0
  %7025 = vmatprep.subr.mxu0 0.0
  %7026 = vmatpush1.msra.mxu0 0.0
  %7027 = vmatprep.subr.mxu0 0.0
  %7028 = vmatpush1.msra.mxu0 0.0
  %7029 = vmatprep.subr.mxu0 0.0
  %7030 = vmatpush1.msra.mxu0 0.0
  %7031 = vmatprep.subr.mxu0 0.0
  %7032 = vmatpush1.msra.mxu0 0.0
  %7033 = vmatprep.subr.mxu0 0.0
  %7034 = vmatpush1.msra.mxu0 0.0
  %7035 = vmatprep.subr.mxu0 0.0
  %7036 = vmatpush1.msra.mxu0 0.0
  %7037 = vmatprep.subr.mxu0 0.0
  %7038 = vmatpush1.msra.mxu0 0.0
  %7039 = vmatprep.subr.mxu0 0.0
  %7040 = vmatpush1.msra.mxu0 0.0
  %7041 = vmatprep.subr.mxu0 0.0
  %7042 = vmatpush1.msra.mxu0 0.0
  %7043 = vmatprep.mubr.f32.mxu0 0.0
  %v7044 = vand.u32 %v5245, 4294901760
  %v7045 = vsub.f32 %v5245, %v7044
  %v7046 = vand.u32 %v7045, 4294901760
  %v7047 = vsub.f32 %v7045, %v7046
  %v7048 = vand.u32 %v7047, 4294901760
  %7049 = vmatmul.mubr.f32.gmra.mrb[0].mxu0 %v7048
  %v7050 = vpop.f32.mrb[0].mxu0
  %v7051 = vadd.f32 %v6968, %v7050
  %v7052 = vpop.f32.mrb[0].mxu0
  %7053 = vdwg.mxu0
  %7054 = vmatprep.subr.mxu0 0.0
  %v7055 = vand.u32 %v5230, 4294901760
  %v7056 = vsub.f32 %v5230, %v7055
  %v7057 = vand.u32 %v7056, 4294901760
  %v7058 = vsub.f32 %v7056, %v7057
  %v7059 = vand.u32 %v7058, 4294901760
  %7060 = vmatpush1.msra.mxu0 %v7059
  %7061 = vmatprep.subr.mxu0 0.0
  %v7062 = vand.u32 %v5231, 4294901760
  %v7063 = vsub.f32 %v5231, %v7062
  %v7064 = vand.u32 %v7063, 4294901760
  %v7065 = vsub.f32 %v7063, %v7064
  %v7066 = vand.u32 %v7065, 4294901760
  %7067 = vmatpush1.msra.mxu0 %v7066
  %7068 = vmatprep.subr.mxu0 0.0
  %v7069 = vand.u32 %v5232, 4294901760
  %v7070 = vsub.f32 %v5232, %v7069
  %v7071 = vand.u32 %v7070, 4294901760
  %v7072 = vsub.f32 %v7070, %v7071
  %v7073 = vand.u32 %v7072, 4294901760
  %7074 = vmatpush1.msra.mxu0 %v7073
  %7075 = vmatprep.subr.mxu0 0.0
  %v7076 = vand.u32 %v5233, 4294901760
  %v7077 = vsub.f32 %v5233, %v7076
  %v7078 = vand.u32 %v7077, 4294901760
  %v7079 = vsub.f32 %v7077, %v7078
  %v7080 = vand.u32 %v7079, 4294901760
  %7081 = vmatpush1.msra.mxu0 %v7080
  %7082 = vmatprep.subr.mxu0 0.0
  %v7083 = vand.u32 %v5234, 4294901760
  %v7084 = vsub.f32 %v5234, %v7083
  %v7085 = vand.u32 %v7084, 4294901760
  %v7086 = vsub.f32 %v7084, %v7085
  %v7087 = vand.u32 %v7086, 4294901760
  %7088 = vmatpush1.msra.mxu0 %v7087
  %7089 = vmatprep.subr.mxu0 0.0
  %v7090 = vand.u32 %v5235, 4294901760
  %v7091 = vsub.f32 %v5235, %v7090
  %v7092 = vand.u32 %v7091, 4294901760
  %v7093 = vsub.f32 %v7091, %v7092
  %v7094 = vand.u32 %v7093, 4294901760
  %7095 = vmatpush1.msra.mxu0 %v7094
  %7096 = vmatprep.subr.mxu0 0.0
  %v7097 = vand.u32 %v5236, 4294901760
  %v7098 = vsub.f32 %v5236, %v7097
  %v7099 = vand.u32 %v7098, 4294901760
  %v7100 = vsub.f32 %v7098, %v7099
  %v7101 = vand.u32 %v7100, 4294901760
  %7102 = vmatpush1.msra.mxu0 %v7101
  %7103 = vmatprep.subr.mxu0 0.0
  %v7104 = vand.u32 %v5237, 4294901760
  %v7105 = vsub.f32 %v5237, %v7104
  %v7106 = vand.u32 %v7105, 4294901760
  %v7107 = vsub.f32 %v7105, %v7106
  %v7108 = vand.u32 %v7107, 4294901760
  %7109 = vmatpush1.msra.mxu0 %v7108
  %7110 = vmatprep.subr.mxu0 0.0
  %7111 = vmatpush1.msra.mxu0 0.0
  %7112 = vmatprep.subr.mxu0 0.0
  %7113 = vmatpush1.msra.mxu0 0.0
  %7114 = vmatprep.subr.mxu0 0.0
  %7115 = vmatpush1.msra.mxu0 0.0
  %7116 = vmatprep.subr.mxu0 0.0
  %7117 = vmatpush1.msra.mxu0 0.0
  %7118 = vmatprep.subr.mxu0 0.0
  %7119 = vmatpush1.msra.mxu0 0.0
  %7120 = vmatprep.subr.mxu0 0.0
  %7121 = vmatpush1.msra.mxu0 0.0
  %7122 = vmatprep.subr.mxu0 0.0
  %7123 = vmatpush1.msra.mxu0 0.0
  %7124 = vmatprep.subr.mxu0 0.0
  %7125 = vmatpush1.msra.mxu0 0.0
  %7126 = vmatprep.subr.mxu0 0.0
  %7127 = vmatpush1.msra.mxu0 0.0
  %7128 = vmatprep.subr.mxu0 0.0
  %7129 = vmatpush1.msra.mxu0 0.0
  %7130 = vmatprep.subr.mxu0 0.0
  %7131 = vmatpush1.msra.mxu0 0.0
  %7132 = vmatprep.subr.mxu0 0.0
  %7133 = vmatpush1.msra.mxu0 0.0
  %7134 = vmatprep.subr.mxu0 0.0
  %7135 = vmatpush1.msra.mxu0 0.0
  %7136 = vmatprep.subr.mxu0 0.0
  %7137 = vmatpush1.msra.mxu0 0.0
  %7138 = vmatprep.subr.mxu0 0.0
  %7139 = vmatpush1.msra.mxu0 0.0
  %7140 = vmatprep.subr.mxu0 0.0
  %7141 = vmatpush1.msra.mxu0 0.0
  %7142 = vmatprep.subr.mxu0 0.0
  %7143 = vmatpush1.msra.mxu0 0.0
  %7144 = vmatprep.subr.mxu0 0.0
  %7145 = vmatpush1.msra.mxu0 0.0
  %7146 = vmatprep.subr.mxu0 0.0
  %7147 = vmatpush1.msra.mxu0 0.0
  %7148 = vmatprep.subr.mxu0 0.0
  %7149 = vmatpush1.msra.mxu0 0.0
  %7150 = vmatprep.subr.mxu0 0.0
  %7151 = vmatpush1.msra.mxu0 0.0
  %7152 = vmatprep.subr.mxu0 0.0
  %7153 = vmatpush1.msra.mxu0 0.0
  %7154 = vmatprep.subr.mxu0 0.0
  %7155 = vmatpush1.msra.mxu0 0.0
  %7156 = vmatprep.subr.mxu0 0.0
  %7157 = vmatpush1.msra.mxu0 0.0
  %7158 = vmatprep.mubr.f32.mxu0 0.0
  %v7159 = vand.u32 %v5245, 4294901760
  %7160 = vmatmul.mubr.f32.gmra.mrb[0].mxu0 %v7159
  %v7161 = vpop.f32.mrb[0].mxu0
  %v7162 = vadd.f32 %v7051, %v7161
  %v7163 = vpop.f32.mrb[0].mxu0
  %7164 = vdwg.mxu0
  %7165 = vmatprep.subr.mxu0 0.0
  %v7166 = vand.u32 %v5230, 4294901760
  %v7167 = vsub.f32 %v5230, %v7166
  %7168 = vmatpush1.msra.mxu0 %v7167
  %7169 = vmatprep.subr.mxu0 0.0
  %v7170 = vand.u32 %v5231, 4294901760
  %v7171 = vsub.f32 %v5231, %v7170
  %7172 = vmatpush1.msra.mxu0 %v7171
  %7173 = vmatprep.subr.mxu0 0.0
  %v7174 = vand.u32 %v5232, 4294901760
  %v7175 = vsub.f32 %v5232, %v7174
  %7176 = vmatpush1.msra.mxu0 %v7175
  %7177 = vmatprep.subr.mxu0 0.0
  %v7178 = vand.u32 %v5233, 4294901760
  %v7179 = vsub.f32 %v5233, %v7178
  %7180 = vmatpush1.msra.mxu0 %v7179
  %7181 = vmatprep.subr.mxu0 0.0
  %v7182 = vand.u32 %v5234, 4294901760
  %v7183 = vsub.f32 %v5234, %v7182
  %7184 = vmatpush1.msra.mxu0 %v7183
  %7185 = vmatprep.subr.mxu0 0.0
  %v7186 = vand.u32 %v5235, 4294901760
  %v7187 = vsub.f32 %v5235, %v7186
  %7188 = vmatpush1.msra.mxu0 %v7187
  %7189 = vmatprep.subr.mxu0 0.0
  %v7190 = vand.u32 %v5236, 4294901760
  %v7191 = vsub.f32 %v5236, %v7190
  %7192 = vmatpush1.msra.mxu0 %v7191
  %7193 = vmatprep.subr.mxu0 0.0
  %v7194 = vand.u32 %v5237, 4294901760
  %v7195 = vsub.f32 %v5237, %v7194
  %7196 = vmatpush1.msra.mxu0 %v7195
  %7197 = vmatprep.subr.mxu0 0.0
  %7198 = vmatpush1.msra.mxu0 0.0
  %7199 = vmatprep.subr.mxu0 0.0
  %7200 = vmatpush1.msra.mxu0 0.0
  %7201 = vmatprep.subr.mxu0 0.0
  %7202 = vmatpush1.msra.mxu0 0.0
  %7203 = vmatprep.subr.mxu0 0.0
  %7204 = vmatpush1.msra.mxu0 0.0
  %7205 = vmatprep.subr.mxu0 0.0
  %7206 = vmatpush1.msra.mxu0 0.0
  %7207 = vmatprep.subr.mxu0 0.0
  %7208 = vmatpush1.msra.mxu0 0.0
  %7209 = vmatprep.subr.mxu0 0.0
  %7210 = vmatpush1.msra.mxu0 0.0
  %7211 = vmatprep.subr.mxu0 0.0
  %7212 = vmatpush1.msra.mxu0 0.0
  %7213 = vmatprep.subr.mxu0 0.0
  %7214 = vmatpush1.msra.mxu0 0.0
  %7215 = vmatprep.subr.mxu0 0.0
  %7216 = vmatpush1.msra.mxu0 0.0
  %7217 = vmatprep.subr.mxu0 0.0
  %7218 = vmatpush1.msra.mxu0 0.0
  %7219 = vmatprep.subr.mxu0 0.0
  %7220 = vmatpush1.msra.mxu0 0.0
  %7221 = vmatprep.subr.mxu0 0.0
  %7222 = vmatpush1.msra.mxu0 0.0
  %7223 = vmatprep.subr.mxu0 0.0
  %7224 = vmatpush1.msra.mxu0 0.0
  %7225 = vmatprep.subr.mxu0 0.0
  %7226 = vmatpush1.msra.mxu0 0.0
  %7227 = vmatprep.subr.mxu0 0.0
  %7228 = vmatpush1.msra.mxu0 0.0
  %7229 = vmatprep.subr.mxu0 0.0
  %7230 = vmatpush1.msra.mxu0 0.0
  %7231 = vmatprep.subr.mxu0 0.0
  %7232 = vmatpush1.msra.mxu0 0.0
  %7233 = vmatprep.subr.mxu0 0.0
  %7234 = vmatpush1.msra.mxu0 0.0
  %7235 = vmatprep.subr.mxu0 0.0
  %7236 = vmatpush1.msra.mxu0 0.0
  %7237 = vmatprep.subr.mxu0 0.0
  %7238 = vmatpush1.msra.mxu0 0.0
  %7239 = vmatprep.subr.mxu0 0.0
  %7240 = vmatpush1.msra.mxu0 0.0
  %7241 = vmatprep.subr.mxu0 0.0
  %7242 = vmatpush1.msra.mxu0 0.0
  %7243 = vmatprep.subr.mxu0 0.0
  %7244 = vmatpush1.msra.mxu0 0.0
  %7245 = vmatprep.mubr.f32.mxu0 0.0
  %v7246 = vand.u32 %v5245, 4294901760
  %v7247 = vsub.f32 %v5245, %v7246
  %7248 = vmatmul.mubr.f32.gmra.mrb[0].mxu0 %v7247
  %v7249 = vpop.f32.mrb[0].mxu0
  %v7250 = vadd.f32 %v7162, %v7249
  %v7251 = vpop.f32.mrb[0].mxu0
  %7252 = vdwg.mxu0
  %7253 = vmatprep.subr.mxu0 0.0
  %v7254 = vand.u32 %v5230, 4294901760
  %7255 = vmatpush1.msra.mxu0 %v7254
  %7256 = vmatprep.subr.mxu0 0.0
  %v7257 = vand.u32 %v5231, 4294901760
  %7258 = vmatpush1.msra.mxu0 %v7257
  %7259 = vmatprep.subr.mxu0 0.0
  %v7260 = vand.u32 %v5232, 4294901760
  %7261 = vmatpush1.msra.mxu0 %v7260
  %7262 = vmatprep.subr.mxu0 0.0
  %v7263 = vand.u32 %v5233, 4294901760
  %7264 = vmatpush1.msra.mxu0 %v7263
  %7265 = vmatprep.subr.mxu0 0.0
  %v7266 = vand.u32 %v5234, 4294901760
  %7267 = vmatpush1.msra.mxu0 %v7266
  %7268 = vmatprep.subr.mxu0 0.0
  %v7269 = vand.u32 %v5235, 4294901760
  %7270 = vmatpush1.msra.mxu0 %v7269
  %7271 = vmatprep.subr.mxu0 0.0
  %v7272 = vand.u32 %v5236, 4294901760
  %7273 = vmatpush1.msra.mxu0 %v7272
  %7274 = vmatprep.subr.mxu0 0.0
  %v7275 = vand.u32 %v5237, 4294901760
  %7276 = vmatpush1.msra.mxu0 %v7275
  %7277 = vmatprep.subr.mxu0 0.0
  %7278 = vmatpush1.msra.mxu0 0.0
  %7279 = vmatprep.subr.mxu0 0.0
  %7280 = vmatpush1.msra.mxu0 0.0
  %7281 = vmatprep.subr.mxu0 0.0
  %7282 = vmatpush1.msra.mxu0 0.0
  %7283 = vmatprep.subr.mxu0 0.0
  %7284 = vmatpush1.msra.mxu0 0.0
  %7285 = vmatprep.subr.mxu0 0.0
  %7286 = vmatpush1.msra.mxu0 0.0
  %7287 = vmatprep.subr.mxu0 0.0
  %7288 = vmatpush1.msra.mxu0 0.0
  %7289 = vmatprep.subr.mxu0 0.0
  %7290 = vmatpush1.msra.mxu0 0.0
  %7291 = vmatprep.subr.mxu0 0.0
  %7292 = vmatpush1.msra.mxu0 0.0
  %7293 = vmatprep.subr.mxu0 0.0
  %7294 = vmatpush1.msra.mxu0 0.0
  %7295 = vmatprep.subr.mxu0 0.0
  %7296 = vmatpush1.msra.mxu0 0.0
  %7297 = vmatprep.subr.mxu0 0.0
  %7298 = vmatpush1.msra.mxu0 0.0
  %7299 = vmatprep.subr.mxu0 0.0
  %7300 = vmatpush1.msra.mxu0 0.0
  %7301 = vmatprep.subr.mxu0 0.0
  %7302 = vmatpush1.msra.mxu0 0.0
  %7303 = vmatprep.subr.mxu0 0.0
  %7304 = vmatpush1.msra.mxu0 0.0
  %7305 = vmatprep.subr.mxu0 0.0
  %7306 = vmatpush1.msra.mxu0 0.0
  %7307 = vmatprep.subr.mxu0 0.0
  %7308 = vmatpush1.msra.mxu0 0.0
  %7309 = vmatprep.subr.mxu0 0.0
  %7310 = vmatpush1.msra.mxu0 0.0
  %7311 = vmatprep.subr.mxu0 0.0
  %7312 = vmatpush1.msra.mxu0 0.0
  %7313 = vmatprep.subr.mxu0 0.0
  %7314 = vmatpush1.msra.mxu0 0.0
  %7315 = vmatprep.subr.mxu0 0.0
  %7316 = vmatpush1.msra.mxu0 0.0
  %7317 = vmatprep.subr.mxu0 0.0
  %7318 = vmatpush1.msra.mxu0 0.0
  %7319 = vmatprep.subr.mxu0 0.0
  %7320 = vmatpush1.msra.mxu0 0.0
  %7321 = vmatprep.subr.mxu0 0.0
  %7322 = vmatpush1.msra.mxu0 0.0
  %7323 = vmatprep.subr.mxu0 0.0
  %7324 = vmatpush1.msra.mxu0 0.0
  %7325 = vmatprep.mubr.f32.mxu0 0.0
  %v7326 = vand.u32 %v5245, 4294901760
  %v7327 = vsub.f32 %v5245, %v7326
  %v7328 = vand.u32 %v7327, 4294901760
  %7329 = vmatmul.mubr.f32.gmra.mrb[0].mxu0 %v7328
  %v7330 = vpop.f32.mrb[0].mxu0
  %v7331 = vadd.f32 %v7250, %v7330
  %v7332 = vpop.f32.mrb[0].mxu0
  %7333 = vdwg.mxu0
  %7334 = vmatprep.subr.mxu0 0.0
  %v7335 = vand.u32 %v5230, 4294901760
  %v7336 = vsub.f32 %v5230, %v7335
  %v7337 = vand.u32 %v7336, 4294901760
  %7338 = vmatpush1.msra.mxu0 %v7337
  %7339 = vmatprep.subr.mxu0 0.0
  %v7340 = vand.u32 %v5231, 4294901760
  %v7341 = vsub.f32 %v5231, %v7340
  %v7342 = vand.u32 %v7341, 4294901760
  %7343 = vmatpush1.msra.mxu0 %v7342
  %7344 = vmatprep.subr.mxu0 0.0
  %v7345 = vand.u32 %v5232, 4294901760
  %v7346 = vsub.f32 %v5232, %v7345
  %v7347 = vand.u32 %v7346, 4294901760
  %7348 = vmatpush1.msra.mxu0 %v7347
  %7349 = vmatprep.subr.mxu0 0.0
  %v7350 = vand.u32 %v5233, 4294901760
  %v7351 = vsub.f32 %v5233, %v7350
  %v7352 = vand.u32 %v7351, 4294901760
  %7353 = vmatpush1.msra.mxu0 %v7352
  %7354 = vmatprep.subr.mxu0 0.0
  %v7355 = vand.u32 %v5234, 4294901760
  %v7356 = vsub.f32 %v5234, %v7355
  %v7357 = vand.u32 %v7356, 4294901760
  %7358 = vmatpush1.msra.mxu0 %v7357
  %7359 = vmatprep.subr.mxu0 0.0
  %v7360 = vand.u32 %v5235, 4294901760
  %v7361 = vsub.f32 %v5235, %v7360
  %v7362 = vand.u32 %v7361, 4294901760
  %7363 = vmatpush1.msra.mxu0 %v7362
  %7364 = vmatprep.subr.mxu0 0.0
  %v7365 = vand.u32 %v5236, 4294901760
  %v7366 = vsub.f32 %v5236, %v7365
  %v7367 = vand.u32 %v7366, 4294901760
  %7368 = vmatpush1.msra.mxu0 %v7367
  %7369 = vmatprep.subr.mxu0 0.0
  %v7370 = vand.u32 %v5237, 4294901760
  %v7371 = vsub.f32 %v5237, %v7370
  %v7372 = vand.u32 %v7371, 4294901760
  %7373 = vmatpush1.msra.mxu0 %v7372
  %7374 = vmatprep.subr.mxu0 0.0
  %7375 = vmatpush1.msra.mxu0 0.0
  %7376 = vmatprep.subr.mxu0 0.0
  %7377 = vmatpush1.msra.mxu0 0.0
  %7378 = vmatprep.subr.mxu0 0.0
  %7379 = vmatpush1.msra.mxu0 0.0
  %7380 = vmatprep.subr.mxu0 0.0
  %7381 = vmatpush1.msra.mxu0 0.0
  %7382 = vmatprep.subr.mxu0 0.0
  %7383 = vmatpush1.msra.mxu0 0.0
  %7384 = vmatprep.subr.mxu0 0.0
  %7385 = vmatpush1.msra.mxu0 0.0
  %7386 = vmatprep.subr.mxu0 0.0
  %7387 = vmatpush1.msra.mxu0 0.0
  %7388 = vmatprep.subr.mxu0 0.0
  %7389 = vmatpush1.msra.mxu0 0.0
  %7390 = vmatprep.subr.mxu0 0.0
  %7391 = vmatpush1.msra.mxu0 0.0
  %7392 = vmatprep.subr.mxu0 0.0
  %7393 = vmatpush1.msra.mxu0 0.0
  %7394 = vmatprep.subr.mxu0 0.0
  %7395 = vmatpush1.msra.mxu0 0.0
  %7396 = vmatprep.subr.mxu0 0.0
  %7397 = vmatpush1.msra.mxu0 0.0
  %7398 = vmatprep.subr.mxu0 0.0
  %7399 = vmatpush1.msra.mxu0 0.0
  %7400 = vmatprep.subr.mxu0 0.0
  %7401 = vmatpush1.msra.mxu0 0.0
  %7402 = vmatprep.subr.mxu0 0.0
  %7403 = vmatpush1.msra.mxu0 0.0
  %7404 = vmatprep.subr.mxu0 0.0
  %7405 = vmatpush1.msra.mxu0 0.0
  %7406 = vmatprep.subr.mxu0 0.0
  %7407 = vmatpush1.msra.mxu0 0.0
  %7408 = vmatprep.subr.mxu0 0.0
  %7409 = vmatpush1.msra.mxu0 0.0
  %7410 = vmatprep.subr.mxu0 0.0
  %7411 = vmatpush1.msra.mxu0 0.0
  %7412 = vmatprep.subr.mxu0 0.0
  %7413 = vmatpush1.msra.mxu0 0.0
  %7414 = vmatprep.subr.mxu0 0.0
  %7415 = vmatpush1.msra.mxu0 0.0
  %7416 = vmatprep.subr.mxu0 0.0
  %7417 = vmatpush1.msra.mxu0 0.0
  %7418 = vmatprep.subr.mxu0 0.0
  %7419 = vmatpush1.msra.mxu0 0.0
  %7420 = vmatprep.subr.mxu0 0.0
  %7421 = vmatpush1.msra.mxu0 0.0
  %7422 = vmatprep.mubr.f32.mxu0 0.0
  %v7423 = vand.u32 %v5245, 4294901760
  %7424 = vmatmul.mubr.f32.gmra.mrb[0].mxu0 %v7423
  %v7425 = vpop.f32.mrb[0].mxu0
  %v7426 = vadd.f32 %v7331, %v7425
  %v7427 = vpop.f32.mrb[0].mxu0
  %7428 = vdwg.mxu0
  %7429 = vmatprep.subr.mxu0 0.0
  %v7430 = vand.u32 %v5230, 4294901760
  %7431 = vmatpush1.msra.mxu0 %v7430
  %7432 = vmatprep.subr.mxu0 0.0
  %v7433 = vand.u32 %v5231, 4294901760
  %7434 = vmatpush1.msra.mxu0 %v7433
  %7435 = vmatprep.subr.mxu0 0.0
  %v7436 = vand.u32 %v5232, 4294901760
  %7437 = vmatpush1.msra.mxu0 %v7436
  %7438 = vmatprep.subr.mxu0 0.0
  %v7439 = vand.u32 %v5233, 4294901760
  %7440 = vmatpush1.msra.mxu0 %v7439
  %7441 = vmatprep.subr.mxu0 0.0
  %v7442 = vand.u32 %v5234, 4294901760
  %7443 = vmatpush1.msra.mxu0 %v7442
  %7444 = vmatprep.subr.mxu0 0.0
  %v7445 = vand.u32 %v5235, 4294901760
  %7446 = vmatpush1.msra.mxu0 %v7445
  %7447 = vmatprep.subr.mxu0 0.0
  %v7448 = vand.u32 %v5236, 4294901760
  %7449 = vmatpush1.msra.mxu0 %v7448
  %7450 = vmatprep.subr.mxu0 0.0
  %v7451 = vand.u32 %v5237, 4294901760
  %7452 = vmatpush1.msra.mxu0 %v7451
  %7453 = vmatprep.subr.mxu0 0.0
  %7454 = vmatpush1.msra.mxu0 0.0
  %7455 = vmatprep.subr.mxu0 0.0
  %7456 = vmatpush1.msra.mxu0 0.0
  %7457 = vmatprep.subr.mxu0 0.0
  %7458 = vmatpush1.msra.mxu0 0.0
  %7459 = vmatprep.subr.mxu0 0.0
  %7460 = vmatpush1.msra.mxu0 0.0
  %7461 = vmatprep.subr.mxu0 0.0
  %7462 = vmatpush1.msra.mxu0 0.0
  %7463 = vmatprep.subr.mxu0 0.0
  %7464 = vmatpush1.msra.mxu0 0.0
  %7465 = vmatprep.subr.mxu0 0.0
  %7466 = vmatpush1.msra.mxu0 0.0
  %7467 = vmatprep.subr.mxu0 0.0
  %7468 = vmatpush1.msra.mxu0 0.0
  %7469 = vmatprep.subr.mxu0 0.0
  %7470 = vmatpush1.msra.mxu0 0.0
  %7471 = vmatprep.subr.mxu0 0.0
  %7472 = vmatpush1.msra.mxu0 0.0
  %7473 = vmatprep.subr.mxu0 0.0
  %7474 = vmatpush1.msra.mxu0 0.0
  %7475 = vmatprep.subr.mxu0 0.0
  %7476 = vmatpush1.msra.mxu0 0.0
  %7477 = vmatprep.subr.mxu0 0.0
  %7478 = vmatpush1.msra.mxu0 0.0
  %7479 = vmatprep.subr.mxu0 0.0
  %7480 = vmatpush1.msra.mxu0 0.0
  %7481 = vmatprep.subr.mxu0 0.0
  %7482 = vmatpush1.msra.mxu0 0.0
  %7483 = vmatprep.subr.mxu0 0.0
  %7484 = vmatpush1.msra.mxu0 0.0
  %7485 = vmatprep.subr.mxu0 0.0
  %7486 = vmatpush1.msra.mxu0 0.0
  %7487 = vmatprep.subr.mxu0 0.0
  %7488 = vmatpush1.msra.mxu0 0.0
  %7489 = vmatprep.subr.mxu0 0.0
  %7490 = vmatpush1.msra.mxu0 0.0
  %7491 = vmatprep.subr.mxu0 0.0
  %7492 = vmatpush1.msra.mxu0 0.0
  %7493 = vmatprep.subr.mxu0 0.0
  %7494 = vmatpush1.msra.mxu0 0.0
  %7495 = vmatprep.subr.mxu0 0.0
  %7496 = vmatpush1.msra.mxu0 0.0
  %7497 = vmatprep.subr.mxu0 0.0
  %7498 = vmatpush1.msra.mxu0 0.0
  %7499 = vmatprep.subr.mxu0 0.0
  %7500 = vmatpush1.msra.mxu0 0.0
  %7501 = vmatprep.mubr.f32.mxu0 0.0
  %v7502 = vand.u32 %v5245, 4294901760
  %7503 = vmatmul.mubr.f32.gmra.mrb[0].mxu0 %v7502
  %v7504 = vpop.f32.mrb[0].mxu0
  %v7505 = vadd.f32 %v7426, %v7504
  %v7506 = vpop.f32.mrb[0].mxu0
  %7507 = vdwg.mxu0
  %v7508 = vmax.f32 %v7505, 0.0
  %v7509 = vld [vmem:[%s7] sm:$0xff]
  %v7510 = vld [vmem:[%s7 + $0x8] sm:$0xff]
  %v7511 = vld [vmem:[%s7 + $0x10] sm:$0xff]
  %v7512 = vld [vmem:[%s7 + $0x18] sm:$0xff]
  %v7513 = vld [vmem:[%s7 + $0x20] sm:$0xff]
  %v7514 = vld [vmem:[%s7 + $0x28] sm:$0xff]
  %v7515 = vld [vmem:[%s7 + $0x30] sm:$0xff]
  %v7516 = vld [vmem:[%s7 + $0x38] sm:$0xff]
  %v7517 = vld [vmem:[%s7 + $0x40] sm:$0xff]
  %v7518 = vld [vmem:[%s7 + $0x48] sm:$0xff]
  %v7519 = vld [vmem:[%s7 + $0x50] sm:$0xff]
  %v7520 = vld [vmem:[%s7 + $0x58] sm:$0xff]
  %v7521 = vld [vmem:[%s7 + $0x60] sm:$0xff]
  %v7522 = vld [vmem:[%s7 + $0x68] sm:$0xff]
  %v7523 = vld [vmem:[%s7 + $0x70] sm:$0xff]
  %v7524 = vld [vmem:[%s7 + $0x78] sm:$0xff]
  %v7525 = vld [vmem:[%s8] sm:$0x3]
  %v7527 = vlaneseq
  %v7528 = vshrl.u32 %v7527, 7
  %v7529 = vsub.s32 0, %v7528
  %v7530 = vrot.slane %v7525, %v7529
  %v7531 = vlaneseq
  %v7532 = vshrl.u32 %v7531, 7
  %v7533 = vsub.s32 1, %v7532
  %v7534 = vrot.slane %v7525, %v7533
  %v7538 = vsel %vm57, %v7508, 0
  %v7540 = vand.u32 %v7510, 4294901760
  %7541 = vmatprep.subr.mxu0 %v7540
  %v7542 = vand.u32 %v7509, 4294901760
  %7543 = vmatpush1.msra.mxu0 %v7542
  %v7544 = vand.u32 %v7512, 4294901760
  %7545 = vmatprep.subr.mxu0 %v7544
  %v7546 = vand.u32 %v7511, 4294901760
  %7547 = vmatpush1.msra.mxu0 %v7546
  %v7548 = vand.u32 %v7514, 4294901760
  %7549 = vmatprep.subr.mxu0 %v7548
  %v7550 = vand.u32 %v7513, 4294901760
  %7551 = vmatpush1.msra.mxu0 %v7550
  %v7552 = vand.u32 %v7516, 4294901760
  %7553 = vmatprep.subr.mxu0 %v7552
  %v7554 = vand.u32 %v7515, 4294901760
  %7555 = vmatpush1.msra.mxu0 %v7554
  %v7556 = vand.u32 %v7518, 4294901760
  %7557 = vmatprep.subr.mxu0 %v7556
  %v7558 = vand.u32 %v7517, 4294901760
  %7559 = vmatpush1.msra.mxu0 %v7558
  %v7560 = vand.u32 %v7520, 4294901760
  %7561 = vmatprep.subr.mxu0 %v7560
  %v7562 = vand.u32 %v7519, 4294901760
  %7563 = vmatpush1.msra.mxu0 %v7562
  %v7564 = vand.u32 %v7522, 4294901760
  %7565 = vmatprep.subr.mxu0 %v7564
  %v7566 = vand.u32 %v7521, 4294901760
  %7567 = vmatpush1.msra.mxu0 %v7566
  %v7568 = vand.u32 %v7524, 4294901760
  %7569 = vmatprep.subr.mxu0 %v7568
  %v7570 = vand.u32 %v7523, 4294901760
  %7571 = vmatpush1.msra.mxu0 %v7570
  %7572 = vmatprep.subr.mxu0 0.0
  %7573 = vmatpush1.msra.mxu0 0.0
  %7574 = vmatprep.subr.mxu0 0.0
  %7575 = vmatpush1.msra.mxu0 0.0
  %7576 = vmatprep.subr.mxu0 0.0
  %7577 = vmatpush1.msra.mxu0 0.0
  %7578 = vmatprep.subr.mxu0 0.0
  %7579 = vmatpush1.msra.mxu0 0.0
  %7580 = vmatprep.subr.mxu0 0.0
  %7581 = vmatpush1.msra.mxu0 0.0
  %7582 = vmatprep.subr.mxu0 0.0
  %7583 = vmatpush1.msra.mxu0 0.0
  %7584 = vmatprep.subr.mxu0 0.0
  %7585 = vmatpush1.msra.mxu0 0.0
  %7586 = vmatprep.subr.mxu0 0.0
  %7587 = vmatpush1.msra.mxu0 0.0
  %7588 = vmatprep.subr.mxu0 0.0
  %7589 = vmatpush1.msra.mxu0 0.0
  %7590 = vmatprep.subr.mxu0 0.0
  %7591 = vmatpush1.msra.mxu0 0.0
  %7592 = vmatprep.subr.mxu0 0.0
  %7593 = vmatpush1.msra.mxu0 0.0
  %7594 = vmatprep.subr.mxu0 0.0
  %7595 = vmatpush1.msra.mxu0 0.0
  %7596 = vmatprep.subr.mxu0 0.0
  %7597 = vmatpush1.msra.mxu0 0.0
  %7598 = vmatprep.subr.mxu0 0.0
  %7599 = vmatpush1.msra.mxu0 0.0
  %7600 = vmatprep.subr.mxu0 0.0
  %7601 = vmatpush1.msra.mxu0 0.0
  %7602 = vmatprep.subr.mxu0 0.0
  %7603 = vmatpush1.msra.mxu0 0.0
  %7604 = vmatprep.subr.mxu0 0.0
  %7605 = vmatpush1.msra.mxu0 0.0
  %7606 = vmatprep.subr.mxu0 0.0
  %7607 = vmatpush1.msra.mxu0 0.0
  %7608 = vmatprep.subr.mxu0 0.0
  %7609 = vmatpush1.msra.mxu0 0.0
  %7610 = vmatprep.subr.mxu0 0.0
  %7611 = vmatpush1.msra.mxu0 0.0
  %7612 = vmatprep.subr.mxu0 0.0
  %7613 = vmatpush1.msra.mxu0 0.0
  %7614 = vmatprep.subr.mxu0 0.0
  %7615 = vmatpush1.msra.mxu0 0.0
  %7616 = vmatprep.subr.mxu0 0.0
  %7617 = vmatpush1.msra.mxu0 0.0
  %7618 = vmatprep.subr.mxu0 0.0
  %7619 = vmatpush1.msra.mxu0 0.0
  %7620 = vmatprep.mubr.f32.mxu0 0.0
  %v7621 = vand.u32 %v7538, 4294901760
  %v7622 = vsub.f32 %v7538, %v7621
  %v7623 = vand.u32 %v7622, 4294901760
  %v7624 = vsub.f32 %v7622, %v7623
  %v7625 = vand.u32 %v7624, 4294901760
  %7626 = vmatmul.mubr.f32.gmra.mrb[0].mxu0 %v7625
  %v7627 = vpop.f32.mrb[0].mxu0
  %v7628 = vadd.f32 %v7530, %v7627
  %v7629 = vpop.f32.mrb[0].mxu0
  %v7630 = vadd.f32 %v7534, %v7629
  %7631 = vdwg.mxu0
  %v7632 = vand.u32 %v7510, 4294901760
  %v7633 = vsub.f32 %v7510, %v7632
  %v7634 = vand.u32 %v7633, 4294901760
  %v7635 = vsub.f32 %v7633, %v7634
  %v7636 = vand.u32 %v7635, 4294901760
  %7637 = vmatprep.subr.mxu0 %v7636
  %v7638 = vand.u32 %v7509, 4294901760
  %v7639 = vsub.f32 %v7509, %v7638
  %v7640 = vand.u32 %v7639, 4294901760
  %v7641 = vsub.f32 %v7639, %v7640
  %v7642 = vand.u32 %v7641, 4294901760
  %7643 = vmatpush1.msra.mxu0 %v7642
  %v7644 = vand.u32 %v7512, 4294901760
  %v7645 = vsub.f32 %v7512, %v7644
  %v7646 = vand.u32 %v7645, 4294901760
  %v7647 = vsub.f32 %v7645, %v7646
  %v7648 = vand.u32 %v7647, 4294901760
  %7649 = vmatprep.subr.mxu0 %v7648
  %v7650 = vand.u32 %v7511, 4294901760
  %v7651 = vsub.f32 %v7511, %v7650
  %v7652 = vand.u32 %v7651, 4294901760
  %v7653 = vsub.f32 %v7651, %v7652
  %v7654 = vand.u32 %v7653, 4294901760
  %7655 = vmatpush1.msra.mxu0 %v7654
  %v7656 = vand.u32 %v7514, 4294901760
  %v7657 = vsub.f32 %v7514, %v7656
  %v7658 = vand.u32 %v7657, 4294901760
  %v7659 = vsub.f32 %v7657, %v7658
  %v7660 = vand.u32 %v7659, 4294901760
  %7661 = vmatprep.subr.mxu0 %v7660
  %v7662 = vand.u32 %v7513, 4294901760
  %v7663 = vsub.f32 %v7513, %v7662
  %v7664 = vand.u32 %v7663, 4294901760
  %v7665 = vsub.f32 %v7663, %v7664
  %v7666 = vand.u32 %v7665, 4294901760
  %7667 = vmatpush1.msra.mxu0 %v7666
  %v7668 = vand.u32 %v7516, 4294901760
  %v7669 = vsub.f32 %v7516, %v7668
  %v7670 = vand.u32 %v7669, 4294901760
  %v7671 = vsub.f32 %v7669, %v7670
  %v7672 = vand.u32 %v7671, 4294901760
  %7673 = vmatprep.subr.mxu0 %v7672
  %v7674 = vand.u32 %v7515, 4294901760
  %v7675 = vsub.f32 %v7515, %v7674
  %v7676 = vand.u32 %v7675, 4294901760
  %v7677 = vsub.f32 %v7675, %v7676
  %v7678 = vand.u32 %v7677, 4294901760
  %7679 = vmatpush1.msra.mxu0 %v7678
  %v7680 = vand.u32 %v7518, 4294901760
  %v7681 = vsub.f32 %v7518, %v7680
  %v7682 = vand.u32 %v7681, 4294901760
  %v7683 = vsub.f32 %v7681, %v7682
  %v7684 = vand.u32 %v7683, 4294901760
  %7685 = vmatprep.subr.mxu0 %v7684
  %v7686 = vand.u32 %v7517, 4294901760
  %v7687 = vsub.f32 %v7517, %v7686
  %v7688 = vand.u32 %v7687, 4294901760
  %v7689 = vsub.f32 %v7687, %v7688
  %v7690 = vand.u32 %v7689, 4294901760
  %7691 = vmatpush1.msra.mxu0 %v7690
  %v7692 = vand.u32 %v7520, 4294901760
  %v7693 = vsub.f32 %v7520, %v7692
  %v7694 = vand.u32 %v7693, 4294901760
  %v7695 = vsub.f32 %v7693, %v7694
  %v7696 = vand.u32 %v7695, 4294901760
  %7697 = vmatprep.subr.mxu0 %v7696
  %v7698 = vand.u32 %v7519, 4294901760
  %v7699 = vsub.f32 %v7519, %v7698
  %v7700 = vand.u32 %v7699, 4294901760
  %v7701 = vsub.f32 %v7699, %v7700
  %v7702 = vand.u32 %v7701, 4294901760
  %7703 = vmatpush1.msra.mxu0 %v7702
  %v7704 = vand.u32 %v7522, 4294901760
  %v7705 = vsub.f32 %v7522, %v7704
  %v7706 = vand.u32 %v7705, 4294901760
  %v7707 = vsub.f32 %v7705, %v7706
  %v7708 = vand.u32 %v7707, 4294901760
  %7709 = vmatprep.subr.mxu0 %v7708
  %v7710 = vand.u32 %v7521, 4294901760
  %v7711 = vsub.f32 %v7521, %v7710
  %v7712 = vand.u32 %v7711, 4294901760
  %v7713 = vsub.f32 %v7711, %v7712
  %v7714 = vand.u32 %v7713, 4294901760
  %7715 = vmatpush1.msra.mxu0 %v7714
  %v7716 = vand.u32 %v7524, 4294901760
  %v7717 = vsub.f32 %v7524, %v7716
  %v7718 = vand.u32 %v7717, 4294901760
  %v7719 = vsub.f32 %v7717, %v7718
  %v7720 = vand.u32 %v7719, 4294901760
  %7721 = vmatprep.subr.mxu0 %v7720
  %v7722 = vand.u32 %v7523, 4294901760
  %v7723 = vsub.f32 %v7523, %v7722
  %v7724 = vand.u32 %v7723, 4294901760
  %v7725 = vsub.f32 %v7723, %v7724
  %v7726 = vand.u32 %v7725, 4294901760
  %7727 = vmatpush1.msra.mxu0 %v7726
  %7728 = vmatprep.subr.mxu0 0.0
  %7729 = vmatpush1.msra.mxu0 0.0
  %7730 = vmatprep.subr.mxu0 0.0
  %7731 = vmatpush1.msra.mxu0 0.0
  %7732 = vmatprep.subr.mxu0 0.0
  %7733 = vmatpush1.msra.mxu0 0.0
  %7734 = vmatprep.subr.mxu0 0.0
  %7735 = vmatpush1.msra.mxu0 0.0
  %7736 = vmatprep.subr.mxu0 0.0
  %7737 = vmatpush1.msra.mxu0 0.0
  %7738 = vmatprep.subr.mxu0 0.0
  %7739 = vmatpush1.msra.mxu0 0.0
  %7740 = vmatprep.subr.mxu0 0.0
  %7741 = vmatpush1.msra.mxu0 0.0
  %7742 = vmatprep.subr.mxu0 0.0
  %7743 = vmatpush1.msra.mxu0 0.0
  %7744 = vmatprep.subr.mxu0 0.0
  %7745 = vmatpush1.msra.mxu0 0.0
  %7746 = vmatprep.subr.mxu0 0.0
  %7747 = vmatpush1.msra.mxu0 0.0
  %7748 = vmatprep.subr.mxu0 0.0
  %7749 = vmatpush1.msra.mxu0 0.0
  %7750 = vmatprep.subr.mxu0 0.0
  %7751 = vmatpush1.msra.mxu0 0.0
  %7752 = vmatprep.subr.mxu0 0.0
  %7753 = vmatpush1.msra.mxu0 0.0
  %7754 = vmatprep.subr.mxu0 0.0
  %7755 = vmatpush1.msra.mxu0 0.0
  %7756 = vmatprep.subr.mxu0 0.0
  %7757 = vmatpush1.msra.mxu0 0.0
  %7758 = vmatprep.subr.mxu0 0.0
  %7759 = vmatpush1.msra.mxu0 0.0
  %7760 = vmatprep.subr.mxu0 0.0
  %7761 = vmatpush1.msra.mxu0 0.0
  %7762 = vmatprep.subr.mxu0 0.0
  %7763 = vmatpush1.msra.mxu0 0.0
  %7764 = vmatprep.subr.mxu0 0.0
  %7765 = vmatpush1.msra.mxu0 0.0
  %7766 = vmatprep.subr.mxu0 0.0
  %7767 = vmatpush1.msra.mxu0 0.0
  %7768 = vmatprep.subr.mxu0 0.0
  %7769 = vmatpush1.msra.mxu0 0.0
  %7770 = vmatprep.subr.mxu0 0.0
  %7771 = vmatpush1.msra.mxu0 0.0
  %7772 = vmatprep.subr.mxu0 0.0
  %7773 = vmatpush1.msra.mxu0 0.0
  %7774 = vmatprep.subr.mxu0 0.0
  %7775 = vmatpush1.msra.mxu0 0.0
  %7776 = vmatprep.mubr.f32.mxu0 0.0
  %v7777 = vand.u32 %v7538, 4294901760
  %7778 = vmatmul.mubr.f32.gmra.mrb[0].mxu0 %v7777
  %v7779 = vpop.f32.mrb[0].mxu0
  %v7780 = vadd.f32 %v7628, %v7779
  %v7781 = vpop.f32.mrb[0].mxu0
  %v7782 = vadd.f32 %v7630, %v7781
  %7783 = vdwg.mxu0
  %v7784 = vand.u32 %v7510, 4294901760
  %v7785 = vsub.f32 %v7510, %v7784
  %7786 = vmatprep.subr.mxu0 %v7785
  %v7787 = vand.u32 %v7509, 4294901760
  %v7788 = vsub.f32 %v7509, %v7787
  %7789 = vmatpush1.msra.mxu0 %v7788
  %v7790 = vand.u32 %v7512, 4294901760
  %v7791 = vsub.f32 %v7512, %v7790
  %7792 = vmatprep.subr.mxu0 %v7791
  %v7793 = vand.u32 %v7511, 4294901760
  %v7794 = vsub.f32 %v7511, %v7793
  %7795 = vmatpush1.msra.mxu0 %v7794
  %v7796 = vand.u32 %v7514, 4294901760
  %v7797 = vsub.f32 %v7514, %v7796
  %7798 = vmatprep.subr.mxu0 %v7797
  %v7799 = vand.u32 %v7513, 4294901760
  %v7800 = vsub.f32 %v7513, %v7799
  %7801 = vmatpush1.msra.mxu0 %v7800
  %v7802 = vand.u32 %v7516, 4294901760
  %v7803 = vsub.f32 %v7516, %v7802
  %7804 = vmatprep.subr.mxu0 %v7803
  %v7805 = vand.u32 %v7515, 4294901760
  %v7806 = vsub.f32 %v7515, %v7805
  %7807 = vmatpush1.msra.mxu0 %v7806
  %v7808 = vand.u32 %v7518, 4294901760
  %v7809 = vsub.f32 %v7518, %v7808
  %7810 = vmatprep.subr.mxu0 %v7809
  %v7811 = vand.u32 %v7517, 4294901760
  %v7812 = vsub.f32 %v7517, %v7811
  %7813 = vmatpush1.msra.mxu0 %v7812
  %v7814 = vand.u32 %v7520, 4294901760
  %v7815 = vsub.f32 %v7520, %v7814
  %7816 = vmatprep.subr.mxu0 %v7815
  %v7817 = vand.u32 %v7519, 4294901760
  %v7818 = vsub.f32 %v7519, %v7817
  %7819 = vmatpush1.msra.mxu0 %v7818
  %v7820 = vand.u32 %v7522, 4294901760
  %v7821 = vsub.f32 %v7522, %v7820
  %7822 = vmatprep.subr.mxu0 %v7821
  %v7823 = vand.u32 %v7521, 4294901760
  %v7824 = vsub.f32 %v7521, %v7823
  %7825 = vmatpush1.msra.mxu0 %v7824
  %v7826 = vand.u32 %v7524, 4294901760
  %v7827 = vsub.f32 %v7524, %v7826
  %7828 = vmatprep.subr.mxu0 %v7827
  %v7829 = vand.u32 %v7523, 4294901760
  %v7830 = vsub.f32 %v7523, %v7829
  %7831 = vmatpush1.msra.mxu0 %v7830
  %7832 = vmatprep.subr.mxu0 0.0
  %7833 = vmatpush1.msra.mxu0 0.0
  %7834 = vmatprep.subr.mxu0 0.0
  %7835 = vmatpush1.msra.mxu0 0.0
  %7836 = vmatprep.subr.mxu0 0.0
  %7837 = vmatpush1.msra.mxu0 0.0
  %7838 = vmatprep.subr.mxu0 0.0
  %7839 = vmatpush1.msra.mxu0 0.0
  %7840 = vmatprep.subr.mxu0 0.0
  %7841 = vmatpush1.msra.mxu0 0.0
  %7842 = vmatprep.subr.mxu0 0.0
  %7843 = vmatpush1.msra.mxu0 0.0
  %7844 = vmatprep.subr.mxu0 0.0
  %7845 = vmatpush1.msra.mxu0 0.0
  %7846 = vmatprep.subr.mxu0 0.0
  %7847 = vmatpush1.msra.mxu0 0.0
  %7848 = vmatprep.subr.mxu0 0.0
  %7849 = vmatpush1.msra.mxu0 0.0
  %7850 = vmatprep.subr.mxu0 0.0
  %7851 = vmatpush1.msra.mxu0 0.0
  %7852 = vmatprep.subr.mxu0 0.0
  %7853 = vmatpush1.msra.mxu0 0.0
  %7854 = vmatprep.subr.mxu0 0.0
  %7855 = vmatpush1.msra.mxu0 0.0
  %7856 = vmatprep.subr.mxu0 0.0
  %7857 = vmatpush1.msra.mxu0 0.0
  %7858 = vmatprep.subr.mxu0 0.0
  %7859 = vmatpush1.msra.mxu0 0.0
  %7860 = vmatprep.subr.mxu0 0.0
  %7861 = vmatpush1.msra.mxu0 0.0
  %7862 = vmatprep.subr.mxu0 0.0
  %7863 = vmatpush1.msra.mxu0 0.0
  %7864 = vmatprep.subr.mxu0 0.0
  %7865 = vmatpush1.msra.mxu0 0.0
  %7866 = vmatprep.subr.mxu0 0.0
  %7867 = vmatpush1.msra.mxu0 0.0
  %7868 = vmatprep.subr.mxu0 0.0
  %7869 = vmatpush1.msra.mxu0 0.0
  %7870 = vmatprep.subr.mxu0 0.0
  %7871 = vmatpush1.msra.mxu0 0.0
  %7872 = vmatprep.subr.mxu0 0.0
  %7873 = vmatpush1.msra.mxu0 0.0
  %7874 = vmatprep.subr.mxu0 0.0
  %7875 = vmatpush1.msra.mxu0 0.0
  %7876 = vmatprep.subr.mxu0 0.0
  %7877 = vmatpush1.msra.mxu0 0.0
  %7878 = vmatprep.subr.mxu0 0.0
  %7879 = vmatpush1.msra.mxu0 0.0
  %7880 = vmatprep.mubr.f32.mxu0 0.0
  %v7881 = vand.u32 %v7538, 4294901760
  %v7882 = vsub.f32 %v7538, %v7881
  %7883 = vmatmul.mubr.f32.gmra.mrb[0].mxu0 %v7882
  %v7884 = vpop.f32.mrb[0].mxu0
  %v7885 = vadd.f32 %v7780, %v7884
  %v7886 = vpop.f32.mrb[0].mxu0
  %v7887 = vadd.f32 %v7782, %v7886
  %7888 = vdwg.mxu0
  %v7889 = vand.u32 %v7510, 4294901760
  %7890 = vmatprep.subr.mxu0 %v7889
  %v7891 = vand.u32 %v7509, 4294901760
  %7892 = vmatpush1.msra.mxu0 %v7891
  %v7893 = vand.u32 %v7512, 4294901760
  %7894 = vmatprep.subr.mxu0 %v7893
  %v7895 = vand.u32 %v7511, 4294901760
  %7896 = vmatpush1.msra.mxu0 %v7895
  %v7897 = vand.u32 %v7514, 4294901760
  %7898 = vmatprep.subr.mxu0 %v7897
  %v7899 = vand.u32 %v7513, 4294901760
  %7900 = vmatpush1.msra.mxu0 %v7899
  %v7901 = vand.u32 %v7516, 4294901760
  %7902 = vmatprep.subr.mxu0 %v7901
  %v7903 = vand.u32 %v7515, 4294901760
  %7904 = vmatpush1.msra.mxu0 %v7903
  %v7905 = vand.u32 %v7518, 4294901760
  %7906 = vmatprep.subr.mxu0 %v7905
  %v7907 = vand.u32 %v7517, 4294901760
  %7908 = vmatpush1.msra.mxu0 %v7907
  %v7909 = vand.u32 %v7520, 4294901760
  %7910 = vmatprep.subr.mxu0 %v7909
  %v7911 = vand.u32 %v7519, 4294901760
  %7912 = vmatpush1.msra.mxu0 %v7911
  %v7913 = vand.u32 %v7522, 4294901760
  %7914 = vmatprep.subr.mxu0 %v7913
  %v7915 = vand.u32 %v7521, 4294901760
  %7916 = vmatpush1.msra.mxu0 %v7915
  %v7917 = vand.u32 %v7524, 4294901760
  %7918 = vmatprep.subr.mxu0 %v7917
  %v7919 = vand.u32 %v7523, 4294901760
  %7920 = vmatpush1.msra.mxu0 %v7919
  %7921 = vmatprep.subr.mxu0 0.0
  %7922 = vmatpush1.msra.mxu0 0.0
  %7923 = vmatprep.subr.mxu0 0.0
  %7924 = vmatpush1.msra.mxu0 0.0
  %7925 = vmatprep.subr.mxu0 0.0
  %7926 = vmatpush1.msra.mxu0 0.0
  %7927 = vmatprep.subr.mxu0 0.0
  %7928 = vmatpush1.msra.mxu0 0.0
  %7929 = vmatprep.subr.mxu0 0.0
  %7930 = vmatpush1.msra.mxu0 0.0
  %7931 = vmatprep.subr.mxu0 0.0
  %7932 = vmatpush1.msra.mxu0 0.0
  %7933 = vmatprep.subr.mxu0 0.0
  %7934 = vmatpush1.msra.mxu0 0.0
  %7935 = vmatprep.subr.mxu0 0.0
  %7936 = vmatpush1.msra.mxu0 0.0
  %7937 = vmatprep.subr.mxu0 0.0
  %7938 = vmatpush1.msra.mxu0 0.0
  %7939 = vmatprep.subr.mxu0 0.0
  %7940 = vmatpush1.msra.mxu0 0.0
  %7941 = vmatprep.subr.mxu0 0.0
  %7942 = vmatpush1.msra.mxu0 0.0
  %7943 = vmatprep.subr.mxu0 0.0
  %7944 = vmatpush1.msra.mxu0 0.0
  %7945 = vmatprep.subr.mxu0 0.0
  %7946 = vmatpush1.msra.mxu0 0.0
  %7947 = vmatprep.subr.mxu0 0.0
  %7948 = vmatpush1.msra.mxu0 0.0
  %7949 = vmatprep.subr.mxu0 0.0
  %7950 = vmatpush1.msra.mxu0 0.0
  %7951 = vmatprep.subr.mxu0 0.0
  %7952 = vmatpush1.msra.mxu0 0.0
  %7953 = vmatprep.subr.mxu0 0.0
  %7954 = vmatpush1.msra.mxu0 0.0
  %7955 = vmatprep.subr.mxu0 0.0
  %7956 = vmatpush1.msra.mxu0 0.0
  %7957 = vmatprep.subr.mxu0 0.0
  %7958 = vmatpush1.msra.mxu0 0.0
  %7959 = vmatprep.subr.mxu0 0.0
  %7960 = vmatpush1.msra.mxu0 0.0
  %7961 = vmatprep.subr.mxu0 0.0
  %7962 = vmatpush1.msra.mxu0 0.0
  %7963 = vmatprep.subr.mxu0 0.0
  %7964 = vmatpush1.msra.mxu0 0.0
  %7965 = vmatprep.subr.mxu0 0.0
  %7966 = vmatpush1.msra.mxu0 0.0
  %7967 = vmatprep.subr.mxu0 0.0
  %7968 = vmatpush1.msra.mxu0 0.0
  %7969 = vmatprep.mubr.f32.mxu0 0.0
  %v7970 = vand.u32 %v7538, 4294901760
  %v7971 = vsub.f32 %v7538, %v7970
  %v7972 = vand.u32 %v7971, 4294901760
  %7973 = vmatmul.mubr.f32.gmra.mrb[0].mxu0 %v7972
  %v7974 = vpop.f32.mrb[0].mxu0
  %v7975 = vadd.f32 %v7885, %v7974
  %v7976 = vpop.f32.mrb[0].mxu0
  %v7977 = vadd.f32 %v7887, %v7976
  %7978 = vdwg.mxu0
  %v7979 = vand.u32 %v7510, 4294901760
  %v7980 = vsub.f32 %v7510, %v7979
  %v7981 = vand.u32 %v7980, 4294901760
  %7982 = vmatprep.subr.mxu0 %v7981
  %v7983 = vand.u32 %v7509, 4294901760
  %v7984 = vsub.f32 %v7509, %v7983
  %v7985 = vand.u32 %v7984, 4294901760
  %7986 = vmatpush1.msra.mxu0 %v7985
  %v7987 = vand.u32 %v7512, 4294901760
  %v7988 = vsub.f32 %v7512, %v7987
  %v7989 = vand.u32 %v7988, 4294901760
  %7990 = vmatprep.subr.mxu0 %v7989
  %v7991 = vand.u32 %v7511, 4294901760
  %v7992 = vsub.f32 %v7511, %v7991
  %v7993 = vand.u32 %v7992, 4294901760
  %7994 = vmatpush1.msra.mxu0 %v7993
  %v7995 = vand.u32 %v7514, 4294901760
  %v7996 = vsub.f32 %v7514, %v7995
  %v7997 = vand.u32 %v7996, 4294901760
  %7998 = vmatprep.subr.mxu0 %v7997
  %v7999 = vand.u32 %v7513, 4294901760
  %v8000 = vsub.f32 %v7513, %v7999
  %v8001 = vand.u32 %v8000, 4294901760
  %8002 = vmatpush1.msra.mxu0 %v8001
  %v8003 = vand.u32 %v7516, 4294901760
  %v8004 = vsub.f32 %v7516, %v8003
  %v8005 = vand.u32 %v8004, 4294901760
  %8006 = vmatprep.subr.mxu0 %v8005
  %v8007 = vand.u32 %v7515, 4294901760
  %v8008 = vsub.f32 %v7515, %v8007
  %v8009 = vand.u32 %v8008, 4294901760
  %8010 = vmatpush1.msra.mxu0 %v8009
  %v8011 = vand.u32 %v7518, 4294901760
  %v8012 = vsub.f32 %v7518, %v8011
  %v8013 = vand.u32 %v8012, 4294901760
  %8014 = vmatprep.subr.mxu0 %v8013
  %v8015 = vand.u32 %v7517, 4294901760
  %v8016 = vsub.f32 %v7517, %v8015
  %v8017 = vand.u32 %v8016, 4294901760
  %8018 = vmatpush1.msra.mxu0 %v8017
  %v8019 = vand.u32 %v7520, 4294901760
  %v8020 = vsub.f32 %v7520, %v8019
  %v8021 = vand.u32 %v8020, 4294901760
  %8022 = vmatprep.subr.mxu0 %v8021
  %v8023 = vand.u32 %v7519, 4294901760
  %v8024 = vsub.f32 %v7519, %v8023
  %v8025 = vand.u32 %v8024, 4294901760
  %8026 = vmatpush1.msra.mxu0 %v8025
  %v8027 = vand.u32 %v7522, 4294901760
  %v8028 = vsub.f32 %v7522, %v8027
  %v8029 = vand.u32 %v8028, 4294901760
  %8030 = vmatprep.subr.mxu0 %v8029
  %v8031 = vand.u32 %v7521, 4294901760
  %v8032 = vsub.f32 %v7521, %v8031
  %v8033 = vand.u32 %v8032, 4294901760
  %8034 = vmatpush1.msra.mxu0 %v8033
  %v8035 = vand.u32 %v7524, 4294901760
  %v8036 = vsub.f32 %v7524, %v8035
  %v8037 = vand.u32 %v8036, 4294901760
  %8038 = vmatprep.subr.mxu0 %v8037
  %v8039 = vand.u32 %v7523, 4294901760
  %v8040 = vsub.f32 %v7523, %v8039
  %v8041 = vand.u32 %v8040, 4294901760
  %8042 = vmatpush1.msra.mxu0 %v8041
  %8043 = vmatprep.subr.mxu0 0.0
  %8044 = vmatpush1.msra.mxu0 0.0
  %8045 = vmatprep.subr.mxu0 0.0
  %8046 = vmatpush1.msra.mxu0 0.0
  %8047 = vmatprep.subr.mxu0 0.0
  %8048 = vmatpush1.msra.mxu0 0.0
  %8049 = vmatprep.subr.mxu0 0.0
  %8050 = vmatpush1.msra.mxu0 0.0
  %8051 = vmatprep.subr.mxu0 0.0
  %8052 = vmatpush1.msra.mxu0 0.0
  %8053 = vmatprep.subr.mxu0 0.0
  %8054 = vmatpush1.msra.mxu0 0.0
  %8055 = vmatprep.subr.mxu0 0.0
  %8056 = vmatpush1.msra.mxu0 0.0
  %8057 = vmatprep.subr.mxu0 0.0
  %8058 = vmatpush1.msra.mxu0 0.0
  %8059 = vmatprep.subr.mxu0 0.0
  %8060 = vmatpush1.msra.mxu0 0.0
  %8061 = vmatprep.subr.mxu0 0.0
  %8062 = vmatpush1.msra.mxu0 0.0
  %8063 = vmatprep.subr.mxu0 0.0
  %8064 = vmatpush1.msra.mxu0 0.0
  %8065 = vmatprep.subr.mxu0 0.0
  %8066 = vmatpush1.msra.mxu0 0.0
  %8067 = vmatprep.subr.mxu0 0.0
  %8068 = vmatpush1.msra.mxu0 0.0
  %8069 = vmatprep.subr.mxu0 0.0
  %8070 = vmatpush1.msra.mxu0 0.0
  %8071 = vmatprep.subr.mxu0 0.0
  %8072 = vmatpush1.msra.mxu0 0.0
  %8073 = vmatprep.subr.mxu0 0.0
  %8074 = vmatpush1.msra.mxu0 0.0
  %8075 = vmatprep.subr.mxu0 0.0
  %8076 = vmatpush1.msra.mxu0 0.0
  %8077 = vmatprep.subr.mxu0 0.0
  %8078 = vmatpush1.msra.mxu0 0.0
  %8079 = vmatprep.subr.mxu0 0.0
  %8080 = vmatpush1.msra.mxu0 0.0
  %8081 = vmatprep.subr.mxu0 0.0
  %8082 = vmatpush1.msra.mxu0 0.0
  %8083 = vmatprep.subr.mxu0 0.0
  %8084 = vmatpush1.msra.mxu0 0.0
  %8085 = vmatprep.subr.mxu0 0.0
  %8086 = vmatpush1.msra.mxu0 0.0
  %8087 = vmatprep.subr.mxu0 0.0
  %8088 = vmatpush1.msra.mxu0 0.0
  %8089 = vmatprep.subr.mxu0 0.0
  %8090 = vmatpush1.msra.mxu0 0.0
  %8091 = vmatprep.mubr.f32.mxu0 0.0
  %v8092 = vand.u32 %v7538, 4294901760
  %8093 = vmatmul.mubr.f32.gmra.mrb[0].mxu0 %v8092
  %v8094 = vpop.f32.mrb[0].mxu0
  %v8095 = vadd.f32 %v7975, %v8094
  %v8096 = vpop.f32.mrb[0].mxu0
  %v8097 = vadd.f32 %v7977, %v8096
  %8098 = vdwg.mxu0
  %v8099 = vand.u32 %v7510, 4294901760
  %8100 = vmatprep.subr.mxu0 %v8099
  %v8101 = vand.u32 %v7509, 4294901760
  %8102 = vmatpush1.msra.mxu0 %v8101
  %v8103 = vand.u32 %v7512, 4294901760
  %8104 = vmatprep.subr.mxu0 %v8103
  %v8105 = vand.u32 %v7511, 4294901760
  %8106 = vmatpush1.msra.mxu0 %v8105
  %v8107 = vand.u32 %v7514, 4294901760
  %8108 = vmatprep.subr.mxu0 %v8107
  %v8109 = vand.u32 %v7513, 4294901760
  %8110 = vmatpush1.msra.mxu0 %v8109
  %v8111 = vand.u32 %v7516, 4294901760
  %8112 = vmatprep.subr.mxu0 %v8111
  %v8113 = vand.u32 %v7515, 4294901760
  %8114 = vmatpush1.msra.mxu0 %v8113
  %v8115 = vand.u32 %v7518, 4294901760
  %8116 = vmatprep.subr.mxu0 %v8115
  %v8117 = vand.u32 %v7517, 4294901760
  %8118 = vmatpush1.msra.mxu0 %v8117
  %v8119 = vand.u32 %v7520, 4294901760
  %8120 = vmatprep.subr.mxu0 %v8119
  %v8121 = vand.u32 %v7519, 4294901760
  %8122 = vmatpush1.msra.mxu0 %v8121
  %v8123 = vand.u32 %v7522, 4294901760
  %8124 = vmatprep.subr.mxu0 %v8123
  %v8125 = vand.u32 %v7521, 4294901760
  %8126 = vmatpush1.msra.mxu0 %v8125
  %v8127 = vand.u32 %v7524, 4294901760
  %8128 = vmatprep.subr.mxu0 %v8127
  %v8129 = vand.u32 %v7523, 4294901760
  %8130 = vmatpush1.msra.mxu0 %v8129
  %8131 = vmatprep.subr.mxu0 0.0
  %8132 = vmatpush1.msra.mxu0 0.0
  %8133 = vmatprep.subr.mxu0 0.0
  %8134 = vmatpush1.msra.mxu0 0.0
  %8135 = vmatprep.subr.mxu0 0.0
  %8136 = vmatpush1.msra.mxu0 0.0
  %8137 = vmatprep.subr.mxu0 0.0
  %8138 = vmatpush1.msra.mxu0 0.0
  %8139 = vmatprep.subr.mxu0 0.0
  %8140 = vmatpush1.msra.mxu0 0.0
  %8141 = vmatprep.subr.mxu0 0.0
  %8142 = vmatpush1.msra.mxu0 0.0
  %8143 = vmatprep.subr.mxu0 0.0
  %8144 = vmatpush1.msra.mxu0 0.0
  %8145 = vmatprep.subr.mxu0 0.0
  %8146 = vmatpush1.msra.mxu0 0.0
  %8147 = vmatprep.subr.mxu0 0.0
  %8148 = vmatpush1.msra.mxu0 0.0
  %8149 = vmatprep.subr.mxu0 0.0
  %8150 = vmatpush1.msra.mxu0 0.0
  %8151 = vmatprep.subr.mxu0 0.0
  %8152 = vmatpush1.msra.mxu0 0.0
  %8153 = vmatprep.subr.mxu0 0.0
  %8154 = vmatpush1.msra.mxu0 0.0
  %8155 = vmatprep.subr.mxu0 0.0
  %8156 = vmatpush1.msra.mxu0 0.0
  %8157 = vmatprep.subr.mxu0 0.0
  %8158 = vmatpush1.msra.mxu0 0.0
  %8159 = vmatprep.subr.mxu0 0.0
  %8160 = vmatpush1.msra.mxu0 0.0
  %8161 = vmatprep.subr.mxu0 0.0
  %8162 = vmatpush1.msra.mxu0 0.0
  %8163 = vmatprep.subr.mxu0 0.0
  %8164 = vmatpush1.msra.mxu0 0.0
  %8165 = vmatprep.subr.mxu0 0.0
  %8166 = vmatpush1.msra.mxu0 0.0
  %8167 = vmatprep.subr.mxu0 0.0
  %8168 = vmatpush1.msra.mxu0 0.0
  %8169 = vmatprep.subr.mxu0 0.0
  %8170 = vmatpush1.msra.mxu0 0.0
  %8171 = vmatprep.subr.mxu0 0.0
  %8172 = vmatpush1.msra.mxu0 0.0
  %8173 = vmatprep.subr.mxu0 0.0
  %8174 = vmatpush1.msra.mxu0 0.0
  %8175 = vmatprep.subr.mxu0 0.0
  %8176 = vmatpush1.msra.mxu0 0.0
  %8177 = vmatprep.subr.mxu0 0.0
  %8178 = vmatpush1.msra.mxu0 0.0
  %8179 = vmatprep.mubr.f32.mxu0 0.0
  %v8180 = vand.u32 %v7538, 4294901760
  %8181 = vmatmul.mubr.f32.gmra.mrb[0].mxu0 %v8180
  %v8182 = vpop.f32.mrb[0].mxu0
  %v8183 = vadd.f32 %v8095, %v8182
  %v8184 = vpop.f32.mrb[0].mxu0
  %v8185 = vadd.f32 %v8097, %v8184
  %8186 = vdwg.mxu0
  %v8187 = vmax.f32 %v8183, 0.0
  %v8188 = vmax.f32 %v8185, 0.0
  %v8189 = vld [vmem:[%s9] sm:$0xff]
  %v8190 = vld [vmem:[%s9 + $0x8] sm:$0xff]
  %v8191 = vld [vmem:[%s9 + $0x10] sm:$0xff]
  %v8192 = vld [vmem:[%s9 + $0x18] sm:$0xff]
  %v8193 = vld [vmem:[%s9 + $0x20] sm:$0xff]
  %v8194 = vld [vmem:[%s9 + $0x28] sm:$0xff]
  %v8195 = vld [vmem:[%s9 + $0x30] sm:$0xff]
  %v8196 = vld [vmem:[%s9 + $0x38] sm:$0xff]
  %v8197 = vld [vmem:[%s9 + $0x40] sm:$0xff]
  %v8198 = vld [vmem:[%s9 + $0x48] sm:$0xff]
  %v8199 = vld [vmem:[%s9 + $0x50] sm:$0xff]
  %v8200 = vld [vmem:[%s9 + $0x58] sm:$0xff]
  %v8201 = vld [vmem:[%s9 + $0x60] sm:$0xff]
  %v8202 = vld [vmem:[%s9 + $0x68] sm:$0xff]
  %v8203 = vld [vmem:[%s9 + $0x70] sm:$0xff]
  %v8204 = vld [vmem:[%s9 + $0x78] sm:$0xff]
  %v8205 = vld [vmem:[%s9 + $0x80] sm:$0xff]
  %v8206 = vld [vmem:[%s9 + $0x88] sm:$0xff]
  %v8207 = vld [vmem:[%s9 + $0x90] sm:$0xff]
  %v8208 = vld [vmem:[%s9 + $0x98] sm:$0xff]
  %v8209 = vld [vmem:[%s9 + $0xa0] sm:$0xff]
  %v8210 = vld [vmem:[%s9 + $0xa8] sm:$0xff]
  %v8211 = vld [vmem:[%s9 + $0xb0] sm:$0xff]
  %v8212 = vld [vmem:[%s9 + $0xb8] sm:$0xff]
  %v8213 = vld [vmem:[%s9 + $0xc0] sm:$0xff]
  %v8214 = vld [vmem:[%s9 + $0xc8] sm:$0xff]
  %v8215 = vld [vmem:[%s9 + $0xd0] sm:$0xff]
  %v8216 = vld [vmem:[%s9 + $0xd8] sm:$0xff]
  %v8217 = vld [vmem:[%s9 + $0xe0] sm:$0xff]
  %v8218 = vld [vmem:[%s9 + $0xe8] sm:$0xff]
  %v8219 = vld [vmem:[%s9 + $0xf0] sm:$0xff]
  %v8220 = vld [vmem:[%s9 + $0xf8] sm:$0xff]
  %v8221 = vld [vmem:[%s10] sm:$0x1]
  %v8223 = vlaneseq
  %v8224 = vshrl.u32 %v8223, 7
  %v8225 = vsub.s32 0, %v8224
  %v8226 = vrot.slane %v8221, %v8225
  %8228 = vmatprep.subr.mxu0 0.0
  %v8229 = vand.u32 %v8189, 4294901760
  %8230 = vmatpush1.msra.mxu0 %v8229
  %8231 = vmatprep.subr.mxu0 0.0
  %v8232 = vand.u32 %v8190, 4294901760
  %8233 = vmatpush1.msra.mxu0 %v8232
  %8234 = vmatprep.subr.mxu0 0.0
  %v8235 = vand.u32 %v8191, 4294901760
  %8236 = vmatpush1.msra.mxu0 %v8235
  %8237 = vmatprep.subr.mxu0 0.0
  %v8238 = vand.u32 %v8192, 4294901760
  %8239 = vmatpush1.msra.mxu0 %v8238
  %8240 = vmatprep.subr.mxu0 0.0
  %v8241 = vand.u32 %v8193, 4294901760
  %8242 = vmatpush1.msra.mxu0 %v8241
  %8243 = vmatprep.subr.mxu0 0.0
  %v8244 = vand.u32 %v8194, 4294901760
  %8245 = vmatpush1.msra.mxu0 %v8244
  %8246 = vmatprep.subr.mxu0 0.0
  %v8247 = vand.u32 %v8195, 4294901760
  %8248 = vmatpush1.msra.mxu0 %v8247
  %8249 = vmatprep.subr.mxu0 0.0
  %v8250 = vand.u32 %v8196, 4294901760
  %8251 = vmatpush1.msra.mxu0 %v8250
  %8252 = vmatprep.subr.mxu0 0.0
  %v8253 = vand.u32 %v8197, 4294901760
  %8254 = vmatpush1.msra.mxu0 %v8253
  %8255 = vmatprep.subr.mxu0 0.0
  %v8256 = vand.u32 %v8198, 4294901760
  %8257 = vmatpush1.msra.mxu0 %v8256
  %8258 = vmatprep.subr.mxu0 0.0
  %v8259 = vand.u32 %v8199, 4294901760
  %8260 = vmatpush1.msra.mxu0 %v8259
  %8261 = vmatprep.subr.mxu0 0.0
  %v8262 = vand.u32 %v8200, 4294901760
  %8263 = vmatpush1.msra.mxu0 %v8262
  %8264 = vmatprep.subr.mxu0 0.0
  %v8265 = vand.u32 %v8201, 4294901760
  %8266 = vmatpush1.msra.mxu0 %v8265
  %8267 = vmatprep.subr.mxu0 0.0
  %v8268 = vand.u32 %v8202, 4294901760
  %8269 = vmatpush1.msra.mxu0 %v8268
  %8270 = vmatprep.subr.mxu0 0.0
  %v8271 = vand.u32 %v8203, 4294901760
  %8272 = vmatpush1.msra.mxu0 %v8271
  %8273 = vmatprep.subr.mxu0 0.0
  %v8274 = vand.u32 %v8204, 4294901760
  %8275 = vmatpush1.msra.mxu0 %v8274
  %8276 = vmatprep.subr.mxu0 0.0
  %v8277 = vand.u32 %v8205, 4294901760
  %8278 = vmatpush1.msra.mxu0 %v8277
  %8279 = vmatprep.subr.mxu0 0.0
  %v8280 = vand.u32 %v8206, 4294901760
  %8281 = vmatpush1.msra.mxu0 %v8280
  %8282 = vmatprep.subr.mxu0 0.0
  %v8283 = vand.u32 %v8207, 4294901760
  %8284 = vmatpush1.msra.mxu0 %v8283
  %8285 = vmatprep.subr.mxu0 0.0
  %v8286 = vand.u32 %v8208, 4294901760
  %8287 = vmatpush1.msra.mxu0 %v8286
  %8288 = vmatprep.subr.mxu0 0.0
  %v8289 = vand.u32 %v8209, 4294901760
  %8290 = vmatpush1.msra.mxu0 %v8289
  %8291 = vmatprep.subr.mxu0 0.0
  %v8292 = vand.u32 %v8210, 4294901760
  %8293 = vmatpush1.msra.mxu0 %v8292
  %8294 = vmatprep.subr.mxu0 0.0
  %v8295 = vand.u32 %v8211, 4294901760
  %8296 = vmatpush1.msra.mxu0 %v8295
  %8297 = vmatprep.subr.mxu0 0.0
  %v8298 = vand.u32 %v8212, 4294901760
  %8299 = vmatpush1.msra.mxu0 %v8298
  %8300 = vmatprep.subr.mxu0 0.0
  %v8301 = vand.u32 %v8213, 4294901760
  %8302 = vmatpush1.msra.mxu0 %v8301
  %8303 = vmatprep.subr.mxu0 0.0
  %v8304 = vand.u32 %v8214, 4294901760
  %8305 = vmatpush1.msra.mxu0 %v8304
  %8306 = vmatprep.subr.mxu0 0.0
  %v8307 = vand.u32 %v8215, 4294901760
  %8308 = vmatpush1.msra.mxu0 %v8307
  %8309 = vmatprep.subr.mxu0 0.0
  %v8310 = vand.u32 %v8216, 4294901760
  %8311 = vmatpush1.msra.mxu0 %v8310
  %8312 = vmatprep.subr.mxu0 0.0
  %v8313 = vand.u32 %v8217, 4294901760
  %8314 = vmatpush1.msra.mxu0 %v8313
  %8315 = vmatprep.subr.mxu0 0.0
  %v8316 = vand.u32 %v8218, 4294901760
  %8317 = vmatpush1.msra.mxu0 %v8316
  %8318 = vmatprep.subr.mxu0 0.0
  %v8319 = vand.u32 %v8219, 4294901760
  %8320 = vmatpush1.msra.mxu0 %v8319
  %8321 = vmatprep.subr.mxu0 0.0
  %v8322 = vand.u32 %v8220, 4294901760
  %8323 = vmatpush1.msra.mxu0 %v8322
  %v8324 = vand.u32 %v8188, 4294901760
  %v8325 = vsub.f32 %v8188, %v8324
  %v8326 = vand.u32 %v8325, 4294901760
  %v8327 = vsub.f32 %v8325, %v8326
  %v8328 = vand.u32 %v8327, 4294901760
  %8329 = vmatprep.mubr.f32.mxu0 %v8328
  %v8330 = vand.u32 %v8187, 4294901760
  %v8331 = vsub.f32 %v8187, %v8330
  %v8332 = vand.u32 %v8331, 4294901760
  %v8333 = vsub.f32 %v8331, %v8332
  %v8334 = vand.u32 %v8333, 4294901760
  %8335 = vmatmul.mubr.f32.gmra.mrb[0].mxu0 %v8334
  %v8336 = vpop.f32.mrb[0].mxu0
  %v8337 = vadd.f32 %v8226, %v8336
  %v8338 = vpop.f32.mrb[0].mxu0
  %8339 = vdwg.mxu0
  %8340 = vmatprep.subr.mxu0 0.0
  %v8341 = vand.u32 %v8189, 4294901760
  %v8342 = vsub.f32 %v8189, %v8341
  %v8343 = vand.u32 %v8342, 4294901760
  %v8344 = vsub.f32 %v8342, %v8343
  %v8345 = vand.u32 %v8344, 4294901760
  %8346 = vmatpush1.msra.mxu0 %v8345
  %8347 = vmatprep.subr.mxu0 0.0
  %v8348 = vand.u32 %v8190, 4294901760
  %v8349 = vsub.f32 %v8190, %v8348
  %v8350 = vand.u32 %v8349, 4294901760
  %v8351 = vsub.f32 %v8349, %v8350
  %v8352 = vand.u32 %v8351, 4294901760
  %8353 = vmatpush1.msra.mxu0 %v8352
  %8354 = vmatprep.subr.mxu0 0.0
  %v8355 = vand.u32 %v8191, 4294901760
  %v8356 = vsub.f32 %v8191, %v8355
  %v8357 = vand.u32 %v8356, 4294901760
  %v8358 = vsub.f32 %v8356, %v8357
  %v8359 = vand.u32 %v8358, 4294901760
  %8360 = vmatpush1.msra.mxu0 %v8359
  %8361 = vmatprep.subr.mxu0 0.0
  %v8362 = vand.u32 %v8192, 4294901760
  %v8363 = vsub.f32 %v8192, %v8362
  %v8364 = vand.u32 %v8363, 4294901760
  %v8365 = vsub.f32 %v8363, %v8364
  %v8366 = vand.u32 %v8365, 4294901760
  %8367 = vmatpush1.msra.mxu0 %v8366
  %8368 = vmatprep.subr.mxu0 0.0
  %v8369 = vand.u32 %v8193, 4294901760
  %v8370 = vsub.f32 %v8193, %v8369
  %v8371 = vand.u32 %v8370, 4294901760
  %v8372 = vsub.f32 %v8370, %v8371
  %v8373 = vand.u32 %v8372, 4294901760
  %8374 = vmatpush1.msra.mxu0 %v8373
  %8375 = vmatprep.subr.mxu0 0.0
  %v8376 = vand.u32 %v8194, 4294901760
  %v8377 = vsub.f32 %v8194, %v8376
  %v8378 = vand.u32 %v8377, 4294901760
  %v8379 = vsub.f32 %v8377, %v8378
  %v8380 = vand.u32 %v8379, 4294901760
  %8381 = vmatpush1.msra.mxu0 %v8380
  %8382 = vmatprep.subr.mxu0 0.0
  %v8383 = vand.u32 %v8195, 4294901760
  %v8384 = vsub.f32 %v8195, %v8383
  %v8385 = vand.u32 %v8384, 4294901760
  %v8386 = vsub.f32 %v8384, %v8385
  %v8387 = vand.u32 %v8386, 4294901760
  %8388 = vmatpush1.msra.mxu0 %v8387
  %8389 = vmatprep.subr.mxu0 0.0
  %v8390 = vand.u32 %v8196, 4294901760
  %v8391 = vsub.f32 %v8196, %v8390
  %v8392 = vand.u32 %v8391, 4294901760
  %v8393 = vsub.f32 %v8391, %v8392
  %v8394 = vand.u32 %v8393, 4294901760
  %8395 = vmatpush1.msra.mxu0 %v8394
  %8396 = vmatprep.subr.mxu0 0.0
  %v8397 = vand.u32 %v8197, 4294901760
  %v8398 = vsub.f32 %v8197, %v8397
  %v8399 = vand.u32 %v8398, 4294901760
  %v8400 = vsub.f32 %v8398, %v8399
  %v8401 = vand.u32 %v8400, 4294901760
  %8402 = vmatpush1.msra.mxu0 %v8401
  %8403 = vmatprep.subr.mxu0 0.0
  %v8404 = vand.u32 %v8198, 4294901760
  %v8405 = vsub.f32 %v8198, %v8404
  %v8406 = vand.u32 %v8405, 4294901760
  %v8407 = vsub.f32 %v8405, %v8406
  %v8408 = vand.u32 %v8407, 4294901760
  %8409 = vmatpush1.msra.mxu0 %v8408
  %8410 = vmatprep.subr.mxu0 0.0
  %v8411 = vand.u32 %v8199, 4294901760
  %v8412 = vsub.f32 %v8199, %v8411
  %v8413 = vand.u32 %v8412, 4294901760
  %v8414 = vsub.f32 %v8412, %v8413
  %v8415 = vand.u32 %v8414, 4294901760
  %8416 = vmatpush1.msra.mxu0 %v8415
  %8417 = vmatprep.subr.mxu0 0.0
  %v8418 = vand.u32 %v8200, 4294901760
  %v8419 = vsub.f32 %v8200, %v8418
  %v8420 = vand.u32 %v8419, 4294901760
  %v8421 = vsub.f32 %v8419, %v8420
  %v8422 = vand.u32 %v8421, 4294901760
  %8423 = vmatpush1.msra.mxu0 %v8422
  %8424 = vmatprep.subr.mxu0 0.0
  %v8425 = vand.u32 %v8201, 4294901760
  %v8426 = vsub.f32 %v8201, %v8425
  %v8427 = vand.u32 %v8426, 4294901760
  %v8428 = vsub.f32 %v8426, %v8427
  %v8429 = vand.u32 %v8428, 4294901760
  %8430 = vmatpush1.msra.mxu0 %v8429
  %8431 = vmatprep.subr.mxu0 0.0
  %v8432 = vand.u32 %v8202, 4294901760
  %v8433 = vsub.f32 %v8202, %v8432
  %v8434 = vand.u32 %v8433, 4294901760
  %v8435 = vsub.f32 %v8433, %v8434
  %v8436 = vand.u32 %v8435, 4294901760
  %8437 = vmatpush1.msra.mxu0 %v8436
  %8438 = vmatprep.subr.mxu0 0.0
  %v8439 = vand.u32 %v8203, 4294901760
  %v8440 = vsub.f32 %v8203, %v8439
  %v8441 = vand.u32 %v8440, 4294901760
  %v8442 = vsub.f32 %v8440, %v8441
  %v8443 = vand.u32 %v8442, 4294901760
  %8444 = vmatpush1.msra.mxu0 %v8443
  %8445 = vmatprep.subr.mxu0 0.0
  %v8446 = vand.u32 %v8204, 4294901760
  %v8447 = vsub.f32 %v8204, %v8446
  %v8448 = vand.u32 %v8447, 4294901760
  %v8449 = vsub.f32 %v8447, %v8448
  %v8450 = vand.u32 %v8449, 4294901760
  %8451 = vmatpush1.msra.mxu0 %v8450
  %8452 = vmatprep.subr.mxu0 0.0
  %v8453 = vand.u32 %v8205, 4294901760
  %v8454 = vsub.f32 %v8205, %v8453
  %v8455 = vand.u32 %v8454, 4294901760
  %v8456 = vsub.f32 %v8454, %v8455
  %v8457 = vand.u32 %v8456, 4294901760
  %8458 = vmatpush1.msra.mxu0 %v8457
  %8459 = vmatprep.subr.mxu0 0.0
  %v8460 = vand.u32 %v8206, 4294901760
  %v8461 = vsub.f32 %v8206, %v8460
  %v8462 = vand.u32 %v8461, 4294901760
  %v8463 = vsub.f32 %v8461, %v8462
  %v8464 = vand.u32 %v8463, 4294901760
  %8465 = vmatpush1.msra.mxu0 %v8464
  %8466 = vmatprep.subr.mxu0 0.0
  %v8467 = vand.u32 %v8207, 4294901760
  %v8468 = vsub.f32 %v8207, %v8467
  %v8469 = vand.u32 %v8468, 4294901760
  %v8470 = vsub.f32 %v8468, %v8469
  %v8471 = vand.u32 %v8470, 4294901760
  %8472 = vmatpush1.msra.mxu0 %v8471
  %8473 = vmatprep.subr.mxu0 0.0
  %v8474 = vand.u32 %v8208, 4294901760
  %v8475 = vsub.f32 %v8208, %v8474
  %v8476 = vand.u32 %v8475, 4294901760
  %v8477 = vsub.f32 %v8475, %v8476
  %v8478 = vand.u32 %v8477, 4294901760
  %8479 = vmatpush1.msra.mxu0 %v8478
  %8480 = vmatprep.subr.mxu0 0.0
  %v8481 = vand.u32 %v8209, 4294901760
  %v8482 = vsub.f32 %v8209, %v8481
  %v8483 = vand.u32 %v8482, 4294901760
  %v8484 = vsub.f32 %v8482, %v8483
  %v8485 = vand.u32 %v8484, 4294901760
  %8486 = vmatpush1.msra.mxu0 %v8485
  %8487 = vmatprep.subr.mxu0 0.0
  %v8488 = vand.u32 %v8210, 4294901760
  %v8489 = vsub.f32 %v8210, %v8488
  %v8490 = vand.u32 %v8489, 4294901760
  %v8491 = vsub.f32 %v8489, %v8490
  %v8492 = vand.u32 %v8491, 4294901760
  %8493 = vmatpush1.msra.mxu0 %v8492
  %8494 = vmatprep.subr.mxu0 0.0
  %v8495 = vand.u32 %v8211, 4294901760
  %v8496 = vsub.f32 %v8211, %v8495
  %v8497 = vand.u32 %v8496, 4294901760
  %v8498 = vsub.f32 %v8496, %v8497
  %v8499 = vand.u32 %v8498, 4294901760
  %8500 = vmatpush1.msra.mxu0 %v8499
  %8501 = vmatprep.subr.mxu0 0.0
  %v8502 = vand.u32 %v8212, 4294901760
  %v8503 = vsub.f32 %v8212, %v8502
  %v8504 = vand.u32 %v8503, 4294901760
  %v8505 = vsub.f32 %v8503, %v8504
  %v8506 = vand.u32 %v8505, 4294901760
  %8507 = vmatpush1.msra.mxu0 %v8506
  %8508 = vmatprep.subr.mxu0 0.0
  %v8509 = vand.u32 %v8213, 4294901760
  %v8510 = vsub.f32 %v8213, %v8509
  %v8511 = vand.u32 %v8510, 4294901760
  %v8512 = vsub.f32 %v8510, %v8511
  %v8513 = vand.u32 %v8512, 4294901760
  %8514 = vmatpush1.msra.mxu0 %v8513
  %8515 = vmatprep.subr.mxu0 0.0
  %v8516 = vand.u32 %v8214, 4294901760
  %v8517 = vsub.f32 %v8214, %v8516
  %v8518 = vand.u32 %v8517, 4294901760
  %v8519 = vsub.f32 %v8517, %v8518
  %v8520 = vand.u32 %v8519, 4294901760
  %8521 = vmatpush1.msra.mxu0 %v8520
  %8522 = vmatprep.subr.mxu0 0.0
  %v8523 = vand.u32 %v8215, 4294901760
  %v8524 = vsub.f32 %v8215, %v8523
  %v8525 = vand.u32 %v8524, 4294901760
  %v8526 = vsub.f32 %v8524, %v8525
  %v8527 = vand.u32 %v8526, 4294901760
  %8528 = vmatpush1.msra.mxu0 %v8527
  %8529 = vmatprep.subr.mxu0 0.0
  %v8530 = vand.u32 %v8216, 4294901760
  %v8531 = vsub.f32 %v8216, %v8530
  %v8532 = vand.u32 %v8531, 4294901760
  %v8533 = vsub.f32 %v8531, %v8532
  %v8534 = vand.u32 %v8533, 4294901760
  %8535 = vmatpush1.msra.mxu0 %v8534
  %8536 = vmatprep.subr.mxu0 0.0
  %v8537 = vand.u32 %v8217, 4294901760
  %v8538 = vsub.f32 %v8217, %v8537
  %v8539 = vand.u32 %v8538, 4294901760
  %v8540 = vsub.f32 %v8538, %v8539
  %v8541 = vand.u32 %v8540, 4294901760
  %8542 = vmatpush1.msra.mxu0 %v8541
  %8543 = vmatprep.subr.mxu0 0.0
  %v8544 = vand.u32 %v8218, 4294901760
  %v8545 = vsub.f32 %v8218, %v8544
  %v8546 = vand.u32 %v8545, 4294901760
  %v8547 = vsub.f32 %v8545, %v8546
  %v8548 = vand.u32 %v8547, 4294901760
  %8549 = vmatpush1.msra.mxu0 %v8548
  %8550 = vmatprep.subr.mxu0 0.0
  %v8551 = vand.u32 %v8219, 4294901760
  %v8552 = vsub.f32 %v8219, %v8551
  %v8553 = vand.u32 %v8552, 4294901760
  %v8554 = vsub.f32 %v8552, %v8553
  %v8555 = vand.u32 %v8554, 4294901760
  %8556 = vmatpush1.msra.mxu0 %v8555
  %8557 = vmatprep.subr.mxu0 0.0
  %v8558 = vand.u32 %v8220, 4294901760
  %v8559 = vsub.f32 %v8220, %v8558
  %v8560 = vand.u32 %v8559, 4294901760
  %v8561 = vsub.f32 %v8559, %v8560
  %v8562 = vand.u32 %v8561, 4294901760
  %8563 = vmatpush1.msra.mxu0 %v8562
  %v8564 = vand.u32 %v8188, 4294901760
  %8565 = vmatprep.mubr.f32.mxu0 %v8564
  %v8566 = vand.u32 %v8187, 4294901760
  %8567 = vmatmul.mubr.f32.gmra.mrb[0].mxu0 %v8566
  %v8568 = vpop.f32.mrb[0].mxu0
  %v8569 = vadd.f32 %v8337, %v8568
  %v8570 = vpop.f32.mrb[0].mxu0
  %8571 = vdwg.mxu0
  %8572 = vmatprep.subr.mxu0 0.0
  %v8573 = vand.u32 %v8189, 4294901760
  %v8574 = vsub.f32 %v8189, %v8573
  %8575 = vmatpush1.msra.mxu0 %v8574
  %8576 = vmatprep.subr.mxu0 0.0
  %v8577 = vand.u32 %v8190, 4294901760
  %v8578 = vsub.f32 %v8190, %v8577
  %8579 = vmatpush1.msra.mxu0 %v8578
  %8580 = vmatprep.subr.mxu0 0.0
  %v8581 = vand.u32 %v8191, 4294901760
  %v8582 = vsub.f32 %v8191, %v8581
  %8583 = vmatpush1.msra.mxu0 %v8582
  %8584 = vmatprep.subr.mxu0 0.0
  %v8585 = vand.u32 %v8192, 4294901760
  %v8586 = vsub.f32 %v8192, %v8585
  %8587 = vmatpush1.msra.mxu0 %v8586
  %8588 = vmatprep.subr.mxu0 0.0
  %v8589 = vand.u32 %v8193, 4294901760
  %v8590 = vsub.f32 %v8193, %v8589
  %8591 = vmatpush1.msra.mxu0 %v8590
  %8592 = vmatprep.subr.mxu0 0.0
  %v8593 = vand.u32 %v8194, 4294901760
  %v8594 = vsub.f32 %v8194, %v8593
  %8595 = vmatpush1.msra.mxu0 %v8594
  %8596 = vmatprep.subr.mxu0 0.0
  %v8597 = vand.u32 %v8195, 4294901760
  %v8598 = vsub.f32 %v8195, %v8597
  %8599 = vmatpush1.msra.mxu0 %v8598
  %8600 = vmatprep.subr.mxu0 0.0
  %v8601 = vand.u32 %v8196, 4294901760
  %v8602 = vsub.f32 %v8196, %v8601
  %8603 = vmatpush1.msra.mxu0 %v8602
  %8604 = vmatprep.subr.mxu0 0.0
  %v8605 = vand.u32 %v8197, 4294901760
  %v8606 = vsub.f32 %v8197, %v8605
  %8607 = vmatpush1.msra.mxu0 %v8606
  %8608 = vmatprep.subr.mxu0 0.0
  %v8609 = vand.u32 %v8198, 4294901760
  %v8610 = vsub.f32 %v8198, %v8609
  %8611 = vmatpush1.msra.mxu0 %v8610
  %8612 = vmatprep.subr.mxu0 0.0
  %v8613 = vand.u32 %v8199, 4294901760
  %v8614 = vsub.f32 %v8199, %v8613
  %8615 = vmatpush1.msra.mxu0 %v8614
  %8616 = vmatprep.subr.mxu0 0.0
  %v8617 = vand.u32 %v8200, 4294901760
  %v8618 = vsub.f32 %v8200, %v8617
  %8619 = vmatpush1.msra.mxu0 %v8618
  %8620 = vmatprep.subr.mxu0 0.0
  %v8621 = vand.u32 %v8201, 4294901760
  %v8622 = vsub.f32 %v8201, %v8621
  %8623 = vmatpush1.msra.mxu0 %v8622
  %8624 = vmatprep.subr.mxu0 0.0
  %v8625 = vand.u32 %v8202, 4294901760
  %v8626 = vsub.f32 %v8202, %v8625
  %8627 = vmatpush1.msra.mxu0 %v8626
  %8628 = vmatprep.subr.mxu0 0.0
  %v8629 = vand.u32 %v8203, 4294901760
  %v8630 = vsub.f32 %v8203, %v8629
  %8631 = vmatpush1.msra.mxu0 %v8630
  %8632 = vmatprep.subr.mxu0 0.0
  %v8633 = vand.u32 %v8204, 4294901760
  %v8634 = vsub.f32 %v8204, %v8633
  %8635 = vmatpush1.msra.mxu0 %v8634
  %8636 = vmatprep.subr.mxu0 0.0
  %v8637 = vand.u32 %v8205, 4294901760
  %v8638 = vsub.f32 %v8205, %v8637
  %8639 = vmatpush1.msra.mxu0 %v8638
  %8640 = vmatprep.subr.mxu0 0.0
  %v8641 = vand.u32 %v8206, 4294901760
  %v8642 = vsub.f32 %v8206, %v8641
  %8643 = vmatpush1.msra.mxu0 %v8642
  %8644 = vmatprep.subr.mxu0 0.0
  %v8645 = vand.u32 %v8207, 4294901760
  %v8646 = vsub.f32 %v8207, %v8645
  %8647 = vmatpush1.msra.mxu0 %v8646
  %8648 = vmatprep.subr.mxu0 0.0
  %v8649 = vand.u32 %v8208, 4294901760
  %v8650 = vsub.f32 %v8208, %v8649
  %8651 = vmatpush1.msra.mxu0 %v8650
  %8652 = vmatprep.subr.mxu0 0.0
  %v8653 = vand.u32 %v8209, 4294901760
  %v8654 = vsub.f32 %v8209, %v8653
  %8655 = vmatpush1.msra.mxu0 %v8654
  %8656 = vmatprep.subr.mxu0 0.0
  %v8657 = vand.u32 %v8210, 4294901760
  %v8658 = vsub.f32 %v8210, %v8657
  %8659 = vmatpush1.msra.mxu0 %v8658
  %8660 = vmatprep.subr.mxu0 0.0
  %v8661 = vand.u32 %v8211, 4294901760
  %v8662 = vsub.f32 %v8211, %v8661
  %8663 = vmatpush1.msra.mxu0 %v8662
  %8664 = vmatprep.subr.mxu0 0.0
  %v8665 = vand.u32 %v8212, 4294901760
  %v8666 = vsub.f32 %v8212, %v8665
  %8667 = vmatpush1.msra.mxu0 %v8666
  %8668 = vmatprep.subr.mxu0 0.0
  %v8669 = vand.u32 %v8213, 4294901760
  %v8670 = vsub.f32 %v8213, %v8669
  %8671 = vmatpush1.msra.mxu0 %v8670
  %8672 = vmatprep.subr.mxu0 0.0
  %v8673 = vand.u32 %v8214, 4294901760
  %v8674 = vsub.f32 %v8214, %v8673
  %8675 = vmatpush1.msra.mxu0 %v8674
  %8676 = vmatprep.subr.mxu0 0.0
  %v8677 = vand.u32 %v8215, 4294901760
  %v8678 = vsub.f32 %v8215, %v8677
  %8679 = vmatpush1.msra.mxu0 %v8678
  %8680 = vmatprep.subr.mxu0 0.0
  %v8681 = vand.u32 %v8216, 4294901760
  %v8682 = vsub.f32 %v8216, %v8681
  %8683 = vmatpush1.msra.mxu0 %v8682
  %8684 = vmatprep.subr.mxu0 0.0
  %v8685 = vand.u32 %v8217, 4294901760
  %v8686 = vsub.f32 %v8217, %v8685
  %8687 = vmatpush1.msra.mxu0 %v8686
  %8688 = vmatprep.subr.mxu0 0.0
  %v8689 = vand.u32 %v8218, 4294901760
  %v8690 = vsub.f32 %v8218, %v8689
  %8691 = vmatpush1.msra.mxu0 %v8690
  %8692 = vmatprep.subr.mxu0 0.0
  %v8693 = vand.u32 %v8219, 4294901760
  %v8694 = vsub.f32 %v8219, %v8693
  %8695 = vmatpush1.msra.mxu0 %v8694
  %8696 = vmatprep.subr.mxu0 0.0
  %v8697 = vand.u32 %v8220, 4294901760
  %v8698 = vsub.f32 %v8220, %v8697
  %8699 = vmatpush1.msra.mxu0 %v8698
  %v8700 = vand.u32 %v8188, 4294901760
  %v8701 = vsub.f32 %v8188, %v8700
  %8702 = vmatprep.mubr.f32.mxu0 %v8701
  %v8703 = vand.u32 %v8187, 4294901760
  %v8704 = vsub.f32 %v8187, %v8703
  %8705 = vmatmul.mubr.f32.gmra.mrb[0].mxu0 %v8704
  %v8706 = vpop.f32.mrb[0].mxu0
  %v8707 = vadd.f32 %v8569, %v8706
  %v8708 = vpop.f32.mrb[0].mxu0
  %8709 = vdwg.mxu0
  %8710 = vmatprep.subr.mxu0 0.0
  %v8711 = vand.u32 %v8189, 4294901760
  %8712 = vmatpush1.msra.mxu0 %v8711
  %8713 = vmatprep.subr.mxu0 0.0
  %v8714 = vand.u32 %v8190, 4294901760
  %8715 = vmatpush1.msra.mxu0 %v8714
  %8716 = vmatprep.subr.mxu0 0.0
  %v8717 = vand.u32 %v8191, 4294901760
  %8718 = vmatpush1.msra.mxu0 %v8717
  %8719 = vmatprep.subr.mxu0 0.0
  %v8720 = vand.u32 %v8192, 4294901760
  %8721 = vmatpush1.msra.mxu0 %v8720
  %8722 = vmatprep.subr.mxu0 0.0
  %v8723 = vand.u32 %v8193, 4294901760
  %8724 = vmatpush1.msra.mxu0 %v8723
  %8725 = vmatprep.subr.mxu0 0.0
  %v8726 = vand.u32 %v8194, 4294901760
  %8727 = vmatpush1.msra.mxu0 %v8726
  %8728 = vmatprep.subr.mxu0 0.0
  %v8729 = vand.u32 %v8195, 4294901760
  %8730 = vmatpush1.msra.mxu0 %v8729
  %8731 = vmatprep.subr.mxu0 0.0
  %v8732 = vand.u32 %v8196, 4294901760
  %8733 = vmatpush1.msra.mxu0 %v8732
  %8734 = vmatprep.subr.mxu0 0.0
  %v8735 = vand.u32 %v8197, 4294901760
  %8736 = vmatpush1.msra.mxu0 %v8735
  %8737 = vmatprep.subr.mxu0 0.0
  %v8738 = vand.u32 %v8198, 4294901760
  %8739 = vmatpush1.msra.mxu0 %v8738
  %8740 = vmatprep.subr.mxu0 0.0
  %v8741 = vand.u32 %v8199, 4294901760
  %8742 = vmatpush1.msra.mxu0 %v8741
  %8743 = vmatprep.subr.mxu0 0.0
  %v8744 = vand.u32 %v8200, 4294901760
  %8745 = vmatpush1.msra.mxu0 %v8744
  %8746 = vmatprep.subr.mxu0 0.0
  %v8747 = vand.u32 %v8201, 4294901760
  %8748 = vmatpush1.msra.mxu0 %v8747
  %8749 = vmatprep.subr.mxu0 0.0
  %v8750 = vand.u32 %v8202, 4294901760
  %8751 = vmatpush1.msra.mxu0 %v8750
  %8752 = vmatprep.subr.mxu0 0.0
  %v8753 = vand.u32 %v8203, 4294901760
  %8754 = vmatpush1.msra.mxu0 %v8753
  %8755 = vmatprep.subr.mxu0 0.0
  %v8756 = vand.u32 %v8204, 4294901760
  %8757 = vmatpush1.msra.mxu0 %v8756
  %8758 = vmatprep.subr.mxu0 0.0
  %v8759 = vand.u32 %v8205, 4294901760
  %8760 = vmatpush1.msra.mxu0 %v8759
  %8761 = vmatprep.subr.mxu0 0.0
  %v8762 = vand.u32 %v8206, 4294901760
  %8763 = vmatpush1.msra.mxu0 %v8762
  %8764 = vmatprep.subr.mxu0 0.0
  %v8765 = vand.u32 %v8207, 4294901760
  %8766 = vmatpush1.msra.mxu0 %v8765
  %8767 = vmatprep.subr.mxu0 0.0
  %v8768 = vand.u32 %v8208, 4294901760
  %8769 = vmatpush1.msra.mxu0 %v8768
  %8770 = vmatprep.subr.mxu0 0.0
  %v8771 = vand.u32 %v8209, 4294901760
  %8772 = vmatpush1.msra.mxu0 %v8771
  %8773 = vmatprep.subr.mxu0 0.0
  %v8774 = vand.u32 %v8210, 4294901760
  %8775 = vmatpush1.msra.mxu0 %v8774
  %8776 = vmatprep.subr.mxu0 0.0
  %v8777 = vand.u32 %v8211, 4294901760
  %8778 = vmatpush1.msra.mxu0 %v8777
  %8779 = vmatprep.subr.mxu0 0.0
  %v8780 = vand.u32 %v8212, 4294901760
  %8781 = vmatpush1.msra.mxu0 %v8780
  %8782 = vmatprep.subr.mxu0 0.0
  %v8783 = vand.u32 %v8213, 4294901760
  %8784 = vmatpush1.msra.mxu0 %v8783
  %8785 = vmatprep.subr.mxu0 0.0
  %v8786 = vand.u32 %v8214, 4294901760
  %8787 = vmatpush1.msra.mxu0 %v8786
  %8788 = vmatprep.subr.mxu0 0.0
  %v8789 = vand.u32 %v8215, 4294901760
  %8790 = vmatpush1.msra.mxu0 %v8789
  %8791 = vmatprep.subr.mxu0 0.0
  %v8792 = vand.u32 %v8216, 4294901760
  %8793 = vmatpush1.msra.mxu0 %v8792
  %8794 = vmatprep.subr.mxu0 0.0
  %v8795 = vand.u32 %v8217, 4294901760
  %8796 = vmatpush1.msra.mxu0 %v8795
  %8797 = vmatprep.subr.mxu0 0.0
  %v8798 = vand.u32 %v8218, 4294901760
  %8799 = vmatpush1.msra.mxu0 %v8798
  %8800 = vmatprep.subr.mxu0 0.0
  %v8801 = vand.u32 %v8219, 4294901760
  %8802 = vmatpush1.msra.mxu0 %v8801
  %8803 = vmatprep.subr.mxu0 0.0
  %v8804 = vand.u32 %v8220, 4294901760
  %8805 = vmatpush1.msra.mxu0 %v8804
  %v8806 = vand.u32 %v8188, 4294901760
  %v8807 = vsub.f32 %v8188, %v8806
  %v8808 = vand.u32 %v8807, 4294901760
  %8809 = vmatprep.mubr.f32.mxu0 %v8808
  %v8810 = vand.u32 %v8187, 4294901760
  %v8811 = vsub.f32 %v8187, %v8810
  %v8812 = vand.u32 %v8811, 4294901760
  %8813 = vmatmul.mubr.f32.gmra.mrb[0].mxu0 %v8812
  %v8814 = vpop.f32.mrb[0].mxu0
  %v8815 = vadd.f32 %v8707, %v8814
  %v8816 = vpop.f32.mrb[0].mxu0
  %8817 = vdwg.mxu0
  %8818 = vmatprep.subr.mxu0 0.0
  %v8819 = vand.u32 %v8189, 4294901760
  %v8820 = vsub.f32 %v8189, %v8819
  %v8821 = vand.u32 %v8820, 4294901760
  %8822 = vmatpush1.msra.mxu0 %v8821
  %8823 = vmatprep.subr.mxu0 0.0
  %v8824 = vand.u32 %v8190, 4294901760
  %v8825 = vsub.f32 %v8190, %v8824
  %v8826 = vand.u32 %v8825, 4294901760
  %8827 = vmatpush1.msra.mxu0 %v8826
  %8828 = vmatprep.subr.mxu0 0.0
  %v8829 = vand.u32 %v8191, 4294901760
  %v8830 = vsub.f32 %v8191, %v8829
  %v8831 = vand.u32 %v8830, 4294901760
  %8832 = vmatpush1.msra.mxu0 %v8831
  %8833 = vmatprep.subr.mxu0 0.0
  %v8834 = vand.u32 %v8192, 4294901760
  %v8835 = vsub.f32 %v8192, %v8834
  %v8836 = vand.u32 %v8835, 4294901760
  %8837 = vmatpush1.msra.mxu0 %v8836
  %8838 = vmatprep.subr.mxu0 0.0
  %v8839 = vand.u32 %v8193, 4294901760
  %v8840 = vsub.f32 %v8193, %v8839
  %v8841 = vand.u32 %v8840, 4294901760
  %8842 = vmatpush1.msra.mxu0 %v8841
  %8843 = vmatprep.subr.mxu0 0.0
  %v8844 = vand.u32 %v8194, 4294901760
  %v8845 = vsub.f32 %v8194, %v8844
  %v8846 = vand.u32 %v8845, 4294901760
  %8847 = vmatpush1.msra.mxu0 %v8846
  %8848 = vmatprep.subr.mxu0 0.0
  %v8849 = vand.u32 %v8195, 4294901760
  %v8850 = vsub.f32 %v8195, %v8849
  %v8851 = vand.u32 %v8850, 4294901760
  %8852 = vmatpush1.msra.mxu0 %v8851
  %8853 = vmatprep.subr.mxu0 0.0
  %v8854 = vand.u32 %v8196, 4294901760
  %v8855 = vsub.f32 %v8196, %v8854
  %v8856 = vand.u32 %v8855, 4294901760
  %8857 = vmatpush1.msra.mxu0 %v8856
  %8858 = vmatprep.subr.mxu0 0.0
  %v8859 = vand.u32 %v8197, 4294901760
  %v8860 = vsub.f32 %v8197, %v8859
  %v8861 = vand.u32 %v8860, 4294901760
  %8862 = vmatpush1.msra.mxu0 %v8861
  %8863 = vmatprep.subr.mxu0 0.0
  %v8864 = vand.u32 %v8198, 4294901760
  %v8865 = vsub.f32 %v8198, %v8864
  %v8866 = vand.u32 %v8865, 4294901760
  %8867 = vmatpush1.msra.mxu0 %v8866
  %8868 = vmatprep.subr.mxu0 0.0
  %v8869 = vand.u32 %v8199, 4294901760
  %v8870 = vsub.f32 %v8199, %v8869
  %v8871 = vand.u32 %v8870, 4294901760
  %8872 = vmatpush1.msra.mxu0 %v8871
  %8873 = vmatprep.subr.mxu0 0.0
  %v8874 = vand.u32 %v8200, 4294901760
  %v8875 = vsub.f32 %v8200, %v8874
  %v8876 = vand.u32 %v8875, 4294901760
  %8877 = vmatpush1.msra.mxu0 %v8876
  %8878 = vmatprep.subr.mxu0 0.0
  %v8879 = vand.u32 %v8201, 4294901760
  %v8880 = vsub.f32 %v8201, %v8879
  %v8881 = vand.u32 %v8880, 4294901760
  %8882 = vmatpush1.msra.mxu0 %v8881
  %8883 = vmatprep.subr.mxu0 0.0
  %v8884 = vand.u32 %v8202, 4294901760
  %v8885 = vsub.f32 %v8202, %v8884
  %v8886 = vand.u32 %v8885, 4294901760
  %8887 = vmatpush1.msra.mxu0 %v8886
  %8888 = vmatprep.subr.mxu0 0.0
  %v8889 = vand.u32 %v8203, 4294901760
  %v8890 = vsub.f32 %v8203, %v8889
  %v8891 = vand.u32 %v8890, 4294901760
  %8892 = vmatpush1.msra.mxu0 %v8891
  %8893 = vmatprep.subr.mxu0 0.0
  %v8894 = vand.u32 %v8204, 4294901760
  %v8895 = vsub.f32 %v8204, %v8894
  %v8896 = vand.u32 %v8895, 4294901760
  %8897 = vmatpush1.msra.mxu0 %v8896
  %8898 = vmatprep.subr.mxu0 0.0
  %v8899 = vand.u32 %v8205, 4294901760
  %v8900 = vsub.f32 %v8205, %v8899
  %v8901 = vand.u32 %v8900, 4294901760
  %8902 = vmatpush1.msra.mxu0 %v8901
  %8903 = vmatprep.subr.mxu0 0.0
  %v8904 = vand.u32 %v8206, 4294901760
  %v8905 = vsub.f32 %v8206, %v8904
  %v8906 = vand.u32 %v8905, 4294901760
  %8907 = vmatpush1.msra.mxu0 %v8906
  %8908 = vmatprep.subr.mxu0 0.0
  %v8909 = vand.u32 %v8207, 4294901760
  %v8910 = vsub.f32 %v8207, %v8909
  %v8911 = vand.u32 %v8910, 4294901760
  %8912 = vmatpush1.msra.mxu0 %v8911
  %8913 = vmatprep.subr.mxu0 0.0
  %v8914 = vand.u32 %v8208, 4294901760
  %v8915 = vsub.f32 %v8208, %v8914
  %v8916 = vand.u32 %v8915, 4294901760
  %8917 = vmatpush1.msra.mxu0 %v8916
  %8918 = vmatprep.subr.mxu0 0.0
  %v8919 = vand.u32 %v8209, 4294901760
  %v8920 = vsub.f32 %v8209, %v8919
  %v8921 = vand.u32 %v8920, 4294901760
  %8922 = vmatpush1.msra.mxu0 %v8921
  %8923 = vmatprep.subr.mxu0 0.0
  %v8924 = vand.u32 %v8210, 4294901760
  %v8925 = vsub.f32 %v8210, %v8924
  %v8926 = vand.u32 %v8925, 4294901760
  %8927 = vmatpush1.msra.mxu0 %v8926
  %8928 = vmatprep.subr.mxu0 0.0
  %v8929 = vand.u32 %v8211, 4294901760
  %v8930 = vsub.f32 %v8211, %v8929
  %v8931 = vand.u32 %v8930, 4294901760
  %8932 = vmatpush1.msra.mxu0 %v8931
  %8933 = vmatprep.subr.mxu0 0.0
  %v8934 = vand.u32 %v8212, 4294901760
  %v8935 = vsub.f32 %v8212, %v8934
  %v8936 = vand.u32 %v8935, 4294901760
  %8937 = vmatpush1.msra.mxu0 %v8936
  %8938 = vmatprep.subr.mxu0 0.0
  %v8939 = vand.u32 %v8213, 4294901760
  %v8940 = vsub.f32 %v8213, %v8939
  %v8941 = vand.u32 %v8940, 4294901760
  %8942 = vmatpush1.msra.mxu0 %v8941
  %8943 = vmatprep.subr.mxu0 0.0
  %v8944 = vand.u32 %v8214, 4294901760
  %v8945 = vsub.f32 %v8214, %v8944
  %v8946 = vand.u32 %v8945, 4294901760
  %8947 = vmatpush1.msra.mxu0 %v8946
  %8948 = vmatprep.subr.mxu0 0.0
  %v8949 = vand.u32 %v8215, 4294901760
  %v8950 = vsub.f32 %v8215, %v8949
  %v8951 = vand.u32 %v8950, 4294901760
  %8952 = vmatpush1.msra.mxu0 %v8951
  %8953 = vmatprep.subr.mxu0 0.0
  %v8954 = vand.u32 %v8216, 4294901760
  %v8955 = vsub.f32 %v8216, %v8954
  %v8956 = vand.u32 %v8955, 4294901760
  %8957 = vmatpush1.msra.mxu0 %v8956
  %8958 = vmatprep.subr.mxu0 0.0
  %v8959 = vand.u32 %v8217, 4294901760
  %v8960 = vsub.f32 %v8217, %v8959
  %v8961 = vand.u32 %v8960, 4294901760
  %8962 = vmatpush1.msra.mxu0 %v8961
  %8963 = vmatprep.subr.mxu0 0.0
  %v8964 = vand.u32 %v8218, 4294901760
  %v8965 = vsub.f32 %v8218, %v8964
  %v8966 = vand.u32 %v8965, 4294901760
  %8967 = vmatpush1.msra.mxu0 %v8966
  %8968 = vmatprep.subr.mxu0 0.0
  %v8969 = vand.u32 %v8219, 4294901760
  %v8970 = vsub.f32 %v8219, %v8969
  %v8971 = vand.u32 %v8970, 4294901760
  %8972 = vmatpush1.msra.mxu0 %v8971
  %8973 = vmatprep.subr.mxu0 0.0
  %v8974 = vand.u32 %v8220, 4294901760
  %v8975 = vsub.f32 %v8220, %v8974
  %v8976 = vand.u32 %v8975, 4294901760
  %8977 = vmatpush1.msra.mxu0 %v8976
  %v8978 = vand.u32 %v8188, 4294901760
  %8979 = vmatprep.mubr.f32.mxu0 %v8978
  %v8980 = vand.u32 %v8187, 4294901760
  %8981 = vmatmul.mubr.f32.gmra.mrb[0].mxu0 %v8980
  %v8982 = vpop.f32.mrb[0].mxu0
  %v8983 = vadd.f32 %v8815, %v8982
  %v8984 = vpop.f32.mrb[0].mxu0
  %8985 = vdwg.mxu0
  %8986 = vmatprep.subr.mxu0 0.0
  %v8987 = vand.u32 %v8189, 4294901760
  %8988 = vmatpush1.msra.mxu0 %v8987
  %8989 = vmatprep.subr.mxu0 0.0
  %v8990 = vand.u32 %v8190, 4294901760
  %8991 = vmatpush1.msra.mxu0 %v8990
  %8992 = vmatprep.subr.mxu0 0.0
  %v8993 = vand.u32 %v8191, 4294901760
  %8994 = vmatpush1.msra.mxu0 %v8993
  %8995 = vmatprep.subr.mxu0 0.0
  %v8996 = vand.u32 %v8192, 4294901760
  %8997 = vmatpush1.msra.mxu0 %v8996
  %8998 = vmatprep.subr.mxu0 0.0
  %v8999 = vand.u32 %v8193, 4294901760
  %9000 = vmatpush1.msra.mxu0 %v8999
  %9001 = vmatprep.subr.mxu0 0.0
  %v9002 = vand.u32 %v8194, 4294901760
  %9003 = vmatpush1.msra.mxu0 %v9002
  %9004 = vmatprep.subr.mxu0 0.0
  %v9005 = vand.u32 %v8195, 4294901760
  %9006 = vmatpush1.msra.mxu0 %v9005
  %9007 = vmatprep.subr.mxu0 0.0
  %v9008 = vand.u32 %v8196, 4294901760
  %9009 = vmatpush1.msra.mxu0 %v9008
  %9010 = vmatprep.subr.mxu0 0.0
  %v9011 = vand.u32 %v8197, 4294901760
  %9012 = vmatpush1.msra.mxu0 %v9011
  %9013 = vmatprep.subr.mxu0 0.0
  %v9014 = vand.u32 %v8198, 4294901760
  %9015 = vmatpush1.msra.mxu0 %v9014
  %9016 = vmatprep.subr.mxu0 0.0
  %v9017 = vand.u32 %v8199, 4294901760
  %9018 = vmatpush1.msra.mxu0 %v9017
  %9019 = vmatprep.subr.mxu0 0.0
  %v9020 = vand.u32 %v8200, 4294901760
  %9021 = vmatpush1.msra.mxu0 %v9020
  %9022 = vmatprep.subr.mxu0 0.0
  %v9023 = vand.u32 %v8201, 4294901760
  %9024 = vmatpush1.msra.mxu0 %v9023
  %9025 = vmatprep.subr.mxu0 0.0
  %v9026 = vand.u32 %v8202, 4294901760
  %9027 = vmatpush1.msra.mxu0 %v9026
  %9028 = vmatprep.subr.mxu0 0.0
  %v9029 = vand.u32 %v8203, 4294901760
  %9030 = vmatpush1.msra.mxu0 %v9029
  %9031 = vmatprep.subr.mxu0 0.0
  %v9032 = vand.u32 %v8204, 4294901760
  %9033 = vmatpush1.msra.mxu0 %v9032
  %9034 = vmatprep.subr.mxu0 0.0
  %v9035 = vand.u32 %v8205, 4294901760
  %9036 = vmatpush1.msra.mxu0 %v9035
  %9037 = vmatprep.subr.mxu0 0.0
  %v9038 = vand.u32 %v8206, 4294901760
  %9039 = vmatpush1.msra.mxu0 %v9038
  %9040 = vmatprep.subr.mxu0 0.0
  %v9041 = vand.u32 %v8207, 4294901760
  %9042 = vmatpush1.msra.mxu0 %v9041
  %9043 = vmatprep.subr.mxu0 0.0
  %v9044 = vand.u32 %v8208, 4294901760
  %9045 = vmatpush1.msra.mxu0 %v9044
  %9046 = vmatprep.subr.mxu0 0.0
  %v9047 = vand.u32 %v8209, 4294901760
  %9048 = vmatpush1.msra.mxu0 %v9047
  %9049 = vmatprep.subr.mxu0 0.0
  %v9050 = vand.u32 %v8210, 4294901760
  %9051 = vmatpush1.msra.mxu0 %v9050
  %9052 = vmatprep.subr.mxu0 0.0
  %v9053 = vand.u32 %v8211, 4294901760
  %9054 = vmatpush1.msra.mxu0 %v9053
  %9055 = vmatprep.subr.mxu0 0.0
  %v9056 = vand.u32 %v8212, 4294901760
  %9057 = vmatpush1.msra.mxu0 %v9056
  %9058 = vmatprep.subr.mxu0 0.0
  %v9059 = vand.u32 %v8213, 4294901760
  %9060 = vmatpush1.msra.mxu0 %v9059
  %9061 = vmatprep.subr.mxu0 0.0
  %v9062 = vand.u32 %v8214, 4294901760
  %9063 = vmatpush1.msra.mxu0 %v9062
  %9064 = vmatprep.subr.mxu0 0.0
  %v9065 = vand.u32 %v8215, 4294901760
  %9066 = vmatpush1.msra.mxu0 %v9065
  %9067 = vmatprep.subr.mxu0 0.0
  %v9068 = vand.u32 %v8216, 4294901760
  %9069 = vmatpush1.msra.mxu0 %v9068
  %9070 = vmatprep.subr.mxu0 0.0
  %v9071 = vand.u32 %v8217, 4294901760
  %9072 = vmatpush1.msra.mxu0 %v9071
  %9073 = vmatprep.subr.mxu0 0.0
  %v9074 = vand.u32 %v8218, 4294901760
  %9075 = vmatpush1.msra.mxu0 %v9074
  %9076 = vmatprep.subr.mxu0 0.0
  %v9077 = vand.u32 %v8219, 4294901760
  %9078 = vmatpush1.msra.mxu0 %v9077
  %9079 = vmatprep.subr.mxu0 0.0
  %v9080 = vand.u32 %v8220, 4294901760
  %9081 = vmatpush1.msra.mxu0 %v9080
  %v9082 = vand.u32 %v8188, 4294901760
  %9083 = vmatprep.mubr.f32.mxu0 %v9082
  %v9084 = vand.u32 %v8187, 4294901760
  %9085 = vmatmul.mubr.f32.gmra.mrb[0].mxu0 %v9084
  %v9086 = vpop.f32.mrb[0].mxu0
  %v9087 = vadd.f32 %v8983, %v9086
  %v9088 = vpop.f32.mrb[0].mxu0
  %9089 = vdwg.mxu0
  %9090 = vst [vmem:[%s11] sm:$0x3] %v9087
  // Predicated region
  $region46: #{encoder_forward.1} parent=0 // pred_check
    _
  $region47: #{encoder_forward.1} parent=0 // pred_check_branch
    %9092 = sbr.rel (0) target = $region49
  $region48: #{encoder_forward.1} parent=0 // pred_region
    _
  $region49: #{encoder_forward.1} parent=0 // pred_fallthru
    _
  // Predicated region
  $region50: #{encoder_forward.1} parent=0 // pred_check
    _
  $region51: #{encoder_forward.1} parent=0 // pred_check_branch
    %9094 = sbr.rel (0) target = $region53
  $region52: #{encoder_forward.1} parent=0 // pred_region
    _
  $region53: #{encoder_forward.1} parent=0 // pred_fallthru
    _

</llo_original>
